<compile_context>
chip_gen: v6e
topology: v6e:2x2x1
jax: 0.10.0
libtpu: 0.0.40
codegen_flags: <defaults>
</compile_context>

<pallas_src>
import functools

import jax
import jax.numpy as jnp
from jax.experimental import pallas as pl
from jax.experimental.pallas import tpu as pltpu


# ------------------------------ small helpers ------------------------------

def _round_up(x, m):
    return (x + m - 1) // m * m


def _pick_tile(dim, max_tile):
    """Pad dim up to a multiple of 128 and pick a tile (multiple of 128,
    <= max_tile) that divides the padded dim."""
    dp = _round_up(dim, 128)
    t = min(max_tile, dp)
    while dp % t:
        t -= 128
    return t, dp


def _pad_to(x, shape):
    pads = [(0, s - d) for d, s in zip(x.shape, shape)]
    if all(p[1] == 0 for p in pads):
        return x
    return jnp.pad(x, pads)


# ------------------------- tiled matmul Pallas kernel -----------------------

def _mm_kernel(*refs, relu, has_shortcut):
    if has_shortcut:
        x_ref, w_ref, b_ref, sc_ref, o_ref, acc_ref = refs
    else:
        x_ref, w_ref, b_ref, o_ref, acc_ref = refs
        sc_ref = None
    k = pl.program_id(2)

    @pl.when(k == 0)
    def _():
        acc_ref[...] = jnp.zeros_like(acc_ref)

    acc_ref[...] += jnp.dot(x_ref[...], w_ref[...],
                            preferred_element_type=jnp.float32)

    @pl.when(k == pl.num_programs(2) - 1)
    def _():
        y = acc_ref[...] + b_ref[...]
        if has_shortcut:
            y = y + sc_ref[...]
        if relu:
            y = jnp.maximum(y, 0.0)
        o_ref[...] = y


def matmul_pallas(x, w, b=None, shortcut=None, relu=False):
    """y = relu?( x @ w + b [+ shortcut] ).

    x: (M, K) f32, w: (K, N) f32. bf16 MXU operands, f32 accumulation,
    f32 fused epilogue. Dimensions are zero-padded to lane/tile multiples
    and the result is sliced back to (M, N)."""
    M, K = x.shape
    Kw, N = w.shape
    assert Kw == K

    tm, Mp = _pick_tile(M, 512)
    tk, Kp = _pick_tile(K, 512)
    tn, Np = _pick_tile(N, 256)

    xp = _pad_to(x.astype(jnp.bfloat16), (Mp, Kp))
    wp = _pad_to(w.astype(jnp.bfloat16), (Kp, Np))
    if b is None:
        bp = jnp.zeros((1, Np), jnp.float32)
    else:
        bp = _pad_to(b.reshape(1, N).astype(jnp.float32), (1, Np))

    args = [xp, wp, bp]
    in_specs = [
        pl.BlockSpec((tm, tk), lambda i, j, k: (i, k)),
        pl.BlockSpec((tk, tn), lambda i, j, k: (k, j)),
        pl.BlockSpec((1, tn), lambda i, j, k: (0, j)),
    ]
    has_shortcut = shortcut is not None
    if has_shortcut:
        scp = _pad_to(shortcut.astype(jnp.float32), (Mp, Np))
        args.append(scp)
        in_specs.append(pl.BlockSpec((tm, tn), lambda i, j, k: (i, j)))

    kernel = functools.partial(_mm_kernel, relu=relu, has_shortcut=has_shortcut)
    out = pl.pallas_call(
        kernel,
        out_shape=jax.ShapeDtypeStruct((Mp, Np), jnp.float32),
        grid=(Mp // tm, Np // tn, Kp // tk),
        in_specs=in_specs,
        out_specs=pl.BlockSpec((tm, tn), lambda i, j, k: (i, j)),
        scratch_shapes=[pltpu.VMEM((tm, tn), jnp.float32)],
        compiler_params=pltpu.CompilerParams(
            dimension_semantics=("parallel", "parallel", "arbitrary"),
            vmem_limit_bytes=48 * 1024 * 1024,
        ),
    )(*args)
    return out[:M, :N]


# --------------------- fused tail kernel (pool+head+cls) --------------------

def _tail_kernel(x_ref, hw_ref, hb_ref, cw_ref, cb_ref, o_ref, *, l2norm):
    x = x_ref[...]                               # (B, HW, C)
    pooled = jnp.mean(x, axis=1)                 # (B, C) global average pool
    h = jnp.dot(pooled, hw_ref[...],
                preferred_element_type=jnp.float32) + hb_ref[...]
    if l2norm:
        inv = jax.lax.rsqrt(jnp.sum(h * h, axis=-1, keepdims=True) + 1e-12)
        h = h * inv
    o_ref[...] = jnp.dot(h, cw_ref[...],
                         preferred_element_type=jnp.float32) + cb_ref[...]


def tail_pallas(feat_map, head_w, head_b, cls_w, cls_b, l2norm):
    """Global avg-pool -> head linear -> optional L2 norm -> classifier linear,
    all inside one Pallas kernel (tiny tensors; padded lane-dense to 128)."""
    B, H, W, C = feat_map.shape
    x = feat_map.reshape(B, H * W, C).astype(jnp.float32)
    D = head_w.shape[1]
    O = cls_w.shape[1]
    Dp = _round_up(D, 128)
    Op = _round_up(O, 128)

    hw = _pad_to(head_w.astype(jnp.float32), (C, Dp))
    hb = _pad_to(head_b.reshape(1, D).astype(jnp.float32), (1, Dp))
    cw = _pad_to(cls_w.astype(jnp.float32), (Dp, Op))
    cb = _pad_to(cls_b.reshape(1, O).astype(jnp.float32), (1, Op))

    kernel = functools.partial(_tail_kernel, l2norm=l2norm)
    out = pl.pallas_call(
        kernel,
        out_shape=jax.ShapeDtypeStruct((B, Op), jnp.float32),
        grid=(1,),
        in_specs=[
            pl.BlockSpec((B, H * W, C), lambda i: (0, 0, 0)),
            pl.BlockSpec((C, Dp), lambda i: (0, 0)),
            pl.BlockSpec((1, Dp), lambda i: (0, 0)),
            pl.BlockSpec((Dp, Op), lambda i: (0, 0)),
            pl.BlockSpec((1, Op), lambda i: (0, 0)),
        ],
        out_specs=pl.BlockSpec((B, Op), lambda i: (0, 0)),
    )(x, hw, hb, cw, cb)
    return out[:, :O]


# ------------------------- conv = im2col + Pallas ---------------------------

def _im2col(x_nhwc, kh, kw, stride, pad):
    """Static-stride im2col (strides are Python ints)."""
    x = x_nhwc
    if pad:
        x = jnp.pad(x, ((0, 0), (pad, pad), (pad, pad), (0, 0)))
    N, H, W, C = x.shape
    Ho = (H - kh) // stride + 1
    Wo = (W - kw) // stride + 1
    cols = []
    for i in range(kh):
        for j in range(kw):
            cols.append(x[:, i:i + Ho * stride:stride,
                          j:j + Wo * stride:stride, :])
    patches = jnp.concatenate(cols, axis=-1)           # (N, Ho, Wo, kh*kw*C)
    return patches.reshape(N * Ho * Wo, kh * kw * C), (N, Ho, Wo)


def conv2d_pallas(x_nhwc, w2d, b, kh, kw, stride, pad,
                  relu=False, shortcut_nhwc=None):
    """Conv as im2col + Pallas MXU matmul.  w2d is pre-transposed
    (kh*kw*Cin, O).  Bias / ReLU / residual-add are fused in the epilogue."""
    O = w2d.shape[1]
    patches, (N, Ho, Wo) = _im2col(x_nhwc, kh, kw, stride, pad)
    sc = None
    if shortcut_nhwc is not None:
        sc = shortcut_nhwc.reshape(N * Ho * Wo, O)
    y = matmul_pallas(patches, w2d, b, shortcut=sc, relu=relu)
    return y.reshape(N, Ho, Wo, O)


def basic_block(x, p, stride):
    out = conv2d_pallas(x, p["conv1"], None, 3, 3, stride, 1, relu=True)
    if "down" in p:
        sc = conv2d_pallas(x, p["down"], None, 1, 1, stride, 0, relu=False)
    else:
        sc = x
    # conv2 with residual-add + ReLU fused into the matmul epilogue.
    return conv2d_pallas(out, p["conv2"], None, 3, 3, 1, 1,
                         relu=True, shortcut_nhwc=sc)


# --------------------------- model forward pass -----------------------------

def classifier_forward(x_nchw, params, config):
    att = params["attention"]
    x = jnp.transpose(x_nchw, (0, 2, 3, 1)).astype(jnp.float32)  # NCHW->NHWC
    x = conv2d_pallas(x, att["conv1"], None, 3, 3,
                      config["conv1_stride"], 1, relu=True)
    for si, stage in enumerate(att["stages"]):
        for bi, blk in enumerate(stage):
            stride = config["stage_strides"][si] if bi == 0 else 1
            x = basic_block(x, blk, stride)

    which = config["which_out"]
    head_w, head_b = att["heads"][which // 2]      # only the selected head
    cls_w, cls_b = params["linear"]
    return tail_pallas(x, head_w, head_b, cls_w, cls_b,
                       l2norm=(which % 2 == 1))    # (B, output_size)


# -------------------------------- parameters --------------------------------

def init_params(key, low_dim=(32, 16), output_size=10, base=8,
                conv1_stride=1, which_out=0):
    planes = [base, base * 2, base * 4, base * 8]
    nblocks = [2, 2, 2, 2]
    strides = [1, 2, 2, 2]
    keys = iter(jax.random.split(key, 64))

    def dense_w(shape, scale=0.05):
        return jax.random.normal(next(keys), shape, jnp.float32) * scale

    def conv_w(o, i, kh, kw):
        w = dense_w((o, i, kh, kw))
        # Pre-transpose ONCE to the (kh*kw*Cin, O) matmul layout (matches the
        # im2col tap/channel ordering) so no transpose runs per forward call.
        return jnp.transpose(w, (2, 3, 1, 0)).reshape(kh * kw * i, o)

    att = {"conv1": conv_w(planes[0], 3, 3, 3), "stages": []}
    inpl = planes[0]
    for pidx, (pln, nb) in enumerate(zip(planes, nblocks)):
        stage = []
        for bi in range(nb):
            stride = strides[pidx] if bi == 0 else 1
            blk = {"conv1": conv_w(pln, inpl, 3, 3),
                   "conv2": conv_w(pln, pln, 3, 3)}
            if stride != 1 or inpl != pln:
                blk["down"] = conv_w(pln, inpl, 1, 1)
            stage.append(blk)
            inpl = pln
        att["stages"].append(stage)
    att["heads"] = [(dense_w((planes[-1], d)), jnp.zeros((d,), jnp.float32))
                    for d in low_dim]

    in_size = low_dim[which_out // 2]    # classifier_type=0 -> int input_size
    params = {"attention": att,
              "linear": (dense_w((in_size, output_size)),
                         jnp.zeros((output_size,), jnp.float32))}
    # Static (non-traced) configuration — keeps conv strides out of the jit
    # pytree so all slicing stays static.
    config = {"conv1_stride": conv1_stride,
              "stage_strides": strides,
              "which_out": which_out,
              "low_dim": low_dim}
    return params, config


# ----------------------------------- main ------------------------------------

if __name__ == "__main__":
    key = jax.random.PRNGKey(0)
    kp, kx = jax.random.split(key)

    params, config = init_params(kp, low_dim=(32, 16), output_size=10,
                                 base=8, conv1_stride=1, which_out=0)

    # small input consistent with the module: NCHW image batch
    x = jax.random.normal(kx, (2, 3, 16, 16), jnp.float32)

    fwd = jax.jit(lambda inp, prm: classifier_forward(inp, prm, config))
    out = fwd(x, params)
    jax.block_until_ready(out)

    assert out.shape == (2, 10) and out.dtype == jnp.float32
    print("KERNEL_OK")
</pallas_src>

<mosaic_0001>
module attributes {stable_mosaic.version = 11 : i64} {
  func.func @_mm_kernel(%arg0: i32, %arg1: i32, %arg2: i32, %arg3: memref<512x128xbf16, #tpu.memory_space<vmem>>, %arg4: memref<128x128xbf16, #tpu.memory_space<vmem>>, %arg5: memref<1x128xf32, #tpu.memory_space<vmem>>, %arg6: memref<512x128xf32, #tpu.memory_space<vmem>>, %arg7: memref<512x128xf32, #tpu.memory_space<vmem>>) attributes {dimension_semantics = [#tpu.dimension_semantics<parallel>, #tpu.dimension_semantics<parallel>, #tpu.dimension_semantics<arbitrary>], iteration_bounds = array<i64: 1, 1, 1>, scalar_prefetch = 0 : i64, scratch_operands = 1 : i64, tpu.core_type = #tpu.core_type<tc>, window_params = [{transform_indices = @transform_0, window_bounds = array<i64: 512, 128>}, {transform_indices = @transform_1, window_bounds = array<i64: 128, 128>}, {transform_indices = @transform_2, window_bounds = array<i64: 1, 128>}, {transform_indices = @transform_3, window_bounds = array<i64: 512, 128>}]} {
    %c0_i32 = arith.constant 0 : i32
    %0 = arith.cmpi eq, %arg2, %c0_i32 : i32
    %1 = arith.extui %0 : i1 to i32
    %c0_i32_0 = arith.constant 0 : i32
    %2 = arith.cmpi ne, %1, %c0_i32_0 : i32
    scf.if %2 {
      %cst_10 = arith.constant 0.000000e+00 : f32
      %12 = vector.broadcast %cst_10 : f32 to vector<512x128xf32>
      %c0_11 = arith.constant 0 : index
      %c0_12 = arith.constant 0 : index
      %13 = vector.load %arg7[%c0_11, %c0_12] : memref<512x128xf32, #tpu.memory_space<vmem>>, vector<512x128xf32>
      tpu.vector_store %arg7[%c0_11, %c0_12], %12 {strides = array<i32>} : memref<512x128xf32, #tpu.memory_space<vmem>>, vector<512x128xf32>,
    } else {
    }
    %c0 = arith.constant 0 : index
    %c0_1 = arith.constant 0 : index
    %3 = vector.load %arg7[%c0, %c0_1] : memref<512x128xf32, #tpu.memory_space<vmem>>, vector<512x128xf32>
    %c0_2 = arith.constant 0 : index
    %c0_3 = arith.constant 0 : index
    %4 = vector.load %arg3[%c0_2, %c0_3] : memref<512x128xbf16, #tpu.memory_space<vmem>>, vector<512x128xbf16>
    %c0_4 = arith.constant 0 : index
    %c0_5 = arith.constant 0 : index
    %5 = vector.load %arg4[%c0_4, %c0_5] : memref<128x128xbf16, #tpu.memory_space<vmem>>, vector<128x128xbf16>
    %cst = arith.constant dense<0.000000e+00> : vector<512x128xf32>
    %6 = tpu.matmul %4, %5, %cst {dimension_numbers = #tpu.dot_dimension_numbers<[1], [0], [0], [1], [0, 0, 1, 1], [], []>} : vector<512x128xbf16>, vector<128x128xbf16>, vector<512x128xf32> -> vector<512x128xf32>
    %7 = arith.addf %3, %6 : vector<512x128xf32>
    %c0_6 = arith.constant 0 : index
    %c0_7 = arith.constant 0 : index
    %8 = vector.load %arg7[%c0_6, %c0_7] : memref<512x128xf32, #tpu.memory_space<vmem>>, vector<512x128xf32>
    tpu.vector_store %arg7[%c0_6, %c0_7], %7 {strides = array<i32>} : memref<512x128xf32, #tpu.memory_space<vmem>>, vector<512x128xf32>,
    %c0_i32_8 = arith.constant 0 : i32
    %9 = arith.cmpi eq, %arg2, %c0_i32_8 : i32
    %10 = arith.extui %9 : i1 to i32
    %c0_i32_9 = arith.constant 0 : i32
    %11 = arith.cmpi ne, %10, %c0_i32_9 : i32
    scf.if %11 {
      %c0_10 = arith.constant 0 : index
      %c0_11 = arith.constant 0 : index
      %12 = vector.load %arg7[%c0_10, %c0_11] : memref<512x128xf32, #tpu.memory_space<vmem>>, vector<512x128xf32>
      %c0_12 = arith.constant 0 : index
      %c0_13 = arith.constant 0 : index
      %13 = vector.load %arg5[%c0_12, %c0_13] : memref<1x128xf32, #tpu.memory_space<vmem>>, vector<1x128xf32>
      %14 = vector.broadcast %13 : vector<1x128xf32> to vector<512x128xf32>
      %15 = arith.addf %12, %14 : vector<512x128xf32>
      %cst_14 = arith.constant 0.000000e+00 : f32
      %16 = vector.broadcast %cst_14 : f32 to vector<512x128xf32>
      %17 = arith.maximumf %15, %16 : vector<512x128xf32>
      %c0_15 = arith.constant 0 : index
      %c0_16 = arith.constant 0 : index
      %18 = vector.load %arg6[%c0_15, %c0_16] : memref<512x128xf32, #tpu.memory_space<vmem>>, vector<512x128xf32>
      tpu.vector_store %arg6[%c0_15, %c0_16], %17 {strides = array<i32>} : memref<512x128xf32, #tpu.memory_space<vmem>>, vector<512x128xf32>,
    } else {
    }
    return
  }
  func.func @transform_0(%arg0: i32, %arg1: i32, %arg2: i32) -> (i32, i32) {
    %c0_i32 = arith.constant 0 : i32
    return %arg0, %arg2 : i32, i32
  }
  func.func @transform_1(%arg0: i32, %arg1: i32, %arg2: i32) -> (i32, i32) {
    %c0_i32 = arith.constant 0 : i32
    return %arg2, %arg1 : i32, i32
  }
  func.func @transform_2(%arg0: i32, %arg1: i32, %arg2: i32) -> (i32, i32) {
    %c0_i32 = arith.constant 0 : i32
    %c0_i32_0 = arith.constant 0 : i32
    return %c0_i32, %arg1 : i32, i32
  }
  func.func @transform_3(%arg0: i32, %arg1: i32, %arg2: i32) -> (i32, i32) {
    %c0_i32 = arith.constant 0 : i32
    return %arg0, %arg1 : i32, i32
  }
}

module attributes {stable_mosaic.version = 11 : i64} {
  func.func @_mm_kernel(%arg0: i32, %arg1: i32, %arg2: i32, %arg3: memref<512x128xbf16, #tpu.memory_space<vmem>>, %arg4: memref<128x128xbf16, #tpu.memory_space<vmem>>, %arg5: memref<1x128xf32, #tpu.memory_space<vmem>>, %arg6: memref<512x128xf32, #tpu.memory_space<vmem>>, %arg7: memref<512x128xf32, #tpu.memory_space<vmem>>, %arg8: memref<512x128xf32, #tpu.memory_space<vmem>>) attributes {dimension_semantics = [#tpu.dimension_semantics<parallel>, #tpu.dimension_semantics<parallel>, #tpu.dimension_semantics<arbitrary>], iteration_bounds = array<i64: 1, 1, 1>, scalar_prefetch = 0 : i64, scratch_operands = 1 : i64, tpu.core_type = #tpu.core_type<tc>, window_params = [{transform_indices = @transform_0, window_bounds = array<i64: 512, 128>}, {transform_indices = @transform_1, window_bounds = array<i64: 128, 128>}, {transform_indices = @transform_2, window_bounds = array<i64: 1, 128>}, {transform_indices = @transform_3, window_bounds = array<i64: 512, 128>}, {transform_indices = @transform_4, window_bounds = array<i64: 512, 128>}]} {
    %c0_i32 = arith.constant 0 : i32
    %0 = arith.cmpi eq, %arg2, %c0_i32 : i32
    %1 = arith.extui %0 : i1 to i32
    %c0_i32_0 = arith.constant 0 : i32
    %2 = arith.cmpi ne, %1, %c0_i32_0 : i32
    scf.if %2 {
      %cst_10 = arith.constant 0.000000e+00 : f32
      %12 = vector.broadcast %cst_10 : f32 to vector<512x128xf32>
      %c0_11 = arith.constant 0 : index
      %c0_12 = arith.constant 0 : index
      %13 = vector.load %arg8[%c0_11, %c0_12] : memref<512x128xf32, #tpu.memory_space<vmem>>, vector<512x128xf32>
      tpu.vector_store %arg8[%c0_11, %c0_12], %12 {strides = array<i32>} : memref<512x128xf32, #tpu.memory_space<vmem>>, vector<512x128xf32>,
    } else {
    }
    %c0 = arith.constant 0 : index
    %c0_1 = arith.constant 0 : index
    %3 = vector.load %arg8[%c0, %c0_1] : memref<512x128xf32, #tpu.memory_space<vmem>>, vector<512x128xf32>
    %c0_2 = arith.constant 0 : index
    %c0_3 = arith.constant 0 : index
    %4 = vector.load %arg3[%c0_2, %c0_3] : memref<512x128xbf16, #tpu.memory_space<vmem>>, vector<512x128xbf16>
    %c0_4 = arith.constant 0 : index
    %c0_5 = arith.constant 0 : index
    %5 = vector.load %arg4[%c0_4, %c0_5] : memref<128x128xbf16, #tpu.memory_space<vmem>>, vector<128x128xbf16>
    %cst = arith.constant dense<0.000000e+00> : vector<512x128xf32>
    %6 = tpu.matmul %4, %5, %cst {dimension_numbers = #tpu.dot_dimension_numbers<[1], [0], [0], [1], [0, 0, 1, 1], [], []>} : vector<512x128xbf16>, vector<128x128xbf16>, vector<512x128xf32> -> vector<512x128xf32>
    %7 = arith.addf %3, %6 : vector<512x128xf32>
    %c0_6 = arith.constant 0 : index
    %c0_7 = arith.constant 0 : index
    %8 = vector.load %arg8[%c0_6, %c0_7] : memref<512x128xf32, #tpu.memory_space<vmem>>, vector<512x128xf32>
    tpu.vector_store %arg8[%c0_6, %c0_7], %7 {strides = array<i32>} : memref<512x128xf32, #tpu.memory_space<vmem>>, vector<512x128xf32>,
    %c0_i32_8 = arith.constant 0 : i32
    %9 = arith.cmpi eq, %arg2, %c0_i32_8 : i32
    %10 = arith.extui %9 : i1 to i32
    %c0_i32_9 = arith.constant 0 : i32
    %11 = arith.cmpi ne, %10, %c0_i32_9 : i32
    scf.if %11 {
      %c0_10 = arith.constant 0 : index
      %c0_11 = arith.constant 0 : index
      %12 = vector.load %arg8[%c0_10, %c0_11] : memref<512x128xf32, #tpu.memory_space<vmem>>, vector<512x128xf32>
      %c0_12 = arith.constant 0 : index
      %c0_13 = arith.constant 0 : index
      %13 = vector.load %arg5[%c0_12, %c0_13] : memref<1x128xf32, #tpu.memory_space<vmem>>, vector<1x128xf32>
      %14 = vector.broadcast %13 : vector<1x128xf32> to vector<512x128xf32>
      %15 = arith.addf %12, %14 : vector<512x128xf32>
      %c0_14 = arith.constant 0 : index
      %c0_15 = arith.constant 0 : index
      %16 = vector.load %arg6[%c0_14, %c0_15] : memref<512x128xf32, #tpu.memory_space<vmem>>, vector<512x128xf32>
      %17 = arith.addf %15, %16 : vector<512x128xf32>
      %cst_16 = arith.constant 0.000000e+00 : f32
      %18 = vector.broadcast %cst_16 : f32 to vector<512x128xf32>
      %19 = arith.maximumf %17, %18 : vector<512x128xf32>
      %c0_17 = arith.constant 0 : index
      %c0_18 = arith.constant 0 : index
      %20 = vector.load %arg7[%c0_17, %c0_18] : memref<512x128xf32, #tpu.memory_space<vmem>>, vector<512x128xf32>
      tpu.vector_store %arg7[%c0_17, %c0_18], %19 {strides = array<i32>} : memref<512x128xf32, #tpu.memory_space<vmem>>, vector<512x128xf32>,
    } else {
    }
    return
  }
  func.func @transform_0(%arg0: i32, %arg1: i32, %arg2: i32) -> (i32, i32) {
    %c0_i32 = arith.constant 0 : i32
    return %arg0, %arg2 : i32, i32
  }
  func.func @transform_1(%arg0: i32, %arg1: i32, %arg2: i32) -> (i32, i32) {
    %c0_i32 = arith.constant 0 : i32
    return %arg2, %arg1 : i32, i32
  }
  func.func @transform_2(%arg0: i32, %arg1: i32, %arg2: i32) -> (i32, i32) {
    %c0_i32 = arith.constant 0 : i32
    %c0_i32_0 = arith.constant 0 : i32
    return %c0_i32, %arg1 : i32, i32
  }
  func.func @transform_3(%arg0: i32, %arg1: i32, %arg2: i32) -> (i32, i32) {
    %c0_i32 = arith.constant 0 : i32
    return %arg0, %arg1 : i32, i32
  }
  func.func @transform_4(%arg0: i32, %arg1: i32, %arg2: i32) -> (i32, i32) {
    %c0_i32 = arith.constant 0 : i32
    return %arg0, %arg1 : i32, i32
  }
}

module attributes {stable_mosaic.version = 11 : i64} {
  func.func @_mm_kernel(%arg0: i32, %arg1: i32, %arg2: i32, %arg3: memref<128x128xbf16, #tpu.memory_space<vmem>>, %arg4: memref<128x128xbf16, #tpu.memory_space<vmem>>, %arg5: memref<1x128xf32, #tpu.memory_space<vmem>>, %arg6: memref<128x128xf32, #tpu.memory_space<vmem>>, %arg7: memref<128x128xf32, #tpu.memory_space<vmem>>) attributes {dimension_semantics = [#tpu.dimension_semantics<parallel>, #tpu.dimension_semantics<parallel>, #tpu.dimension_semantics<arbitrary>], iteration_bounds = array<i64: 1, 1, 1>, scalar_prefetch = 0 : i64, scratch_operands = 1 : i64, tpu.core_type = #tpu.core_type<tc>, window_params = [{transform_indices = @transform_0, window_bounds = array<i64: 128, 128>}, {transform_indices = @transform_1, window_bounds = array<i64: 128, 128>}, {transform_indices = @transform_2, window_bounds = array<i64: 1, 128>}, {transform_indices = @transform_3, window_bounds = array<i64: 128, 128>}]} {
    %c0_i32 = arith.constant 0 : i32
    %0 = arith.cmpi eq, %arg2, %c0_i32 : i32
    %1 = arith.extui %0 : i1 to i32
    %c0_i32_0 = arith.constant 0 : i32
    %2 = arith.cmpi ne, %1, %c0_i32_0 : i32
    scf.if %2 {
      %cst_10 = arith.constant 0.000000e+00 : f32
      %12 = vector.broadcast %cst_10 : f32 to vector<128x128xf32>
      %c0_11 = arith.constant 0 : index
      %c0_12 = arith.constant 0 : index
      %13 = vector.load %arg7[%c0_11, %c0_12] : memref<128x128xf32, #tpu.memory_space<vmem>>, vector<128x128xf32>
      tpu.vector_store %arg7[%c0_11, %c0_12], %12 {strides = array<i32>} : memref<128x128xf32, #tpu.memory_space<vmem>>, vector<128x128xf32>,
    } else {
    }
    %c0 = arith.constant 0 : index
    %c0_1 = arith.constant 0 : index
    %3 = vector.load %arg7[%c0, %c0_1] : memref<128x128xf32, #tpu.memory_space<vmem>>, vector<128x128xf32>
    %c0_2 = arith.constant 0 : index
    %c0_3 = arith.constant 0 : index
    %4 = vector.load %arg3[%c0_2, %c0_3] : memref<128x128xbf16, #tpu.memory_space<vmem>>, vector<128x128xbf16>
    %c0_4 = arith.constant 0 : index
    %c0_5 = arith.constant 0 : index
    %5 = vector.load %arg4[%c0_4, %c0_5] : memref<128x128xbf16, #tpu.memory_space<vmem>>, vector<128x128xbf16>
    %cst = arith.constant dense<0.000000e+00> : vector<128x128xf32>
    %6 = tpu.matmul %4, %5, %cst {dimension_numbers = #tpu.dot_dimension_numbers<[1], [0], [0], [1], [0, 0, 1, 1], [], []>} : vector<128x128xbf16>, vector<128x128xbf16>, vector<128x128xf32> -> vector<128x128xf32>
    %7 = arith.addf %3, %6 : vector<128x128xf32>
    %c0_6 = arith.constant 0 : index
    %c0_7 = arith.constant 0 : index
    %8 = vector.load %arg7[%c0_6, %c0_7] : memref<128x128xf32, #tpu.memory_space<vmem>>, vector<128x128xf32>
    tpu.vector_store %arg7[%c0_6, %c0_7], %7 {strides = array<i32>} : memref<128x128xf32, #tpu.memory_space<vmem>>, vector<128x128xf32>,
    %c0_i32_8 = arith.constant 0 : i32
    %9 = arith.cmpi eq, %arg2, %c0_i32_8 : i32
    %10 = arith.extui %9 : i1 to i32
    %c0_i32_9 = arith.constant 0 : i32
    %11 = arith.cmpi ne, %10, %c0_i32_9 : i32
    scf.if %11 {
      %c0_10 = arith.constant 0 : index
      %c0_11 = arith.constant 0 : index
      %12 = vector.load %arg7[%c0_10, %c0_11] : memref<128x128xf32, #tpu.memory_space<vmem>>, vector<128x128xf32>
      %c0_12 = arith.constant 0 : index
      %c0_13 = arith.constant 0 : index
      %13 = vector.load %arg5[%c0_12, %c0_13] : memref<1x128xf32, #tpu.memory_space<vmem>>, vector<1x128xf32>
      %14 = vector.broadcast %13 : vector<1x128xf32> to vector<128x128xf32>
      %15 = arith.addf %12, %14 : vector<128x128xf32>
      %cst_14 = arith.constant 0.000000e+00 : f32
      %16 = vector.broadcast %cst_14 : f32 to vector<128x128xf32>
      %17 = arith.maximumf %15, %16 : vector<128x128xf32>
      %c0_15 = arith.constant 0 : index
      %c0_16 = arith.constant 0 : index
      %18 = vector.load %arg6[%c0_15, %c0_16] : memref<128x128xf32, #tpu.memory_space<vmem>>, vector<128x128xf32>
      tpu.vector_store %arg6[%c0_15, %c0_16], %17 {strides = array<i32>} : memref<128x128xf32, #tpu.memory_space<vmem>>, vector<128x128xf32>,
    } else {
    }
    return
  }
  func.func @transform_0(%arg0: i32, %arg1: i32, %arg2: i32) -> (i32, i32) {
    %c0_i32 = arith.constant 0 : i32
    return %arg0, %arg2 : i32, i32
  }
  func.func @transform_1(%arg0: i32, %arg1: i32, %arg2: i32) -> (i32, i32) {
    %c0_i32 = arith.constant 0 : i32
    return %arg2, %arg1 : i32, i32
  }
  func.func @transform_2(%arg0: i32, %arg1: i32, %arg2: i32) -> (i32, i32) {
    %c0_i32 = arith.constant 0 : i32
    %c0_i32_0 = arith.constant 0 : i32
    return %c0_i32, %arg1 : i32, i32
  }
  func.func @transform_3(%arg0: i32, %arg1: i32, %arg2: i32) -> (i32, i32) {
    %c0_i32 = arith.constant 0 : i32
    return %arg0, %arg1 : i32, i32
  }
}

module attributes {stable_mosaic.version = 11 : i64} {
  func.func @_mm_kernel(%arg0: i32, %arg1: i32, %arg2: i32, %arg3: memref<128x128xbf16, #tpu.memory_space<vmem>>, %arg4: memref<128x128xbf16, #tpu.memory_space<vmem>>, %arg5: memref<1x128xf32, #tpu.memory_space<vmem>>, %arg6: memref<128x128xf32, #tpu.memory_space<vmem>>, %arg7: memref<128x128xf32, #tpu.memory_space<vmem>>) attributes {dimension_semantics = [#tpu.dimension_semantics<parallel>, #tpu.dimension_semantics<parallel>, #tpu.dimension_semantics<arbitrary>], iteration_bounds = array<i64: 1, 1, 1>, scalar_prefetch = 0 : i64, scratch_operands = 1 : i64, tpu.core_type = #tpu.core_type<tc>, window_params = [{transform_indices = @transform_0, window_bounds = array<i64: 128, 128>}, {transform_indices = @transform_1, window_bounds = array<i64: 128, 128>}, {transform_indices = @transform_2, window_bounds = array<i64: 1, 128>}, {transform_indices = @transform_3, window_bounds = array<i64: 128, 128>}]} {
    %c0_i32 = arith.constant 0 : i32
    %0 = arith.cmpi eq, %arg2, %c0_i32 : i32
    %1 = arith.extui %0 : i1 to i32
    %c0_i32_0 = arith.constant 0 : i32
    %2 = arith.cmpi ne, %1, %c0_i32_0 : i32
    scf.if %2 {
      %cst_10 = arith.constant 0.000000e+00 : f32
      %12 = vector.broadcast %cst_10 : f32 to vector<128x128xf32>
      %c0_11 = arith.constant 0 : index
      %c0_12 = arith.constant 0 : index
      %13 = vector.load %arg7[%c0_11, %c0_12] : memref<128x128xf32, #tpu.memory_space<vmem>>, vector<128x128xf32>
      tpu.vector_store %arg7[%c0_11, %c0_12], %12 {strides = array<i32>} : memref<128x128xf32, #tpu.memory_space<vmem>>, vector<128x128xf32>,
    } else {
    }
    %c0 = arith.constant 0 : index
    %c0_1 = arith.constant 0 : index
    %3 = vector.load %arg7[%c0, %c0_1] : memref<128x128xf32, #tpu.memory_space<vmem>>, vector<128x128xf32>
    %c0_2 = arith.constant 0 : index
    %c0_3 = arith.constant 0 : index
    %4 = vector.load %arg3[%c0_2, %c0_3] : memref<128x128xbf16, #tpu.memory_space<vmem>>, vector<128x128xbf16>
    %c0_4 = arith.constant 0 : index
    %c0_5 = arith.constant 0 : index
    %5 = vector.load %arg4[%c0_4, %c0_5] : memref<128x128xbf16, #tpu.memory_space<vmem>>, vector<128x128xbf16>
    %cst = arith.constant dense<0.000000e+00> : vector<128x128xf32>
    %6 = tpu.matmul %4, %5, %cst {dimension_numbers = #tpu.dot_dimension_numbers<[1], [0], [0], [1], [0, 0, 1, 1], [], []>} : vector<128x128xbf16>, vector<128x128xbf16>, vector<128x128xf32> -> vector<128x128xf32>
    %7 = arith.addf %3, %6 : vector<128x128xf32>
    %c0_6 = arith.constant 0 : index
    %c0_7 = arith.constant 0 : index
    %8 = vector.load %arg7[%c0_6, %c0_7] : memref<128x128xf32, #tpu.memory_space<vmem>>, vector<128x128xf32>
    tpu.vector_store %arg7[%c0_6, %c0_7], %7 {strides = array<i32>} : memref<128x128xf32, #tpu.memory_space<vmem>>, vector<128x128xf32>,
    %c0_i32_8 = arith.constant 0 : i32
    %9 = arith.cmpi eq, %arg2, %c0_i32_8 : i32
    %10 = arith.extui %9 : i1 to i32
    %c0_i32_9 = arith.constant 0 : i32
    %11 = arith.cmpi ne, %10, %c0_i32_9 : i32
    scf.if %11 {
      %c0_10 = arith.constant 0 : index
      %c0_11 = arith.constant 0 : index
      %12 = vector.load %arg7[%c0_10, %c0_11] : memref<128x128xf32, #tpu.memory_space<vmem>>, vector<128x128xf32>
      %c0_12 = arith.constant 0 : index
      %c0_13 = arith.constant 0 : index
      %13 = vector.load %arg5[%c0_12, %c0_13] : memref<1x128xf32, #tpu.memory_space<vmem>>, vector<1x128xf32>
      %14 = vector.broadcast %13 : vector<1x128xf32> to vector<128x128xf32>
      %15 = arith.addf %12, %14 : vector<128x128xf32>
      %c0_14 = arith.constant 0 : index
      %c0_15 = arith.constant 0 : index
      %16 = vector.load %arg6[%c0_14, %c0_15] : memref<128x128xf32, #tpu.memory_space<vmem>>, vector<128x128xf32>
      tpu.vector_store %arg6[%c0_14, %c0_15], %15 {strides = array<i32>} : memref<128x128xf32, #tpu.memory_space<vmem>>, vector<128x128xf32>,
    } else {
    }
    return
  }
  func.func @transform_0(%arg0: i32, %arg1: i32, %arg2: i32) -> (i32, i32) {
    %c0_i32 = arith.constant 0 : i32
    return %arg0, %arg2 : i32, i32
  }
  func.func @transform_1(%arg0: i32, %arg1: i32, %arg2: i32) -> (i32, i32) {
    %c0_i32 = arith.constant 0 : i32
    return %arg2, %arg1 : i32, i32
  }
  func.func @transform_2(%arg0: i32, %arg1: i32, %arg2: i32) -> (i32, i32) {
    %c0_i32 = arith.constant 0 : i32
    %c0_i32_0 = arith.constant 0 : i32
    return %c0_i32, %arg1 : i32, i32
  }
  func.func @transform_3(%arg0: i32, %arg1: i32, %arg2: i32) -> (i32, i32) {
    %c0_i32 = arith.constant 0 : i32
    return %arg0, %arg1 : i32, i32
  }
}

module attributes {stable_mosaic.version = 11 : i64} {
  func.func @_mm_kernel(%arg0: i32, %arg1: i32, %arg2: i32, %arg3: memref<128x256xbf16, #tpu.memory_space<vmem>>, %arg4: memref<256x128xbf16, #tpu.memory_space<vmem>>, %arg5: memref<1x128xf32, #tpu.memory_space<vmem>>, %arg6: memref<128x128xf32, #tpu.memory_space<vmem>>, %arg7: memref<128x128xf32, #tpu.memory_space<vmem>>, %arg8: memref<128x128xf32, #tpu.memory_space<vmem>>) attributes {dimension_semantics = [#tpu.dimension_semantics<parallel>, #tpu.dimension_semantics<parallel>, #tpu.dimension_semantics<arbitrary>], iteration_bounds = array<i64: 1, 1, 1>, scalar_prefetch = 0 : i64, scratch_operands = 1 : i64, tpu.core_type = #tpu.core_type<tc>, window_params = [{transform_indices = @transform_0, window_bounds = array<i64: 128, 256>}, {transform_indices = @transform_1, window_bounds = array<i64: 256, 128>}, {transform_indices = @transform_2, window_bounds = array<i64: 1, 128>}, {transform_indices = @transform_3, window_bounds = array<i64: 128, 128>}, {transform_indices = @transform_4, window_bounds = array<i64: 128, 128>}]} {
    %c0_i32 = arith.constant 0 : i32
    %0 = arith.cmpi eq, %arg2, %c0_i32 : i32
    %1 = arith.extui %0 : i1 to i32
    %c0_i32_0 = arith.constant 0 : i32
    %2 = arith.cmpi ne, %1, %c0_i32_0 : i32
    scf.if %2 {
      %cst_10 = arith.constant 0.000000e+00 : f32
      %12 = vector.broadcast %cst_10 : f32 to vector<128x128xf32>
      %c0_11 = arith.constant 0 : index
      %c0_12 = arith.constant 0 : index
      %13 = vector.load %arg8[%c0_11, %c0_12] : memref<128x128xf32, #tpu.memory_space<vmem>>, vector<128x128xf32>
      tpu.vector_store %arg8[%c0_11, %c0_12], %12 {strides = array<i32>} : memref<128x128xf32, #tpu.memory_space<vmem>>, vector<128x128xf32>,
    } else {
    }
    %c0 = arith.constant 0 : index
    %c0_1 = arith.constant 0 : index
    %3 = vector.load %arg8[%c0, %c0_1] : memref<128x128xf32, #tpu.memory_space<vmem>>, vector<128x128xf32>
    %c0_2 = arith.constant 0 : index
    %c0_3 = arith.constant 0 : index
    %4 = vector.load %arg3[%c0_2, %c0_3] : memref<128x256xbf16, #tpu.memory_space<vmem>>, vector<128x256xbf16>
    %c0_4 = arith.constant 0 : index
    %c0_5 = arith.constant 0 : index
    %5 = vector.load %arg4[%c0_4, %c0_5] : memref<256x128xbf16, #tpu.memory_space<vmem>>, vector<256x128xbf16>
    %cst = arith.constant dense<0.000000e+00> : vector<128x128xf32>
    %6 = tpu.matmul %4, %5, %cst {dimension_numbers = #tpu.dot_dimension_numbers<[1], [0], [0], [1], [0, 0, 1, 1], [], []>} : vector<128x256xbf16>, vector<256x128xbf16>, vector<128x128xf32> -> vector<128x128xf32>
    %7 = arith.addf %3, %6 : vector<128x128xf32>
    %c0_6 = arith.constant 0 : index
    %c0_7 = arith.constant 0 : index
    %8 = vector.load %arg8[%c0_6, %c0_7] : memref<128x128xf32, #tpu.memory_space<vmem>>, vector<128x128xf32>
    tpu.vector_store %arg8[%c0_6, %c0_7], %7 {strides = array<i32>} : memref<128x128xf32, #tpu.memory_space<vmem>>, vector<128x128xf32>,
    %c0_i32_8 = arith.constant 0 : i32
    %9 = arith.cmpi eq, %arg2, %c0_i32_8 : i32
    %10 = arith.extui %9 : i1 to i32
    %c0_i32_9 = arith.constant 0 : i32
    %11 = arith.cmpi ne, %10, %c0_i32_9 : i32
    scf.if %11 {
      %c0_10 = arith.constant 0 : index
      %c0_11 = arith.constant 0 : index
      %12 = vector.load %arg8[%c0_10, %c0_11] : memref<128x128xf32, #tpu.memory_space<vmem>>, vector<128x128xf32>
      %c0_12 = arith.constant 0 : index
      %c0_13 = arith.constant 0 : index
      %13 = vector.load %arg5[%c0_12, %c0_13] : memref<1x128xf32, #tpu.memory_space<vmem>>, vector<1x128xf32>
      %14 = vector.broadcast %13 : vector<1x128xf32> to vector<128x128xf32>
      %15 = arith.addf %12, %14 : vector<128x128xf32>
      %c0_14 = arith.constant 0 : index
      %c0_15 = arith.constant 0 : index
      %16 = vector.load %arg6[%c0_14, %c0_15] : memref<128x128xf32, #tpu.memory_space<vmem>>, vector<128x128xf32>
      %17 = arith.addf %15, %16 : vector<128x128xf32>
      %cst_16 = arith.constant 0.000000e+00 : f32
      %18 = vector.broadcast %cst_16 : f32 to vector<128x128xf32>
      %19 = arith.maximumf %17, %18 : vector<128x128xf32>
      %c0_17 = arith.constant 0 : index
      %c0_18 = arith.constant 0 : index
      %20 = vector.load %arg7[%c0_17, %c0_18] : memref<128x128xf32, #tpu.memory_space<vmem>>, vector<128x128xf32>
      tpu.vector_store %arg7[%c0_17, %c0_18], %19 {strides = array<i32>} : memref<128x128xf32, #tpu.memory_space<vmem>>, vector<128x128xf32>,
    } else {
    }
    return
  }
  func.func @transform_0(%arg0: i32, %arg1: i32, %arg2: i32) -> (i32, i32) {
    %c0_i32 = arith.constant 0 : i32
    return %arg0, %arg2 : i32, i32
  }
  func.func @transform_1(%arg0: i32, %arg1: i32, %arg2: i32) -> (i32, i32) {
    %c0_i32 = arith.constant 0 : i32
    return %arg2, %arg1 : i32, i32
  }
  func.func @transform_2(%arg0: i32, %arg1: i32, %arg2: i32) -> (i32, i32) {
    %c0_i32 = arith.constant 0 : i32
    %c0_i32_0 = arith.constant 0 : i32
    return %c0_i32, %arg1 : i32, i32
  }
  func.func @transform_3(%arg0: i32, %arg1: i32, %arg2: i32) -> (i32, i32) {
    %c0_i32 = arith.constant 0 : i32
    return %arg0, %arg1 : i32, i32
  }
  func.func @transform_4(%arg0: i32, %arg1: i32, %arg2: i32) -> (i32, i32) {
    %c0_i32 = arith.constant 0 : i32
    return %arg0, %arg1 : i32, i32
  }
}

module attributes {stable_mosaic.version = 11 : i64} {
  func.func @_mm_kernel(%arg0: i32, %arg1: i32, %arg2: i32, %arg3: memref<128x256xbf16, #tpu.memory_space<vmem>>, %arg4: memref<256x128xbf16, #tpu.memory_space<vmem>>, %arg5: memref<1x128xf32, #tpu.memory_space<vmem>>, %arg6: memref<128x128xf32, #tpu.memory_space<vmem>>, %arg7: memref<128x128xf32, #tpu.memory_space<vmem>>) attributes {dimension_semantics = [#tpu.dimension_semantics<parallel>, #tpu.dimension_semantics<parallel>, #tpu.dimension_semantics<arbitrary>], iteration_bounds = array<i64: 1, 1, 1>, scalar_prefetch = 0 : i64, scratch_operands = 1 : i64, tpu.core_type = #tpu.core_type<tc>, window_params = [{transform_indices = @transform_0, window_bounds = array<i64: 128, 256>}, {transform_indices = @transform_1, window_bounds = array<i64: 256, 128>}, {transform_indices = @transform_2, window_bounds = array<i64: 1, 128>}, {transform_indices = @transform_3, window_bounds = array<i64: 128, 128>}]} {
    %c0_i32 = arith.constant 0 : i32
    %0 = arith.cmpi eq, %arg2, %c0_i32 : i32
    %1 = arith.extui %0 : i1 to i32
    %c0_i32_0 = arith.constant 0 : i32
    %2 = arith.cmpi ne, %1, %c0_i32_0 : i32
    scf.if %2 {
      %cst_10 = arith.constant 0.000000e+00 : f32
      %12 = vector.broadcast %cst_10 : f32 to vector<128x128xf32>
      %c0_11 = arith.constant 0 : index
      %c0_12 = arith.constant 0 : index
      %13 = vector.load %arg7[%c0_11, %c0_12] : memref<128x128xf32, #tpu.memory_space<vmem>>, vector<128x128xf32>
      tpu.vector_store %arg7[%c0_11, %c0_12], %12 {strides = array<i32>} : memref<128x128xf32, #tpu.memory_space<vmem>>, vector<128x128xf32>,
    } else {
    }
    %c0 = arith.constant 0 : index
    %c0_1 = arith.constant 0 : index
    %3 = vector.load %arg7[%c0, %c0_1] : memref<128x128xf32, #tpu.memory_space<vmem>>, vector<128x128xf32>
    %c0_2 = arith.constant 0 : index
    %c0_3 = arith.constant 0 : index
    %4 = vector.load %arg3[%c0_2, %c0_3] : memref<128x256xbf16, #tpu.memory_space<vmem>>, vector<128x256xbf16>
    %c0_4 = arith.constant 0 : index
    %c0_5 = arith.constant 0 : index
    %5 = vector.load %arg4[%c0_4, %c0_5] : memref<256x128xbf16, #tpu.memory_space<vmem>>, vector<256x128xbf16>
    %cst = arith.constant dense<0.000000e+00> : vector<128x128xf32>
    %6 = tpu.matmul %4, %5, %cst {dimension_numbers = #tpu.dot_dimension_numbers<[1], [0], [0], [1], [0, 0, 1, 1], [], []>} : vector<128x256xbf16>, vector<256x128xbf16>, vector<128x128xf32> -> vector<128x128xf32>
    %7 = arith.addf %3, %6 : vector<128x128xf32>
    %c0_6 = arith.constant 0 : index
    %c0_7 = arith.constant 0 : index
    %8 = vector.load %arg7[%c0_6, %c0_7] : memref<128x128xf32, #tpu.memory_space<vmem>>, vector<128x128xf32>
    tpu.vector_store %arg7[%c0_6, %c0_7], %7 {strides = array<i32>} : memref<128x128xf32, #tpu.memory_space<vmem>>, vector<128x128xf32>,
    %c0_i32_8 = arith.constant 0 : i32
    %9 = arith.cmpi eq, %arg2, %c0_i32_8 : i32
    %10 = arith.extui %9 : i1 to i32
    %c0_i32_9 = arith.constant 0 : i32
    %11 = arith.cmpi ne, %10, %c0_i32_9 : i32
    scf.if %11 {
      %c0_10 = arith.constant 0 : index
      %c0_11 = arith.constant 0 : index
      %12 = vector.load %arg7[%c0_10, %c0_11] : memref<128x128xf32, #tpu.memory_space<vmem>>, vector<128x128xf32>
      %c0_12 = arith.constant 0 : index
      %c0_13 = arith.constant 0 : index
      %13 = vector.load %arg5[%c0_12, %c0_13] : memref<1x128xf32, #tpu.memory_space<vmem>>, vector<1x128xf32>
      %14 = vector.broadcast %13 : vector<1x128xf32> to vector<128x128xf32>
      %15 = arith.addf %12, %14 : vector<128x128xf32>
      %cst_14 = arith.constant 0.000000e+00 : f32
      %16 = vector.broadcast %cst_14 : f32 to vector<128x128xf32>
      %17 = arith.maximumf %15, %16 : vector<128x128xf32>
      %c0_15 = arith.constant 0 : index
      %c0_16 = arith.constant 0 : index
      %18 = vector.load %arg6[%c0_15, %c0_16] : memref<128x128xf32, #tpu.memory_space<vmem>>, vector<128x128xf32>
      tpu.vector_store %arg6[%c0_15, %c0_16], %17 {strides = array<i32>} : memref<128x128xf32, #tpu.memory_space<vmem>>, vector<128x128xf32>,
    } else {
    }
    return
  }
  func.func @transform_0(%arg0: i32, %arg1: i32, %arg2: i32) -> (i32, i32) {
    %c0_i32 = arith.constant 0 : i32
    return %arg0, %arg2 : i32, i32
  }
  func.func @transform_1(%arg0: i32, %arg1: i32, %arg2: i32) -> (i32, i32) {
    %c0_i32 = arith.constant 0 : i32
    return %arg2, %arg1 : i32, i32
  }
  func.func @transform_2(%arg0: i32, %arg1: i32, %arg2: i32) -> (i32, i32) {
    %c0_i32 = arith.constant 0 : i32
    %c0_i32_0 = arith.constant 0 : i32
    return %c0_i32, %arg1 : i32, i32
  }
  func.func @transform_3(%arg0: i32, %arg1: i32, %arg2: i32) -> (i32, i32) {
    %c0_i32 = arith.constant 0 : i32
    return %arg0, %arg1 : i32, i32
  }
}

module attributes {stable_mosaic.version = 11 : i64} {
  func.func @_mm_kernel(%arg0: i32, %arg1: i32, %arg2: i32, %arg3: memref<128x384xbf16, #tpu.memory_space<vmem>>, %arg4: memref<384x128xbf16, #tpu.memory_space<vmem>>, %arg5: memref<1x128xf32, #tpu.memory_space<vmem>>, %arg6: memref<128x128xf32, #tpu.memory_space<vmem>>, %arg7: memref<128x128xf32, #tpu.memory_space<vmem>>, %arg8: memref<128x128xf32, #tpu.memory_space<vmem>>) attributes {dimension_semantics = [#tpu.dimension_semantics<parallel>, #tpu.dimension_semantics<parallel>, #tpu.dimension_semantics<arbitrary>], iteration_bounds = array<i64: 1, 1, 1>, scalar_prefetch = 0 : i64, scratch_operands = 1 : i64, tpu.core_type = #tpu.core_type<tc>, window_params = [{transform_indices = @transform_0, window_bounds = array<i64: 128, 384>}, {transform_indices = @transform_1, window_bounds = array<i64: 384, 128>}, {transform_indices = @transform_2, window_bounds = array<i64: 1, 128>}, {transform_indices = @transform_3, window_bounds = array<i64: 128, 128>}, {transform_indices = @transform_4, window_bounds = array<i64: 128, 128>}]} {
    %c0_i32 = arith.constant 0 : i32
    %0 = arith.cmpi eq, %arg2, %c0_i32 : i32
    %1 = arith.extui %0 : i1 to i32
    %c0_i32_0 = arith.constant 0 : i32
    %2 = arith.cmpi ne, %1, %c0_i32_0 : i32
    scf.if %2 {
      %cst_10 = arith.constant 0.000000e+00 : f32
      %12 = vector.broadcast %cst_10 : f32 to vector<128x128xf32>
      %c0_11 = arith.constant 0 : index
      %c0_12 = arith.constant 0 : index
      %13 = vector.load %arg8[%c0_11, %c0_12] : memref<128x128xf32, #tpu.memory_space<vmem>>, vector<128x128xf32>
      tpu.vector_store %arg8[%c0_11, %c0_12], %12 {strides = array<i32>} : memref<128x128xf32, #tpu.memory_space<vmem>>, vector<128x128xf32>,
    } else {
    }
    %c0 = arith.constant 0 : index
    %c0_1 = arith.constant 0 : index
    %3 = vector.load %arg8[%c0, %c0_1] : memref<128x128xf32, #tpu.memory_space<vmem>>, vector<128x128xf32>
    %c0_2 = arith.constant 0 : index
    %c0_3 = arith.constant 0 : index
    %4 = vector.load %arg3[%c0_2, %c0_3] : memref<128x384xbf16, #tpu.memory_space<vmem>>, vector<128x384xbf16>
    %c0_4 = arith.constant 0 : index
    %c0_5 = arith.constant 0 : index
    %5 = vector.load %arg4[%c0_4, %c0_5] : memref<384x128xbf16, #tpu.memory_space<vmem>>, vector<384x128xbf16>
    %cst = arith.constant dense<0.000000e+00> : vector<128x128xf32>
    %6 = tpu.matmul %4, %5, %cst {dimension_numbers = #tpu.dot_dimension_numbers<[1], [0], [0], [1], [0, 0, 1, 1], [], []>} : vector<128x384xbf16>, vector<384x128xbf16>, vector<128x128xf32> -> vector<128x128xf32>
    %7 = arith.addf %3, %6 : vector<128x128xf32>
    %c0_6 = arith.constant 0 : index
    %c0_7 = arith.constant 0 : index
    %8 = vector.load %arg8[%c0_6, %c0_7] : memref<128x128xf32, #tpu.memory_space<vmem>>, vector<128x128xf32>
    tpu.vector_store %arg8[%c0_6, %c0_7], %7 {strides = array<i32>} : memref<128x128xf32, #tpu.memory_space<vmem>>, vector<128x128xf32>,
    %c0_i32_8 = arith.constant 0 : i32
    %9 = arith.cmpi eq, %arg2, %c0_i32_8 : i32
    %10 = arith.extui %9 : i1 to i32
    %c0_i32_9 = arith.constant 0 : i32
    %11 = arith.cmpi ne, %10, %c0_i32_9 : i32
    scf.if %11 {
      %c0_10 = arith.constant 0 : index
      %c0_11 = arith.constant 0 : index
      %12 = vector.load %arg8[%c0_10, %c0_11] : memref<128x128xf32, #tpu.memory_space<vmem>>, vector<128x128xf32>
      %c0_12 = arith.constant 0 : index
      %c0_13 = arith.constant 0 : index
      %13 = vector.load %arg5[%c0_12, %c0_13] : memref<1x128xf32, #tpu.memory_space<vmem>>, vector<1x128xf32>
      %14 = vector.broadcast %13 : vector<1x128xf32> to vector<128x128xf32>
      %15 = arith.addf %12, %14 : vector<128x128xf32>
      %c0_14 = arith.constant 0 : index
      %c0_15 = arith.constant 0 : index
      %16 = vector.load %arg6[%c0_14, %c0_15] : memref<128x128xf32, #tpu.memory_space<vmem>>, vector<128x128xf32>
      %17 = arith.addf %15, %16 : vector<128x128xf32>
      %cst_16 = arith.constant 0.000000e+00 : f32
      %18 = vector.broadcast %cst_16 : f32 to vector<128x128xf32>
      %19 = arith.maximumf %17, %18 : vector<128x128xf32>
      %c0_17 = arith.constant 0 : index
      %c0_18 = arith.constant 0 : index
      %20 = vector.load %arg7[%c0_17, %c0_18] : memref<128x128xf32, #tpu.memory_space<vmem>>, vector<128x128xf32>
      tpu.vector_store %arg7[%c0_17, %c0_18], %19 {strides = array<i32>} : memref<128x128xf32, #tpu.memory_space<vmem>>, vector<128x128xf32>,
    } else {
    }
    return
  }
  func.func @transform_0(%arg0: i32, %arg1: i32, %arg2: i32) -> (i32, i32) {
    %c0_i32 = arith.constant 0 : i32
    return %arg0, %arg2 : i32, i32
  }
  func.func @transform_1(%arg0: i32, %arg1: i32, %arg2: i32) -> (i32, i32) {
    %c0_i32 = arith.constant 0 : i32
    return %arg2, %arg1 : i32, i32
  }
  func.func @transform_2(%arg0: i32, %arg1: i32, %arg2: i32) -> (i32, i32) {
    %c0_i32 = arith.constant 0 : i32
    %c0_i32_0 = arith.constant 0 : i32
    return %c0_i32, %arg1 : i32, i32
  }
  func.func @transform_3(%arg0: i32, %arg1: i32, %arg2: i32) -> (i32, i32) {
    %c0_i32 = arith.constant 0 : i32
    return %arg0, %arg1 : i32, i32
  }
  func.func @transform_4(%arg0: i32, %arg1: i32, %arg2: i32) -> (i32, i32) {
    %c0_i32 = arith.constant 0 : i32
    return %arg0, %arg1 : i32, i32
  }
}

module attributes {stable_mosaic.version = 11 : i64} {
  func.func @_mm_kernel(%arg0: i32, %arg1: i32, %arg2: i32, %arg3: memref<128x384xbf16, #tpu.memory_space<vmem>>, %arg4: memref<384x128xbf16, #tpu.memory_space<vmem>>, %arg5: memref<1x128xf32, #tpu.memory_space<vmem>>, %arg6: memref<128x128xf32, #tpu.memory_space<vmem>>, %arg7: memref<128x128xf32, #tpu.memory_space<vmem>>) attributes {dimension_semantics = [#tpu.dimension_semantics<parallel>, #tpu.dimension_semantics<parallel>, #tpu.dimension_semantics<arbitrary>], iteration_bounds = array<i64: 1, 1, 1>, scalar_prefetch = 0 : i64, scratch_operands = 1 : i64, tpu.core_type = #tpu.core_type<tc>, window_params = [{transform_indices = @transform_0, window_bounds = array<i64: 128, 384>}, {transform_indices = @transform_1, window_bounds = array<i64: 384, 128>}, {transform_indices = @transform_2, window_bounds = array<i64: 1, 128>}, {transform_indices = @transform_3, window_bounds = array<i64: 128, 128>}]} {
    %c0_i32 = arith.constant 0 : i32
    %0 = arith.cmpi eq, %arg2, %c0_i32 : i32
    %1 = arith.extui %0 : i1 to i32
    %c0_i32_0 = arith.constant 0 : i32
    %2 = arith.cmpi ne, %1, %c0_i32_0 : i32
    scf.if %2 {
      %cst_10 = arith.constant 0.000000e+00 : f32
      %12 = vector.broadcast %cst_10 : f32 to vector<128x128xf32>
      %c0_11 = arith.constant 0 : index
      %c0_12 = arith.constant 0 : index
      %13 = vector.load %arg7[%c0_11, %c0_12] : memref<128x128xf32, #tpu.memory_space<vmem>>, vector<128x128xf32>
      tpu.vector_store %arg7[%c0_11, %c0_12], %12 {strides = array<i32>} : memref<128x128xf32, #tpu.memory_space<vmem>>, vector<128x128xf32>,
    } else {
    }
    %c0 = arith.constant 0 : index
    %c0_1 = arith.constant 0 : index
    %3 = vector.load %arg7[%c0, %c0_1] : memref<128x128xf32, #tpu.memory_space<vmem>>, vector<128x128xf32>
    %c0_2 = arith.constant 0 : index
    %c0_3 = arith.constant 0 : index
    %4 = vector.load %arg3[%c0_2, %c0_3] : memref<128x384xbf16, #tpu.memory_space<vmem>>, vector<128x384xbf16>
    %c0_4 = arith.constant 0 : index
    %c0_5 = arith.constant 0 : index
    %5 = vector.load %arg4[%c0_4, %c0_5] : memref<384x128xbf16, #tpu.memory_space<vmem>>, vector<384x128xbf16>
    %cst = arith.constant dense<0.000000e+00> : vector<128x128xf32>
    %6 = tpu.matmul %4, %5, %cst {dimension_numbers = #tpu.dot_dimension_numbers<[1], [0], [0], [1], [0, 0, 1, 1], [], []>} : vector<128x384xbf16>, vector<384x128xbf16>, vector<128x128xf32> -> vector<128x128xf32>
    %7 = arith.addf %3, %6 : vector<128x128xf32>
    %c0_6 = arith.constant 0 : index
    %c0_7 = arith.constant 0 : index
    %8 = vector.load %arg7[%c0_6, %c0_7] : memref<128x128xf32, #tpu.memory_space<vmem>>, vector<128x128xf32>
    tpu.vector_store %arg7[%c0_6, %c0_7], %7 {strides = array<i32>} : memref<128x128xf32, #tpu.memory_space<vmem>>, vector<128x128xf32>,
    %c0_i32_8 = arith.constant 0 : i32
    %9 = arith.cmpi eq, %arg2, %c0_i32_8 : i32
    %10 = arith.extui %9 : i1 to i32
    %c0_i32_9 = arith.constant 0 : i32
    %11 = arith.cmpi ne, %10, %c0_i32_9 : i32
    scf.if %11 {
      %c0_10 = arith.constant 0 : index
      %c0_11 = arith.constant 0 : index
      %12 = vector.load %arg7[%c0_10, %c0_11] : memref<128x128xf32, #tpu.memory_space<vmem>>, vector<128x128xf32>
      %c0_12 = arith.constant 0 : index
      %c0_13 = arith.constant 0 : index
      %13 = vector.load %arg5[%c0_12, %c0_13] : memref<1x128xf32, #tpu.memory_space<vmem>>, vector<1x128xf32>
      %14 = vector.broadcast %13 : vector<1x128xf32> to vector<128x128xf32>
      %15 = arith.addf %12, %14 : vector<128x128xf32>
      %cst_14 = arith.constant 0.000000e+00 : f32
      %16 = vector.broadcast %cst_14 : f32 to vector<128x128xf32>
      %17 = arith.maximumf %15, %16 : vector<128x128xf32>
      %c0_15 = arith.constant 0 : index
      %c0_16 = arith.constant 0 : index
      %18 = vector.load %arg6[%c0_15, %c0_16] : memref<128x128xf32, #tpu.memory_space<vmem>>, vector<128x128xf32>
      tpu.vector_store %arg6[%c0_15, %c0_16], %17 {strides = array<i32>} : memref<128x128xf32, #tpu.memory_space<vmem>>, vector<128x128xf32>,
    } else {
    }
    return
  }
  func.func @transform_0(%arg0: i32, %arg1: i32, %arg2: i32) -> (i32, i32) {
    %c0_i32 = arith.constant 0 : i32
    return %arg0, %arg2 : i32, i32
  }
  func.func @transform_1(%arg0: i32, %arg1: i32, %arg2: i32) -> (i32, i32) {
    %c0_i32 = arith.constant 0 : i32
    return %arg2, %arg1 : i32, i32
  }
  func.func @transform_2(%arg0: i32, %arg1: i32, %arg2: i32) -> (i32, i32) {
    %c0_i32 = arith.constant 0 : i32
    %c0_i32_0 = arith.constant 0 : i32
    return %c0_i32, %arg1 : i32, i32
  }
  func.func @transform_3(%arg0: i32, %arg1: i32, %arg2: i32) -> (i32, i32) {
    %c0_i32 = arith.constant 0 : i32
    return %arg0, %arg1 : i32, i32
  }
}

module attributes {stable_mosaic.version = 11 : i64} {
  func.func @_mm_kernel(%arg0: i32, %arg1: i32, %arg2: i32, %arg3: memref<128x128xbf16, #tpu.memory_space<vmem>>, %arg4: memref<128x128xbf16, #tpu.memory_space<vmem>>, %arg5: memref<1x128xf32, #tpu.memory_space<vmem>>, %arg6: memref<128x128xf32, #tpu.memory_space<vmem>>, %arg7: memref<128x128xf32, #tpu.memory_space<vmem>>, %arg8: memref<128x128xf32, #tpu.memory_space<vmem>>) attributes {dimension_semantics = [#tpu.dimension_semantics<parallel>, #tpu.dimension_semantics<parallel>, #tpu.dimension_semantics<arbitrary>], iteration_bounds = array<i64: 1, 1, 5>, scalar_prefetch = 0 : i64, scratch_operands = 1 : i64, tpu.core_type = #tpu.core_type<tc>, window_params = [{transform_indices = @transform_0, window_bounds = array<i64: 128, 128>}, {transform_indices = @transform_1, window_bounds = array<i64: 128, 128>}, {transform_indices = @transform_2, window_bounds = array<i64: 1, 128>}, {transform_indices = @transform_3, window_bounds = array<i64: 128, 128>}, {transform_indices = @transform_4, window_bounds = array<i64: 128, 128>}]} {
    %c0_i32 = arith.constant 0 : i32
    %0 = arith.cmpi eq, %arg2, %c0_i32 : i32
    %1 = arith.extui %0 : i1 to i32
    %c0_i32_0 = arith.constant 0 : i32
    %2 = arith.cmpi ne, %1, %c0_i32_0 : i32
    scf.if %2 {
      %cst_9 = arith.constant 0.000000e+00 : f32
      %12 = vector.broadcast %cst_9 : f32 to vector<128x128xf32>
      %c0_10 = arith.constant 0 : index
      %c0_11 = arith.constant 0 : index
      %13 = vector.load %arg8[%c0_10, %c0_11] : memref<128x128xf32, #tpu.memory_space<vmem>>, vector<128x128xf32>
      tpu.vector_store %arg8[%c0_10, %c0_11], %12 {strides = array<i32>} : memref<128x128xf32, #tpu.memory_space<vmem>>, vector<128x128xf32>,
    } else {
    }
    %c0 = arith.constant 0 : index
    %c0_1 = arith.constant 0 : index
    %3 = vector.load %arg8[%c0, %c0_1] : memref<128x128xf32, #tpu.memory_space<vmem>>, vector<128x128xf32>
    %c0_2 = arith.constant 0 : index
    %c0_3 = arith.constant 0 : index
    %4 = vector.load %arg3[%c0_2, %c0_3] : memref<128x128xbf16, #tpu.memory_space<vmem>>, vector<128x128xbf16>
    %c0_4 = arith.constant 0 : index
    %c0_5 = arith.constant 0 : index
    %5 = vector.load %arg4[%c0_4, %c0_5] : memref<128x128xbf16, #tpu.memory_space<vmem>>, vector<128x128xbf16>
    %cst = arith.constant dense<0.000000e+00> : vector<128x128xf32>
    %6 = tpu.matmul %4, %5, %cst {dimension_numbers = #tpu.dot_dimension_numbers<[1], [0], [0], [1], [0, 0, 1, 1], [], []>} : vector<128x128xbf16>, vector<128x128xbf16>, vector<128x128xf32> -> vector<128x128xf32>
    %7 = arith.addf %3, %6 : vector<128x128xf32>
    %c0_6 = arith.constant 0 : index
    %c0_7 = arith.constant 0 : index
    %8 = vector.load %arg8[%c0_6, %c0_7] : memref<128x128xf32, #tpu.memory_space<vmem>>, vector<128x128xf32>
    tpu.vector_store %arg8[%c0_6, %c0_7], %7 {strides = array<i32>} : memref<128x128xf32, #tpu.memory_space<vmem>>, vector<128x128xf32>,
    %c4_i32 = arith.constant 4 : i32
    %9 = arith.cmpi eq, %arg2, %c4_i32 : i32
    %10 = arith.extui %9 : i1 to i32
    %c0_i32_8 = arith.constant 0 : i32
    %11 = arith.cmpi ne, %10, %c0_i32_8 : i32
    scf.if %11 {
      %c0_9 = arith.constant 0 : index
      %c0_10 = arith.constant 0 : index
      %12 = vector.load %arg8[%c0_9, %c0_10] : memref<128x128xf32, #tpu.memory_space<vmem>>, vector<128x128xf32>
      %c0_11 = arith.constant 0 : index
      %c0_12 = arith.constant 0 : index
      %13 = vector.load %arg5[%c0_11, %c0_12] : memref<1x128xf32, #tpu.memory_space<vmem>>, vector<1x128xf32>
      %14 = vector.broadcast %13 : vector<1x128xf32> to vector<128x128xf32>
      %15 = arith.addf %12, %14 : vector<128x128xf32>
      %c0_13 = arith.constant 0 : index
      %c0_14 = arith.constant 0 : index
      %16 = vector.load %arg6[%c0_13, %c0_14] : memref<128x128xf32, #tpu.memory_space<vmem>>, vector<128x128xf32>
      %17 = arith.addf %15, %16 : vector<128x128xf32>
      %cst_15 = arith.constant 0.000000e+00 : f32
      %18 = vector.broadcast %cst_15 : f32 to vector<128x128xf32>
      %19 = arith.maximumf %17, %18 : vector<128x128xf32>
      %c0_16 = arith.constant 0 : index
      %c0_17 = arith.constant 0 : index
      %20 = vector.load %arg7[%c0_16, %c0_17] : memref<128x128xf32, #tpu.memory_space<vmem>>, vector<128x128xf32>
      tpu.vector_store %arg7[%c0_16, %c0_17], %19 {strides = array<i32>} : memref<128x128xf32, #tpu.memory_space<vmem>>, vector<128x128xf32>,
    } else {
    }
    return
  }
  func.func @transform_0(%arg0: i32, %arg1: i32, %arg2: i32) -> (i32, i32) {
    %c0_i32 = arith.constant 0 : i32
    return %arg0, %arg2 : i32, i32
  }
  func.func @transform_1(%arg0: i32, %arg1: i32, %arg2: i32) -> (i32, i32) {
    %c0_i32 = arith.constant 0 : i32
    return %arg2, %arg1 : i32, i32
  }
  func.func @transform_2(%arg0: i32, %arg1: i32, %arg2: i32) -> (i32, i32) {
    %c0_i32 = arith.constant 0 : i32
    %c0_i32_0 = arith.constant 0 : i32
    return %c0_i32, %arg1 : i32, i32
  }
  func.func @transform_3(%arg0: i32, %arg1: i32, %arg2: i32) -> (i32, i32) {
    %c0_i32 = arith.constant 0 : i32
    return %arg0, %arg1 : i32, i32
  }
  func.func @transform_4(%arg0: i32, %arg1: i32, %arg2: i32) -> (i32, i32) {
    %c0_i32 = arith.constant 0 : i32
    return %arg0, %arg1 : i32, i32
  }
}

module attributes {stable_mosaic.version = 11 : i64} {
  func.func @_mm_kernel(%arg0: i32, %arg1: i32, %arg2: i32, %arg3: memref<128x128xbf16, #tpu.memory_space<vmem>>, %arg4: memref<128x128xbf16, #tpu.memory_space<vmem>>, %arg5: memref<1x128xf32, #tpu.memory_space<vmem>>, %arg6: memref<128x128xf32, #tpu.memory_space<vmem>>, %arg7: memref<128x128xf32, #tpu.memory_space<vmem>>) attributes {dimension_semantics = [#tpu.dimension_semantics<parallel>, #tpu.dimension_semantics<parallel>, #tpu.dimension_semantics<arbitrary>], iteration_bounds = array<i64: 1, 1, 5>, scalar_prefetch = 0 : i64, scratch_operands = 1 : i64, tpu.core_type = #tpu.core_type<tc>, window_params = [{transform_indices = @transform_0, window_bounds = array<i64: 128, 128>}, {transform_indices = @transform_1, window_bounds = array<i64: 128, 128>}, {transform_indices = @transform_2, window_bounds = array<i64: 1, 128>}, {transform_indices = @transform_3, window_bounds = array<i64: 128, 128>}]} {
    %c0_i32 = arith.constant 0 : i32
    %0 = arith.cmpi eq, %arg2, %c0_i32 : i32
    %1 = arith.extui %0 : i1 to i32
    %c0_i32_0 = arith.constant 0 : i32
    %2 = arith.cmpi ne, %1, %c0_i32_0 : i32
    scf.if %2 {
      %cst_9 = arith.constant 0.000000e+00 : f32
      %12 = vector.broadcast %cst_9 : f32 to vector<128x128xf32>
      %c0_10 = arith.constant 0 : index
      %c0_11 = arith.constant 0 : index
      %13 = vector.load %arg7[%c0_10, %c0_11] : memref<128x128xf32, #tpu.memory_space<vmem>>, vector<128x128xf32>
      tpu.vector_store %arg7[%c0_10, %c0_11], %12 {strides = array<i32>} : memref<128x128xf32, #tpu.memory_space<vmem>>, vector<128x128xf32>,
    } else {
    }
    %c0 = arith.constant 0 : index
    %c0_1 = arith.constant 0 : index
    %3 = vector.load %arg7[%c0, %c0_1] : memref<128x128xf32, #tpu.memory_space<vmem>>, vector<128x128xf32>
    %c0_2 = arith.constant 0 : index
    %c0_3 = arith.constant 0 : index
    %4 = vector.load %arg3[%c0_2, %c0_3] : memref<128x128xbf16, #tpu.memory_space<vmem>>, vector<128x128xbf16>
    %c0_4 = arith.constant 0 : index
    %c0_5 = arith.constant 0 : index
    %5 = vector.load %arg4[%c0_4, %c0_5] : memref<128x128xbf16, #tpu.memory_space<vmem>>, vector<128x128xbf16>
    %cst = arith.constant dense<0.000000e+00> : vector<128x128xf32>
    %6 = tpu.matmul %4, %5, %cst {dimension_numbers = #tpu.dot_dimension_numbers<[1], [0], [0], [1], [0, 0, 1, 1], [], []>} : vector<128x128xbf16>, vector<128x128xbf16>, vector<128x128xf32> -> vector<128x128xf32>
    %7 = arith.addf %3, %6 : vector<128x128xf32>
    %c0_6 = arith.constant 0 : index
    %c0_7 = arith.constant 0 : index
    %8 = vector.load %arg7[%c0_6, %c0_7] : memref<128x128xf32, #tpu.memory_space<vmem>>, vector<128x128xf32>
    tpu.vector_store %arg7[%c0_6, %c0_7], %7 {strides = array<i32>} : memref<128x128xf32, #tpu.memory_space<vmem>>, vector<128x128xf32>,
    %c4_i32 = arith.constant 4 : i32
    %9 = arith.cmpi eq, %arg2, %c4_i32 : i32
    %10 = arith.extui %9 : i1 to i32
    %c0_i32_8 = arith.constant 0 : i32
    %11 = arith.cmpi ne, %10, %c0_i32_8 : i32
    scf.if %11 {
      %c0_9 = arith.constant 0 : index
      %c0_10 = arith.constant 0 : index
      %12 = vector.load %arg7[%c0_9, %c0_10] : memref<128x128xf32, #tpu.memory_space<vmem>>, vector<128x128xf32>
      %c0_11 = arith.constant 0 : index
      %c0_12 = arith.constant 0 : index
      %13 = vector.load %arg5[%c0_11, %c0_12] : memref<1x128xf32, #tpu.memory_space<vmem>>, vector<1x128xf32>
      %14 = vector.broadcast %13 : vector<1x128xf32> to vector<128x128xf32>
      %15 = arith.addf %12, %14 : vector<128x128xf32>
      %cst_13 = arith.constant 0.000000e+00 : f32
      %16 = vector.broadcast %cst_13 : f32 to vector<128x128xf32>
      %17 = arith.maximumf %15, %16 : vector<128x128xf32>
      %c0_14 = arith.constant 0 : index
      %c0_15 = arith.constant 0 : index
      %18 = vector.load %arg6[%c0_14, %c0_15] : memref<128x128xf32, #tpu.memory_space<vmem>>, vector<128x128xf32>
      tpu.vector_store %arg6[%c0_14, %c0_15], %17 {strides = array<i32>} : memref<128x128xf32, #tpu.memory_space<vmem>>, vector<128x128xf32>,
    } else {
    }
    return
  }
  func.func @transform_0(%arg0: i32, %arg1: i32, %arg2: i32) -> (i32, i32) {
    %c0_i32 = arith.constant 0 : i32
    return %arg0, %arg2 : i32, i32
  }
  func.func @transform_1(%arg0: i32, %arg1: i32, %arg2: i32) -> (i32, i32) {
    %c0_i32 = arith.constant 0 : i32
    return %arg2, %arg1 : i32, i32
  }
  func.func @transform_2(%arg0: i32, %arg1: i32, %arg2: i32) -> (i32, i32) {
    %c0_i32 = arith.constant 0 : i32
    %c0_i32_0 = arith.constant 0 : i32
    return %c0_i32, %arg1 : i32, i32
  }
  func.func @transform_3(%arg0: i32, %arg1: i32, %arg2: i32) -> (i32, i32) {
    %c0_i32 = arith.constant 0 : i32
    return %arg0, %arg1 : i32, i32
  }
}

module attributes {stable_mosaic.version = 11 : i64} {
  func.func @_tail_kernel(%arg0: i32, %arg1: memref<2x4x64xf32, #tpu.memory_space<vmem>>, %arg2: memref<64x128xf32, #tpu.memory_space<vmem>>, %arg3: memref<1x128xf32, #tpu.memory_space<vmem>>, %arg4: memref<128x128xf32, #tpu.memory_space<vmem>>, %arg5: memref<1x128xf32, #tpu.memory_space<vmem>>, %arg6: memref<2x128xf32, #tpu.memory_space<vmem>>) attributes {dimension_semantics = [#tpu.dimension_semantics<arbitrary>], iteration_bounds = array<i64: 1>, scalar_prefetch = 0 : i64, scratch_operands = 0 : i64, tpu.core_type = #tpu.core_type<tc>, window_params = [{pipeline_mode = #tpu.pipeline_mode<synchronous>, transform_indices = @transform_0, window_bounds = array<i64: 2, 4, 64>}, {pipeline_mode = #tpu.pipeline_mode<synchronous>, transform_indices = @transform_1, window_bounds = array<i64: 64, 128>}, {pipeline_mode = #tpu.pipeline_mode<synchronous>, transform_indices = @transform_2, window_bounds = array<i64: 1, 128>}, {pipeline_mode = #tpu.pipeline_mode<synchronous>, transform_indices = @transform_3, window_bounds = array<i64: 128, 128>}, {pipeline_mode = #tpu.pipeline_mode<synchronous>, transform_indices = @transform_4, window_bounds = array<i64: 1, 128>}, {pipeline_mode = #tpu.pipeline_mode<synchronous>, transform_indices = @transform_5, window_bounds = array<i64: 2, 128>}]} {
    %c0 = arith.constant 0 : index
    %c0_0 = arith.constant 0 : index
    %c0_1 = arith.constant 0 : index
    %0 = vector.load %arg1[%c0, %c0_0, %c0_1] : memref<2x4x64xf32, #tpu.memory_space<vmem>>, vector<2x4x64xf32>
    %cst = arith.constant dense<0.000000e+00> : vector<2x64xf32>
    %1 = vector.multi_reduction <add>, %0, %cst [1] : vector<2x4x64xf32> to vector<2x64xf32>
    %cst_2 = arith.constant 4.000000e+00 : f32
    %2 = vector.broadcast %cst_2 : f32 to vector<2x64xf32>
    %3 = arith.divf %1, %2 : vector<2x64xf32>
    %c0_3 = arith.constant 0 : index
    %c0_4 = arith.constant 0 : index
    %4 = vector.load %arg2[%c0_3, %c0_4] : memref<64x128xf32, #tpu.memory_space<vmem>>, vector<64x128xf32>
    %cst_5 = arith.constant dense<0.000000e+00> : vector<2x128xf32>
    %5 = tpu.matmul %3, %4, %cst_5 {dimension_numbers = #tpu.dot_dimension_numbers<[1], [0], [0], [1], [0, 0, 1, 1], [], []>} : vector<2x64xf32>, vector<64x128xf32>, vector<2x128xf32> -> vector<2x128xf32>
    %c0_6 = arith.constant 0 : index
    %c0_7 = arith.constant 0 : index
    %6 = vector.load %arg3[%c0_6, %c0_7] : memref<1x128xf32, #tpu.memory_space<vmem>>, vector<1x128xf32>
    %7 = vector.broadcast %6 : vector<1x128xf32> to vector<2x128xf32>
    %8 = arith.addf %5, %7 : vector<2x128xf32>
    %c0_8 = arith.constant 0 : index
    %c0_9 = arith.constant 0 : index
    %9 = vector.load %arg4[%c0_8, %c0_9] : memref<128x128xf32, #tpu.memory_space<vmem>>, vector<128x128xf32>
    %cst_10 = arith.constant dense<0.000000e+00> : vector<2x128xf32>
    %10 = tpu.matmul %8, %9, %cst_10 {dimension_numbers = #tpu.dot_dimension_numbers<[1], [0], [0], [1], [0, 0, 1, 1], [], []>} : vector<2x128xf32>, vector<128x128xf32>, vector<2x128xf32> -> vector<2x128xf32>
    %c0_11 = arith.constant 0 : index
    %c0_12 = arith.constant 0 : index
    %11 = vector.load %arg5[%c0_11, %c0_12] : memref<1x128xf32, #tpu.memory_space<vmem>>, vector<1x128xf32>
    %12 = vector.broadcast %11 : vector<1x128xf32> to vector<2x128xf32>
    %13 = arith.addf %10, %12 : vector<2x128xf32>
    %c0_13 = arith.constant 0 : index
    %c0_14 = arith.constant 0 : index
    %14 = vector.load %arg6[%c0_13, %c0_14] : memref<2x128xf32, #tpu.memory_space<vmem>>, vector<2x128xf32>
    tpu.vector_store %arg6[%c0_13, %c0_14], %13 {strides = array<i32>} : memref<2x128xf32, #tpu.memory_space<vmem>>, vector<2x128xf32>,
    return
  }
  func.func @transform_0(%arg0: i32) -> (i32, i32, i32) {
    %c0_i32 = arith.constant 0 : i32
    %c0_i32_0 = arith.constant 0 : i32
    %c0_i32_1 = arith.constant 0 : i32
    %c0_i32_2 = arith.constant 0 : i32
    return %c0_i32, %c0_i32_0, %c0_i32_1 : i32, i32, i32
  }
  func.func @transform_1(%arg0: i32) -> (i32, i32) {
    %c0_i32 = arith.constant 0 : i32
    %c0_i32_0 = arith.constant 0 : i32
    %c0_i32_1 = arith.constant 0 : i32
    return %c0_i32, %c0_i32_0 : i32, i32
  }
  func.func @transform_2(%arg0: i32) -> (i32, i32) {
    %c0_i32 = arith.constant 0 : i32
    %c0_i32_0 = arith.constant 0 : i32
    %c0_i32_1 = arith.constant 0 : i32
    return %c0_i32, %c0_i32_0 : i32, i32
  }
  func.func @transform_3(%arg0: i32) -> (i32, i32) {
    %c0_i32 = arith.constant 0 : i32
    %c0_i32_0 = arith.constant 0 : i32
    %c0_i32_1 = arith.constant 0 : i32
    return %c0_i32, %c0_i32_0 : i32, i32
  }
  func.func @transform_4(%arg0: i32) -> (i32, i32) {
    %c0_i32 = arith.constant 0 : i32
    %c0_i32_0 = arith.constant 0 : i32
    %c0_i32_1 = arith.constant 0 : i32
    return %c0_i32, %c0_i32_0 : i32, i32
  }
  func.func @transform_5(%arg0: i32) -> (i32, i32) {
    %c0_i32 = arith.constant 0 : i32
    %c0_i32_0 = arith.constant 0 : i32
    %c0_i32_1 = arith.constant 0 : i32
    return %c0_i32, %c0_i32_0 : i32, i32
  }
}

</mosaic_0001>

<llo_original>
// kernel: _lambda_.21
$region0: #{_lambda_.21}
  #allocation0 [shape = 'u32[]', space=smem, size = 0x4, offset = 0x4, fixed_abs, tag = 'smem constant byte address 0x4 - core index']
  #allocation1 [shape = 'u32[144,128]{1,0:T(1,128)}', space=vmem, size = 0x12000, scoped, tag = 'internal scratch']
  #allocation2 [shape = 'f32[512,128]{1,0:T(8,128)}', space=vmem, size = 0x40000, scoped, tag = 'scratch operand']
  %s0 = inlined_call_operand.vmem [shape: bf16[512,128], index: 0, kind: input, shape index: {}]
  %s1 = inlined_call_operand.vmem [shape: bf16[128,128], index: 1, kind: input, shape index: {}]
  %s2 = inlined_call_operand.vmem [shape: f32[1,128], index: 2, kind: input, shape index: {}]
  %s3 = inlined_call_operand.vmem [shape: f32[512,128], index: 3, kind: output, shape index: {}]
  %s4 = sld [smem:[#allocation0]]
  $region30: #{_lambda_.21} parent=0
    _
  %s6 = ssub.s32 1, %s4
  %s7 = scalar_select 0, %s6, %s4
  // Predicated region
  $region2: #{_lambda_.21} parent=0 // pred_check
    _
  $region3: #{_lambda_.21} parent=0 // pred_check_branch
    %9 = sbr.rel (0) target = $region5
  $region4: #{_lambda_.21} parent=0 // pred_region
    _
  $region5: #{_lambda_.21} parent=0 // pred_fallthru
    _
  // Predicated region
  $region6: #{_lambda_.21} parent=0 // pred_check
    _
  $region7: #{_lambda_.21} parent=0 // pred_check_branch
    %11 = sbr.rel (0) target = $region9
  $region8: #{_lambda_.21} parent=0 // pred_region
    _
  $region9: #{_lambda_.21} parent=0 // pred_fallthru
    _
  // Predicated region
  $region10: #{_lambda_.21} parent=0 // pred_check
    _
  $region11: #{_lambda_.21} parent=0 // pred_check_branch
    %13 = sbr.rel (0) target = $region13
  $region12: #{_lambda_.21} parent=0 // pred_region
    _
  $region13: #{_lambda_.21} parent=0 // pred_fallthru
    _
  %p15 = scmp.eq.s32.totalorder 0, 0
  // Predicated region
  $region14: #{_lambda_.21} parent=0 // pred_check
    %p16 = pneg %p15
  $region15: #{_lambda_.21} parent=0 // pred_check_branch
    %18 = sbr.rel (%p16) target = $region17
  $region16: #{_lambda_.21} parent=0 // pred_region
    %19 = vst [vmem:[#allocation2] sm:$0xff] 0.0
    %20 = vst [vmem:[#allocation2 + $0x8] sm:$0xff] 0.0
    %21 = vst [vmem:[#allocation2 + $0x10] sm:$0xff] 0.0
    %22 = vst [vmem:[#allocation2 + $0x18] sm:$0xff] 0.0
    %23 = vst [vmem:[#allocation2 + $0x20] sm:$0xff] 0.0
    %24 = vst [vmem:[#allocation2 + $0x28] sm:$0xff] 0.0
    %25 = vst [vmem:[#allocation2 + $0x30] sm:$0xff] 0.0
    %26 = vst [vmem:[#allocation2 + $0x38] sm:$0xff] 0.0
    %27 = vst [vmem:[#allocation2 + $0x40] sm:$0xff] 0.0
    %28 = vst [vmem:[#allocation2 + $0x48] sm:$0xff] 0.0
    %29 = vst [vmem:[#allocation2 + $0x50] sm:$0xff] 0.0
    %30 = vst [vmem:[#allocation2 + $0x58] sm:$0xff] 0.0
    %31 = vst [vmem:[#allocation2 + $0x60] sm:$0xff] 0.0
    %32 = vst [vmem:[#allocation2 + $0x68] sm:$0xff] 0.0
    %33 = vst [vmem:[#allocation2 + $0x70] sm:$0xff] 0.0
    %34 = vst [vmem:[#allocation2 + $0x78] sm:$0xff] 0.0
    %35 = vst [vmem:[#allocation2 + $0x80] sm:$0xff] 0.0
    %36 = vst [vmem:[#allocation2 + $0x88] sm:$0xff] 0.0
    %37 = vst [vmem:[#allocation2 + $0x90] sm:$0xff] 0.0
    %38 = vst [vmem:[#allocation2 + $0x98] sm:$0xff] 0.0
    %39 = vst [vmem:[#allocation2 + $0xa0] sm:$0xff] 0.0
    %40 = vst [vmem:[#allocation2 + $0xa8] sm:$0xff] 0.0
    %41 = vst [vmem:[#allocation2 + $0xb0] sm:$0xff] 0.0
    %42 = vst [vmem:[#allocation2 + $0xb8] sm:$0xff] 0.0
    %43 = vst [vmem:[#allocation2 + $0xc0] sm:$0xff] 0.0
    %44 = vst [vmem:[#allocation2 + $0xc8] sm:$0xff] 0.0
    %45 = vst [vmem:[#allocation2 + $0xd0] sm:$0xff] 0.0
    %46 = vst [vmem:[#allocation2 + $0xd8] sm:$0xff] 0.0
    %47 = vst [vmem:[#allocation2 + $0xe0] sm:$0xff] 0.0
    %48 = vst [vmem:[#allocation2 + $0xe8] sm:$0xff] 0.0
    %49 = vst [vmem:[#allocation2 + $0xf0] sm:$0xff] 0.0
    %50 = vst [vmem:[#allocation2 + $0xf8] sm:$0xff] 0.0
    %51 = vst [vmem:[#allocation2 + $0x100] sm:$0xff] 0.0
    %52 = vst [vmem:[#allocation2 + $0x108] sm:$0xff] 0.0
    %53 = vst [vmem:[#allocation2 + $0x110] sm:$0xff] 0.0
    %54 = vst [vmem:[#allocation2 + $0x118] sm:$0xff] 0.0
    %55 = vst [vmem:[#allocation2 + $0x120] sm:$0xff] 0.0
    %56 = vst [vmem:[#allocation2 + $0x128] sm:$0xff] 0.0
    %57 = vst [vmem:[#allocation2 + $0x130] sm:$0xff] 0.0
    %58 = vst [vmem:[#allocation2 + $0x138] sm:$0xff] 0.0
    %59 = vst [vmem:[#allocation2 + $0x140] sm:$0xff] 0.0
    %60 = vst [vmem:[#allocation2 + $0x148] sm:$0xff] 0.0
    %61 = vst [vmem:[#allocation2 + $0x150] sm:$0xff] 0.0
    %62 = vst [vmem:[#allocation2 + $0x158] sm:$0xff] 0.0
    %63 = vst [vmem:[#allocation2 + $0x160] sm:$0xff] 0.0
    %64 = vst [vmem:[#allocation2 + $0x168] sm:$0xff] 0.0
    %65 = vst [vmem:[#allocation2 + $0x170] sm:$0xff] 0.0
    %66 = vst [vmem:[#allocation2 + $0x178] sm:$0xff] 0.0
    %67 = vst [vmem:[#allocation2 + $0x180] sm:$0xff] 0.0
    %68 = vst [vmem:[#allocation2 + $0x188] sm:$0xff] 0.0
    %69 = vst [vmem:[#allocation2 + $0x190] sm:$0xff] 0.0
    %70 = vst [vmem:[#allocation2 + $0x198] sm:$0xff] 0.0
    %71 = vst [vmem:[#allocation2 + $0x1a0] sm:$0xff] 0.0
    %72 = vst [vmem:[#allocation2 + $0x1a8] sm:$0xff] 0.0
    %73 = vst [vmem:[#allocation2 + $0x1b0] sm:$0xff] 0.0
    %74 = vst [vmem:[#allocation2 + $0x1b8] sm:$0xff] 0.0
    %75 = vst [vmem:[#allocation2 + $0x1c0] sm:$0xff] 0.0
    %76 = vst [vmem:[#allocation2 + $0x1c8] sm:$0xff] 0.0
    %77 = vst [vmem:[#allocation2 + $0x1d0] sm:$0xff] 0.0
    %78 = vst [vmem:[#allocation2 + $0x1d8] sm:$0xff] 0.0
    %79 = vst [vmem:[#allocation2 + $0x1e0] sm:$0xff] 0.0
    %80 = vst [vmem:[#allocation2 + $0x1e8] sm:$0xff] 0.0
    %81 = vst [vmem:[#allocation2 + $0x1f0] sm:$0xff] 0.0
    %82 = vst [vmem:[#allocation2 + $0x1f8] sm:$0xff] 0.0
  $region17: #{_lambda_.21} parent=0 // pred_fallthru
    _
  %v83 = vld [vmem:[#allocation2] sm:$0xff]
  %v84 = vld [vmem:[#allocation2 + $0x8] sm:$0xff]
  %v85 = vld [vmem:[#allocation2 + $0x10] sm:$0xff]
  %v86 = vld [vmem:[#allocation2 + $0x18] sm:$0xff]
  %v87 = vld [vmem:[#allocation2 + $0x20] sm:$0xff]
  %v88 = vld [vmem:[#allocation2 + $0x28] sm:$0xff]
  %v89 = vld [vmem:[#allocation2 + $0x30] sm:$0xff]
  %v90 = vld [vmem:[#allocation2 + $0x38] sm:$0xff]
  %v91 = vld [vmem:[#allocation2 + $0x40] sm:$0xff]
  %v92 = vld [vmem:[#allocation2 + $0x48] sm:$0xff]
  %v93 = vld [vmem:[#allocation2 + $0x50] sm:$0xff]
  %v94 = vld [vmem:[#allocation2 + $0x58] sm:$0xff]
  %v95 = vld [vmem:[#allocation2 + $0x60] sm:$0xff]
  %v96 = vld [vmem:[#allocation2 + $0x68] sm:$0xff]
  %v97 = vld [vmem:[#allocation2 + $0x70] sm:$0xff]
  %v98 = vld [vmem:[#allocation2 + $0x78] sm:$0xff]
  %v99 = vld [vmem:[#allocation2 + $0x80] sm:$0xff]
  %v100 = vld [vmem:[#allocation2 + $0x88] sm:$0xff]
  %v101 = vld [vmem:[#allocation2 + $0x90] sm:$0xff]
  %v102 = vld [vmem:[#allocation2 + $0x98] sm:$0xff]
  %v103 = vld [vmem:[#allocation2 + $0xa0] sm:$0xff]
  %v104 = vld [vmem:[#allocation2 + $0xa8] sm:$0xff]
  %v105 = vld [vmem:[#allocation2 + $0xb0] sm:$0xff]
  %v106 = vld [vmem:[#allocation2 + $0xb8] sm:$0xff]
  %v107 = vld [vmem:[#allocation2 + $0xc0] sm:$0xff]
  %v108 = vld [vmem:[#allocation2 + $0xc8] sm:$0xff]
  %v109 = vld [vmem:[#allocation2 + $0xd0] sm:$0xff]
  %v110 = vld [vmem:[#allocation2 + $0xd8] sm:$0xff]
  %v111 = vld [vmem:[#allocation2 + $0xe0] sm:$0xff]
  %v112 = vld [vmem:[#allocation2 + $0xe8] sm:$0xff]
  %v113 = vld [vmem:[#allocation2 + $0xf0] sm:$0xff]
  %v114 = vld [vmem:[#allocation2 + $0xf8] sm:$0xff]
  %v115 = vld [vmem:[#allocation2 + $0x100] sm:$0xff]
  %v116 = vld [vmem:[#allocation2 + $0x108] sm:$0xff]
  %v117 = vld [vmem:[#allocation2 + $0x110] sm:$0xff]
  %v118 = vld [vmem:[#allocation2 + $0x118] sm:$0xff]
  %v119 = vld [vmem:[#allocation2 + $0x120] sm:$0xff]
  %v120 = vld [vmem:[#allocation2 + $0x128] sm:$0xff]
  %v121 = vld [vmem:[#allocation2 + $0x130] sm:$0xff]
  %v122 = vld [vmem:[#allocation2 + $0x138] sm:$0xff]
  %v123 = vld [vmem:[#allocation2 + $0x140] sm:$0xff]
  %v124 = vld [vmem:[#allocation2 + $0x148] sm:$0xff]
  %v125 = vld [vmem:[#allocation2 + $0x150] sm:$0xff]
  %v126 = vld [vmem:[#allocation2 + $0x158] sm:$0xff]
  %v127 = vld [vmem:[#allocation2 + $0x160] sm:$0xff]
  %v128 = vld [vmem:[#allocation2 + $0x168] sm:$0xff]
  %v129 = vld [vmem:[#allocation2 + $0x170] sm:$0xff]
  %v130 = vld [vmem:[#allocation2 + $0x178] sm:$0xff]
  %v131 = vld [vmem:[#allocation2 + $0x180] sm:$0xff]
  %v132 = vld [vmem:[#allocation2 + $0x188] sm:$0xff]
  %v133 = vld [vmem:[#allocation2 + $0x190] sm:$0xff]
  %v134 = vld [vmem:[#allocation2 + $0x198] sm:$0xff]
  %v135 = vld [vmem:[#allocation2 + $0x1a0] sm:$0xff]
  %v136 = vld [vmem:[#allocation2 + $0x1a8] sm:$0xff]
  %v137 = vld [vmem:[#allocation2 + $0x1b0] sm:$0xff]
  %v138 = vld [vmem:[#allocation2 + $0x1b8] sm:$0xff]
  %v139 = vld [vmem:[#allocation2 + $0x1c0] sm:$0xff]
  %v140 = vld [vmem:[#allocation2 + $0x1c8] sm:$0xff]
  %v141 = vld [vmem:[#allocation2 + $0x1d0] sm:$0xff]
  %v142 = vld [vmem:[#allocation2 + $0x1d8] sm:$0xff]
  %v143 = vld [vmem:[#allocation2 + $0x1e0] sm:$0xff]
  %v144 = vld [vmem:[#allocation2 + $0x1e8] sm:$0xff]
  %v145 = vld [vmem:[#allocation2 + $0x1f0] sm:$0xff]
  %v146 = vld [vmem:[#allocation2 + $0x1f8] sm:$0xff]
  %v147 = vld [vmem:[%s0] sm:$0xf]
  %v148 = vld [vmem:[%s0 + $0x4] sm:$0xf]
  %v149 = vld [vmem:[%s0 + $0x8] sm:$0xf]
  %v150 = vld [vmem:[%s0 + $0xc] sm:$0xf]
  %v151 = vld [vmem:[%s0 + $0x10] sm:$0xf]
  %v152 = vld [vmem:[%s0 + $0x14] sm:$0xf]
  %v153 = vld [vmem:[%s0 + $0x18] sm:$0xf]
  %v154 = vld [vmem:[%s0 + $0x1c] sm:$0xf]
  %v155 = vld [vmem:[%s0 + $0x20] sm:$0xf]
  %v156 = vld [vmem:[%s0 + $0x24] sm:$0xf]
  %v157 = vld [vmem:[%s0 + $0x28] sm:$0xf]
  %v158 = vld [vmem:[%s0 + $0x2c] sm:$0xf]
  %v159 = vld [vmem:[%s0 + $0x30] sm:$0xf]
  %v160 = vld [vmem:[%s0 + $0x34] sm:$0xf]
  %v161 = vld [vmem:[%s0 + $0x38] sm:$0xf]
  %v162 = vld [vmem:[%s0 + $0x3c] sm:$0xf]
  %v163 = vld [vmem:[%s0 + $0x40] sm:$0xf]
  %v164 = vld [vmem:[%s0 + $0x44] sm:$0xf]
  %v165 = vld [vmem:[%s0 + $0x48] sm:$0xf]
  %v166 = vld [vmem:[%s0 + $0x4c] sm:$0xf]
  %v167 = vld [vmem:[%s0 + $0x50] sm:$0xf]
  %v168 = vld [vmem:[%s0 + $0x54] sm:$0xf]
  %v169 = vld [vmem:[%s0 + $0x58] sm:$0xf]
  %v170 = vld [vmem:[%s0 + $0x5c] sm:$0xf]
  %v171 = vld [vmem:[%s0 + $0x60] sm:$0xf]
  %v172 = vld [vmem:[%s0 + $0x64] sm:$0xf]
  %v173 = vld [vmem:[%s0 + $0x68] sm:$0xf]
  %v174 = vld [vmem:[%s0 + $0x6c] sm:$0xf]
  %v175 = vld [vmem:[%s0 + $0x70] sm:$0xf]
  %v176 = vld [vmem:[%s0 + $0x74] sm:$0xf]
  %v177 = vld [vmem:[%s0 + $0x78] sm:$0xf]
  %v178 = vld [vmem:[%s0 + $0x7c] sm:$0xf]
  %v179 = vld [vmem:[%s0 + $0x80] sm:$0xf]
  %v180 = vld [vmem:[%s0 + $0x84] sm:$0xf]
  %v181 = vld [vmem:[%s0 + $0x88] sm:$0xf]
  %v182 = vld [vmem:[%s0 + $0x8c] sm:$0xf]
  %v183 = vld [vmem:[%s0 + $0x90] sm:$0xf]
  %v184 = vld [vmem:[%s0 + $0x94] sm:$0xf]
  %v185 = vld [vmem:[%s0 + $0x98] sm:$0xf]
  %v186 = vld [vmem:[%s0 + $0x9c] sm:$0xf]
  %v187 = vld [vmem:[%s0 + $0xa0] sm:$0xf]
  %v188 = vld [vmem:[%s0 + $0xa4] sm:$0xf]
  %v189 = vld [vmem:[%s0 + $0xa8] sm:$0xf]
  %v190 = vld [vmem:[%s0 + $0xac] sm:$0xf]
  %v191 = vld [vmem:[%s0 + $0xb0] sm:$0xf]
  %v192 = vld [vmem:[%s0 + $0xb4] sm:$0xf]
  %v193 = vld [vmem:[%s0 + $0xb8] sm:$0xf]
  %v194 = vld [vmem:[%s0 + $0xbc] sm:$0xf]
  %v195 = vld [vmem:[%s0 + $0xc0] sm:$0xf]
  %v196 = vld [vmem:[%s0 + $0xc4] sm:$0xf]
  %v197 = vld [vmem:[%s0 + $0xc8] sm:$0xf]
  %v198 = vld [vmem:[%s0 + $0xcc] sm:$0xf]
  %v199 = vld [vmem:[%s0 + $0xd0] sm:$0xf]
  %v200 = vld [vmem:[%s0 + $0xd4] sm:$0xf]
  %v201 = vld [vmem:[%s0 + $0xd8] sm:$0xf]
  %v202 = vld [vmem:[%s0 + $0xdc] sm:$0xf]
  %v203 = vld [vmem:[%s0 + $0xe0] sm:$0xf]
  %v204 = vld [vmem:[%s0 + $0xe4] sm:$0xf]
  %v205 = vld [vmem:[%s0 + $0xe8] sm:$0xf]
  %v206 = vld [vmem:[%s0 + $0xec] sm:$0xf]
  %v207 = vld [vmem:[%s0 + $0xf0] sm:$0xf]
  %v208 = vld [vmem:[%s0 + $0xf4] sm:$0xf]
  %v209 = vld [vmem:[%s0 + $0xf8] sm:$0xf]
  %v210 = vld [vmem:[%s0 + $0xfc] sm:$0xf]
  %v211 = vld [vmem:[%s1] sm:$0xf]
  %v212 = vld [vmem:[%s1 + $0x4] sm:$0xf]
  %v213 = vld [vmem:[%s1 + $0x8] sm:$0xf]
  %v214 = vld [vmem:[%s1 + $0xc] sm:$0xf]
  %v215 = vld [vmem:[%s1 + $0x10] sm:$0xf]
  %v216 = vld [vmem:[%s1 + $0x14] sm:$0xf]
  %v217 = vld [vmem:[%s1 + $0x18] sm:$0xf]
  %v218 = vld [vmem:[%s1 + $0x1c] sm:$0xf]
  %v219 = vld [vmem:[%s1 + $0x20] sm:$0xf]
  %v220 = vld [vmem:[%s1 + $0x24] sm:$0xf]
  %v221 = vld [vmem:[%s1 + $0x28] sm:$0xf]
  %v222 = vld [vmem:[%s1 + $0x2c] sm:$0xf]
  %v223 = vld [vmem:[%s1 + $0x30] sm:$0xf]
  %v224 = vld [vmem:[%s1 + $0x34] sm:$0xf]
  %v225 = vld [vmem:[%s1 + $0x38] sm:$0xf]
  %v226 = vld [vmem:[%s1 + $0x3c] sm:$0xf]
  %v291 = vunpack.c.l.b16 %v147
  %v292 = vunpack.c.l.b16 %v148
  %v293 = vunpack.c.l.b16 %v149
  %v294 = vunpack.c.l.b16 %v150
  %v295 = vunpack.c.l.b16 %v151
  %v296 = vunpack.c.l.b16 %v152
  %v297 = vunpack.c.l.b16 %v153
  %v298 = vunpack.c.l.b16 %v154
  %v299 = vunpack.c.l.b16 %v155
  %v300 = vunpack.c.l.b16 %v156
  %v301 = vunpack.c.l.b16 %v157
  %v302 = vunpack.c.l.b16 %v158
  %v303 = vunpack.c.l.b16 %v159
  %v304 = vunpack.c.l.b16 %v160
  %v305 = vunpack.c.l.b16 %v161
  %v306 = vunpack.c.l.b16 %v162
  %v307 = vunpack.c.l.b16 %v163
  %v308 = vunpack.c.l.b16 %v164
  %v309 = vunpack.c.l.b16 %v165
  %v310 = vunpack.c.l.b16 %v166
  %v311 = vunpack.c.l.b16 %v167
  %v312 = vunpack.c.l.b16 %v168
  %v313 = vunpack.c.l.b16 %v169
  %v314 = vunpack.c.l.b16 %v170
  %v315 = vunpack.c.l.b16 %v171
  %v316 = vunpack.c.l.b16 %v172
  %v317 = vunpack.c.l.b16 %v173
  %v318 = vunpack.c.l.b16 %v174
  %v319 = vunpack.c.l.b16 %v175
  %v320 = vunpack.c.l.b16 %v176
  %v321 = vunpack.c.l.b16 %v177
  %v322 = vunpack.c.l.b16 %v178
  %v323 = vunpack.c.l.b16 %v179
  %v324 = vunpack.c.l.b16 %v180
  %v325 = vunpack.c.l.b16 %v181
  %v326 = vunpack.c.l.b16 %v182
  %v327 = vunpack.c.l.b16 %v183
  %v328 = vunpack.c.l.b16 %v184
  %v329 = vunpack.c.l.b16 %v185
  %v330 = vunpack.c.l.b16 %v186
  %v331 = vunpack.c.l.b16 %v187
  %v332 = vunpack.c.l.b16 %v188
  %v333 = vunpack.c.l.b16 %v189
  %v334 = vunpack.c.l.b16 %v190
  %v335 = vunpack.c.l.b16 %v191
  %v336 = vunpack.c.l.b16 %v192
  %v337 = vunpack.c.l.b16 %v193
  %v338 = vunpack.c.l.b16 %v194
  %v339 = vunpack.c.l.b16 %v195
  %v340 = vunpack.c.l.b16 %v196
  %v341 = vunpack.c.l.b16 %v197
  %v342 = vunpack.c.l.b16 %v198
  %v343 = vunpack.c.l.b16 %v199
  %v344 = vunpack.c.l.b16 %v200
  %v345 = vunpack.c.l.b16 %v201
  %v346 = vunpack.c.l.b16 %v202
  %v347 = vunpack.c.l.b16 %v203
  %v348 = vunpack.c.l.b16 %v204
  %v349 = vunpack.c.l.b16 %v205
  %v350 = vunpack.c.l.b16 %v206
  %v351 = vunpack.c.l.b16 %v207
  %v352 = vunpack.c.l.b16 %v208
  %v353 = vunpack.c.l.b16 %v209
  %v354 = vunpack.c.l.b16 %v210
  %v355 = vpack.c.b16 %v292, %v291
  %v356 = vpack.c.b16 %v294, %v293
  %v357 = vpack.c.b16 %v296, %v295
  %v358 = vpack.c.b16 %v298, %v297
  %v359 = vpack.c.b16 %v300, %v299
  %v360 = vpack.c.b16 %v302, %v301
  %v361 = vpack.c.b16 %v304, %v303
  %v362 = vpack.c.b16 %v306, %v305
  %v363 = vpack.c.b16 %v308, %v307
  %v364 = vpack.c.b16 %v310, %v309
  %v365 = vpack.c.b16 %v312, %v311
  %v366 = vpack.c.b16 %v314, %v313
  %v367 = vpack.c.b16 %v316, %v315
  %v368 = vpack.c.b16 %v318, %v317
  %v369 = vpack.c.b16 %v320, %v319
  %v370 = vpack.c.b16 %v322, %v321
  %v371 = vpack.c.b16 %v324, %v323
  %v372 = vpack.c.b16 %v326, %v325
  %v373 = vpack.c.b16 %v328, %v327
  %v374 = vpack.c.b16 %v330, %v329
  %v375 = vpack.c.b16 %v332, %v331
  %v376 = vpack.c.b16 %v334, %v333
  %v377 = vpack.c.b16 %v336, %v335
  %v378 = vpack.c.b16 %v338, %v337
  %v379 = vpack.c.b16 %v340, %v339
  %v380 = vpack.c.b16 %v342, %v341
  %v381 = vpack.c.b16 %v344, %v343
  %v382 = vpack.c.b16 %v346, %v345
  %v383 = vpack.c.b16 %v348, %v347
  %v384 = vpack.c.b16 %v350, %v349
  %v385 = vpack.c.b16 %v352, %v351
  %v386 = vpack.c.b16 %v354, %v353
  %v435 = vunpack.c.l.b16 %v211
  %v436 = vunpack.c.l.b16 %v212
  %v437 = vunpack.c.l.b16 %v213
  %v438 = vunpack.c.l.b16 %v214
  %v439 = vunpack.c.l.b16 %v215
  %v440 = vunpack.c.l.b16 %v216
  %v441 = vunpack.c.l.b16 %v217
  %v442 = vunpack.c.l.b16 %v218
  %v443 = vunpack.c.l.b16 %v219
  %v444 = vunpack.c.l.b16 %v220
  %v445 = vunpack.c.l.b16 %v221
  %v446 = vunpack.c.l.b16 %v222
  %v447 = vunpack.c.l.b16 %v223
  %v448 = vunpack.c.l.b16 %v224
  %v449 = vunpack.c.l.b16 %v225
  %v450 = vunpack.c.l.b16 %v226
  %v451 = vpack.c.b16 %v436, %v435
  %v452 = vpack.c.b16 %v438, %v437
  %v453 = vpack.c.b16 %v440, %v439
  %v454 = vpack.c.b16 %v442, %v441
  %v455 = vpack.c.b16 %v444, %v443
  %v456 = vpack.c.b16 %v446, %v445
  %v457 = vpack.c.b16 %v448, %v447
  %v458 = vpack.c.b16 %v450, %v449
  %467 = vmatprep.subr.bf16.mxu0 0
  %468 = vmatpush1.bf16.msra.mxu0 %v458
  %469 = vmatprep.subr.bf16.mxu0 0
  %470 = vmatpush1.bf16.msra.mxu0 %v457
  %471 = vmatprep.subr.bf16.mxu0 0
  %472 = vmatpush1.bf16.msra.mxu0 %v456
  %473 = vmatprep.subr.bf16.mxu0 0
  %474 = vmatpush1.bf16.msra.mxu0 %v455
  %475 = vmatprep.subr.bf16.mxu0 0
  %476 = vmatpush1.bf16.msra.mxu0 %v454
  %477 = vmatprep.subr.bf16.mxu0 0
  %478 = vmatpush1.bf16.msra.mxu0 %v453
  %479 = vmatprep.subr.bf16.mxu0 0
  %480 = vmatpush1.bf16.msra.mxu0 %v452
  %481 = vmatprep.subr.bf16.mxu0 0
  %482 = vmatpush1.bf16.msra.mxu0 %v451
  %483 = vmatprep.subr.bf16.mxu0 0
  %484 = vmatpush2.bf16.msra.mxu0 0
  %485 = vmatprep.subr.bf16.mxu0 0
  %486 = vmatpush2.bf16.msra.mxu0 0
  %487 = vmatprep.subr.bf16.mxu0 0
  %488 = vmatpush2.bf16.msra.mxu0 0
  %489 = vmatprep.subr.bf16.mxu0 0
  %490 = vmatpush2.bf16.msra.mxu0 0
  %491 = vmatprep.subr.bf16.mxu0 0
  %492 = vmatpush2.bf16.msra.mxu0 0
  %493 = vmatprep.subr.bf16.mxu0 0
  %494 = vmatpush2.bf16.msra.mxu0 0
  %495 = vmatprep.subr.bf16.mxu0 0
  %496 = vmatpush2.bf16.msra.mxu0 0
  %497 = vmatprep.subr.bf16.mxu0 0
  %498 = vmatpush2.bf16.msra.mxu0 0
  %499 = vmatprep.mubr.bf16.mxu0 0
  %500 = vmatmul.mubr.bf16.gmra.mxu0 %v355
  %v501 = vpop.f32.mrf.mxu0
  %v502 = vadd.f32 0.0, %v501
  %v503 = vpop.f32.mrf.mxu0
  %v504 = vpop.f32.mrf.mxu0
  %v505 = vadd.f32 0.0, %v504
  %v506 = vpop.f32.mrf.mxu0
  %507 = vmatprep.mubr.bf16.mxu0 0
  %508 = vmatmul.mubr.bf16.gmra.mxu0 %v356
  %v509 = vpop.f32.mrf.mxu0
  %v510 = vadd.f32 0.0, %v509
  %v511 = vpop.f32.mrf.mxu0
  %v512 = vpop.f32.mrf.mxu0
  %v513 = vadd.f32 0.0, %v512
  %v514 = vpop.f32.mrf.mxu0
  %515 = vmatprep.mubr.bf16.mxu0 0
  %516 = vmatmul.mubr.bf16.gmra.mxu0 %v357
  %v517 = vpop.f32.mrf.mxu0
  %v518 = vadd.f32 0.0, %v517
  %v519 = vpop.f32.mrf.mxu0
  %v520 = vpop.f32.mrf.mxu0
  %v521 = vadd.f32 0.0, %v520
  %v522 = vpop.f32.mrf.mxu0
  %523 = vmatprep.mubr.bf16.mxu0 0
  %524 = vmatmul.mubr.bf16.gmra.mxu0 %v358
  %v525 = vpop.f32.mrf.mxu0
  %v526 = vadd.f32 0.0, %v525
  %v527 = vpop.f32.mrf.mxu0
  %v528 = vpop.f32.mrf.mxu0
  %v529 = vadd.f32 0.0, %v528
  %v530 = vpop.f32.mrf.mxu0
  %531 = vmatprep.mubr.bf16.mxu0 0
  %532 = vmatmul.mubr.bf16.gmra.mxu0 %v359
  %v533 = vpop.f32.mrf.mxu0
  %v534 = vadd.f32 0.0, %v533
  %v535 = vpop.f32.mrf.mxu0
  %v536 = vpop.f32.mrf.mxu0
  %v537 = vadd.f32 0.0, %v536
  %v538 = vpop.f32.mrf.mxu0
  %539 = vmatprep.mubr.bf16.mxu0 0
  %540 = vmatmul.mubr.bf16.gmra.mxu0 %v360
  %v541 = vpop.f32.mrf.mxu0
  %v542 = vadd.f32 0.0, %v541
  %v543 = vpop.f32.mrf.mxu0
  %v544 = vpop.f32.mrf.mxu0
  %v545 = vadd.f32 0.0, %v544
  %v546 = vpop.f32.mrf.mxu0
  %547 = vmatprep.mubr.bf16.mxu0 0
  %548 = vmatmul.mubr.bf16.gmra.mxu0 %v361
  %v549 = vpop.f32.mrf.mxu0
  %v550 = vadd.f32 0.0, %v549
  %v551 = vpop.f32.mrf.mxu0
  %v552 = vpop.f32.mrf.mxu0
  %v553 = vadd.f32 0.0, %v552
  %v554 = vpop.f32.mrf.mxu0
  %555 = vmatprep.mubr.bf16.mxu0 0
  %556 = vmatmul.mubr.bf16.gmra.mxu0 %v362
  %v557 = vpop.f32.mrf.mxu0
  %v558 = vadd.f32 0.0, %v557
  %v559 = vpop.f32.mrf.mxu0
  %v560 = vpop.f32.mrf.mxu0
  %v561 = vadd.f32 0.0, %v560
  %v562 = vpop.f32.mrf.mxu0
  %563 = vmatprep.mubr.bf16.mxu0 0
  %564 = vmatmul.mubr.bf16.gmra.mxu0 %v363
  %v565 = vpop.f32.mrf.mxu0
  %v566 = vadd.f32 0.0, %v565
  %v567 = vpop.f32.mrf.mxu0
  %v568 = vpop.f32.mrf.mxu0
  %v569 = vadd.f32 0.0, %v568
  %v570 = vpop.f32.mrf.mxu0
  %571 = vmatprep.mubr.bf16.mxu0 0
  %572 = vmatmul.mubr.bf16.gmra.mxu0 %v364
  %v573 = vpop.f32.mrf.mxu0
  %v574 = vadd.f32 0.0, %v573
  %v575 = vpop.f32.mrf.mxu0
  %v576 = vpop.f32.mrf.mxu0
  %v577 = vadd.f32 0.0, %v576
  %v578 = vpop.f32.mrf.mxu0
  %579 = vmatprep.mubr.bf16.mxu0 0
  %580 = vmatmul.mubr.bf16.gmra.mxu0 %v365
  %v581 = vpop.f32.mrf.mxu0
  %v582 = vadd.f32 0.0, %v581
  %v583 = vpop.f32.mrf.mxu0
  %v584 = vpop.f32.mrf.mxu0
  %v585 = vadd.f32 0.0, %v584
  %v586 = vpop.f32.mrf.mxu0
  %587 = vmatprep.mubr.bf16.mxu0 0
  %588 = vmatmul.mubr.bf16.gmra.mxu0 %v366
  %v589 = vpop.f32.mrf.mxu0
  %v590 = vadd.f32 0.0, %v589
  %v591 = vpop.f32.mrf.mxu0
  %v592 = vpop.f32.mrf.mxu0
  %v593 = vadd.f32 0.0, %v592
  %v594 = vpop.f32.mrf.mxu0
  %595 = vmatprep.mubr.bf16.mxu0 0
  %596 = vmatmul.mubr.bf16.gmra.mxu0 %v367
  %v597 = vpop.f32.mrf.mxu0
  %v598 = vadd.f32 0.0, %v597
  %v599 = vpop.f32.mrf.mxu0
  %v600 = vpop.f32.mrf.mxu0
  %v601 = vadd.f32 0.0, %v600
  %v602 = vpop.f32.mrf.mxu0
  %603 = vmatprep.mubr.bf16.mxu0 0
  %604 = vmatmul.mubr.bf16.gmra.mxu0 %v368
  %v605 = vpop.f32.mrf.mxu0
  %v606 = vadd.f32 0.0, %v605
  %v607 = vpop.f32.mrf.mxu0
  %v608 = vpop.f32.mrf.mxu0
  %v609 = vadd.f32 0.0, %v608
  %v610 = vpop.f32.mrf.mxu0
  %611 = vmatprep.mubr.bf16.mxu0 0
  %612 = vmatmul.mubr.bf16.gmra.mxu0 %v369
  %v613 = vpop.f32.mrf.mxu0
  %v614 = vadd.f32 0.0, %v613
  %v615 = vpop.f32.mrf.mxu0
  %v616 = vpop.f32.mrf.mxu0
  %v617 = vadd.f32 0.0, %v616
  %v618 = vpop.f32.mrf.mxu0
  %619 = vmatprep.mubr.bf16.mxu0 0
  %620 = vmatmul.mubr.bf16.gmra.mxu0 %v370
  %v621 = vpop.f32.mrf.mxu0
  %v622 = vadd.f32 0.0, %v621
  %v623 = vpop.f32.mrf.mxu0
  %v624 = vpop.f32.mrf.mxu0
  %v625 = vadd.f32 0.0, %v624
  %v626 = vpop.f32.mrf.mxu0
  %627 = vmatprep.mubr.bf16.mxu0 0
  %628 = vmatmul.mubr.bf16.gmra.mxu0 %v371
  %v629 = vpop.f32.mrf.mxu0
  %v630 = vadd.f32 0.0, %v629
  %v631 = vpop.f32.mrf.mxu0
  %v632 = vpop.f32.mrf.mxu0
  %v633 = vadd.f32 0.0, %v632
  %v634 = vpop.f32.mrf.mxu0
  %635 = vmatprep.mubr.bf16.mxu0 0
  %636 = vmatmul.mubr.bf16.gmra.mxu0 %v372
  %v637 = vpop.f32.mrf.mxu0
  %v638 = vadd.f32 0.0, %v637
  %v639 = vpop.f32.mrf.mxu0
  %v640 = vpop.f32.mrf.mxu0
  %v641 = vadd.f32 0.0, %v640
  %v642 = vpop.f32.mrf.mxu0
  %643 = vmatprep.mubr.bf16.mxu0 0
  %644 = vmatmul.mubr.bf16.gmra.mxu0 %v373
  %v645 = vpop.f32.mrf.mxu0
  %v646 = vadd.f32 0.0, %v645
  %v647 = vpop.f32.mrf.mxu0
  %v648 = vpop.f32.mrf.mxu0
  %v649 = vadd.f32 0.0, %v648
  %v650 = vpop.f32.mrf.mxu0
  %651 = vmatprep.mubr.bf16.mxu0 0
  %652 = vmatmul.mubr.bf16.gmra.mxu0 %v374
  %v653 = vpop.f32.mrf.mxu0
  %v654 = vadd.f32 0.0, %v653
  %v655 = vpop.f32.mrf.mxu0
  %v656 = vpop.f32.mrf.mxu0
  %v657 = vadd.f32 0.0, %v656
  %v658 = vpop.f32.mrf.mxu0
  %659 = vmatprep.mubr.bf16.mxu0 0
  %660 = vmatmul.mubr.bf16.gmra.mxu0 %v375
  %v661 = vpop.f32.mrf.mxu0
  %v662 = vadd.f32 0.0, %v661
  %v663 = vpop.f32.mrf.mxu0
  %v664 = vpop.f32.mrf.mxu0
  %v665 = vadd.f32 0.0, %v664
  %v666 = vpop.f32.mrf.mxu0
  %667 = vmatprep.mubr.bf16.mxu0 0
  %668 = vmatmul.mubr.bf16.gmra.mxu0 %v376
  %v669 = vpop.f32.mrf.mxu0
  %v670 = vadd.f32 0.0, %v669
  %v671 = vpop.f32.mrf.mxu0
  %v672 = vpop.f32.mrf.mxu0
  %v673 = vadd.f32 0.0, %v672
  %v674 = vpop.f32.mrf.mxu0
  %675 = vmatprep.mubr.bf16.mxu0 0
  %676 = vmatmul.mubr.bf16.gmra.mxu0 %v377
  %v677 = vpop.f32.mrf.mxu0
  %v678 = vadd.f32 0.0, %v677
  %v679 = vpop.f32.mrf.mxu0
  %v680 = vpop.f32.mrf.mxu0
  %v681 = vadd.f32 0.0, %v680
  %v682 = vpop.f32.mrf.mxu0
  %683 = vmatprep.mubr.bf16.mxu0 0
  %684 = vmatmul.mubr.bf16.gmra.mxu0 %v378
  %v685 = vpop.f32.mrf.mxu0
  %v686 = vadd.f32 0.0, %v685
  %v687 = vpop.f32.mrf.mxu0
  %v688 = vpop.f32.mrf.mxu0
  %v689 = vadd.f32 0.0, %v688
  %v690 = vpop.f32.mrf.mxu0
  %691 = vmatprep.mubr.bf16.mxu0 0
  %692 = vmatmul.mubr.bf16.gmra.mxu0 %v379
  %v693 = vpop.f32.mrf.mxu0
  %v694 = vadd.f32 0.0, %v693
  %v695 = vpop.f32.mrf.mxu0
  %v696 = vpop.f32.mrf.mxu0
  %v697 = vadd.f32 0.0, %v696
  %v698 = vpop.f32.mrf.mxu0
  %699 = vmatprep.mubr.bf16.mxu0 0
  %700 = vmatmul.mubr.bf16.gmra.mxu0 %v380
  %v701 = vpop.f32.mrf.mxu0
  %v702 = vadd.f32 0.0, %v701
  %v703 = vpop.f32.mrf.mxu0
  %v704 = vpop.f32.mrf.mxu0
  %v705 = vadd.f32 0.0, %v704
  %v706 = vpop.f32.mrf.mxu0
  %707 = vmatprep.mubr.bf16.mxu0 0
  %708 = vmatmul.mubr.bf16.gmra.mxu0 %v381
  %v709 = vpop.f32.mrf.mxu0
  %v710 = vadd.f32 0.0, %v709
  %v711 = vpop.f32.mrf.mxu0
  %v712 = vpop.f32.mrf.mxu0
  %v713 = vadd.f32 0.0, %v712
  %v714 = vpop.f32.mrf.mxu0
  %715 = vmatprep.mubr.bf16.mxu0 0
  %716 = vmatmul.mubr.bf16.gmra.mxu0 %v382
  %v717 = vpop.f32.mrf.mxu0
  %v718 = vadd.f32 0.0, %v717
  %v719 = vpop.f32.mrf.mxu0
  %v720 = vpop.f32.mrf.mxu0
  %v721 = vadd.f32 0.0, %v720
  %v722 = vpop.f32.mrf.mxu0
  %723 = vmatprep.mubr.bf16.mxu0 0
  %724 = vmatmul.mubr.bf16.gmra.mxu0 %v383
  %v725 = vpop.f32.mrf.mxu0
  %v726 = vadd.f32 0.0, %v725
  %v727 = vpop.f32.mrf.mxu0
  %v728 = vpop.f32.mrf.mxu0
  %v729 = vadd.f32 0.0, %v728
  %v730 = vpop.f32.mrf.mxu0
  %731 = vmatprep.mubr.bf16.mxu0 0
  %732 = vmatmul.mubr.bf16.gmra.mxu0 %v384
  %v733 = vpop.f32.mrf.mxu0
  %v734 = vadd.f32 0.0, %v733
  %v735 = vpop.f32.mrf.mxu0
  %v736 = vpop.f32.mrf.mxu0
  %v737 = vadd.f32 0.0, %v736
  %v738 = vpop.f32.mrf.mxu0
  %739 = vmatprep.mubr.bf16.mxu0 0
  %740 = vmatmul.mubr.bf16.gmra.mxu0 %v385
  %v741 = vpop.f32.mrf.mxu0
  %v742 = vadd.f32 0.0, %v741
  %v743 = vpop.f32.mrf.mxu0
  %v744 = vpop.f32.mrf.mxu0
  %v745 = vadd.f32 0.0, %v744
  %v746 = vpop.f32.mrf.mxu0
  %747 = vmatprep.mubr.bf16.mxu0 0
  %748 = vmatmul.mubr.bf16.gmra.mxu0 %v386
  %v749 = vpop.f32.mrf.mxu0
  %v750 = vadd.f32 0.0, %v749
  %v751 = vpop.f32.mrf.mxu0
  %v752 = vpop.f32.mrf.mxu0
  %v753 = vadd.f32 0.0, %v752
  %v754 = vpop.f32.mrf.mxu0
  %755 = vdwg.mxu0
  %v756 = vadd.f32 %v83, %v502
  %v757 = vadd.f32 %v84, %v505
  %v758 = vadd.f32 %v85, %v510
  %v759 = vadd.f32 %v86, %v513
  %v760 = vadd.f32 %v87, %v518
  %v761 = vadd.f32 %v88, %v521
  %v762 = vadd.f32 %v89, %v526
  %v763 = vadd.f32 %v90, %v529
  %v764 = vadd.f32 %v91, %v534
  %v765 = vadd.f32 %v92, %v537
  %v766 = vadd.f32 %v93, %v542
  %v767 = vadd.f32 %v94, %v545
  %v768 = vadd.f32 %v95, %v550
  %v769 = vadd.f32 %v96, %v553
  %v770 = vadd.f32 %v97, %v558
  %v771 = vadd.f32 %v98, %v561
  %v772 = vadd.f32 %v99, %v566
  %v773 = vadd.f32 %v100, %v569
  %v774 = vadd.f32 %v101, %v574
  %v775 = vadd.f32 %v102, %v577
  %v776 = vadd.f32 %v103, %v582
  %v777 = vadd.f32 %v104, %v585
  %v778 = vadd.f32 %v105, %v590
  %v779 = vadd.f32 %v106, %v593
  %v780 = vadd.f32 %v107, %v598
  %v781 = vadd.f32 %v108, %v601
  %v782 = vadd.f32 %v109, %v606
  %v783 = vadd.f32 %v110, %v609
  %v784 = vadd.f32 %v111, %v614
  %v785 = vadd.f32 %v112, %v617
  %v786 = vadd.f32 %v113, %v622
  %v787 = vadd.f32 %v114, %v625
  %v788 = vadd.f32 %v115, %v630
  %v789 = vadd.f32 %v116, %v633
  %v790 = vadd.f32 %v117, %v638
  %v791 = vadd.f32 %v118, %v641
  %v792 = vadd.f32 %v119, %v646
  %v793 = vadd.f32 %v120, %v649
  %v794 = vadd.f32 %v121, %v654
  %v795 = vadd.f32 %v122, %v657
  %v796 = vadd.f32 %v123, %v662
  %v797 = vadd.f32 %v124, %v665
  %v798 = vadd.f32 %v125, %v670
  %v799 = vadd.f32 %v126, %v673
  %v800 = vadd.f32 %v127, %v678
  %v801 = vadd.f32 %v128, %v681
  %v802 = vadd.f32 %v129, %v686
  %v803 = vadd.f32 %v130, %v689
  %v804 = vadd.f32 %v131, %v694
  %v805 = vadd.f32 %v132, %v697
  %v806 = vadd.f32 %v133, %v702
  %v807 = vadd.f32 %v134, %v705
  %v808 = vadd.f32 %v135, %v710
  %v809 = vadd.f32 %v136, %v713
  %v810 = vadd.f32 %v137, %v718
  %v811 = vadd.f32 %v138, %v721
  %v812 = vadd.f32 %v139, %v726
  %v813 = vadd.f32 %v140, %v729
  %v814 = vadd.f32 %v141, %v734
  %v815 = vadd.f32 %v142, %v737
  %v816 = vadd.f32 %v143, %v742
  %v817 = vadd.f32 %v144, %v745
  %v818 = vadd.f32 %v145, %v750
  %v819 = vadd.f32 %v146, %v753
  %820 = vst [vmem:[#allocation2] sm:$0xff] %v756
  %821 = vst [vmem:[#allocation2 + $0x8] sm:$0xff] %v757
  %822 = vst [vmem:[#allocation2 + $0x10] sm:$0xff] %v758
  %823 = vst [vmem:[#allocation2 + $0x18] sm:$0xff] %v759
  %824 = vst [vmem:[#allocation2 + $0x20] sm:$0xff] %v760
  %825 = vst [vmem:[#allocation2 + $0x28] sm:$0xff] %v761
  %826 = vst [vmem:[#allocation2 + $0x30] sm:$0xff] %v762
  %827 = vst [vmem:[#allocation2 + $0x38] sm:$0xff] %v763
  %828 = vst [vmem:[#allocation2 + $0x40] sm:$0xff] %v764
  %829 = vst [vmem:[#allocation2 + $0x48] sm:$0xff] %v765
  %830 = vst [vmem:[#allocation2 + $0x50] sm:$0xff] %v766
  %831 = vst [vmem:[#allocation2 + $0x58] sm:$0xff] %v767
  %832 = vst [vmem:[#allocation2 + $0x60] sm:$0xff] %v768
  %833 = vst [vmem:[#allocation2 + $0x68] sm:$0xff] %v769
  %834 = vst [vmem:[#allocation2 + $0x70] sm:$0xff] %v770
  %835 = vst [vmem:[#allocation2 + $0x78] sm:$0xff] %v771
  %836 = vst [vmem:[#allocation2 + $0x80] sm:$0xff] %v772
  %837 = vst [vmem:[#allocation2 + $0x88] sm:$0xff] %v773
  %838 = vst [vmem:[#allocation2 + $0x90] sm:$0xff] %v774
  %839 = vst [vmem:[#allocation2 + $0x98] sm:$0xff] %v775
  %840 = vst [vmem:[#allocation2 + $0xa0] sm:$0xff] %v776
  %841 = vst [vmem:[#allocation2 + $0xa8] sm:$0xff] %v777
  %842 = vst [vmem:[#allocation2 + $0xb0] sm:$0xff] %v778
  %843 = vst [vmem:[#allocation2 + $0xb8] sm:$0xff] %v779
  %844 = vst [vmem:[#allocation2 + $0xc0] sm:$0xff] %v780
  %845 = vst [vmem:[#allocation2 + $0xc8] sm:$0xff] %v781
  %846 = vst [vmem:[#allocation2 + $0xd0] sm:$0xff] %v782
  %847 = vst [vmem:[#allocation2 + $0xd8] sm:$0xff] %v783
  %848 = vst [vmem:[#allocation2 + $0xe0] sm:$0xff] %v784
  %849 = vst [vmem:[#allocation2 + $0xe8] sm:$0xff] %v785
  %850 = vst [vmem:[#allocation2 + $0xf0] sm:$0xff] %v786
  %851 = vst [vmem:[#allocation2 + $0xf8] sm:$0xff] %v787
  %852 = vst [vmem:[#allocation2 + $0x100] sm:$0xff] %v788
  %853 = vst [vmem:[#allocation2 + $0x108] sm:$0xff] %v789
  %854 = vst [vmem:[#allocation2 + $0x110] sm:$0xff] %v790
  %855 = vst [vmem:[#allocation2 + $0x118] sm:$0xff] %v791
  %856 = vst [vmem:[#allocation2 + $0x120] sm:$0xff] %v792
  %857 = vst [vmem:[#allocation2 + $0x128] sm:$0xff] %v793
  %858 = vst [vmem:[#allocation2 + $0x130] sm:$0xff] %v794
  %859 = vst [vmem:[#allocation2 + $0x138] sm:$0xff] %v795
  %860 = vst [vmem:[#allocation2 + $0x140] sm:$0xff] %v796
  %861 = vst [vmem:[#allocation2 + $0x148] sm:$0xff] %v797
  %862 = vst [vmem:[#allocation2 + $0x150] sm:$0xff] %v798
  %863 = vst [vmem:[#allocation2 + $0x158] sm:$0xff] %v799
  %864 = vst [vmem:[#allocation2 + $0x160] sm:$0xff] %v800
  %865 = vst [vmem:[#allocation2 + $0x168] sm:$0xff] %v801
  %866 = vst [vmem:[#allocation2 + $0x170] sm:$0xff] %v802
  %867 = vst [vmem:[#allocation2 + $0x178] sm:$0xff] %v803
  %868 = vst [vmem:[#allocation2 + $0x180] sm:$0xff] %v804
  %869 = vst [vmem:[#allocation2 + $0x188] sm:$0xff] %v805
  %870 = vst [vmem:[#allocation2 + $0x190] sm:$0xff] %v806
  %871 = vst [vmem:[#allocation2 + $0x198] sm:$0xff] %v807
  %872 = vst [vmem:[#allocation2 + $0x1a0] sm:$0xff] %v808
  %873 = vst [vmem:[#allocation2 + $0x1a8] sm:$0xff] %v809
  %874 = vst [vmem:[#allocation2 + $0x1b0] sm:$0xff] %v810
  %875 = vst [vmem:[#allocation2 + $0x1b8] sm:$0xff] %v811
  %876 = vst [vmem:[#allocation2 + $0x1c0] sm:$0xff] %v812
  %877 = vst [vmem:[#allocation2 + $0x1c8] sm:$0xff] %v813
  %878 = vst [vmem:[#allocation2 + $0x1d0] sm:$0xff] %v814
  %879 = vst [vmem:[#allocation2 + $0x1d8] sm:$0xff] %v815
  %880 = vst [vmem:[#allocation2 + $0x1e0] sm:$0xff] %v816
  %881 = vst [vmem:[#allocation2 + $0x1e8] sm:$0xff] %v817
  %882 = vst [vmem:[#allocation2 + $0x1f0] sm:$0xff] %v818
  %883 = vst [vmem:[#allocation2 + $0x1f8] sm:$0xff] %v819
  // Predicated region
  $region18: #{_lambda_.21} parent=0 // pred_check
    %p884 = pneg %p15
  $region19: #{_lambda_.21} parent=0 // pred_check_branch
    %886 = sbr.rel (%p884) target = $region21
  $region20: #{_lambda_.21} parent=0 // pred_region
    %v887 = vld [vmem:[#allocation2] sm:$0xff]
    %v888 = vld [vmem:[#allocation2 + $0x8] sm:$0xff]
    %v889 = vld [vmem:[#allocation2 + $0x10] sm:$0xff]
    %v890 = vld [vmem:[#allocation2 + $0x18] sm:$0xff]
    %v891 = vld [vmem:[#allocation2 + $0x20] sm:$0xff]
    %v892 = vld [vmem:[#allocation2 + $0x28] sm:$0xff]
    %v893 = vld [vmem:[#allocation2 + $0x30] sm:$0xff]
    %v894 = vld [vmem:[#allocation2 + $0x38] sm:$0xff]
    %v895 = vld [vmem:[#allocation2 + $0x40] sm:$0xff]
    %v896 = vld [vmem:[#allocation2 + $0x48] sm:$0xff]
    %v897 = vld [vmem:[#allocation2 + $0x50] sm:$0xff]
    %v898 = vld [vmem:[#allocation2 + $0x58] sm:$0xff]
    %v899 = vld [vmem:[#allocation2 + $0x60] sm:$0xff]
    %v900 = vld [vmem:[#allocation2 + $0x68] sm:$0xff]
    %v901 = vld [vmem:[#allocation2 + $0x70] sm:$0xff]
    %v902 = vld [vmem:[#allocation2 + $0x78] sm:$0xff]
    %v903 = vld [vmem:[#allocation2 + $0x80] sm:$0xff]
    %v904 = vld [vmem:[#allocation2 + $0x88] sm:$0xff]
    %v905 = vld [vmem:[#allocation2 + $0x90] sm:$0xff]
    %v906 = vld [vmem:[#allocation2 + $0x98] sm:$0xff]
    %v907 = vld [vmem:[#allocation2 + $0xa0] sm:$0xff]
    %v908 = vld [vmem:[#allocation2 + $0xa8] sm:$0xff]
    %v909 = vld [vmem:[#allocation2 + $0xb0] sm:$0xff]
    %v910 = vld [vmem:[#allocation2 + $0xb8] sm:$0xff]
    %v911 = vld [vmem:[#allocation2 + $0xc0] sm:$0xff]
    %v912 = vld [vmem:[#allocation2 + $0xc8] sm:$0xff]
    %v913 = vld [vmem:[#allocation2 + $0xd0] sm:$0xff]
    %v914 = vld [vmem:[#allocation2 + $0xd8] sm:$0xff]
    %v915 = vld [vmem:[#allocation2 + $0xe0] sm:$0xff]
    %v916 = vld [vmem:[#allocation2 + $0xe8] sm:$0xff]
    %v917 = vld [vmem:[#allocation2 + $0xf0] sm:$0xff]
    %v918 = vld [vmem:[#allocation2 + $0xf8] sm:$0xff]
    %v919 = vld [vmem:[#allocation2 + $0x100] sm:$0xff]
    %v920 = vld [vmem:[#allocation2 + $0x108] sm:$0xff]
    %v921 = vld [vmem:[#allocation2 + $0x110] sm:$0xff]
    %v922 = vld [vmem:[#allocation2 + $0x118] sm:$0xff]
    %v923 = vld [vmem:[#allocation2 + $0x120] sm:$0xff]
    %v924 = vld [vmem:[#allocation2 + $0x128] sm:$0xff]
    %v925 = vld [vmem:[#allocation2 + $0x130] sm:$0xff]
    %v926 = vld [vmem:[#allocation2 + $0x138] sm:$0xff]
    %v927 = vld [vmem:[#allocation2 + $0x140] sm:$0xff]
    %v928 = vld [vmem:[#allocation2 + $0x148] sm:$0xff]
    %v929 = vld [vmem:[#allocation2 + $0x150] sm:$0xff]
    %v930 = vld [vmem:[#allocation2 + $0x158] sm:$0xff]
    %v931 = vld [vmem:[#allocation2 + $0x160] sm:$0xff]
    %v932 = vld [vmem:[#allocation2 + $0x168] sm:$0xff]
    %v933 = vld [vmem:[#allocation2 + $0x170] sm:$0xff]
    %v934 = vld [vmem:[#allocation2 + $0x178] sm:$0xff]
    %v935 = vld [vmem:[#allocation2 + $0x180] sm:$0xff]
    %v936 = vld [vmem:[#allocation2 + $0x188] sm:$0xff]
    %v937 = vld [vmem:[#allocation2 + $0x190] sm:$0xff]
    %v938 = vld [vmem:[#allocation2 + $0x198] sm:$0xff]
    %v939 = vld [vmem:[#allocation2 + $0x1a0] sm:$0xff]
    %v940 = vld [vmem:[#allocation2 + $0x1a8] sm:$0xff]
    %v941 = vld [vmem:[#allocation2 + $0x1b0] sm:$0xff]
    %v942 = vld [vmem:[#allocation2 + $0x1b8] sm:$0xff]
    %v943 = vld [vmem:[#allocation2 + $0x1c0] sm:$0xff]
    %v944 = vld [vmem:[#allocation2 + $0x1c8] sm:$0xff]
    %v945 = vld [vmem:[#allocation2 + $0x1d0] sm:$0xff]
    %v946 = vld [vmem:[#allocation2 + $0x1d8] sm:$0xff]
    %v947 = vld [vmem:[#allocation2 + $0x1e0] sm:$0xff]
    %v948 = vld [vmem:[#allocation2 + $0x1e8] sm:$0xff]
    %v949 = vld [vmem:[#allocation2 + $0x1f0] sm:$0xff]
    %v950 = vld [vmem:[#allocation2 + $0x1f8] sm:$0xff]
    %v951 = vld [vmem:[%s2] sm:$0x1]
    %v953 = vlaneseq
    %v954 = vshrl.u32 %v953, 7
    %v955 = vsub.s32 0, %v954
    %v956 = vrot.slane %v951, %v955
    %v958 = vadd.f32 %v887, %v956
    %v959 = vadd.f32 %v888, %v956
    %v960 = vadd.f32 %v889, %v956
    %v961 = vadd.f32 %v890, %v956
    %v962 = vadd.f32 %v891, %v956
    %v963 = vadd.f32 %v892, %v956
    %v964 = vadd.f32 %v893, %v956
    %v965 = vadd.f32 %v894, %v956
    %v966 = vadd.f32 %v895, %v956
    %v967 = vadd.f32 %v896, %v956
    %v968 = vadd.f32 %v897, %v956
    %v969 = vadd.f32 %v898, %v956
    %v970 = vadd.f32 %v899, %v956
    %v971 = vadd.f32 %v900, %v956
    %v972 = vadd.f32 %v901, %v956
    %v973 = vadd.f32 %v902, %v956
    %v974 = vadd.f32 %v903, %v956
    %v975 = vadd.f32 %v904, %v956
    %v976 = vadd.f32 %v905, %v956
    %v977 = vadd.f32 %v906, %v956
    %v978 = vadd.f32 %v907, %v956
    %v979 = vadd.f32 %v908, %v956
    %v980 = vadd.f32 %v909, %v956
    %v981 = vadd.f32 %v910, %v956
    %v982 = vadd.f32 %v911, %v956
    %v983 = vadd.f32 %v912, %v956
    %v984 = vadd.f32 %v913, %v956
    %v985 = vadd.f32 %v914, %v956
    %v986 = vadd.f32 %v915, %v956
    %v987 = vadd.f32 %v916, %v956
    %v988 = vadd.f32 %v917, %v956
    %v989 = vadd.f32 %v918, %v956
    %v990 = vadd.f32 %v919, %v956
    %v991 = vadd.f32 %v920, %v956
    %v992 = vadd.f32 %v921, %v956
    %v993 = vadd.f32 %v922, %v956
    %v994 = vadd.f32 %v923, %v956
    %v995 = vadd.f32 %v924, %v956
    %v996 = vadd.f32 %v925, %v956
    %v997 = vadd.f32 %v926, %v956
    %v998 = vadd.f32 %v927, %v956
    %v999 = vadd.f32 %v928, %v956
    %v1000 = vadd.f32 %v929, %v956
    %v1001 = vadd.f32 %v930, %v956
    %v1002 = vadd.f32 %v931, %v956
    %v1003 = vadd.f32 %v932, %v956
    %v1004 = vadd.f32 %v933, %v956
    %v1005 = vadd.f32 %v934, %v956
    %v1006 = vadd.f32 %v935, %v956
    %v1007 = vadd.f32 %v936, %v956
    %v1008 = vadd.f32 %v937, %v956
    %v1009 = vadd.f32 %v938, %v956
    %v1010 = vadd.f32 %v939, %v956
    %v1011 = vadd.f32 %v940, %v956
    %v1012 = vadd.f32 %v941, %v956
    %v1013 = vadd.f32 %v942, %v956
    %v1014 = vadd.f32 %v943, %v956
    %v1015 = vadd.f32 %v944, %v956
    %v1016 = vadd.f32 %v945, %v956
    %v1017 = vadd.f32 %v946, %v956
    %v1018 = vadd.f32 %v947, %v956
    %v1019 = vadd.f32 %v948, %v956
    %v1020 = vadd.f32 %v949, %v956
    %v1021 = vadd.f32 %v950, %v956
    %v1022 = vmax.f32 %v958, 0.0
    %v1023 = vmax.f32 %v959, 0.0
    %v1024 = vmax.f32 %v960, 0.0
    %v1025 = vmax.f32 %v961, 0.0
    %v1026 = vmax.f32 %v962, 0.0
    %v1027 = vmax.f32 %v963, 0.0
    %v1028 = vmax.f32 %v964, 0.0
    %v1029 = vmax.f32 %v965, 0.0
    %v1030 = vmax.f32 %v966, 0.0
    %v1031 = vmax.f32 %v967, 0.0
    %v1032 = vmax.f32 %v968, 0.0
    %v1033 = vmax.f32 %v969, 0.0
    %v1034 = vmax.f32 %v970, 0.0
    %v1035 = vmax.f32 %v971, 0.0
    %v1036 = vmax.f32 %v972, 0.0
    %v1037 = vmax.f32 %v973, 0.0
    %v1038 = vmax.f32 %v974, 0.0
    %v1039 = vmax.f32 %v975, 0.0
    %v1040 = vmax.f32 %v976, 0.0
    %v1041 = vmax.f32 %v977, 0.0
    %v1042 = vmax.f32 %v978, 0.0
    %v1043 = vmax.f32 %v979, 0.0
    %v1044 = vmax.f32 %v980, 0.0
    %v1045 = vmax.f32 %v981, 0.0
    %v1046 = vmax.f32 %v982, 0.0
    %v1047 = vmax.f32 %v983, 0.0
    %v1048 = vmax.f32 %v984, 0.0
    %v1049 = vmax.f32 %v985, 0.0
    %v1050 = vmax.f32 %v986, 0.0
    %v1051 = vmax.f32 %v987, 0.0
    %v1052 = vmax.f32 %v988, 0.0
    %v1053 = vmax.f32 %v989, 0.0
    %v1054 = vmax.f32 %v990, 0.0
    %v1055 = vmax.f32 %v991, 0.0
    %v1056 = vmax.f32 %v992, 0.0
    %v1057 = vmax.f32 %v993, 0.0
    %v1058 = vmax.f32 %v994, 0.0
    %v1059 = vmax.f32 %v995, 0.0
    %v1060 = vmax.f32 %v996, 0.0
    %v1061 = vmax.f32 %v997, 0.0
    %v1062 = vmax.f32 %v998, 0.0
    %v1063 = vmax.f32 %v999, 0.0
    %v1064 = vmax.f32 %v1000, 0.0
    %v1065 = vmax.f32 %v1001, 0.0
    %v1066 = vmax.f32 %v1002, 0.0
    %v1067 = vmax.f32 %v1003, 0.0
    %v1068 = vmax.f32 %v1004, 0.0
    %v1069 = vmax.f32 %v1005, 0.0
    %v1070 = vmax.f32 %v1006, 0.0
    %v1071 = vmax.f32 %v1007, 0.0
    %v1072 = vmax.f32 %v1008, 0.0
    %v1073 = vmax.f32 %v1009, 0.0
    %v1074 = vmax.f32 %v1010, 0.0
    %v1075 = vmax.f32 %v1011, 0.0
    %v1076 = vmax.f32 %v1012, 0.0
    %v1077 = vmax.f32 %v1013, 0.0
    %v1078 = vmax.f32 %v1014, 0.0
    %v1079 = vmax.f32 %v1015, 0.0
    %v1080 = vmax.f32 %v1016, 0.0
    %v1081 = vmax.f32 %v1017, 0.0
    %v1082 = vmax.f32 %v1018, 0.0
    %v1083 = vmax.f32 %v1019, 0.0
    %v1084 = vmax.f32 %v1020, 0.0
    %v1085 = vmax.f32 %v1021, 0.0
    %1086 = vst [vmem:[%s3] sm:$0xff] %v1022
    %1087 = vst [vmem:[%s3 + $0x8] sm:$0xff] %v1023
    %1088 = vst [vmem:[%s3 + $0x10] sm:$0xff] %v1024
    %1089 = vst [vmem:[%s3 + $0x18] sm:$0xff] %v1025
    %1090 = vst [vmem:[%s3 + $0x20] sm:$0xff] %v1026
    %1091 = vst [vmem:[%s3 + $0x28] sm:$0xff] %v1027
    %1092 = vst [vmem:[%s3 + $0x30] sm:$0xff] %v1028
    %1093 = vst [vmem:[%s3 + $0x38] sm:$0xff] %v1029
    %1094 = vst [vmem:[%s3 + $0x40] sm:$0xff] %v1030
    %1095 = vst [vmem:[%s3 + $0x48] sm:$0xff] %v1031
    %1096 = vst [vmem:[%s3 + $0x50] sm:$0xff] %v1032
    %1097 = vst [vmem:[%s3 + $0x58] sm:$0xff] %v1033
    %1098 = vst [vmem:[%s3 + $0x60] sm:$0xff] %v1034
    %1099 = vst [vmem:[%s3 + $0x68] sm:$0xff] %v1035
    %1100 = vst [vmem:[%s3 + $0x70] sm:$0xff] %v1036
    %1101 = vst [vmem:[%s3 + $0x78] sm:$0xff] %v1037
    %1102 = vst [vmem:[%s3 + $0x80] sm:$0xff] %v1038
    %1103 = vst [vmem:[%s3 + $0x88] sm:$0xff] %v1039
    %1104 = vst [vmem:[%s3 + $0x90] sm:$0xff] %v1040
    %1105 = vst [vmem:[%s3 + $0x98] sm:$0xff] %v1041
    %1106 = vst [vmem:[%s3 + $0xa0] sm:$0xff] %v1042
    %1107 = vst [vmem:[%s3 + $0xa8] sm:$0xff] %v1043
    %1108 = vst [vmem:[%s3 + $0xb0] sm:$0xff] %v1044
    %1109 = vst [vmem:[%s3 + $0xb8] sm:$0xff] %v1045
    %1110 = vst [vmem:[%s3 + $0xc0] sm:$0xff] %v1046
    %1111 = vst [vmem:[%s3 + $0xc8] sm:$0xff] %v1047
    %1112 = vst [vmem:[%s3 + $0xd0] sm:$0xff] %v1048
    %1113 = vst [vmem:[%s3 + $0xd8] sm:$0xff] %v1049
    %1114 = vst [vmem:[%s3 + $0xe0] sm:$0xff] %v1050
    %1115 = vst [vmem:[%s3 + $0xe8] sm:$0xff] %v1051
    %1116 = vst [vmem:[%s3 + $0xf0] sm:$0xff] %v1052
    %1117 = vst [vmem:[%s3 + $0xf8] sm:$0xff] %v1053
    %1118 = vst [vmem:[%s3 + $0x100] sm:$0xff] %v1054
    %1119 = vst [vmem:[%s3 + $0x108] sm:$0xff] %v1055
    %1120 = vst [vmem:[%s3 + $0x110] sm:$0xff] %v1056
    %1121 = vst [vmem:[%s3 + $0x118] sm:$0xff] %v1057
    %1122 = vst [vmem:[%s3 + $0x120] sm:$0xff] %v1058
    %1123 = vst [vmem:[%s3 + $0x128] sm:$0xff] %v1059
    %1124 = vst [vmem:[%s3 + $0x130] sm:$0xff] %v1060
    %1125 = vst [vmem:[%s3 + $0x138] sm:$0xff] %v1061
    %1126 = vst [vmem:[%s3 + $0x140] sm:$0xff] %v1062
    %1127 = vst [vmem:[%s3 + $0x148] sm:$0xff] %v1063
    %1128 = vst [vmem:[%s3 + $0x150] sm:$0xff] %v1064
    %1129 = vst [vmem:[%s3 + $0x158] sm:$0xff] %v1065
    %1130 = vst [vmem:[%s3 + $0x160] sm:$0xff] %v1066
    %1131 = vst [vmem:[%s3 + $0x168] sm:$0xff] %v1067
    %1132 = vst [vmem:[%s3 + $0x170] sm:$0xff] %v1068
    %1133 = vst [vmem:[%s3 + $0x178] sm:$0xff] %v1069
    %1134 = vst [vmem:[%s3 + $0x180] sm:$0xff] %v1070
    %1135 = vst [vmem:[%s3 + $0x188] sm:$0xff] %v1071
    %1136 = vst [vmem:[%s3 + $0x190] sm:$0xff] %v1072
    %1137 = vst [vmem:[%s3 + $0x198] sm:$0xff] %v1073
    %1138 = vst [vmem:[%s3 + $0x1a0] sm:$0xff] %v1074
    %1139 = vst [vmem:[%s3 + $0x1a8] sm:$0xff] %v1075
    %1140 = vst [vmem:[%s3 + $0x1b0] sm:$0xff] %v1076
    %1141 = vst [vmem:[%s3 + $0x1b8] sm:$0xff] %v1077
    %1142 = vst [vmem:[%s3 + $0x1c0] sm:$0xff] %v1078
    %1143 = vst [vmem:[%s3 + $0x1c8] sm:$0xff] %v1079
    %1144 = vst [vmem:[%s3 + $0x1d0] sm:$0xff] %v1080
    %1145 = vst [vmem:[%s3 + $0x1d8] sm:$0xff] %v1081
    %1146 = vst [vmem:[%s3 + $0x1e0] sm:$0xff] %v1082
    %1147 = vst [vmem:[%s3 + $0x1e8] sm:$0xff] %v1083
    %1148 = vst [vmem:[%s3 + $0x1f0] sm:$0xff] %v1084
    %1149 = vst [vmem:[%s3 + $0x1f8] sm:$0xff] %v1085
  $region21: #{_lambda_.21} parent=0 // pred_fallthru
    _
  // Predicated region
  $region22: #{_lambda_.21} parent=0 // pred_check
    _
  $region23: #{_lambda_.21} parent=0 // pred_check_branch
    %1151 = sbr.rel (0) target = $region25
  $region24: #{_lambda_.21} parent=0 // pred_region
    _
  $region25: #{_lambda_.21} parent=0 // pred_fallthru
    _
  // Predicated region
  $region26: #{_lambda_.21} parent=0 // pred_check
    _
  $region27: #{_lambda_.21} parent=0 // pred_check_branch
    %1153 = sbr.rel (0) target = $region29
  $region28: #{_lambda_.21} parent=0 // pred_region
    _
  $region29: #{_lambda_.21} parent=0 // pred_fallthru
    _

// kernel: _lambda_.23
$region0: #{_lambda_.23}
  #allocation0 [shape = 'u32[]', space=smem, size = 0x4, offset = 0x4, fixed_abs, tag = 'smem constant byte address 0x4 - core index']
  #allocation1 [shape = 'u32[144,128]{1,0:T(1,128)}', space=vmem, size = 0x12000, scoped, tag = 'internal scratch']
  #allocation2 [shape = 'f32[512,128]{1,0:T(8,128)}', space=vmem, size = 0x40000, scoped, tag = 'scratch operand']
  %s0 = inlined_call_operand.vmem [shape: bf16[512,128], index: 0, kind: input, shape index: {}]
  %s1 = inlined_call_operand.vmem [shape: bf16[128,128], index: 1, kind: input, shape index: {}]
  %s2 = inlined_call_operand.vmem [shape: f32[1,128], index: 2, kind: input, shape index: {}]
  %s3 = inlined_call_operand.vmem [shape: f32[512,128], index: 3, kind: input, shape index: {}]
  %s4 = inlined_call_operand.vmem [shape: f32[512,128], index: 4, kind: output, shape index: {}]
  %s5 = sld [smem:[#allocation0]]
  $region34: #{_lambda_.23} parent=0
    _
  %s7 = ssub.s32 1, %s5
  %s8 = scalar_select 0, %s7, %s5
  // Predicated region
  $region2: #{_lambda_.23} parent=0 // pred_check
    _
  $region3: #{_lambda_.23} parent=0 // pred_check_branch
    %10 = sbr.rel (0) target = $region5
  $region4: #{_lambda_.23} parent=0 // pred_region
    _
  $region5: #{_lambda_.23} parent=0 // pred_fallthru
    _
  // Predicated region
  $region6: #{_lambda_.23} parent=0 // pred_check
    _
  $region7: #{_lambda_.23} parent=0 // pred_check_branch
    %12 = sbr.rel (0) target = $region9
  $region8: #{_lambda_.23} parent=0 // pred_region
    _
  $region9: #{_lambda_.23} parent=0 // pred_fallthru
    _
  // Predicated region
  $region10: #{_lambda_.23} parent=0 // pred_check
    _
  $region11: #{_lambda_.23} parent=0 // pred_check_branch
    %14 = sbr.rel (0) target = $region13
  $region12: #{_lambda_.23} parent=0 // pred_region
    _
  $region13: #{_lambda_.23} parent=0 // pred_fallthru
    _
  // Predicated region
  $region14: #{_lambda_.23} parent=0 // pred_check
    _
  $region15: #{_lambda_.23} parent=0 // pred_check_branch
    %16 = sbr.rel (0) target = $region17
  $region16: #{_lambda_.23} parent=0 // pred_region
    _
  $region17: #{_lambda_.23} parent=0 // pred_fallthru
    _
  %p18 = scmp.eq.s32.totalorder 0, 0
  // Predicated region
  $region18: #{_lambda_.23} parent=0 // pred_check
    %p19 = pneg %p18
  $region19: #{_lambda_.23} parent=0 // pred_check_branch
    %21 = sbr.rel (%p19) target = $region21
  $region20: #{_lambda_.23} parent=0 // pred_region
    %22 = vst [vmem:[#allocation2] sm:$0xff] 0.0
    %23 = vst [vmem:[#allocation2 + $0x8] sm:$0xff] 0.0
    %24 = vst [vmem:[#allocation2 + $0x10] sm:$0xff] 0.0
    %25 = vst [vmem:[#allocation2 + $0x18] sm:$0xff] 0.0
    %26 = vst [vmem:[#allocation2 + $0x20] sm:$0xff] 0.0
    %27 = vst [vmem:[#allocation2 + $0x28] sm:$0xff] 0.0
    %28 = vst [vmem:[#allocation2 + $0x30] sm:$0xff] 0.0
    %29 = vst [vmem:[#allocation2 + $0x38] sm:$0xff] 0.0
    %30 = vst [vmem:[#allocation2 + $0x40] sm:$0xff] 0.0
    %31 = vst [vmem:[#allocation2 + $0x48] sm:$0xff] 0.0
    %32 = vst [vmem:[#allocation2 + $0x50] sm:$0xff] 0.0
    %33 = vst [vmem:[#allocation2 + $0x58] sm:$0xff] 0.0
    %34 = vst [vmem:[#allocation2 + $0x60] sm:$0xff] 0.0
    %35 = vst [vmem:[#allocation2 + $0x68] sm:$0xff] 0.0
    %36 = vst [vmem:[#allocation2 + $0x70] sm:$0xff] 0.0
    %37 = vst [vmem:[#allocation2 + $0x78] sm:$0xff] 0.0
    %38 = vst [vmem:[#allocation2 + $0x80] sm:$0xff] 0.0
    %39 = vst [vmem:[#allocation2 + $0x88] sm:$0xff] 0.0
    %40 = vst [vmem:[#allocation2 + $0x90] sm:$0xff] 0.0
    %41 = vst [vmem:[#allocation2 + $0x98] sm:$0xff] 0.0
    %42 = vst [vmem:[#allocation2 + $0xa0] sm:$0xff] 0.0
    %43 = vst [vmem:[#allocation2 + $0xa8] sm:$0xff] 0.0
    %44 = vst [vmem:[#allocation2 + $0xb0] sm:$0xff] 0.0
    %45 = vst [vmem:[#allocation2 + $0xb8] sm:$0xff] 0.0
    %46 = vst [vmem:[#allocation2 + $0xc0] sm:$0xff] 0.0
    %47 = vst [vmem:[#allocation2 + $0xc8] sm:$0xff] 0.0
    %48 = vst [vmem:[#allocation2 + $0xd0] sm:$0xff] 0.0
    %49 = vst [vmem:[#allocation2 + $0xd8] sm:$0xff] 0.0
    %50 = vst [vmem:[#allocation2 + $0xe0] sm:$0xff] 0.0
    %51 = vst [vmem:[#allocation2 + $0xe8] sm:$0xff] 0.0
    %52 = vst [vmem:[#allocation2 + $0xf0] sm:$0xff] 0.0
    %53 = vst [vmem:[#allocation2 + $0xf8] sm:$0xff] 0.0
    %54 = vst [vmem:[#allocation2 + $0x100] sm:$0xff] 0.0
    %55 = vst [vmem:[#allocation2 + $0x108] sm:$0xff] 0.0
    %56 = vst [vmem:[#allocation2 + $0x110] sm:$0xff] 0.0
    %57 = vst [vmem:[#allocation2 + $0x118] sm:$0xff] 0.0
    %58 = vst [vmem:[#allocation2 + $0x120] sm:$0xff] 0.0
    %59 = vst [vmem:[#allocation2 + $0x128] sm:$0xff] 0.0
    %60 = vst [vmem:[#allocation2 + $0x130] sm:$0xff] 0.0
    %61 = vst [vmem:[#allocation2 + $0x138] sm:$0xff] 0.0
    %62 = vst [vmem:[#allocation2 + $0x140] sm:$0xff] 0.0
    %63 = vst [vmem:[#allocation2 + $0x148] sm:$0xff] 0.0
    %64 = vst [vmem:[#allocation2 + $0x150] sm:$0xff] 0.0
    %65 = vst [vmem:[#allocation2 + $0x158] sm:$0xff] 0.0
    %66 = vst [vmem:[#allocation2 + $0x160] sm:$0xff] 0.0
    %67 = vst [vmem:[#allocation2 + $0x168] sm:$0xff] 0.0
    %68 = vst [vmem:[#allocation2 + $0x170] sm:$0xff] 0.0
    %69 = vst [vmem:[#allocation2 + $0x178] sm:$0xff] 0.0
    %70 = vst [vmem:[#allocation2 + $0x180] sm:$0xff] 0.0
    %71 = vst [vmem:[#allocation2 + $0x188] sm:$0xff] 0.0
    %72 = vst [vmem:[#allocation2 + $0x190] sm:$0xff] 0.0
    %73 = vst [vmem:[#allocation2 + $0x198] sm:$0xff] 0.0
    %74 = vst [vmem:[#allocation2 + $0x1a0] sm:$0xff] 0.0
    %75 = vst [vmem:[#allocation2 + $0x1a8] sm:$0xff] 0.0
    %76 = vst [vmem:[#allocation2 + $0x1b0] sm:$0xff] 0.0
    %77 = vst [vmem:[#allocation2 + $0x1b8] sm:$0xff] 0.0
    %78 = vst [vmem:[#allocation2 + $0x1c0] sm:$0xff] 0.0
    %79 = vst [vmem:[#allocation2 + $0x1c8] sm:$0xff] 0.0
    %80 = vst [vmem:[#allocation2 + $0x1d0] sm:$0xff] 0.0
    %81 = vst [vmem:[#allocation2 + $0x1d8] sm:$0xff] 0.0
    %82 = vst [vmem:[#allocation2 + $0x1e0] sm:$0xff] 0.0
    %83 = vst [vmem:[#allocation2 + $0x1e8] sm:$0xff] 0.0
    %84 = vst [vmem:[#allocation2 + $0x1f0] sm:$0xff] 0.0
    %85 = vst [vmem:[#allocation2 + $0x1f8] sm:$0xff] 0.0
  $region21: #{_lambda_.23} parent=0 // pred_fallthru
    _
  %v86 = vld [vmem:[#allocation2] sm:$0xff]
  %v87 = vld [vmem:[#allocation2 + $0x8] sm:$0xff]
  %v88 = vld [vmem:[#allocation2 + $0x10] sm:$0xff]
  %v89 = vld [vmem:[#allocation2 + $0x18] sm:$0xff]
  %v90 = vld [vmem:[#allocation2 + $0x20] sm:$0xff]
  %v91 = vld [vmem:[#allocation2 + $0x28] sm:$0xff]
  %v92 = vld [vmem:[#allocation2 + $0x30] sm:$0xff]
  %v93 = vld [vmem:[#allocation2 + $0x38] sm:$0xff]
  %v94 = vld [vmem:[#allocation2 + $0x40] sm:$0xff]
  %v95 = vld [vmem:[#allocation2 + $0x48] sm:$0xff]
  %v96 = vld [vmem:[#allocation2 + $0x50] sm:$0xff]
  %v97 = vld [vmem:[#allocation2 + $0x58] sm:$0xff]
  %v98 = vld [vmem:[#allocation2 + $0x60] sm:$0xff]
  %v99 = vld [vmem:[#allocation2 + $0x68] sm:$0xff]
  %v100 = vld [vmem:[#allocation2 + $0x70] sm:$0xff]
  %v101 = vld [vmem:[#allocation2 + $0x78] sm:$0xff]
  %v102 = vld [vmem:[#allocation2 + $0x80] sm:$0xff]
  %v103 = vld [vmem:[#allocation2 + $0x88] sm:$0xff]
  %v104 = vld [vmem:[#allocation2 + $0x90] sm:$0xff]
  %v105 = vld [vmem:[#allocation2 + $0x98] sm:$0xff]
  %v106 = vld [vmem:[#allocation2 + $0xa0] sm:$0xff]
  %v107 = vld [vmem:[#allocation2 + $0xa8] sm:$0xff]
  %v108 = vld [vmem:[#allocation2 + $0xb0] sm:$0xff]
  %v109 = vld [vmem:[#allocation2 + $0xb8] sm:$0xff]
  %v110 = vld [vmem:[#allocation2 + $0xc0] sm:$0xff]
  %v111 = vld [vmem:[#allocation2 + $0xc8] sm:$0xff]
  %v112 = vld [vmem:[#allocation2 + $0xd0] sm:$0xff]
  %v113 = vld [vmem:[#allocation2 + $0xd8] sm:$0xff]
  %v114 = vld [vmem:[#allocation2 + $0xe0] sm:$0xff]
  %v115 = vld [vmem:[#allocation2 + $0xe8] sm:$0xff]
  %v116 = vld [vmem:[#allocation2 + $0xf0] sm:$0xff]
  %v117 = vld [vmem:[#allocation2 + $0xf8] sm:$0xff]
  %v118 = vld [vmem:[#allocation2 + $0x100] sm:$0xff]
  %v119 = vld [vmem:[#allocation2 + $0x108] sm:$0xff]
  %v120 = vld [vmem:[#allocation2 + $0x110] sm:$0xff]
  %v121 = vld [vmem:[#allocation2 + $0x118] sm:$0xff]
  %v122 = vld [vmem:[#allocation2 + $0x120] sm:$0xff]
  %v123 = vld [vmem:[#allocation2 + $0x128] sm:$0xff]
  %v124 = vld [vmem:[#allocation2 + $0x130] sm:$0xff]
  %v125 = vld [vmem:[#allocation2 + $0x138] sm:$0xff]
  %v126 = vld [vmem:[#allocation2 + $0x140] sm:$0xff]
  %v127 = vld [vmem:[#allocation2 + $0x148] sm:$0xff]
  %v128 = vld [vmem:[#allocation2 + $0x150] sm:$0xff]
  %v129 = vld [vmem:[#allocation2 + $0x158] sm:$0xff]
  %v130 = vld [vmem:[#allocation2 + $0x160] sm:$0xff]
  %v131 = vld [vmem:[#allocation2 + $0x168] sm:$0xff]
  %v132 = vld [vmem:[#allocation2 + $0x170] sm:$0xff]
  %v133 = vld [vmem:[#allocation2 + $0x178] sm:$0xff]
  %v134 = vld [vmem:[#allocation2 + $0x180] sm:$0xff]
  %v135 = vld [vmem:[#allocation2 + $0x188] sm:$0xff]
  %v136 = vld [vmem:[#allocation2 + $0x190] sm:$0xff]
  %v137 = vld [vmem:[#allocation2 + $0x198] sm:$0xff]
  %v138 = vld [vmem:[#allocation2 + $0x1a0] sm:$0xff]
  %v139 = vld [vmem:[#allocation2 + $0x1a8] sm:$0xff]
  %v140 = vld [vmem:[#allocation2 + $0x1b0] sm:$0xff]
  %v141 = vld [vmem:[#allocation2 + $0x1b8] sm:$0xff]
  %v142 = vld [vmem:[#allocation2 + $0x1c0] sm:$0xff]
  %v143 = vld [vmem:[#allocation2 + $0x1c8] sm:$0xff]
  %v144 = vld [vmem:[#allocation2 + $0x1d0] sm:$0xff]
  %v145 = vld [vmem:[#allocation2 + $0x1d8] sm:$0xff]
  %v146 = vld [vmem:[#allocation2 + $0x1e0] sm:$0xff]
  %v147 = vld [vmem:[#allocation2 + $0x1e8] sm:$0xff]
  %v148 = vld [vmem:[#allocation2 + $0x1f0] sm:$0xff]
  %v149 = vld [vmem:[#allocation2 + $0x1f8] sm:$0xff]
  %v150 = vld [vmem:[%s0] sm:$0xf]
  %v151 = vld [vmem:[%s0 + $0x4] sm:$0xf]
  %v152 = vld [vmem:[%s0 + $0x8] sm:$0xf]
  %v153 = vld [vmem:[%s0 + $0xc] sm:$0xf]
  %v154 = vld [vmem:[%s0 + $0x10] sm:$0xf]
  %v155 = vld [vmem:[%s0 + $0x14] sm:$0xf]
  %v156 = vld [vmem:[%s0 + $0x18] sm:$0xf]
  %v157 = vld [vmem:[%s0 + $0x1c] sm:$0xf]
  %v158 = vld [vmem:[%s0 + $0x20] sm:$0xf]
  %v159 = vld [vmem:[%s0 + $0x24] sm:$0xf]
  %v160 = vld [vmem:[%s0 + $0x28] sm:$0xf]
  %v161 = vld [vmem:[%s0 + $0x2c] sm:$0xf]
  %v162 = vld [vmem:[%s0 + $0x30] sm:$0xf]
  %v163 = vld [vmem:[%s0 + $0x34] sm:$0xf]
  %v164 = vld [vmem:[%s0 + $0x38] sm:$0xf]
  %v165 = vld [vmem:[%s0 + $0x3c] sm:$0xf]
  %v166 = vld [vmem:[%s0 + $0x40] sm:$0xf]
  %v167 = vld [vmem:[%s0 + $0x44] sm:$0xf]
  %v168 = vld [vmem:[%s0 + $0x48] sm:$0xf]
  %v169 = vld [vmem:[%s0 + $0x4c] sm:$0xf]
  %v170 = vld [vmem:[%s0 + $0x50] sm:$0xf]
  %v171 = vld [vmem:[%s0 + $0x54] sm:$0xf]
  %v172 = vld [vmem:[%s0 + $0x58] sm:$0xf]
  %v173 = vld [vmem:[%s0 + $0x5c] sm:$0xf]
  %v174 = vld [vmem:[%s0 + $0x60] sm:$0xf]
  %v175 = vld [vmem:[%s0 + $0x64] sm:$0xf]
  %v176 = vld [vmem:[%s0 + $0x68] sm:$0xf]
  %v177 = vld [vmem:[%s0 + $0x6c] sm:$0xf]
  %v178 = vld [vmem:[%s0 + $0x70] sm:$0xf]
  %v179 = vld [vmem:[%s0 + $0x74] sm:$0xf]
  %v180 = vld [vmem:[%s0 + $0x78] sm:$0xf]
  %v181 = vld [vmem:[%s0 + $0x7c] sm:$0xf]
  %v182 = vld [vmem:[%s0 + $0x80] sm:$0xf]
  %v183 = vld [vmem:[%s0 + $0x84] sm:$0xf]
  %v184 = vld [vmem:[%s0 + $0x88] sm:$0xf]
  %v185 = vld [vmem:[%s0 + $0x8c] sm:$0xf]
  %v186 = vld [vmem:[%s0 + $0x90] sm:$0xf]
  %v187 = vld [vmem:[%s0 + $0x94] sm:$0xf]
  %v188 = vld [vmem:[%s0 + $0x98] sm:$0xf]
  %v189 = vld [vmem:[%s0 + $0x9c] sm:$0xf]
  %v190 = vld [vmem:[%s0 + $0xa0] sm:$0xf]
  %v191 = vld [vmem:[%s0 + $0xa4] sm:$0xf]
  %v192 = vld [vmem:[%s0 + $0xa8] sm:$0xf]
  %v193 = vld [vmem:[%s0 + $0xac] sm:$0xf]
  %v194 = vld [vmem:[%s0 + $0xb0] sm:$0xf]
  %v195 = vld [vmem:[%s0 + $0xb4] sm:$0xf]
  %v196 = vld [vmem:[%s0 + $0xb8] sm:$0xf]
  %v197 = vld [vmem:[%s0 + $0xbc] sm:$0xf]
  %v198 = vld [vmem:[%s0 + $0xc0] sm:$0xf]
  %v199 = vld [vmem:[%s0 + $0xc4] sm:$0xf]
  %v200 = vld [vmem:[%s0 + $0xc8] sm:$0xf]
  %v201 = vld [vmem:[%s0 + $0xcc] sm:$0xf]
  %v202 = vld [vmem:[%s0 + $0xd0] sm:$0xf]
  %v203 = vld [vmem:[%s0 + $0xd4] sm:$0xf]
  %v204 = vld [vmem:[%s0 + $0xd8] sm:$0xf]
  %v205 = vld [vmem:[%s0 + $0xdc] sm:$0xf]
  %v206 = vld [vmem:[%s0 + $0xe0] sm:$0xf]
  %v207 = vld [vmem:[%s0 + $0xe4] sm:$0xf]
  %v208 = vld [vmem:[%s0 + $0xe8] sm:$0xf]
  %v209 = vld [vmem:[%s0 + $0xec] sm:$0xf]
  %v210 = vld [vmem:[%s0 + $0xf0] sm:$0xf]
  %v211 = vld [vmem:[%s0 + $0xf4] sm:$0xf]
  %v212 = vld [vmem:[%s0 + $0xf8] sm:$0xf]
  %v213 = vld [vmem:[%s0 + $0xfc] sm:$0xf]
  %v214 = vld [vmem:[%s1] sm:$0xf]
  %v215 = vld [vmem:[%s1 + $0x4] sm:$0xf]
  %v216 = vld [vmem:[%s1 + $0x8] sm:$0xf]
  %v217 = vld [vmem:[%s1 + $0xc] sm:$0xf]
  %v218 = vld [vmem:[%s1 + $0x10] sm:$0xf]
  %v219 = vld [vmem:[%s1 + $0x14] sm:$0xf]
  %v220 = vld [vmem:[%s1 + $0x18] sm:$0xf]
  %v221 = vld [vmem:[%s1 + $0x1c] sm:$0xf]
  %v222 = vld [vmem:[%s1 + $0x20] sm:$0xf]
  %v223 = vld [vmem:[%s1 + $0x24] sm:$0xf]
  %v224 = vld [vmem:[%s1 + $0x28] sm:$0xf]
  %v225 = vld [vmem:[%s1 + $0x2c] sm:$0xf]
  %v226 = vld [vmem:[%s1 + $0x30] sm:$0xf]
  %v227 = vld [vmem:[%s1 + $0x34] sm:$0xf]
  %v228 = vld [vmem:[%s1 + $0x38] sm:$0xf]
  %v229 = vld [vmem:[%s1 + $0x3c] sm:$0xf]
  %v294 = vunpack.c.l.b16 %v150
  %v295 = vunpack.c.l.b16 %v151
  %v296 = vunpack.c.l.b16 %v152
  %v297 = vunpack.c.l.b16 %v153
  %v298 = vunpack.c.l.b16 %v154
  %v299 = vunpack.c.l.b16 %v155
  %v300 = vunpack.c.l.b16 %v156
  %v301 = vunpack.c.l.b16 %v157
  %v302 = vunpack.c.l.b16 %v158
  %v303 = vunpack.c.l.b16 %v159
  %v304 = vunpack.c.l.b16 %v160
  %v305 = vunpack.c.l.b16 %v161
  %v306 = vunpack.c.l.b16 %v162
  %v307 = vunpack.c.l.b16 %v163
  %v308 = vunpack.c.l.b16 %v164
  %v309 = vunpack.c.l.b16 %v165
  %v310 = vunpack.c.l.b16 %v166
  %v311 = vunpack.c.l.b16 %v167
  %v312 = vunpack.c.l.b16 %v168
  %v313 = vunpack.c.l.b16 %v169
  %v314 = vunpack.c.l.b16 %v170
  %v315 = vunpack.c.l.b16 %v171
  %v316 = vunpack.c.l.b16 %v172
  %v317 = vunpack.c.l.b16 %v173
  %v318 = vunpack.c.l.b16 %v174
  %v319 = vunpack.c.l.b16 %v175
  %v320 = vunpack.c.l.b16 %v176
  %v321 = vunpack.c.l.b16 %v177
  %v322 = vunpack.c.l.b16 %v178
  %v323 = vunpack.c.l.b16 %v179
  %v324 = vunpack.c.l.b16 %v180
  %v325 = vunpack.c.l.b16 %v181
  %v326 = vunpack.c.l.b16 %v182
  %v327 = vunpack.c.l.b16 %v183
  %v328 = vunpack.c.l.b16 %v184
  %v329 = vunpack.c.l.b16 %v185
  %v330 = vunpack.c.l.b16 %v186
  %v331 = vunpack.c.l.b16 %v187
  %v332 = vunpack.c.l.b16 %v188
  %v333 = vunpack.c.l.b16 %v189
  %v334 = vunpack.c.l.b16 %v190
  %v335 = vunpack.c.l.b16 %v191
  %v336 = vunpack.c.l.b16 %v192
  %v337 = vunpack.c.l.b16 %v193
  %v338 = vunpack.c.l.b16 %v194
  %v339 = vunpack.c.l.b16 %v195
  %v340 = vunpack.c.l.b16 %v196
  %v341 = vunpack.c.l.b16 %v197
  %v342 = vunpack.c.l.b16 %v198
  %v343 = vunpack.c.l.b16 %v199
  %v344 = vunpack.c.l.b16 %v200
  %v345 = vunpack.c.l.b16 %v201
  %v346 = vunpack.c.l.b16 %v202
  %v347 = vunpack.c.l.b16 %v203
  %v348 = vunpack.c.l.b16 %v204
  %v349 = vunpack.c.l.b16 %v205
  %v350 = vunpack.c.l.b16 %v206
  %v351 = vunpack.c.l.b16 %v207
  %v352 = vunpack.c.l.b16 %v208
  %v353 = vunpack.c.l.b16 %v209
  %v354 = vunpack.c.l.b16 %v210
  %v355 = vunpack.c.l.b16 %v211
  %v356 = vunpack.c.l.b16 %v212
  %v357 = vunpack.c.l.b16 %v213
  %v358 = vpack.c.b16 %v295, %v294
  %v359 = vpack.c.b16 %v297, %v296
  %v360 = vpack.c.b16 %v299, %v298
  %v361 = vpack.c.b16 %v301, %v300
  %v362 = vpack.c.b16 %v303, %v302
  %v363 = vpack.c.b16 %v305, %v304
  %v364 = vpack.c.b16 %v307, %v306
  %v365 = vpack.c.b16 %v309, %v308
  %v366 = vpack.c.b16 %v311, %v310
  %v367 = vpack.c.b16 %v313, %v312
  %v368 = vpack.c.b16 %v315, %v314
  %v369 = vpack.c.b16 %v317, %v316
  %v370 = vpack.c.b16 %v319, %v318
  %v371 = vpack.c.b16 %v321, %v320
  %v372 = vpack.c.b16 %v323, %v322
  %v373 = vpack.c.b16 %v325, %v324
  %v374 = vpack.c.b16 %v327, %v326
  %v375 = vpack.c.b16 %v329, %v328
  %v376 = vpack.c.b16 %v331, %v330
  %v377 = vpack.c.b16 %v333, %v332
  %v378 = vpack.c.b16 %v335, %v334
  %v379 = vpack.c.b16 %v337, %v336
  %v380 = vpack.c.b16 %v339, %v338
  %v381 = vpack.c.b16 %v341, %v340
  %v382 = vpack.c.b16 %v343, %v342
  %v383 = vpack.c.b16 %v345, %v344
  %v384 = vpack.c.b16 %v347, %v346
  %v385 = vpack.c.b16 %v349, %v348
  %v386 = vpack.c.b16 %v351, %v350
  %v387 = vpack.c.b16 %v353, %v352
  %v388 = vpack.c.b16 %v355, %v354
  %v389 = vpack.c.b16 %v357, %v356
  %v438 = vunpack.c.l.b16 %v214
  %v439 = vunpack.c.l.b16 %v215
  %v440 = vunpack.c.l.b16 %v216
  %v441 = vunpack.c.l.b16 %v217
  %v442 = vunpack.c.l.b16 %v218
  %v443 = vunpack.c.l.b16 %v219
  %v444 = vunpack.c.l.b16 %v220
  %v445 = vunpack.c.l.b16 %v221
  %v446 = vunpack.c.l.b16 %v222
  %v447 = vunpack.c.l.b16 %v223
  %v448 = vunpack.c.l.b16 %v224
  %v449 = vunpack.c.l.b16 %v225
  %v450 = vunpack.c.l.b16 %v226
  %v451 = vunpack.c.l.b16 %v227
  %v452 = vunpack.c.l.b16 %v228
  %v453 = vunpack.c.l.b16 %v229
  %v454 = vpack.c.b16 %v439, %v438
  %v455 = vpack.c.b16 %v441, %v440
  %v456 = vpack.c.b16 %v443, %v442
  %v457 = vpack.c.b16 %v445, %v444
  %v458 = vpack.c.b16 %v447, %v446
  %v459 = vpack.c.b16 %v449, %v448
  %v460 = vpack.c.b16 %v451, %v450
  %v461 = vpack.c.b16 %v453, %v452
  %470 = vmatprep.subr.bf16.mxu0 0
  %471 = vmatpush1.bf16.msra.mxu0 %v461
  %472 = vmatprep.subr.bf16.mxu0 0
  %473 = vmatpush1.bf16.msra.mxu0 %v460
  %474 = vmatprep.subr.bf16.mxu0 0
  %475 = vmatpush1.bf16.msra.mxu0 %v459
  %476 = vmatprep.subr.bf16.mxu0 0
  %477 = vmatpush1.bf16.msra.mxu0 %v458
  %478 = vmatprep.subr.bf16.mxu0 0
  %479 = vmatpush1.bf16.msra.mxu0 %v457
  %480 = vmatprep.subr.bf16.mxu0 0
  %481 = vmatpush1.bf16.msra.mxu0 %v456
  %482 = vmatprep.subr.bf16.mxu0 0
  %483 = vmatpush1.bf16.msra.mxu0 %v455
  %484 = vmatprep.subr.bf16.mxu0 0
  %485 = vmatpush1.bf16.msra.mxu0 %v454
  %486 = vmatprep.subr.bf16.mxu0 0
  %487 = vmatpush2.bf16.msra.mxu0 0
  %488 = vmatprep.subr.bf16.mxu0 0
  %489 = vmatpush2.bf16.msra.mxu0 0
  %490 = vmatprep.subr.bf16.mxu0 0
  %491 = vmatpush2.bf16.msra.mxu0 0
  %492 = vmatprep.subr.bf16.mxu0 0
  %493 = vmatpush2.bf16.msra.mxu0 0
  %494 = vmatprep.subr.bf16.mxu0 0
  %495 = vmatpush2.bf16.msra.mxu0 0
  %496 = vmatprep.subr.bf16.mxu0 0
  %497 = vmatpush2.bf16.msra.mxu0 0
  %498 = vmatprep.subr.bf16.mxu0 0
  %499 = vmatpush2.bf16.msra.mxu0 0
  %500 = vmatprep.subr.bf16.mxu0 0
  %501 = vmatpush2.bf16.msra.mxu0 0
  %502 = vmatprep.mubr.bf16.mxu0 0
  %503 = vmatmul.mubr.bf16.gmra.mxu0 %v358
  %v504 = vpop.f32.mrf.mxu0
  %v505 = vadd.f32 0.0, %v504
  %v506 = vpop.f32.mrf.mxu0
  %v507 = vpop.f32.mrf.mxu0
  %v508 = vadd.f32 0.0, %v507
  %v509 = vpop.f32.mrf.mxu0
  %510 = vmatprep.mubr.bf16.mxu0 0
  %511 = vmatmul.mubr.bf16.gmra.mxu0 %v359
  %v512 = vpop.f32.mrf.mxu0
  %v513 = vadd.f32 0.0, %v512
  %v514 = vpop.f32.mrf.mxu0
  %v515 = vpop.f32.mrf.mxu0
  %v516 = vadd.f32 0.0, %v515
  %v517 = vpop.f32.mrf.mxu0
  %518 = vmatprep.mubr.bf16.mxu0 0
  %519 = vmatmul.mubr.bf16.gmra.mxu0 %v360
  %v520 = vpop.f32.mrf.mxu0
  %v521 = vadd.f32 0.0, %v520
  %v522 = vpop.f32.mrf.mxu0
  %v523 = vpop.f32.mrf.mxu0
  %v524 = vadd.f32 0.0, %v523
  %v525 = vpop.f32.mrf.mxu0
  %526 = vmatprep.mubr.bf16.mxu0 0
  %527 = vmatmul.mubr.bf16.gmra.mxu0 %v361
  %v528 = vpop.f32.mrf.mxu0
  %v529 = vadd.f32 0.0, %v528
  %v530 = vpop.f32.mrf.mxu0
  %v531 = vpop.f32.mrf.mxu0
  %v532 = vadd.f32 0.0, %v531
  %v533 = vpop.f32.mrf.mxu0
  %534 = vmatprep.mubr.bf16.mxu0 0
  %535 = vmatmul.mubr.bf16.gmra.mxu0 %v362
  %v536 = vpop.f32.mrf.mxu0
  %v537 = vadd.f32 0.0, %v536
  %v538 = vpop.f32.mrf.mxu0
  %v539 = vpop.f32.mrf.mxu0
  %v540 = vadd.f32 0.0, %v539
  %v541 = vpop.f32.mrf.mxu0
  %542 = vmatprep.mubr.bf16.mxu0 0
  %543 = vmatmul.mubr.bf16.gmra.mxu0 %v363
  %v544 = vpop.f32.mrf.mxu0
  %v545 = vadd.f32 0.0, %v544
  %v546 = vpop.f32.mrf.mxu0
  %v547 = vpop.f32.mrf.mxu0
  %v548 = vadd.f32 0.0, %v547
  %v549 = vpop.f32.mrf.mxu0
  %550 = vmatprep.mubr.bf16.mxu0 0
  %551 = vmatmul.mubr.bf16.gmra.mxu0 %v364
  %v552 = vpop.f32.mrf.mxu0
  %v553 = vadd.f32 0.0, %v552
  %v554 = vpop.f32.mrf.mxu0
  %v555 = vpop.f32.mrf.mxu0
  %v556 = vadd.f32 0.0, %v555
  %v557 = vpop.f32.mrf.mxu0
  %558 = vmatprep.mubr.bf16.mxu0 0
  %559 = vmatmul.mubr.bf16.gmra.mxu0 %v365
  %v560 = vpop.f32.mrf.mxu0
  %v561 = vadd.f32 0.0, %v560
  %v562 = vpop.f32.mrf.mxu0
  %v563 = vpop.f32.mrf.mxu0
  %v564 = vadd.f32 0.0, %v563
  %v565 = vpop.f32.mrf.mxu0
  %566 = vmatprep.mubr.bf16.mxu0 0
  %567 = vmatmul.mubr.bf16.gmra.mxu0 %v366
  %v568 = vpop.f32.mrf.mxu0
  %v569 = vadd.f32 0.0, %v568
  %v570 = vpop.f32.mrf.mxu0
  %v571 = vpop.f32.mrf.mxu0
  %v572 = vadd.f32 0.0, %v571
  %v573 = vpop.f32.mrf.mxu0
  %574 = vmatprep.mubr.bf16.mxu0 0
  %575 = vmatmul.mubr.bf16.gmra.mxu0 %v367
  %v576 = vpop.f32.mrf.mxu0
  %v577 = vadd.f32 0.0, %v576
  %v578 = vpop.f32.mrf.mxu0
  %v579 = vpop.f32.mrf.mxu0
  %v580 = vadd.f32 0.0, %v579
  %v581 = vpop.f32.mrf.mxu0
  %582 = vmatprep.mubr.bf16.mxu0 0
  %583 = vmatmul.mubr.bf16.gmra.mxu0 %v368
  %v584 = vpop.f32.mrf.mxu0
  %v585 = vadd.f32 0.0, %v584
  %v586 = vpop.f32.mrf.mxu0
  %v587 = vpop.f32.mrf.mxu0
  %v588 = vadd.f32 0.0, %v587
  %v589 = vpop.f32.mrf.mxu0
  %590 = vmatprep.mubr.bf16.mxu0 0
  %591 = vmatmul.mubr.bf16.gmra.mxu0 %v369
  %v592 = vpop.f32.mrf.mxu0
  %v593 = vadd.f32 0.0, %v592
  %v594 = vpop.f32.mrf.mxu0
  %v595 = vpop.f32.mrf.mxu0
  %v596 = vadd.f32 0.0, %v595
  %v597 = vpop.f32.mrf.mxu0
  %598 = vmatprep.mubr.bf16.mxu0 0
  %599 = vmatmul.mubr.bf16.gmra.mxu0 %v370
  %v600 = vpop.f32.mrf.mxu0
  %v601 = vadd.f32 0.0, %v600
  %v602 = vpop.f32.mrf.mxu0
  %v603 = vpop.f32.mrf.mxu0
  %v604 = vadd.f32 0.0, %v603
  %v605 = vpop.f32.mrf.mxu0
  %606 = vmatprep.mubr.bf16.mxu0 0
  %607 = vmatmul.mubr.bf16.gmra.mxu0 %v371
  %v608 = vpop.f32.mrf.mxu0
  %v609 = vadd.f32 0.0, %v608
  %v610 = vpop.f32.mrf.mxu0
  %v611 = vpop.f32.mrf.mxu0
  %v612 = vadd.f32 0.0, %v611
  %v613 = vpop.f32.mrf.mxu0
  %614 = vmatprep.mubr.bf16.mxu0 0
  %615 = vmatmul.mubr.bf16.gmra.mxu0 %v372
  %v616 = vpop.f32.mrf.mxu0
  %v617 = vadd.f32 0.0, %v616
  %v618 = vpop.f32.mrf.mxu0
  %v619 = vpop.f32.mrf.mxu0
  %v620 = vadd.f32 0.0, %v619
  %v621 = vpop.f32.mrf.mxu0
  %622 = vmatprep.mubr.bf16.mxu0 0
  %623 = vmatmul.mubr.bf16.gmra.mxu0 %v373
  %v624 = vpop.f32.mrf.mxu0
  %v625 = vadd.f32 0.0, %v624
  %v626 = vpop.f32.mrf.mxu0
  %v627 = vpop.f32.mrf.mxu0
  %v628 = vadd.f32 0.0, %v627
  %v629 = vpop.f32.mrf.mxu0
  %630 = vmatprep.mubr.bf16.mxu0 0
  %631 = vmatmul.mubr.bf16.gmra.mxu0 %v374
  %v632 = vpop.f32.mrf.mxu0
  %v633 = vadd.f32 0.0, %v632
  %v634 = vpop.f32.mrf.mxu0
  %v635 = vpop.f32.mrf.mxu0
  %v636 = vadd.f32 0.0, %v635
  %v637 = vpop.f32.mrf.mxu0
  %638 = vmatprep.mubr.bf16.mxu0 0
  %639 = vmatmul.mubr.bf16.gmra.mxu0 %v375
  %v640 = vpop.f32.mrf.mxu0
  %v641 = vadd.f32 0.0, %v640
  %v642 = vpop.f32.mrf.mxu0
  %v643 = vpop.f32.mrf.mxu0
  %v644 = vadd.f32 0.0, %v643
  %v645 = vpop.f32.mrf.mxu0
  %646 = vmatprep.mubr.bf16.mxu0 0
  %647 = vmatmul.mubr.bf16.gmra.mxu0 %v376
  %v648 = vpop.f32.mrf.mxu0
  %v649 = vadd.f32 0.0, %v648
  %v650 = vpop.f32.mrf.mxu0
  %v651 = vpop.f32.mrf.mxu0
  %v652 = vadd.f32 0.0, %v651
  %v653 = vpop.f32.mrf.mxu0
  %654 = vmatprep.mubr.bf16.mxu0 0
  %655 = vmatmul.mubr.bf16.gmra.mxu0 %v377
  %v656 = vpop.f32.mrf.mxu0
  %v657 = vadd.f32 0.0, %v656
  %v658 = vpop.f32.mrf.mxu0
  %v659 = vpop.f32.mrf.mxu0
  %v660 = vadd.f32 0.0, %v659
  %v661 = vpop.f32.mrf.mxu0
  %662 = vmatprep.mubr.bf16.mxu0 0
  %663 = vmatmul.mubr.bf16.gmra.mxu0 %v378
  %v664 = vpop.f32.mrf.mxu0
  %v665 = vadd.f32 0.0, %v664
  %v666 = vpop.f32.mrf.mxu0
  %v667 = vpop.f32.mrf.mxu0
  %v668 = vadd.f32 0.0, %v667
  %v669 = vpop.f32.mrf.mxu0
  %670 = vmatprep.mubr.bf16.mxu0 0
  %671 = vmatmul.mubr.bf16.gmra.mxu0 %v379
  %v672 = vpop.f32.mrf.mxu0
  %v673 = vadd.f32 0.0, %v672
  %v674 = vpop.f32.mrf.mxu0
  %v675 = vpop.f32.mrf.mxu0
  %v676 = vadd.f32 0.0, %v675
  %v677 = vpop.f32.mrf.mxu0
  %678 = vmatprep.mubr.bf16.mxu0 0
  %679 = vmatmul.mubr.bf16.gmra.mxu0 %v380
  %v680 = vpop.f32.mrf.mxu0
  %v681 = vadd.f32 0.0, %v680
  %v682 = vpop.f32.mrf.mxu0
  %v683 = vpop.f32.mrf.mxu0
  %v684 = vadd.f32 0.0, %v683
  %v685 = vpop.f32.mrf.mxu0
  %686 = vmatprep.mubr.bf16.mxu0 0
  %687 = vmatmul.mubr.bf16.gmra.mxu0 %v381
  %v688 = vpop.f32.mrf.mxu0
  %v689 = vadd.f32 0.0, %v688
  %v690 = vpop.f32.mrf.mxu0
  %v691 = vpop.f32.mrf.mxu0
  %v692 = vadd.f32 0.0, %v691
  %v693 = vpop.f32.mrf.mxu0
  %694 = vmatprep.mubr.bf16.mxu0 0
  %695 = vmatmul.mubr.bf16.gmra.mxu0 %v382
  %v696 = vpop.f32.mrf.mxu0
  %v697 = vadd.f32 0.0, %v696
  %v698 = vpop.f32.mrf.mxu0
  %v699 = vpop.f32.mrf.mxu0
  %v700 = vadd.f32 0.0, %v699
  %v701 = vpop.f32.mrf.mxu0
  %702 = vmatprep.mubr.bf16.mxu0 0
  %703 = vmatmul.mubr.bf16.gmra.mxu0 %v383
  %v704 = vpop.f32.mrf.mxu0
  %v705 = vadd.f32 0.0, %v704
  %v706 = vpop.f32.mrf.mxu0
  %v707 = vpop.f32.mrf.mxu0
  %v708 = vadd.f32 0.0, %v707
  %v709 = vpop.f32.mrf.mxu0
  %710 = vmatprep.mubr.bf16.mxu0 0
  %711 = vmatmul.mubr.bf16.gmra.mxu0 %v384
  %v712 = vpop.f32.mrf.mxu0
  %v713 = vadd.f32 0.0, %v712
  %v714 = vpop.f32.mrf.mxu0
  %v715 = vpop.f32.mrf.mxu0
  %v716 = vadd.f32 0.0, %v715
  %v717 = vpop.f32.mrf.mxu0
  %718 = vmatprep.mubr.bf16.mxu0 0
  %719 = vmatmul.mubr.bf16.gmra.mxu0 %v385
  %v720 = vpop.f32.mrf.mxu0
  %v721 = vadd.f32 0.0, %v720
  %v722 = vpop.f32.mrf.mxu0
  %v723 = vpop.f32.mrf.mxu0
  %v724 = vadd.f32 0.0, %v723
  %v725 = vpop.f32.mrf.mxu0
  %726 = vmatprep.mubr.bf16.mxu0 0
  %727 = vmatmul.mubr.bf16.gmra.mxu0 %v386
  %v728 = vpop.f32.mrf.mxu0
  %v729 = vadd.f32 0.0, %v728
  %v730 = vpop.f32.mrf.mxu0
  %v731 = vpop.f32.mrf.mxu0
  %v732 = vadd.f32 0.0, %v731
  %v733 = vpop.f32.mrf.mxu0
  %734 = vmatprep.mubr.bf16.mxu0 0
  %735 = vmatmul.mubr.bf16.gmra.mxu0 %v387
  %v736 = vpop.f32.mrf.mxu0
  %v737 = vadd.f32 0.0, %v736
  %v738 = vpop.f32.mrf.mxu0
  %v739 = vpop.f32.mrf.mxu0
  %v740 = vadd.f32 0.0, %v739
  %v741 = vpop.f32.mrf.mxu0
  %742 = vmatprep.mubr.bf16.mxu0 0
  %743 = vmatmul.mubr.bf16.gmra.mxu0 %v388
  %v744 = vpop.f32.mrf.mxu0
  %v745 = vadd.f32 0.0, %v744
  %v746 = vpop.f32.mrf.mxu0
  %v747 = vpop.f32.mrf.mxu0
  %v748 = vadd.f32 0.0, %v747
  %v749 = vpop.f32.mrf.mxu0
  %750 = vmatprep.mubr.bf16.mxu0 0
  %751 = vmatmul.mubr.bf16.gmra.mxu0 %v389
  %v752 = vpop.f32.mrf.mxu0
  %v753 = vadd.f32 0.0, %v752
  %v754 = vpop.f32.mrf.mxu0
  %v755 = vpop.f32.mrf.mxu0
  %v756 = vadd.f32 0.0, %v755
  %v757 = vpop.f32.mrf.mxu0
  %758 = vdwg.mxu0
  %v759 = vadd.f32 %v86, %v505
  %v760 = vadd.f32 %v87, %v508
  %v761 = vadd.f32 %v88, %v513
  %v762 = vadd.f32 %v89, %v516
  %v763 = vadd.f32 %v90, %v521
  %v764 = vadd.f32 %v91, %v524
  %v765 = vadd.f32 %v92, %v529
  %v766 = vadd.f32 %v93, %v532
  %v767 = vadd.f32 %v94, %v537
  %v768 = vadd.f32 %v95, %v540
  %v769 = vadd.f32 %v96, %v545
  %v770 = vadd.f32 %v97, %v548
  %v771 = vadd.f32 %v98, %v553
  %v772 = vadd.f32 %v99, %v556
  %v773 = vadd.f32 %v100, %v561
  %v774 = vadd.f32 %v101, %v564
  %v775 = vadd.f32 %v102, %v569
  %v776 = vadd.f32 %v103, %v572
  %v777 = vadd.f32 %v104, %v577
  %v778 = vadd.f32 %v105, %v580
  %v779 = vadd.f32 %v106, %v585
  %v780 = vadd.f32 %v107, %v588
  %v781 = vadd.f32 %v108, %v593
  %v782 = vadd.f32 %v109, %v596
  %v783 = vadd.f32 %v110, %v601
  %v784 = vadd.f32 %v111, %v604
  %v785 = vadd.f32 %v112, %v609
  %v786 = vadd.f32 %v113, %v612
  %v787 = vadd.f32 %v114, %v617
  %v788 = vadd.f32 %v115, %v620
  %v789 = vadd.f32 %v116, %v625
  %v790 = vadd.f32 %v117, %v628
  %v791 = vadd.f32 %v118, %v633
  %v792 = vadd.f32 %v119, %v636
  %v793 = vadd.f32 %v120, %v641
  %v794 = vadd.f32 %v121, %v644
  %v795 = vadd.f32 %v122, %v649
  %v796 = vadd.f32 %v123, %v652
  %v797 = vadd.f32 %v124, %v657
  %v798 = vadd.f32 %v125, %v660
  %v799 = vadd.f32 %v126, %v665
  %v800 = vadd.f32 %v127, %v668
  %v801 = vadd.f32 %v128, %v673
  %v802 = vadd.f32 %v129, %v676
  %v803 = vadd.f32 %v130, %v681
  %v804 = vadd.f32 %v131, %v684
  %v805 = vadd.f32 %v132, %v689
  %v806 = vadd.f32 %v133, %v692
  %v807 = vadd.f32 %v134, %v697
  %v808 = vadd.f32 %v135, %v700
  %v809 = vadd.f32 %v136, %v705
  %v810 = vadd.f32 %v137, %v708
  %v811 = vadd.f32 %v138, %v713
  %v812 = vadd.f32 %v139, %v716
  %v813 = vadd.f32 %v140, %v721
  %v814 = vadd.f32 %v141, %v724
  %v815 = vadd.f32 %v142, %v729
  %v816 = vadd.f32 %v143, %v732
  %v817 = vadd.f32 %v144, %v737
  %v818 = vadd.f32 %v145, %v740
  %v819 = vadd.f32 %v146, %v745
  %v820 = vadd.f32 %v147, %v748
  %v821 = vadd.f32 %v148, %v753
  %v822 = vadd.f32 %v149, %v756
  %823 = vst [vmem:[#allocation2] sm:$0xff] %v759
  %824 = vst [vmem:[#allocation2 + $0x8] sm:$0xff] %v760
  %825 = vst [vmem:[#allocation2 + $0x10] sm:$0xff] %v761
  %826 = vst [vmem:[#allocation2 + $0x18] sm:$0xff] %v762
  %827 = vst [vmem:[#allocation2 + $0x20] sm:$0xff] %v763
  %828 = vst [vmem:[#allocation2 + $0x28] sm:$0xff] %v764
  %829 = vst [vmem:[#allocation2 + $0x30] sm:$0xff] %v765
  %830 = vst [vmem:[#allocation2 + $0x38] sm:$0xff] %v766
  %831 = vst [vmem:[#allocation2 + $0x40] sm:$0xff] %v767
  %832 = vst [vmem:[#allocation2 + $0x48] sm:$0xff] %v768
  %833 = vst [vmem:[#allocation2 + $0x50] sm:$0xff] %v769
  %834 = vst [vmem:[#allocation2 + $0x58] sm:$0xff] %v770
  %835 = vst [vmem:[#allocation2 + $0x60] sm:$0xff] %v771
  %836 = vst [vmem:[#allocation2 + $0x68] sm:$0xff] %v772
  %837 = vst [vmem:[#allocation2 + $0x70] sm:$0xff] %v773
  %838 = vst [vmem:[#allocation2 + $0x78] sm:$0xff] %v774
  %839 = vst [vmem:[#allocation2 + $0x80] sm:$0xff] %v775
  %840 = vst [vmem:[#allocation2 + $0x88] sm:$0xff] %v776
  %841 = vst [vmem:[#allocation2 + $0x90] sm:$0xff] %v777
  %842 = vst [vmem:[#allocation2 + $0x98] sm:$0xff] %v778
  %843 = vst [vmem:[#allocation2 + $0xa0] sm:$0xff] %v779
  %844 = vst [vmem:[#allocation2 + $0xa8] sm:$0xff] %v780
  %845 = vst [vmem:[#allocation2 + $0xb0] sm:$0xff] %v781
  %846 = vst [vmem:[#allocation2 + $0xb8] sm:$0xff] %v782
  %847 = vst [vmem:[#allocation2 + $0xc0] sm:$0xff] %v783
  %848 = vst [vmem:[#allocation2 + $0xc8] sm:$0xff] %v784
  %849 = vst [vmem:[#allocation2 + $0xd0] sm:$0xff] %v785
  %850 = vst [vmem:[#allocation2 + $0xd8] sm:$0xff] %v786
  %851 = vst [vmem:[#allocation2 + $0xe0] sm:$0xff] %v787
  %852 = vst [vmem:[#allocation2 + $0xe8] sm:$0xff] %v788
  %853 = vst [vmem:[#allocation2 + $0xf0] sm:$0xff] %v789
  %854 = vst [vmem:[#allocation2 + $0xf8] sm:$0xff] %v790
  %855 = vst [vmem:[#allocation2 + $0x100] sm:$0xff] %v791
  %856 = vst [vmem:[#allocation2 + $0x108] sm:$0xff] %v792
  %857 = vst [vmem:[#allocation2 + $0x110] sm:$0xff] %v793
  %858 = vst [vmem:[#allocation2 + $0x118] sm:$0xff] %v794
  %859 = vst [vmem:[#allocation2 + $0x120] sm:$0xff] %v795
  %860 = vst [vmem:[#allocation2 + $0x128] sm:$0xff] %v796
  %861 = vst [vmem:[#allocation2 + $0x130] sm:$0xff] %v797
  %862 = vst [vmem:[#allocation2 + $0x138] sm:$0xff] %v798
  %863 = vst [vmem:[#allocation2 + $0x140] sm:$0xff] %v799
  %864 = vst [vmem:[#allocation2 + $0x148] sm:$0xff] %v800
  %865 = vst [vmem:[#allocation2 + $0x150] sm:$0xff] %v801
  %866 = vst [vmem:[#allocation2 + $0x158] sm:$0xff] %v802
  %867 = vst [vmem:[#allocation2 + $0x160] sm:$0xff] %v803
  %868 = vst [vmem:[#allocation2 + $0x168] sm:$0xff] %v804
  %869 = vst [vmem:[#allocation2 + $0x170] sm:$0xff] %v805
  %870 = vst [vmem:[#allocation2 + $0x178] sm:$0xff] %v806
  %871 = vst [vmem:[#allocation2 + $0x180] sm:$0xff] %v807
  %872 = vst [vmem:[#allocation2 + $0x188] sm:$0xff] %v808
  %873 = vst [vmem:[#allocation2 + $0x190] sm:$0xff] %v809
  %874 = vst [vmem:[#allocation2 + $0x198] sm:$0xff] %v810
  %875 = vst [vmem:[#allocation2 + $0x1a0] sm:$0xff] %v811
  %876 = vst [vmem:[#allocation2 + $0x1a8] sm:$0xff] %v812
  %877 = vst [vmem:[#allocation2 + $0x1b0] sm:$0xff] %v813
  %878 = vst [vmem:[#allocation2 + $0x1b8] sm:$0xff] %v814
  %879 = vst [vmem:[#allocation2 + $0x1c0] sm:$0xff] %v815
  %880 = vst [vmem:[#allocation2 + $0x1c8] sm:$0xff] %v816
  %881 = vst [vmem:[#allocation2 + $0x1d0] sm:$0xff] %v817
  %882 = vst [vmem:[#allocation2 + $0x1d8] sm:$0xff] %v818
  %883 = vst [vmem:[#allocation2 + $0x1e0] sm:$0xff] %v819
  %884 = vst [vmem:[#allocation2 + $0x1e8] sm:$0xff] %v820
  %885 = vst [vmem:[#allocation2 + $0x1f0] sm:$0xff] %v821
  %886 = vst [vmem:[#allocation2 + $0x1f8] sm:$0xff] %v822
  // Predicated region
  $region22: #{_lambda_.23} parent=0 // pred_check
    %p887 = pneg %p18
  $region23: #{_lambda_.23} parent=0 // pred_check_branch
    %889 = sbr.rel (%p887) target = $region25
  $region24: #{_lambda_.23} parent=0 // pred_region
    %v890 = vld [vmem:[#allocation2] sm:$0xff]
    %v891 = vld [vmem:[#allocation2 + $0x8] sm:$0xff]
    %v892 = vld [vmem:[#allocation2 + $0x10] sm:$0xff]
    %v893 = vld [vmem:[#allocation2 + $0x18] sm:$0xff]
    %v894 = vld [vmem:[#allocation2 + $0x20] sm:$0xff]
    %v895 = vld [vmem:[#allocation2 + $0x28] sm:$0xff]
    %v896 = vld [vmem:[#allocation2 + $0x30] sm:$0xff]
    %v897 = vld [vmem:[#allocation2 + $0x38] sm:$0xff]
    %v898 = vld [vmem:[#allocation2 + $0x40] sm:$0xff]
    %v899 = vld [vmem:[#allocation2 + $0x48] sm:$0xff]
    %v900 = vld [vmem:[#allocation2 + $0x50] sm:$0xff]
    %v901 = vld [vmem:[#allocation2 + $0x58] sm:$0xff]
    %v902 = vld [vmem:[#allocation2 + $0x60] sm:$0xff]
    %v903 = vld [vmem:[#allocation2 + $0x68] sm:$0xff]
    %v904 = vld [vmem:[#allocation2 + $0x70] sm:$0xff]
    %v905 = vld [vmem:[#allocation2 + $0x78] sm:$0xff]
    %v906 = vld [vmem:[#allocation2 + $0x80] sm:$0xff]
    %v907 = vld [vmem:[#allocation2 + $0x88] sm:$0xff]
    %v908 = vld [vmem:[#allocation2 + $0x90] sm:$0xff]
    %v909 = vld [vmem:[#allocation2 + $0x98] sm:$0xff]
    %v910 = vld [vmem:[#allocation2 + $0xa0] sm:$0xff]
    %v911 = vld [vmem:[#allocation2 + $0xa8] sm:$0xff]
    %v912 = vld [vmem:[#allocation2 + $0xb0] sm:$0xff]
    %v913 = vld [vmem:[#allocation2 + $0xb8] sm:$0xff]
    %v914 = vld [vmem:[#allocation2 + $0xc0] sm:$0xff]
    %v915 = vld [vmem:[#allocation2 + $0xc8] sm:$0xff]
    %v916 = vld [vmem:[#allocation2 + $0xd0] sm:$0xff]
    %v917 = vld [vmem:[#allocation2 + $0xd8] sm:$0xff]
    %v918 = vld [vmem:[#allocation2 + $0xe0] sm:$0xff]
    %v919 = vld [vmem:[#allocation2 + $0xe8] sm:$0xff]
    %v920 = vld [vmem:[#allocation2 + $0xf0] sm:$0xff]
    %v921 = vld [vmem:[#allocation2 + $0xf8] sm:$0xff]
    %v922 = vld [vmem:[#allocation2 + $0x100] sm:$0xff]
    %v923 = vld [vmem:[#allocation2 + $0x108] sm:$0xff]
    %v924 = vld [vmem:[#allocation2 + $0x110] sm:$0xff]
    %v925 = vld [vmem:[#allocation2 + $0x118] sm:$0xff]
    %v926 = vld [vmem:[#allocation2 + $0x120] sm:$0xff]
    %v927 = vld [vmem:[#allocation2 + $0x128] sm:$0xff]
    %v928 = vld [vmem:[#allocation2 + $0x130] sm:$0xff]
    %v929 = vld [vmem:[#allocation2 + $0x138] sm:$0xff]
    %v930 = vld [vmem:[#allocation2 + $0x140] sm:$0xff]
    %v931 = vld [vmem:[#allocation2 + $0x148] sm:$0xff]
    %v932 = vld [vmem:[#allocation2 + $0x150] sm:$0xff]
    %v933 = vld [vmem:[#allocation2 + $0x158] sm:$0xff]
    %v934 = vld [vmem:[#allocation2 + $0x160] sm:$0xff]
    %v935 = vld [vmem:[#allocation2 + $0x168] sm:$0xff]
    %v936 = vld [vmem:[#allocation2 + $0x170] sm:$0xff]
    %v937 = vld [vmem:[#allocation2 + $0x178] sm:$0xff]
    %v938 = vld [vmem:[#allocation2 + $0x180] sm:$0xff]
    %v939 = vld [vmem:[#allocation2 + $0x188] sm:$0xff]
    %v940 = vld [vmem:[#allocation2 + $0x190] sm:$0xff]
    %v941 = vld [vmem:[#allocation2 + $0x198] sm:$0xff]
    %v942 = vld [vmem:[#allocation2 + $0x1a0] sm:$0xff]
    %v943 = vld [vmem:[#allocation2 + $0x1a8] sm:$0xff]
    %v944 = vld [vmem:[#allocation2 + $0x1b0] sm:$0xff]
    %v945 = vld [vmem:[#allocation2 + $0x1b8] sm:$0xff]
    %v946 = vld [vmem:[#allocation2 + $0x1c0] sm:$0xff]
    %v947 = vld [vmem:[#allocation2 + $0x1c8] sm:$0xff]
    %v948 = vld [vmem:[#allocation2 + $0x1d0] sm:$0xff]
    %v949 = vld [vmem:[#allocation2 + $0x1d8] sm:$0xff]
    %v950 = vld [vmem:[#allocation2 + $0x1e0] sm:$0xff]
    %v951 = vld [vmem:[#allocation2 + $0x1e8] sm:$0xff]
    %v952 = vld [vmem:[#allocation2 + $0x1f0] sm:$0xff]
    %v953 = vld [vmem:[#allocation2 + $0x1f8] sm:$0xff]
    %v954 = vld [vmem:[%s2] sm:$0x1]
    %v956 = vlaneseq
    %v957 = vshrl.u32 %v956, 7
    %v958 = vsub.s32 0, %v957
    %v959 = vrot.slane %v954, %v958
    %v961 = vadd.f32 %v890, %v959
    %v962 = vadd.f32 %v891, %v959
    %v963 = vadd.f32 %v892, %v959
    %v964 = vadd.f32 %v893, %v959
    %v965 = vadd.f32 %v894, %v959
    %v966 = vadd.f32 %v895, %v959
    %v967 = vadd.f32 %v896, %v959
    %v968 = vadd.f32 %v897, %v959
    %v969 = vadd.f32 %v898, %v959
    %v970 = vadd.f32 %v899, %v959
    %v971 = vadd.f32 %v900, %v959
    %v972 = vadd.f32 %v901, %v959
    %v973 = vadd.f32 %v902, %v959
    %v974 = vadd.f32 %v903, %v959
    %v975 = vadd.f32 %v904, %v959
    %v976 = vadd.f32 %v905, %v959
    %v977 = vadd.f32 %v906, %v959
    %v978 = vadd.f32 %v907, %v959
    %v979 = vadd.f32 %v908, %v959
    %v980 = vadd.f32 %v909, %v959
    %v981 = vadd.f32 %v910, %v959
    %v982 = vadd.f32 %v911, %v959
    %v983 = vadd.f32 %v912, %v959
    %v984 = vadd.f32 %v913, %v959
    %v985 = vadd.f32 %v914, %v959
    %v986 = vadd.f32 %v915, %v959
    %v987 = vadd.f32 %v916, %v959
    %v988 = vadd.f32 %v917, %v959
    %v989 = vadd.f32 %v918, %v959
    %v990 = vadd.f32 %v919, %v959
    %v991 = vadd.f32 %v920, %v959
    %v992 = vadd.f32 %v921, %v959
    %v993 = vadd.f32 %v922, %v959
    %v994 = vadd.f32 %v923, %v959
    %v995 = vadd.f32 %v924, %v959
    %v996 = vadd.f32 %v925, %v959
    %v997 = vadd.f32 %v926, %v959
    %v998 = vadd.f32 %v927, %v959
    %v999 = vadd.f32 %v928, %v959
    %v1000 = vadd.f32 %v929, %v959
    %v1001 = vadd.f32 %v930, %v959
    %v1002 = vadd.f32 %v931, %v959
    %v1003 = vadd.f32 %v932, %v959
    %v1004 = vadd.f32 %v933, %v959
    %v1005 = vadd.f32 %v934, %v959
    %v1006 = vadd.f32 %v935, %v959
    %v1007 = vadd.f32 %v936, %v959
    %v1008 = vadd.f32 %v937, %v959
    %v1009 = vadd.f32 %v938, %v959
    %v1010 = vadd.f32 %v939, %v959
    %v1011 = vadd.f32 %v940, %v959
    %v1012 = vadd.f32 %v941, %v959
    %v1013 = vadd.f32 %v942, %v959
    %v1014 = vadd.f32 %v943, %v959
    %v1015 = vadd.f32 %v944, %v959
    %v1016 = vadd.f32 %v945, %v959
    %v1017 = vadd.f32 %v946, %v959
    %v1018 = vadd.f32 %v947, %v959
    %v1019 = vadd.f32 %v948, %v959
    %v1020 = vadd.f32 %v949, %v959
    %v1021 = vadd.f32 %v950, %v959
    %v1022 = vadd.f32 %v951, %v959
    %v1023 = vadd.f32 %v952, %v959
    %v1024 = vadd.f32 %v953, %v959
    %v1025 = vld [vmem:[%s3] sm:$0xff]
    %v1026 = vld [vmem:[%s3 + $0x8] sm:$0xff]
    %v1027 = vld [vmem:[%s3 + $0x10] sm:$0xff]
    %v1028 = vld [vmem:[%s3 + $0x18] sm:$0xff]
    %v1029 = vld [vmem:[%s3 + $0x20] sm:$0xff]
    %v1030 = vld [vmem:[%s3 + $0x28] sm:$0xff]
    %v1031 = vld [vmem:[%s3 + $0x30] sm:$0xff]
    %v1032 = vld [vmem:[%s3 + $0x38] sm:$0xff]
    %v1033 = vld [vmem:[%s3 + $0x40] sm:$0xff]
    %v1034 = vld [vmem:[%s3 + $0x48] sm:$0xff]
    %v1035 = vld [vmem:[%s3 + $0x50] sm:$0xff]
    %v1036 = vld [vmem:[%s3 + $0x58] sm:$0xff]
    %v1037 = vld [vmem:[%s3 + $0x60] sm:$0xff]
    %v1038 = vld [vmem:[%s3 + $0x68] sm:$0xff]
    %v1039 = vld [vmem:[%s3 + $0x70] sm:$0xff]
    %v1040 = vld [vmem:[%s3 + $0x78] sm:$0xff]
    %v1041 = vld [vmem:[%s3 + $0x80] sm:$0xff]
    %v1042 = vld [vmem:[%s3 + $0x88] sm:$0xff]
    %v1043 = vld [vmem:[%s3 + $0x90] sm:$0xff]
    %v1044 = vld [vmem:[%s3 + $0x98] sm:$0xff]
    %v1045 = vld [vmem:[%s3 + $0xa0] sm:$0xff]
    %v1046 = vld [vmem:[%s3 + $0xa8] sm:$0xff]
    %v1047 = vld [vmem:[%s3 + $0xb0] sm:$0xff]
    %v1048 = vld [vmem:[%s3 + $0xb8] sm:$0xff]
    %v1049 = vld [vmem:[%s3 + $0xc0] sm:$0xff]
    %v1050 = vld [vmem:[%s3 + $0xc8] sm:$0xff]
    %v1051 = vld [vmem:[%s3 + $0xd0] sm:$0xff]
    %v1052 = vld [vmem:[%s3 + $0xd8] sm:$0xff]
    %v1053 = vld [vmem:[%s3 + $0xe0] sm:$0xff]
    %v1054 = vld [vmem:[%s3 + $0xe8] sm:$0xff]
    %v1055 = vld [vmem:[%s3 + $0xf0] sm:$0xff]
    %v1056 = vld [vmem:[%s3 + $0xf8] sm:$0xff]
    %v1057 = vld [vmem:[%s3 + $0x100] sm:$0xff]
    %v1058 = vld [vmem:[%s3 + $0x108] sm:$0xff]
    %v1059 = vld [vmem:[%s3 + $0x110] sm:$0xff]
    %v1060 = vld [vmem:[%s3 + $0x118] sm:$0xff]
    %v1061 = vld [vmem:[%s3 + $0x120] sm:$0xff]
    %v1062 = vld [vmem:[%s3 + $0x128] sm:$0xff]
    %v1063 = vld [vmem:[%s3 + $0x130] sm:$0xff]
    %v1064 = vld [vmem:[%s3 + $0x138] sm:$0xff]
    %v1065 = vld [vmem:[%s3 + $0x140] sm:$0xff]
    %v1066 = vld [vmem:[%s3 + $0x148] sm:$0xff]
    %v1067 = vld [vmem:[%s3 + $0x150] sm:$0xff]
    %v1068 = vld [vmem:[%s3 + $0x158] sm:$0xff]
    %v1069 = vld [vmem:[%s3 + $0x160] sm:$0xff]
    %v1070 = vld [vmem:[%s3 + $0x168] sm:$0xff]
    %v1071 = vld [vmem:[%s3 + $0x170] sm:$0xff]
    %v1072 = vld [vmem:[%s3 + $0x178] sm:$0xff]
    %v1073 = vld [vmem:[%s3 + $0x180] sm:$0xff]
    %v1074 = vld [vmem:[%s3 + $0x188] sm:$0xff]
    %v1075 = vld [vmem:[%s3 + $0x190] sm:$0xff]
    %v1076 = vld [vmem:[%s3 + $0x198] sm:$0xff]
    %v1077 = vld [vmem:[%s3 + $0x1a0] sm:$0xff]
    %v1078 = vld [vmem:[%s3 + $0x1a8] sm:$0xff]
    %v1079 = vld [vmem:[%s3 + $0x1b0] sm:$0xff]
    %v1080 = vld [vmem:[%s3 + $0x1b8] sm:$0xff]
    %v1081 = vld [vmem:[%s3 + $0x1c0] sm:$0xff]
    %v1082 = vld [vmem:[%s3 + $0x1c8] sm:$0xff]
    %v1083 = vld [vmem:[%s3 + $0x1d0] sm:$0xff]
    %v1084 = vld [vmem:[%s3 + $0x1d8] sm:$0xff]
    %v1085 = vld [vmem:[%s3 + $0x1e0] sm:$0xff]
    %v1086 = vld [vmem:[%s3 + $0x1e8] sm:$0xff]
    %v1087 = vld [vmem:[%s3 + $0x1f0] sm:$0xff]
    %v1088 = vld [vmem:[%s3 + $0x1f8] sm:$0xff]
    %v1089 = vadd.f32 %v961, %v1025
    %v1090 = vadd.f32 %v962, %v1026
    %v1091 = vadd.f32 %v963, %v1027
    %v1092 = vadd.f32 %v964, %v1028
    %v1093 = vadd.f32 %v965, %v1029
    %v1094 = vadd.f32 %v966, %v1030
    %v1095 = vadd.f32 %v967, %v1031
    %v1096 = vadd.f32 %v968, %v1032
    %v1097 = vadd.f32 %v969, %v1033
    %v1098 = vadd.f32 %v970, %v1034
    %v1099 = vadd.f32 %v971, %v1035
    %v1100 = vadd.f32 %v972, %v1036
    %v1101 = vadd.f32 %v973, %v1037
    %v1102 = vadd.f32 %v974, %v1038
    %v1103 = vadd.f32 %v975, %v1039
    %v1104 = vadd.f32 %v976, %v1040
    %v1105 = vadd.f32 %v977, %v1041
    %v1106 = vadd.f32 %v978, %v1042
    %v1107 = vadd.f32 %v979, %v1043
    %v1108 = vadd.f32 %v980, %v1044
    %v1109 = vadd.f32 %v981, %v1045
    %v1110 = vadd.f32 %v982, %v1046
    %v1111 = vadd.f32 %v983, %v1047
    %v1112 = vadd.f32 %v984, %v1048
    %v1113 = vadd.f32 %v985, %v1049
    %v1114 = vadd.f32 %v986, %v1050
    %v1115 = vadd.f32 %v987, %v1051
    %v1116 = vadd.f32 %v988, %v1052
    %v1117 = vadd.f32 %v989, %v1053
    %v1118 = vadd.f32 %v990, %v1054
    %v1119 = vadd.f32 %v991, %v1055
    %v1120 = vadd.f32 %v992, %v1056
    %v1121 = vadd.f32 %v993, %v1057
    %v1122 = vadd.f32 %v994, %v1058
    %v1123 = vadd.f32 %v995, %v1059
    %v1124 = vadd.f32 %v996, %v1060
    %v1125 = vadd.f32 %v997, %v1061
    %v1126 = vadd.f32 %v998, %v1062
    %v1127 = vadd.f32 %v999, %v1063
    %v1128 = vadd.f32 %v1000, %v1064
    %v1129 = vadd.f32 %v1001, %v1065
    %v1130 = vadd.f32 %v1002, %v1066
    %v1131 = vadd.f32 %v1003, %v1067
    %v1132 = vadd.f32 %v1004, %v1068
    %v1133 = vadd.f32 %v1005, %v1069
    %v1134 = vadd.f32 %v1006, %v1070
    %v1135 = vadd.f32 %v1007, %v1071
    %v1136 = vadd.f32 %v1008, %v1072
    %v1137 = vadd.f32 %v1009, %v1073
    %v1138 = vadd.f32 %v1010, %v1074
    %v1139 = vadd.f32 %v1011, %v1075
    %v1140 = vadd.f32 %v1012, %v1076
    %v1141 = vadd.f32 %v1013, %v1077
    %v1142 = vadd.f32 %v1014, %v1078
    %v1143 = vadd.f32 %v1015, %v1079
    %v1144 = vadd.f32 %v1016, %v1080
    %v1145 = vadd.f32 %v1017, %v1081
    %v1146 = vadd.f32 %v1018, %v1082
    %v1147 = vadd.f32 %v1019, %v1083
    %v1148 = vadd.f32 %v1020, %v1084
    %v1149 = vadd.f32 %v1021, %v1085
    %v1150 = vadd.f32 %v1022, %v1086
    %v1151 = vadd.f32 %v1023, %v1087
    %v1152 = vadd.f32 %v1024, %v1088
    %v1153 = vmax.f32 %v1089, 0.0
    %v1154 = vmax.f32 %v1090, 0.0
    %v1155 = vmax.f32 %v1091, 0.0
    %v1156 = vmax.f32 %v1092, 0.0
    %v1157 = vmax.f32 %v1093, 0.0
    %v1158 = vmax.f32 %v1094, 0.0
    %v1159 = vmax.f32 %v1095, 0.0
    %v1160 = vmax.f32 %v1096, 0.0
    %v1161 = vmax.f32 %v1097, 0.0
    %v1162 = vmax.f32 %v1098, 0.0
    %v1163 = vmax.f32 %v1099, 0.0
    %v1164 = vmax.f32 %v1100, 0.0
    %v1165 = vmax.f32 %v1101, 0.0
    %v1166 = vmax.f32 %v1102, 0.0
    %v1167 = vmax.f32 %v1103, 0.0
    %v1168 = vmax.f32 %v1104, 0.0
    %v1169 = vmax.f32 %v1105, 0.0
    %v1170 = vmax.f32 %v1106, 0.0
    %v1171 = vmax.f32 %v1107, 0.0
    %v1172 = vmax.f32 %v1108, 0.0
    %v1173 = vmax.f32 %v1109, 0.0
    %v1174 = vmax.f32 %v1110, 0.0
    %v1175 = vmax.f32 %v1111, 0.0
    %v1176 = vmax.f32 %v1112, 0.0
    %v1177 = vmax.f32 %v1113, 0.0
    %v1178 = vmax.f32 %v1114, 0.0
    %v1179 = vmax.f32 %v1115, 0.0
    %v1180 = vmax.f32 %v1116, 0.0
    %v1181 = vmax.f32 %v1117, 0.0
    %v1182 = vmax.f32 %v1118, 0.0
    %v1183 = vmax.f32 %v1119, 0.0
    %v1184 = vmax.f32 %v1120, 0.0
    %v1185 = vmax.f32 %v1121, 0.0
    %v1186 = vmax.f32 %v1122, 0.0
    %v1187 = vmax.f32 %v1123, 0.0
    %v1188 = vmax.f32 %v1124, 0.0
    %v1189 = vmax.f32 %v1125, 0.0
    %v1190 = vmax.f32 %v1126, 0.0
    %v1191 = vmax.f32 %v1127, 0.0
    %v1192 = vmax.f32 %v1128, 0.0
    %v1193 = vmax.f32 %v1129, 0.0
    %v1194 = vmax.f32 %v1130, 0.0
    %v1195 = vmax.f32 %v1131, 0.0
    %v1196 = vmax.f32 %v1132, 0.0
    %v1197 = vmax.f32 %v1133, 0.0
    %v1198 = vmax.f32 %v1134, 0.0
    %v1199 = vmax.f32 %v1135, 0.0
    %v1200 = vmax.f32 %v1136, 0.0
    %v1201 = vmax.f32 %v1137, 0.0
    %v1202 = vmax.f32 %v1138, 0.0
    %v1203 = vmax.f32 %v1139, 0.0
    %v1204 = vmax.f32 %v1140, 0.0
    %v1205 = vmax.f32 %v1141, 0.0
    %v1206 = vmax.f32 %v1142, 0.0
    %v1207 = vmax.f32 %v1143, 0.0
    %v1208 = vmax.f32 %v1144, 0.0
    %v1209 = vmax.f32 %v1145, 0.0
    %v1210 = vmax.f32 %v1146, 0.0
    %v1211 = vmax.f32 %v1147, 0.0
    %v1212 = vmax.f32 %v1148, 0.0
    %v1213 = vmax.f32 %v1149, 0.0
    %v1214 = vmax.f32 %v1150, 0.0
    %v1215 = vmax.f32 %v1151, 0.0
    %v1216 = vmax.f32 %v1152, 0.0
    %1217 = vst [vmem:[%s4] sm:$0xff] %v1153
    %1218 = vst [vmem:[%s4 + $0x8] sm:$0xff] %v1154
    %1219 = vst [vmem:[%s4 + $0x10] sm:$0xff] %v1155
    %1220 = vst [vmem:[%s4 + $0x18] sm:$0xff] %v1156
    %1221 = vst [vmem:[%s4 + $0x20] sm:$0xff] %v1157
    %1222 = vst [vmem:[%s4 + $0x28] sm:$0xff] %v1158
    %1223 = vst [vmem:[%s4 + $0x30] sm:$0xff] %v1159
    %1224 = vst [vmem:[%s4 + $0x38] sm:$0xff] %v1160
    %1225 = vst [vmem:[%s4 + $0x40] sm:$0xff] %v1161
    %1226 = vst [vmem:[%s4 + $0x48] sm:$0xff] %v1162
    %1227 = vst [vmem:[%s4 + $0x50] sm:$0xff] %v1163
    %1228 = vst [vmem:[%s4 + $0x58] sm:$0xff] %v1164
    %1229 = vst [vmem:[%s4 + $0x60] sm:$0xff] %v1165
    %1230 = vst [vmem:[%s4 + $0x68] sm:$0xff] %v1166
    %1231 = vst [vmem:[%s4 + $0x70] sm:$0xff] %v1167
    %1232 = vst [vmem:[%s4 + $0x78] sm:$0xff] %v1168
    %1233 = vst [vmem:[%s4 + $0x80] sm:$0xff] %v1169
    %1234 = vst [vmem:[%s4 + $0x88] sm:$0xff] %v1170
    %1235 = vst [vmem:[%s4 + $0x90] sm:$0xff] %v1171
    %1236 = vst [vmem:[%s4 + $0x98] sm:$0xff] %v1172
    %1237 = vst [vmem:[%s4 + $0xa0] sm:$0xff] %v1173
    %1238 = vst [vmem:[%s4 + $0xa8] sm:$0xff] %v1174
    %1239 = vst [vmem:[%s4 + $0xb0] sm:$0xff] %v1175
    %1240 = vst [vmem:[%s4 + $0xb8] sm:$0xff] %v1176
    %1241 = vst [vmem:[%s4 + $0xc0] sm:$0xff] %v1177
    %1242 = vst [vmem:[%s4 + $0xc8] sm:$0xff] %v1178
    %1243 = vst [vmem:[%s4 + $0xd0] sm:$0xff] %v1179
    %1244 = vst [vmem:[%s4 + $0xd8] sm:$0xff] %v1180
    %1245 = vst [vmem:[%s4 + $0xe0] sm:$0xff] %v1181
    %1246 = vst [vmem:[%s4 + $0xe8] sm:$0xff] %v1182
    %1247 = vst [vmem:[%s4 + $0xf0] sm:$0xff] %v1183
    %1248 = vst [vmem:[%s4 + $0xf8] sm:$0xff] %v1184
    %1249 = vst [vmem:[%s4 + $0x100] sm:$0xff] %v1185
    %1250 = vst [vmem:[%s4 + $0x108] sm:$0xff] %v1186
    %1251 = vst [vmem:[%s4 + $0x110] sm:$0xff] %v1187
    %1252 = vst [vmem:[%s4 + $0x118] sm:$0xff] %v1188
    %1253 = vst [vmem:[%s4 + $0x120] sm:$0xff] %v1189
    %1254 = vst [vmem:[%s4 + $0x128] sm:$0xff] %v1190
    %1255 = vst [vmem:[%s4 + $0x130] sm:$0xff] %v1191
    %1256 = vst [vmem:[%s4 + $0x138] sm:$0xff] %v1192
    %1257 = vst [vmem:[%s4 + $0x140] sm:$0xff] %v1193
    %1258 = vst [vmem:[%s4 + $0x148] sm:$0xff] %v1194
    %1259 = vst [vmem:[%s4 + $0x150] sm:$0xff] %v1195
    %1260 = vst [vmem:[%s4 + $0x158] sm:$0xff] %v1196
    %1261 = vst [vmem:[%s4 + $0x160] sm:$0xff] %v1197
    %1262 = vst [vmem:[%s4 + $0x168] sm:$0xff] %v1198
    %1263 = vst [vmem:[%s4 + $0x170] sm:$0xff] %v1199
    %1264 = vst [vmem:[%s4 + $0x178] sm:$0xff] %v1200
    %1265 = vst [vmem:[%s4 + $0x180] sm:$0xff] %v1201
    %1266 = vst [vmem:[%s4 + $0x188] sm:$0xff] %v1202
    %1267 = vst [vmem:[%s4 + $0x190] sm:$0xff] %v1203
    %1268 = vst [vmem:[%s4 + $0x198] sm:$0xff] %v1204
    %1269 = vst [vmem:[%s4 + $0x1a0] sm:$0xff] %v1205
    %1270 = vst [vmem:[%s4 + $0x1a8] sm:$0xff] %v1206
    %1271 = vst [vmem:[%s4 + $0x1b0] sm:$0xff] %v1207
    %1272 = vst [vmem:[%s4 + $0x1b8] sm:$0xff] %v1208
    %1273 = vst [vmem:[%s4 + $0x1c0] sm:$0xff] %v1209
    %1274 = vst [vmem:[%s4 + $0x1c8] sm:$0xff] %v1210
    %1275 = vst [vmem:[%s4 + $0x1d0] sm:$0xff] %v1211
    %1276 = vst [vmem:[%s4 + $0x1d8] sm:$0xff] %v1212
    %1277 = vst [vmem:[%s4 + $0x1e0] sm:$0xff] %v1213
    %1278 = vst [vmem:[%s4 + $0x1e8] sm:$0xff] %v1214
    %1279 = vst [vmem:[%s4 + $0x1f0] sm:$0xff] %v1215
    %1280 = vst [vmem:[%s4 + $0x1f8] sm:$0xff] %v1216
  $region25: #{_lambda_.23} parent=0 // pred_fallthru
    _
  // Predicated region
  $region26: #{_lambda_.23} parent=0 // pred_check
    _
  $region27: #{_lambda_.23} parent=0 // pred_check_branch
    %1282 = sbr.rel (0) target = $region29
  $region28: #{_lambda_.23} parent=0 // pred_region
    _
  $region29: #{_lambda_.23} parent=0 // pred_fallthru
    _
  // Predicated region
  $region30: #{_lambda_.23} parent=0 // pred_check
    _
  $region31: #{_lambda_.23} parent=0 // pred_check_branch
    %1284 = sbr.rel (0) target = $region33
  $region32: #{_lambda_.23} parent=0 // pred_region
    _
  $region33: #{_lambda_.23} parent=0 // pred_fallthru
    _

// kernel: _lambda_.26
$region0: #{_lambda_.26}
  #allocation0 [shape = 'u32[]', space=smem, size = 0x4, offset = 0x4, fixed_abs, tag = 'smem constant byte address 0x4 - core index']
  #allocation1 [shape = 'u32[144,128]{1,0:T(1,128)}', space=vmem, size = 0x12000, scoped, tag = 'internal scratch']
  #allocation2 [shape = 'f32[128,128]{1,0:T(8,128)}', space=vmem, size = 0x10000, scoped, tag = 'scratch operand']
  %s0 = inlined_call_operand.vmem [shape: bf16[128,128], index: 0, kind: input, shape index: {}]
  %s1 = inlined_call_operand.vmem [shape: bf16[128,128], index: 1, kind: input, shape index: {}]
  %s2 = inlined_call_operand.vmem [shape: f32[1,128], index: 2, kind: input, shape index: {}]
  %s3 = inlined_call_operand.vmem [shape: f32[128,128], index: 3, kind: output, shape index: {}]
  %s4 = sld [smem:[#allocation0]]
  $region30: #{_lambda_.26} parent=0
    _
  %s6 = ssub.s32 1, %s4
  %s7 = scalar_select 0, %s6, %s4
  // Predicated region
  $region2: #{_lambda_.26} parent=0 // pred_check
    _
  $region3: #{_lambda_.26} parent=0 // pred_check_branch
    %9 = sbr.rel (0) target = $region5
  $region4: #{_lambda_.26} parent=0 // pred_region
    _
  $region5: #{_lambda_.26} parent=0 // pred_fallthru
    _
  // Predicated region
  $region6: #{_lambda_.26} parent=0 // pred_check
    _
  $region7: #{_lambda_.26} parent=0 // pred_check_branch
    %11 = sbr.rel (0) target = $region9
  $region8: #{_lambda_.26} parent=0 // pred_region
    _
  $region9: #{_lambda_.26} parent=0 // pred_fallthru
    _
  // Predicated region
  $region10: #{_lambda_.26} parent=0 // pred_check
    _
  $region11: #{_lambda_.26} parent=0 // pred_check_branch
    %13 = sbr.rel (0) target = $region13
  $region12: #{_lambda_.26} parent=0 // pred_region
    _
  $region13: #{_lambda_.26} parent=0 // pred_fallthru
    _
  %p15 = scmp.eq.s32.totalorder 0, 0
  // Predicated region
  $region14: #{_lambda_.26} parent=0 // pred_check
    %p16 = pneg %p15
  $region15: #{_lambda_.26} parent=0 // pred_check_branch
    %18 = sbr.rel (%p16) target = $region17
  $region16: #{_lambda_.26} parent=0 // pred_region
    %19 = vst [vmem:[#allocation2] sm:$0xff] 0.0
    %20 = vst [vmem:[#allocation2 + $0x8] sm:$0xff] 0.0
    %21 = vst [vmem:[#allocation2 + $0x10] sm:$0xff] 0.0
    %22 = vst [vmem:[#allocation2 + $0x18] sm:$0xff] 0.0
    %23 = vst [vmem:[#allocation2 + $0x20] sm:$0xff] 0.0
    %24 = vst [vmem:[#allocation2 + $0x28] sm:$0xff] 0.0
    %25 = vst [vmem:[#allocation2 + $0x30] sm:$0xff] 0.0
    %26 = vst [vmem:[#allocation2 + $0x38] sm:$0xff] 0.0
    %27 = vst [vmem:[#allocation2 + $0x40] sm:$0xff] 0.0
    %28 = vst [vmem:[#allocation2 + $0x48] sm:$0xff] 0.0
    %29 = vst [vmem:[#allocation2 + $0x50] sm:$0xff] 0.0
    %30 = vst [vmem:[#allocation2 + $0x58] sm:$0xff] 0.0
    %31 = vst [vmem:[#allocation2 + $0x60] sm:$0xff] 0.0
    %32 = vst [vmem:[#allocation2 + $0x68] sm:$0xff] 0.0
    %33 = vst [vmem:[#allocation2 + $0x70] sm:$0xff] 0.0
    %34 = vst [vmem:[#allocation2 + $0x78] sm:$0xff] 0.0
  $region17: #{_lambda_.26} parent=0 // pred_fallthru
    _
  %v35 = vld [vmem:[#allocation2] sm:$0xff]
  %v36 = vld [vmem:[#allocation2 + $0x8] sm:$0xff]
  %v37 = vld [vmem:[#allocation2 + $0x10] sm:$0xff]
  %v38 = vld [vmem:[#allocation2 + $0x18] sm:$0xff]
  %v39 = vld [vmem:[#allocation2 + $0x20] sm:$0xff]
  %v40 = vld [vmem:[#allocation2 + $0x28] sm:$0xff]
  %v41 = vld [vmem:[#allocation2 + $0x30] sm:$0xff]
  %v42 = vld [vmem:[#allocation2 + $0x38] sm:$0xff]
  %v43 = vld [vmem:[#allocation2 + $0x40] sm:$0xff]
  %v44 = vld [vmem:[#allocation2 + $0x48] sm:$0xff]
  %v45 = vld [vmem:[#allocation2 + $0x50] sm:$0xff]
  %v46 = vld [vmem:[#allocation2 + $0x58] sm:$0xff]
  %v47 = vld [vmem:[#allocation2 + $0x60] sm:$0xff]
  %v48 = vld [vmem:[#allocation2 + $0x68] sm:$0xff]
  %v49 = vld [vmem:[#allocation2 + $0x70] sm:$0xff]
  %v50 = vld [vmem:[#allocation2 + $0x78] sm:$0xff]
  %v51 = vld [vmem:[%s0] sm:$0xf]
  %v52 = vld [vmem:[%s0 + $0x4] sm:$0xf]
  %v53 = vld [vmem:[%s0 + $0x8] sm:$0xf]
  %v54 = vld [vmem:[%s0 + $0xc] sm:$0xf]
  %v55 = vld [vmem:[%s0 + $0x10] sm:$0xf]
  %v56 = vld [vmem:[%s0 + $0x14] sm:$0xf]
  %v57 = vld [vmem:[%s0 + $0x18] sm:$0xf]
  %v58 = vld [vmem:[%s0 + $0x1c] sm:$0xf]
  %v59 = vld [vmem:[%s0 + $0x20] sm:$0xf]
  %v60 = vld [vmem:[%s0 + $0x24] sm:$0xf]
  %v61 = vld [vmem:[%s0 + $0x28] sm:$0xf]
  %v62 = vld [vmem:[%s0 + $0x2c] sm:$0xf]
  %v63 = vld [vmem:[%s0 + $0x30] sm:$0xf]
  %v64 = vld [vmem:[%s0 + $0x34] sm:$0xf]
  %v65 = vld [vmem:[%s0 + $0x38] sm:$0xf]
  %v66 = vld [vmem:[%s0 + $0x3c] sm:$0xf]
  %v67 = vld [vmem:[%s1] sm:$0xf]
  %v68 = vld [vmem:[%s1 + $0x4] sm:$0xf]
  %v69 = vld [vmem:[%s1 + $0x8] sm:$0xf]
  %v70 = vld [vmem:[%s1 + $0xc] sm:$0xf]
  %v71 = vld [vmem:[%s1 + $0x10] sm:$0xf]
  %v72 = vld [vmem:[%s1 + $0x14] sm:$0xf]
  %v73 = vld [vmem:[%s1 + $0x18] sm:$0xf]
  %v74 = vld [vmem:[%s1 + $0x1c] sm:$0xf]
  %v75 = vld [vmem:[%s1 + $0x20] sm:$0xf]
  %v76 = vld [vmem:[%s1 + $0x24] sm:$0xf]
  %v77 = vld [vmem:[%s1 + $0x28] sm:$0xf]
  %v78 = vld [vmem:[%s1 + $0x2c] sm:$0xf]
  %v79 = vld [vmem:[%s1 + $0x30] sm:$0xf]
  %v80 = vld [vmem:[%s1 + $0x34] sm:$0xf]
  %v81 = vld [vmem:[%s1 + $0x38] sm:$0xf]
  %v82 = vld [vmem:[%s1 + $0x3c] sm:$0xf]
  %v99 = vunpack.c.l.b16 %v51
  %v100 = vunpack.c.l.b16 %v52
  %v101 = vunpack.c.l.b16 %v53
  %v102 = vunpack.c.l.b16 %v54
  %v103 = vunpack.c.l.b16 %v55
  %v104 = vunpack.c.l.b16 %v56
  %v105 = vunpack.c.l.b16 %v57
  %v106 = vunpack.c.l.b16 %v58
  %v107 = vunpack.c.l.b16 %v59
  %v108 = vunpack.c.l.b16 %v60
  %v109 = vunpack.c.l.b16 %v61
  %v110 = vunpack.c.l.b16 %v62
  %v111 = vunpack.c.l.b16 %v63
  %v112 = vunpack.c.l.b16 %v64
  %v113 = vunpack.c.l.b16 %v65
  %v114 = vunpack.c.l.b16 %v66
  %v115 = vpack.c.b16 %v100, %v99
  %v116 = vpack.c.b16 %v102, %v101
  %v117 = vpack.c.b16 %v104, %v103
  %v118 = vpack.c.b16 %v106, %v105
  %v119 = vpack.c.b16 %v108, %v107
  %v120 = vpack.c.b16 %v110, %v109
  %v121 = vpack.c.b16 %v112, %v111
  %v122 = vpack.c.b16 %v114, %v113
  %v147 = vunpack.c.l.b16 %v67
  %v148 = vunpack.c.l.b16 %v68
  %v149 = vunpack.c.l.b16 %v69
  %v150 = vunpack.c.l.b16 %v70
  %v151 = vunpack.c.l.b16 %v71
  %v152 = vunpack.c.l.b16 %v72
  %v153 = vunpack.c.l.b16 %v73
  %v154 = vunpack.c.l.b16 %v74
  %v155 = vunpack.c.l.b16 %v75
  %v156 = vunpack.c.l.b16 %v76
  %v157 = vunpack.c.l.b16 %v77
  %v158 = vunpack.c.l.b16 %v78
  %v159 = vunpack.c.l.b16 %v79
  %v160 = vunpack.c.l.b16 %v80
  %v161 = vunpack.c.l.b16 %v81
  %v162 = vunpack.c.l.b16 %v82
  %v163 = vpack.c.b16 %v148, %v147
  %v164 = vpack.c.b16 %v150, %v149
  %v165 = vpack.c.b16 %v152, %v151
  %v166 = vpack.c.b16 %v154, %v153
  %v167 = vpack.c.b16 %v156, %v155
  %v168 = vpack.c.b16 %v158, %v157
  %v169 = vpack.c.b16 %v160, %v159
  %v170 = vpack.c.b16 %v162, %v161
  %179 = vmatprep.subr.bf16.mxu0 0
  %180 = vmatpush1.bf16.msra.mxu0 %v170
  %181 = vmatprep.subr.bf16.mxu0 0
  %182 = vmatpush1.bf16.msra.mxu0 %v169
  %183 = vmatprep.subr.bf16.mxu0 0
  %184 = vmatpush1.bf16.msra.mxu0 %v168
  %185 = vmatprep.subr.bf16.mxu0 0
  %186 = vmatpush1.bf16.msra.mxu0 %v167
  %187 = vmatprep.subr.bf16.mxu0 0
  %188 = vmatpush1.bf16.msra.mxu0 %v166
  %189 = vmatprep.subr.bf16.mxu0 0
  %190 = vmatpush1.bf16.msra.mxu0 %v165
  %191 = vmatprep.subr.bf16.mxu0 0
  %192 = vmatpush1.bf16.msra.mxu0 %v164
  %193 = vmatprep.subr.bf16.mxu0 0
  %194 = vmatpush1.bf16.msra.mxu0 %v163
  %195 = vmatprep.subr.bf16.mxu0 0
  %196 = vmatpush2.bf16.msra.mxu0 0
  %197 = vmatprep.subr.bf16.mxu0 0
  %198 = vmatpush2.bf16.msra.mxu0 0
  %199 = vmatprep.subr.bf16.mxu0 0
  %200 = vmatpush2.bf16.msra.mxu0 0
  %201 = vmatprep.subr.bf16.mxu0 0
  %202 = vmatpush2.bf16.msra.mxu0 0
  %203 = vmatprep.subr.bf16.mxu0 0
  %204 = vmatpush2.bf16.msra.mxu0 0
  %205 = vmatprep.subr.bf16.mxu0 0
  %206 = vmatpush2.bf16.msra.mxu0 0
  %207 = vmatprep.subr.bf16.mxu0 0
  %208 = vmatpush2.bf16.msra.mxu0 0
  %209 = vmatprep.subr.bf16.mxu0 0
  %210 = vmatpush2.bf16.msra.mxu0 0
  %211 = vmatprep.mubr.bf16.mxu0 0
  %212 = vmatmul.mubr.bf16.gmra.mxu0 %v115
  %v213 = vpop.f32.mrf.mxu0
  %v214 = vadd.f32 0.0, %v213
  %v215 = vpop.f32.mrf.mxu0
  %v216 = vpop.f32.mrf.mxu0
  %v217 = vadd.f32 0.0, %v216
  %v218 = vpop.f32.mrf.mxu0
  %219 = vmatprep.mubr.bf16.mxu0 0
  %220 = vmatmul.mubr.bf16.gmra.mxu0 %v116
  %v221 = vpop.f32.mrf.mxu0
  %v222 = vadd.f32 0.0, %v221
  %v223 = vpop.f32.mrf.mxu0
  %v224 = vpop.f32.mrf.mxu0
  %v225 = vadd.f32 0.0, %v224
  %v226 = vpop.f32.mrf.mxu0
  %227 = vmatprep.mubr.bf16.mxu0 0
  %228 = vmatmul.mubr.bf16.gmra.mxu0 %v117
  %v229 = vpop.f32.mrf.mxu0
  %v230 = vadd.f32 0.0, %v229
  %v231 = vpop.f32.mrf.mxu0
  %v232 = vpop.f32.mrf.mxu0
  %v233 = vadd.f32 0.0, %v232
  %v234 = vpop.f32.mrf.mxu0
  %235 = vmatprep.mubr.bf16.mxu0 0
  %236 = vmatmul.mubr.bf16.gmra.mxu0 %v118
  %v237 = vpop.f32.mrf.mxu0
  %v238 = vadd.f32 0.0, %v237
  %v239 = vpop.f32.mrf.mxu0
  %v240 = vpop.f32.mrf.mxu0
  %v241 = vadd.f32 0.0, %v240
  %v242 = vpop.f32.mrf.mxu0
  %243 = vmatprep.mubr.bf16.mxu0 0
  %244 = vmatmul.mubr.bf16.gmra.mxu0 %v119
  %v245 = vpop.f32.mrf.mxu0
  %v246 = vadd.f32 0.0, %v245
  %v247 = vpop.f32.mrf.mxu0
  %v248 = vpop.f32.mrf.mxu0
  %v249 = vadd.f32 0.0, %v248
  %v250 = vpop.f32.mrf.mxu0
  %251 = vmatprep.mubr.bf16.mxu0 0
  %252 = vmatmul.mubr.bf16.gmra.mxu0 %v120
  %v253 = vpop.f32.mrf.mxu0
  %v254 = vadd.f32 0.0, %v253
  %v255 = vpop.f32.mrf.mxu0
  %v256 = vpop.f32.mrf.mxu0
  %v257 = vadd.f32 0.0, %v256
  %v258 = vpop.f32.mrf.mxu0
  %259 = vmatprep.mubr.bf16.mxu0 0
  %260 = vmatmul.mubr.bf16.gmra.mxu0 %v121
  %v261 = vpop.f32.mrf.mxu0
  %v262 = vadd.f32 0.0, %v261
  %v263 = vpop.f32.mrf.mxu0
  %v264 = vpop.f32.mrf.mxu0
  %v265 = vadd.f32 0.0, %v264
  %v266 = vpop.f32.mrf.mxu0
  %267 = vmatprep.mubr.bf16.mxu0 0
  %268 = vmatmul.mubr.bf16.gmra.mxu0 %v122
  %v269 = vpop.f32.mrf.mxu0
  %v270 = vadd.f32 0.0, %v269
  %v271 = vpop.f32.mrf.mxu0
  %v272 = vpop.f32.mrf.mxu0
  %v273 = vadd.f32 0.0, %v272
  %v274 = vpop.f32.mrf.mxu0
  %275 = vdwg.mxu0
  %v276 = vadd.f32 %v35, %v214
  %v277 = vadd.f32 %v36, %v217
  %v278 = vadd.f32 %v37, %v222
  %v279 = vadd.f32 %v38, %v225
  %v280 = vadd.f32 %v39, %v230
  %v281 = vadd.f32 %v40, %v233
  %v282 = vadd.f32 %v41, %v238
  %v283 = vadd.f32 %v42, %v241
  %v284 = vadd.f32 %v43, %v246
  %v285 = vadd.f32 %v44, %v249
  %v286 = vadd.f32 %v45, %v254
  %v287 = vadd.f32 %v46, %v257
  %v288 = vadd.f32 %v47, %v262
  %v289 = vadd.f32 %v48, %v265
  %v290 = vadd.f32 %v49, %v270
  %v291 = vadd.f32 %v50, %v273
  %292 = vst [vmem:[#allocation2] sm:$0xff] %v276
  %293 = vst [vmem:[#allocation2 + $0x8] sm:$0xff] %v277
  %294 = vst [vmem:[#allocation2 + $0x10] sm:$0xff] %v278
  %295 = vst [vmem:[#allocation2 + $0x18] sm:$0xff] %v279
  %296 = vst [vmem:[#allocation2 + $0x20] sm:$0xff] %v280
  %297 = vst [vmem:[#allocation2 + $0x28] sm:$0xff] %v281
  %298 = vst [vmem:[#allocation2 + $0x30] sm:$0xff] %v282
  %299 = vst [vmem:[#allocation2 + $0x38] sm:$0xff] %v283
  %300 = vst [vmem:[#allocation2 + $0x40] sm:$0xff] %v284
  %301 = vst [vmem:[#allocation2 + $0x48] sm:$0xff] %v285
  %302 = vst [vmem:[#allocation2 + $0x50] sm:$0xff] %v286
  %303 = vst [vmem:[#allocation2 + $0x58] sm:$0xff] %v287
  %304 = vst [vmem:[#allocation2 + $0x60] sm:$0xff] %v288
  %305 = vst [vmem:[#allocation2 + $0x68] sm:$0xff] %v289
  %306 = vst [vmem:[#allocation2 + $0x70] sm:$0xff] %v290
  %307 = vst [vmem:[#allocation2 + $0x78] sm:$0xff] %v291
  // Predicated region
  $region18: #{_lambda_.26} parent=0 // pred_check
    %p308 = pneg %p15
  $region19: #{_lambda_.26} parent=0 // pred_check_branch
    %310 = sbr.rel (%p308) target = $region21
  $region20: #{_lambda_.26} parent=0 // pred_region
    %v311 = vld [vmem:[#allocation2] sm:$0xff]
    %v312 = vld [vmem:[#allocation2 + $0x8] sm:$0xff]
    %v313 = vld [vmem:[#allocation2 + $0x10] sm:$0xff]
    %v314 = vld [vmem:[#allocation2 + $0x18] sm:$0xff]
    %v315 = vld [vmem:[#allocation2 + $0x20] sm:$0xff]
    %v316 = vld [vmem:[#allocation2 + $0x28] sm:$0xff]
    %v317 = vld [vmem:[#allocation2 + $0x30] sm:$0xff]
    %v318 = vld [vmem:[#allocation2 + $0x38] sm:$0xff]
    %v319 = vld [vmem:[#allocation2 + $0x40] sm:$0xff]
    %v320 = vld [vmem:[#allocation2 + $0x48] sm:$0xff]
    %v321 = vld [vmem:[#allocation2 + $0x50] sm:$0xff]
    %v322 = vld [vmem:[#allocation2 + $0x58] sm:$0xff]
    %v323 = vld [vmem:[#allocation2 + $0x60] sm:$0xff]
    %v324 = vld [vmem:[#allocation2 + $0x68] sm:$0xff]
    %v325 = vld [vmem:[#allocation2 + $0x70] sm:$0xff]
    %v326 = vld [vmem:[#allocation2 + $0x78] sm:$0xff]
    %v327 = vld [vmem:[%s2] sm:$0x1]
    %v329 = vlaneseq
    %v330 = vshrl.u32 %v329, 7
    %v331 = vsub.s32 0, %v330
    %v332 = vrot.slane %v327, %v331
    %v334 = vadd.f32 %v311, %v332
    %v335 = vadd.f32 %v312, %v332
    %v336 = vadd.f32 %v313, %v332
    %v337 = vadd.f32 %v314, %v332
    %v338 = vadd.f32 %v315, %v332
    %v339 = vadd.f32 %v316, %v332
    %v340 = vadd.f32 %v317, %v332
    %v341 = vadd.f32 %v318, %v332
    %v342 = vadd.f32 %v319, %v332
    %v343 = vadd.f32 %v320, %v332
    %v344 = vadd.f32 %v321, %v332
    %v345 = vadd.f32 %v322, %v332
    %v346 = vadd.f32 %v323, %v332
    %v347 = vadd.f32 %v324, %v332
    %v348 = vadd.f32 %v325, %v332
    %v349 = vadd.f32 %v326, %v332
    %v350 = vmax.f32 %v334, 0.0
    %v351 = vmax.f32 %v335, 0.0
    %v352 = vmax.f32 %v336, 0.0
    %v353 = vmax.f32 %v337, 0.0
    %v354 = vmax.f32 %v338, 0.0
    %v355 = vmax.f32 %v339, 0.0
    %v356 = vmax.f32 %v340, 0.0
    %v357 = vmax.f32 %v341, 0.0
    %v358 = vmax.f32 %v342, 0.0
    %v359 = vmax.f32 %v343, 0.0
    %v360 = vmax.f32 %v344, 0.0
    %v361 = vmax.f32 %v345, 0.0
    %v362 = vmax.f32 %v346, 0.0
    %v363 = vmax.f32 %v347, 0.0
    %v364 = vmax.f32 %v348, 0.0
    %v365 = vmax.f32 %v349, 0.0
    %366 = vst [vmem:[%s3] sm:$0xff] %v350
    %367 = vst [vmem:[%s3 + $0x8] sm:$0xff] %v351
    %368 = vst [vmem:[%s3 + $0x10] sm:$0xff] %v352
    %369 = vst [vmem:[%s3 + $0x18] sm:$0xff] %v353
    %370 = vst [vmem:[%s3 + $0x20] sm:$0xff] %v354
    %371 = vst [vmem:[%s3 + $0x28] sm:$0xff] %v355
    %372 = vst [vmem:[%s3 + $0x30] sm:$0xff] %v356
    %373 = vst [vmem:[%s3 + $0x38] sm:$0xff] %v357
    %374 = vst [vmem:[%s3 + $0x40] sm:$0xff] %v358
    %375 = vst [vmem:[%s3 + $0x48] sm:$0xff] %v359
    %376 = vst [vmem:[%s3 + $0x50] sm:$0xff] %v360
    %377 = vst [vmem:[%s3 + $0x58] sm:$0xff] %v361
    %378 = vst [vmem:[%s3 + $0x60] sm:$0xff] %v362
    %379 = vst [vmem:[%s3 + $0x68] sm:$0xff] %v363
    %380 = vst [vmem:[%s3 + $0x70] sm:$0xff] %v364
    %381 = vst [vmem:[%s3 + $0x78] sm:$0xff] %v365
  $region21: #{_lambda_.26} parent=0 // pred_fallthru
    _
  // Predicated region
  $region22: #{_lambda_.26} parent=0 // pred_check
    _
  $region23: #{_lambda_.26} parent=0 // pred_check_branch
    %383 = sbr.rel (0) target = $region25
  $region24: #{_lambda_.26} parent=0 // pred_region
    _
  $region25: #{_lambda_.26} parent=0 // pred_fallthru
    _
  // Predicated region
  $region26: #{_lambda_.26} parent=0 // pred_check
    _
  $region27: #{_lambda_.26} parent=0 // pred_check_branch
    %385 = sbr.rel (0) target = $region29
  $region28: #{_lambda_.26} parent=0 // pred_region
    _
  $region29: #{_lambda_.26} parent=0 // pred_fallthru
    _

// kernel: _lambda_.27
$region0: #{_lambda_.27}
  #allocation0 [shape = 'u32[]', space=smem, size = 0x4, offset = 0x4, fixed_abs, tag = 'smem constant byte address 0x4 - core index']
  #allocation1 [shape = 'u32[144,128]{1,0:T(1,128)}', space=vmem, size = 0x12000, scoped, tag = 'internal scratch']
  #allocation2 [shape = 'f32[128,128]{1,0:T(8,128)}', space=vmem, size = 0x10000, scoped, tag = 'scratch operand']
  %s0 = inlined_call_operand.vmem [shape: bf16[128,128], index: 0, kind: input, shape index: {}]
  %s1 = inlined_call_operand.vmem [shape: bf16[128,128], index: 1, kind: input, shape index: {}]
  %s2 = inlined_call_operand.vmem [shape: f32[1,128], index: 2, kind: input, shape index: {}]
  %s3 = inlined_call_operand.vmem [shape: f32[128,128], index: 3, kind: output, shape index: {}]
  %s4 = sld [smem:[#allocation0]]
  $region30: #{_lambda_.27} parent=0
    _
  %s6 = ssub.s32 1, %s4
  %s7 = scalar_select 0, %s6, %s4
  // Predicated region
  $region2: #{_lambda_.27} parent=0 // pred_check
    _
  $region3: #{_lambda_.27} parent=0 // pred_check_branch
    %9 = sbr.rel (0) target = $region5
  $region4: #{_lambda_.27} parent=0 // pred_region
    _
  $region5: #{_lambda_.27} parent=0 // pred_fallthru
    _
  // Predicated region
  $region6: #{_lambda_.27} parent=0 // pred_check
    _
  $region7: #{_lambda_.27} parent=0 // pred_check_branch
    %11 = sbr.rel (0) target = $region9
  $region8: #{_lambda_.27} parent=0 // pred_region
    _
  $region9: #{_lambda_.27} parent=0 // pred_fallthru
    _
  // Predicated region
  $region10: #{_lambda_.27} parent=0 // pred_check
    _
  $region11: #{_lambda_.27} parent=0 // pred_check_branch
    %13 = sbr.rel (0) target = $region13
  $region12: #{_lambda_.27} parent=0 // pred_region
    _
  $region13: #{_lambda_.27} parent=0 // pred_fallthru
    _
  %p15 = scmp.eq.s32.totalorder 0, 0
  // Predicated region
  $region14: #{_lambda_.27} parent=0 // pred_check
    %p16 = pneg %p15
  $region15: #{_lambda_.27} parent=0 // pred_check_branch
    %18 = sbr.rel (%p16) target = $region17
  $region16: #{_lambda_.27} parent=0 // pred_region
    %19 = vst [vmem:[#allocation2] sm:$0xff] 0.0
    %20 = vst [vmem:[#allocation2 + $0x8] sm:$0xff] 0.0
    %21 = vst [vmem:[#allocation2 + $0x10] sm:$0xff] 0.0
    %22 = vst [vmem:[#allocation2 + $0x18] sm:$0xff] 0.0
    %23 = vst [vmem:[#allocation2 + $0x20] sm:$0xff] 0.0
    %24 = vst [vmem:[#allocation2 + $0x28] sm:$0xff] 0.0
    %25 = vst [vmem:[#allocation2 + $0x30] sm:$0xff] 0.0
    %26 = vst [vmem:[#allocation2 + $0x38] sm:$0xff] 0.0
    %27 = vst [vmem:[#allocation2 + $0x40] sm:$0xff] 0.0
    %28 = vst [vmem:[#allocation2 + $0x48] sm:$0xff] 0.0
    %29 = vst [vmem:[#allocation2 + $0x50] sm:$0xff] 0.0
    %30 = vst [vmem:[#allocation2 + $0x58] sm:$0xff] 0.0
    %31 = vst [vmem:[#allocation2 + $0x60] sm:$0xff] 0.0
    %32 = vst [vmem:[#allocation2 + $0x68] sm:$0xff] 0.0
    %33 = vst [vmem:[#allocation2 + $0x70] sm:$0xff] 0.0
    %34 = vst [vmem:[#allocation2 + $0x78] sm:$0xff] 0.0
  $region17: #{_lambda_.27} parent=0 // pred_fallthru
    _
  %v35 = vld [vmem:[#allocation2] sm:$0xff]
  %v36 = vld [vmem:[#allocation2 + $0x8] sm:$0xff]
  %v37 = vld [vmem:[#allocation2 + $0x10] sm:$0xff]
  %v38 = vld [vmem:[#allocation2 + $0x18] sm:$0xff]
  %v39 = vld [vmem:[#allocation2 + $0x20] sm:$0xff]
  %v40 = vld [vmem:[#allocation2 + $0x28] sm:$0xff]
  %v41 = vld [vmem:[#allocation2 + $0x30] sm:$0xff]
  %v42 = vld [vmem:[#allocation2 + $0x38] sm:$0xff]
  %v43 = vld [vmem:[#allocation2 + $0x40] sm:$0xff]
  %v44 = vld [vmem:[#allocation2 + $0x48] sm:$0xff]
  %v45 = vld [vmem:[#allocation2 + $0x50] sm:$0xff]
  %v46 = vld [vmem:[#allocation2 + $0x58] sm:$0xff]
  %v47 = vld [vmem:[#allocation2 + $0x60] sm:$0xff]
  %v48 = vld [vmem:[#allocation2 + $0x68] sm:$0xff]
  %v49 = vld [vmem:[#allocation2 + $0x70] sm:$0xff]
  %v50 = vld [vmem:[#allocation2 + $0x78] sm:$0xff]
  %v51 = vld [vmem:[%s0] sm:$0xf]
  %v52 = vld [vmem:[%s0 + $0x4] sm:$0xf]
  %v53 = vld [vmem:[%s0 + $0x8] sm:$0xf]
  %v54 = vld [vmem:[%s0 + $0xc] sm:$0xf]
  %v55 = vld [vmem:[%s0 + $0x10] sm:$0xf]
  %v56 = vld [vmem:[%s0 + $0x14] sm:$0xf]
  %v57 = vld [vmem:[%s0 + $0x18] sm:$0xf]
  %v58 = vld [vmem:[%s0 + $0x1c] sm:$0xf]
  %v59 = vld [vmem:[%s0 + $0x20] sm:$0xf]
  %v60 = vld [vmem:[%s0 + $0x24] sm:$0xf]
  %v61 = vld [vmem:[%s0 + $0x28] sm:$0xf]
  %v62 = vld [vmem:[%s0 + $0x2c] sm:$0xf]
  %v63 = vld [vmem:[%s0 + $0x30] sm:$0xf]
  %v64 = vld [vmem:[%s0 + $0x34] sm:$0xf]
  %v65 = vld [vmem:[%s0 + $0x38] sm:$0xf]
  %v66 = vld [vmem:[%s0 + $0x3c] sm:$0xf]
  %v67 = vld [vmem:[%s1] sm:$0xf]
  %v68 = vld [vmem:[%s1 + $0x4] sm:$0xf]
  %v69 = vld [vmem:[%s1 + $0x8] sm:$0xf]
  %v70 = vld [vmem:[%s1 + $0xc] sm:$0xf]
  %v71 = vld [vmem:[%s1 + $0x10] sm:$0xf]
  %v72 = vld [vmem:[%s1 + $0x14] sm:$0xf]
  %v73 = vld [vmem:[%s1 + $0x18] sm:$0xf]
  %v74 = vld [vmem:[%s1 + $0x1c] sm:$0xf]
  %v75 = vld [vmem:[%s1 + $0x20] sm:$0xf]
  %v76 = vld [vmem:[%s1 + $0x24] sm:$0xf]
  %v77 = vld [vmem:[%s1 + $0x28] sm:$0xf]
  %v78 = vld [vmem:[%s1 + $0x2c] sm:$0xf]
  %v79 = vld [vmem:[%s1 + $0x30] sm:$0xf]
  %v80 = vld [vmem:[%s1 + $0x34] sm:$0xf]
  %v81 = vld [vmem:[%s1 + $0x38] sm:$0xf]
  %v82 = vld [vmem:[%s1 + $0x3c] sm:$0xf]
  %v99 = vunpack.c.l.b16 %v51
  %v100 = vunpack.c.l.b16 %v52
  %v101 = vunpack.c.l.b16 %v53
  %v102 = vunpack.c.l.b16 %v54
  %v103 = vunpack.c.l.b16 %v55
  %v104 = vunpack.c.l.b16 %v56
  %v105 = vunpack.c.l.b16 %v57
  %v106 = vunpack.c.l.b16 %v58
  %v107 = vunpack.c.l.b16 %v59
  %v108 = vunpack.c.l.b16 %v60
  %v109 = vunpack.c.l.b16 %v61
  %v110 = vunpack.c.l.b16 %v62
  %v111 = vunpack.c.l.b16 %v63
  %v112 = vunpack.c.l.b16 %v64
  %v113 = vunpack.c.l.b16 %v65
  %v114 = vunpack.c.l.b16 %v66
  %v115 = vpack.c.b16 %v100, %v99
  %v116 = vpack.c.b16 %v102, %v101
  %v117 = vpack.c.b16 %v104, %v103
  %v118 = vpack.c.b16 %v106, %v105
  %v119 = vpack.c.b16 %v108, %v107
  %v120 = vpack.c.b16 %v110, %v109
  %v121 = vpack.c.b16 %v112, %v111
  %v122 = vpack.c.b16 %v114, %v113
  %v147 = vunpack.c.l.b16 %v67
  %v148 = vunpack.c.l.b16 %v68
  %v149 = vunpack.c.l.b16 %v69
  %v150 = vunpack.c.l.b16 %v70
  %v151 = vunpack.c.l.b16 %v71
  %v152 = vunpack.c.l.b16 %v72
  %v153 = vunpack.c.l.b16 %v73
  %v154 = vunpack.c.l.b16 %v74
  %v155 = vunpack.c.l.b16 %v75
  %v156 = vunpack.c.l.b16 %v76
  %v157 = vunpack.c.l.b16 %v77
  %v158 = vunpack.c.l.b16 %v78
  %v159 = vunpack.c.l.b16 %v79
  %v160 = vunpack.c.l.b16 %v80
  %v161 = vunpack.c.l.b16 %v81
  %v162 = vunpack.c.l.b16 %v82
  %v163 = vpack.c.b16 %v148, %v147
  %v164 = vpack.c.b16 %v150, %v149
  %v165 = vpack.c.b16 %v152, %v151
  %v166 = vpack.c.b16 %v154, %v153
  %v167 = vpack.c.b16 %v156, %v155
  %v168 = vpack.c.b16 %v158, %v157
  %v169 = vpack.c.b16 %v160, %v159
  %v170 = vpack.c.b16 %v162, %v161
  %179 = vmatprep.subr.bf16.mxu0 0
  %180 = vmatpush1.bf16.msra.mxu0 %v170
  %181 = vmatprep.subr.bf16.mxu0 0
  %182 = vmatpush1.bf16.msra.mxu0 %v169
  %183 = vmatprep.subr.bf16.mxu0 0
  %184 = vmatpush1.bf16.msra.mxu0 %v168
  %185 = vmatprep.subr.bf16.mxu0 0
  %186 = vmatpush1.bf16.msra.mxu0 %v167
  %187 = vmatprep.subr.bf16.mxu0 0
  %188 = vmatpush1.bf16.msra.mxu0 %v166
  %189 = vmatprep.subr.bf16.mxu0 0
  %190 = vmatpush1.bf16.msra.mxu0 %v165
  %191 = vmatprep.subr.bf16.mxu0 0
  %192 = vmatpush1.bf16.msra.mxu0 %v164
  %193 = vmatprep.subr.bf16.mxu0 0
  %194 = vmatpush1.bf16.msra.mxu0 %v163
  %195 = vmatprep.subr.bf16.mxu0 0
  %196 = vmatpush2.bf16.msra.mxu0 0
  %197 = vmatprep.subr.bf16.mxu0 0
  %198 = vmatpush2.bf16.msra.mxu0 0
  %199 = vmatprep.subr.bf16.mxu0 0
  %200 = vmatpush2.bf16.msra.mxu0 0
  %201 = vmatprep.subr.bf16.mxu0 0
  %202 = vmatpush2.bf16.msra.mxu0 0
  %203 = vmatprep.subr.bf16.mxu0 0
  %204 = vmatpush2.bf16.msra.mxu0 0
  %205 = vmatprep.subr.bf16.mxu0 0
  %206 = vmatpush2.bf16.msra.mxu0 0
  %207 = vmatprep.subr.bf16.mxu0 0
  %208 = vmatpush2.bf16.msra.mxu0 0
  %209 = vmatprep.subr.bf16.mxu0 0
  %210 = vmatpush2.bf16.msra.mxu0 0
  %211 = vmatprep.mubr.bf16.mxu0 0
  %212 = vmatmul.mubr.bf16.gmra.mxu0 %v115
  %v213 = vpop.f32.mrf.mxu0
  %v214 = vadd.f32 0.0, %v213
  %v215 = vpop.f32.mrf.mxu0
  %v216 = vpop.f32.mrf.mxu0
  %v217 = vadd.f32 0.0, %v216
  %v218 = vpop.f32.mrf.mxu0
  %219 = vmatprep.mubr.bf16.mxu0 0
  %220 = vmatmul.mubr.bf16.gmra.mxu0 %v116
  %v221 = vpop.f32.mrf.mxu0
  %v222 = vadd.f32 0.0, %v221
  %v223 = vpop.f32.mrf.mxu0
  %v224 = vpop.f32.mrf.mxu0
  %v225 = vadd.f32 0.0, %v224
  %v226 = vpop.f32.mrf.mxu0
  %227 = vmatprep.mubr.bf16.mxu0 0
  %228 = vmatmul.mubr.bf16.gmra.mxu0 %v117
  %v229 = vpop.f32.mrf.mxu0
  %v230 = vadd.f32 0.0, %v229
  %v231 = vpop.f32.mrf.mxu0
  %v232 = vpop.f32.mrf.mxu0
  %v233 = vadd.f32 0.0, %v232
  %v234 = vpop.f32.mrf.mxu0
  %235 = vmatprep.mubr.bf16.mxu0 0
  %236 = vmatmul.mubr.bf16.gmra.mxu0 %v118
  %v237 = vpop.f32.mrf.mxu0
  %v238 = vadd.f32 0.0, %v237
  %v239 = vpop.f32.mrf.mxu0
  %v240 = vpop.f32.mrf.mxu0
  %v241 = vadd.f32 0.0, %v240
  %v242 = vpop.f32.mrf.mxu0
  %243 = vmatprep.mubr.bf16.mxu0 0
  %244 = vmatmul.mubr.bf16.gmra.mxu0 %v119
  %v245 = vpop.f32.mrf.mxu0
  %v246 = vadd.f32 0.0, %v245
  %v247 = vpop.f32.mrf.mxu0
  %v248 = vpop.f32.mrf.mxu0
  %v249 = vadd.f32 0.0, %v248
  %v250 = vpop.f32.mrf.mxu0
  %251 = vmatprep.mubr.bf16.mxu0 0
  %252 = vmatmul.mubr.bf16.gmra.mxu0 %v120
  %v253 = vpop.f32.mrf.mxu0
  %v254 = vadd.f32 0.0, %v253
  %v255 = vpop.f32.mrf.mxu0
  %v256 = vpop.f32.mrf.mxu0
  %v257 = vadd.f32 0.0, %v256
  %v258 = vpop.f32.mrf.mxu0
  %259 = vmatprep.mubr.bf16.mxu0 0
  %260 = vmatmul.mubr.bf16.gmra.mxu0 %v121
  %v261 = vpop.f32.mrf.mxu0
  %v262 = vadd.f32 0.0, %v261
  %v263 = vpop.f32.mrf.mxu0
  %v264 = vpop.f32.mrf.mxu0
  %v265 = vadd.f32 0.0, %v264
  %v266 = vpop.f32.mrf.mxu0
  %267 = vmatprep.mubr.bf16.mxu0 0
  %268 = vmatmul.mubr.bf16.gmra.mxu0 %v122
  %v269 = vpop.f32.mrf.mxu0
  %v270 = vadd.f32 0.0, %v269
  %v271 = vpop.f32.mrf.mxu0
  %v272 = vpop.f32.mrf.mxu0
  %v273 = vadd.f32 0.0, %v272
  %v274 = vpop.f32.mrf.mxu0
  %275 = vdwg.mxu0
  %v276 = vadd.f32 %v35, %v214
  %v277 = vadd.f32 %v36, %v217
  %v278 = vadd.f32 %v37, %v222
  %v279 = vadd.f32 %v38, %v225
  %v280 = vadd.f32 %v39, %v230
  %v281 = vadd.f32 %v40, %v233
  %v282 = vadd.f32 %v41, %v238
  %v283 = vadd.f32 %v42, %v241
  %v284 = vadd.f32 %v43, %v246
  %v285 = vadd.f32 %v44, %v249
  %v286 = vadd.f32 %v45, %v254
  %v287 = vadd.f32 %v46, %v257
  %v288 = vadd.f32 %v47, %v262
  %v289 = vadd.f32 %v48, %v265
  %v290 = vadd.f32 %v49, %v270
  %v291 = vadd.f32 %v50, %v273
  %292 = vst [vmem:[#allocation2] sm:$0xff] %v276
  %293 = vst [vmem:[#allocation2 + $0x8] sm:$0xff] %v277
  %294 = vst [vmem:[#allocation2 + $0x10] sm:$0xff] %v278
  %295 = vst [vmem:[#allocation2 + $0x18] sm:$0xff] %v279
  %296 = vst [vmem:[#allocation2 + $0x20] sm:$0xff] %v280
  %297 = vst [vmem:[#allocation2 + $0x28] sm:$0xff] %v281
  %298 = vst [vmem:[#allocation2 + $0x30] sm:$0xff] %v282
  %299 = vst [vmem:[#allocation2 + $0x38] sm:$0xff] %v283
  %300 = vst [vmem:[#allocation2 + $0x40] sm:$0xff] %v284
  %301 = vst [vmem:[#allocation2 + $0x48] sm:$0xff] %v285
  %302 = vst [vmem:[#allocation2 + $0x50] sm:$0xff] %v286
  %303 = vst [vmem:[#allocation2 + $0x58] sm:$0xff] %v287
  %304 = vst [vmem:[#allocation2 + $0x60] sm:$0xff] %v288
  %305 = vst [vmem:[#allocation2 + $0x68] sm:$0xff] %v289
  %306 = vst [vmem:[#allocation2 + $0x70] sm:$0xff] %v290
  %307 = vst [vmem:[#allocation2 + $0x78] sm:$0xff] %v291
  // Predicated region
  $region18: #{_lambda_.27} parent=0 // pred_check
    %p308 = pneg %p15
  $region19: #{_lambda_.27} parent=0 // pred_check_branch
    %310 = sbr.rel (%p308) target = $region21
  $region20: #{_lambda_.27} parent=0 // pred_region
    %v311 = vld [vmem:[#allocation2] sm:$0xff]
    %v312 = vld [vmem:[#allocation2 + $0x8] sm:$0xff]
    %v313 = vld [vmem:[#allocation2 + $0x10] sm:$0xff]
    %v314 = vld [vmem:[#allocation2 + $0x18] sm:$0xff]
    %v315 = vld [vmem:[#allocation2 + $0x20] sm:$0xff]
    %v316 = vld [vmem:[#allocation2 + $0x28] sm:$0xff]
    %v317 = vld [vmem:[#allocation2 + $0x30] sm:$0xff]
    %v318 = vld [vmem:[#allocation2 + $0x38] sm:$0xff]
    %v319 = vld [vmem:[#allocation2 + $0x40] sm:$0xff]
    %v320 = vld [vmem:[#allocation2 + $0x48] sm:$0xff]
    %v321 = vld [vmem:[#allocation2 + $0x50] sm:$0xff]
    %v322 = vld [vmem:[#allocation2 + $0x58] sm:$0xff]
    %v323 = vld [vmem:[#allocation2 + $0x60] sm:$0xff]
    %v324 = vld [vmem:[#allocation2 + $0x68] sm:$0xff]
    %v325 = vld [vmem:[#allocation2 + $0x70] sm:$0xff]
    %v326 = vld [vmem:[#allocation2 + $0x78] sm:$0xff]
    %v327 = vld [vmem:[%s2] sm:$0x1]
    %v329 = vlaneseq
    %v330 = vshrl.u32 %v329, 7
    %v331 = vsub.s32 0, %v330
    %v332 = vrot.slane %v327, %v331
    %v334 = vadd.f32 %v311, %v332
    %v335 = vadd.f32 %v312, %v332
    %v336 = vadd.f32 %v313, %v332
    %v337 = vadd.f32 %v314, %v332
    %v338 = vadd.f32 %v315, %v332
    %v339 = vadd.f32 %v316, %v332
    %v340 = vadd.f32 %v317, %v332
    %v341 = vadd.f32 %v318, %v332
    %v342 = vadd.f32 %v319, %v332
    %v343 = vadd.f32 %v320, %v332
    %v344 = vadd.f32 %v321, %v332
    %v345 = vadd.f32 %v322, %v332
    %v346 = vadd.f32 %v323, %v332
    %v347 = vadd.f32 %v324, %v332
    %v348 = vadd.f32 %v325, %v332
    %v349 = vadd.f32 %v326, %v332
    %350 = vst [vmem:[%s3] sm:$0xff] %v334
    %351 = vst [vmem:[%s3 + $0x8] sm:$0xff] %v335
    %352 = vst [vmem:[%s3 + $0x10] sm:$0xff] %v336
    %353 = vst [vmem:[%s3 + $0x18] sm:$0xff] %v337
    %354 = vst [vmem:[%s3 + $0x20] sm:$0xff] %v338
    %355 = vst [vmem:[%s3 + $0x28] sm:$0xff] %v339
    %356 = vst [vmem:[%s3 + $0x30] sm:$0xff] %v340
    %357 = vst [vmem:[%s3 + $0x38] sm:$0xff] %v341
    %358 = vst [vmem:[%s3 + $0x40] sm:$0xff] %v342
    %359 = vst [vmem:[%s3 + $0x48] sm:$0xff] %v343
    %360 = vst [vmem:[%s3 + $0x50] sm:$0xff] %v344
    %361 = vst [vmem:[%s3 + $0x58] sm:$0xff] %v345
    %362 = vst [vmem:[%s3 + $0x60] sm:$0xff] %v346
    %363 = vst [vmem:[%s3 + $0x68] sm:$0xff] %v347
    %364 = vst [vmem:[%s3 + $0x70] sm:$0xff] %v348
    %365 = vst [vmem:[%s3 + $0x78] sm:$0xff] %v349
  $region21: #{_lambda_.27} parent=0 // pred_fallthru
    _
  // Predicated region
  $region22: #{_lambda_.27} parent=0 // pred_check
    _
  $region23: #{_lambda_.27} parent=0 // pred_check_branch
    %367 = sbr.rel (0) target = $region25
  $region24: #{_lambda_.27} parent=0 // pred_region
    _
  $region25: #{_lambda_.27} parent=0 // pred_fallthru
    _
  // Predicated region
  $region26: #{_lambda_.27} parent=0 // pred_check
    _
  $region27: #{_lambda_.27} parent=0 // pred_check_branch
    %369 = sbr.rel (0) target = $region29
  $region28: #{_lambda_.27} parent=0 // pred_region
    _
  $region29: #{_lambda_.27} parent=0 // pred_fallthru
    _

// kernel: _lambda_.28
$region0: #{_lambda_.28}
  #allocation0 [shape = 'u32[]', space=smem, size = 0x4, offset = 0x4, fixed_abs, tag = 'smem constant byte address 0x4 - core index']
  #allocation1 [shape = 'u32[144,128]{1,0:T(1,128)}', space=vmem, size = 0x12000, scoped, tag = 'internal scratch']
  #allocation2 [shape = 'f32[128,128]{1,0:T(8,128)}', space=vmem, size = 0x10000, scoped, tag = 'scratch operand']
  %s0 = inlined_call_operand.vmem [shape: bf16[128,256], index: 0, kind: input, shape index: {}]
  %s1 = inlined_call_operand.vmem [shape: bf16[256,128], index: 1, kind: input, shape index: {}]
  %s2 = inlined_call_operand.vmem [shape: f32[1,128], index: 2, kind: input, shape index: {}]
  %s3 = inlined_call_operand.vmem [shape: f32[128,128], index: 3, kind: input, shape index: {}]
  %s4 = inlined_call_operand.vmem [shape: f32[128,128], index: 4, kind: output, shape index: {}]
  %s5 = sld [smem:[#allocation0]]
  $region34: #{_lambda_.28} parent=0
    _
  %s7 = ssub.s32 1, %s5
  %s8 = scalar_select 0, %s7, %s5
  // Predicated region
  $region2: #{_lambda_.28} parent=0 // pred_check
    _
  $region3: #{_lambda_.28} parent=0 // pred_check_branch
    %10 = sbr.rel (0) target = $region5
  $region4: #{_lambda_.28} parent=0 // pred_region
    _
  $region5: #{_lambda_.28} parent=0 // pred_fallthru
    _
  // Predicated region
  $region6: #{_lambda_.28} parent=0 // pred_check
    _
  $region7: #{_lambda_.28} parent=0 // pred_check_branch
    %12 = sbr.rel (0) target = $region9
  $region8: #{_lambda_.28} parent=0 // pred_region
    _
  $region9: #{_lambda_.28} parent=0 // pred_fallthru
    _
  // Predicated region
  $region10: #{_lambda_.28} parent=0 // pred_check
    _
  $region11: #{_lambda_.28} parent=0 // pred_check_branch
    %14 = sbr.rel (0) target = $region13
  $region12: #{_lambda_.28} parent=0 // pred_region
    _
  $region13: #{_lambda_.28} parent=0 // pred_fallthru
    _
  // Predicated region
  $region14: #{_lambda_.28} parent=0 // pred_check
    _
  $region15: #{_lambda_.28} parent=0 // pred_check_branch
    %16 = sbr.rel (0) target = $region17
  $region16: #{_lambda_.28} parent=0 // pred_region
    _
  $region17: #{_lambda_.28} parent=0 // pred_fallthru
    _
  %p18 = scmp.eq.s32.totalorder 0, 0
  // Predicated region
  $region18: #{_lambda_.28} parent=0 // pred_check
    %p19 = pneg %p18
  $region19: #{_lambda_.28} parent=0 // pred_check_branch
    %21 = sbr.rel (%p19) target = $region21
  $region20: #{_lambda_.28} parent=0 // pred_region
    %22 = vst [vmem:[#allocation2] sm:$0xff] 0.0
    %23 = vst [vmem:[#allocation2 + $0x8] sm:$0xff] 0.0
    %24 = vst [vmem:[#allocation2 + $0x10] sm:$0xff] 0.0
    %25 = vst [vmem:[#allocation2 + $0x18] sm:$0xff] 0.0
    %26 = vst [vmem:[#allocation2 + $0x20] sm:$0xff] 0.0
    %27 = vst [vmem:[#allocation2 + $0x28] sm:$0xff] 0.0
    %28 = vst [vmem:[#allocation2 + $0x30] sm:$0xff] 0.0
    %29 = vst [vmem:[#allocation2 + $0x38] sm:$0xff] 0.0
    %30 = vst [vmem:[#allocation2 + $0x40] sm:$0xff] 0.0
    %31 = vst [vmem:[#allocation2 + $0x48] sm:$0xff] 0.0
    %32 = vst [vmem:[#allocation2 + $0x50] sm:$0xff] 0.0
    %33 = vst [vmem:[#allocation2 + $0x58] sm:$0xff] 0.0
    %34 = vst [vmem:[#allocation2 + $0x60] sm:$0xff] 0.0
    %35 = vst [vmem:[#allocation2 + $0x68] sm:$0xff] 0.0
    %36 = vst [vmem:[#allocation2 + $0x70] sm:$0xff] 0.0
    %37 = vst [vmem:[#allocation2 + $0x78] sm:$0xff] 0.0
  $region21: #{_lambda_.28} parent=0 // pred_fallthru
    _
  %v38 = vld [vmem:[#allocation2] sm:$0xff]
  %v39 = vld [vmem:[#allocation2 + $0x8] sm:$0xff]
  %v40 = vld [vmem:[#allocation2 + $0x10] sm:$0xff]
  %v41 = vld [vmem:[#allocation2 + $0x18] sm:$0xff]
  %v42 = vld [vmem:[#allocation2 + $0x20] sm:$0xff]
  %v43 = vld [vmem:[#allocation2 + $0x28] sm:$0xff]
  %v44 = vld [vmem:[#allocation2 + $0x30] sm:$0xff]
  %v45 = vld [vmem:[#allocation2 + $0x38] sm:$0xff]
  %v46 = vld [vmem:[#allocation2 + $0x40] sm:$0xff]
  %v47 = vld [vmem:[#allocation2 + $0x48] sm:$0xff]
  %v48 = vld [vmem:[#allocation2 + $0x50] sm:$0xff]
  %v49 = vld [vmem:[#allocation2 + $0x58] sm:$0xff]
  %v50 = vld [vmem:[#allocation2 + $0x60] sm:$0xff]
  %v51 = vld [vmem:[#allocation2 + $0x68] sm:$0xff]
  %v52 = vld [vmem:[#allocation2 + $0x70] sm:$0xff]
  %v53 = vld [vmem:[#allocation2 + $0x78] sm:$0xff]
  %v54 = vld [vmem:[%s0] sm:$0xff]
  %v55 = vld [vmem:[%s0 + $0x8] sm:$0xff]
  %v56 = vld [vmem:[%s0 + $0x10] sm:$0xff]
  %v57 = vld [vmem:[%s0 + $0x18] sm:$0xff]
  %v58 = vld [vmem:[%s0 + $0x20] sm:$0xff]
  %v59 = vld [vmem:[%s0 + $0x28] sm:$0xff]
  %v60 = vld [vmem:[%s0 + $0x30] sm:$0xff]
  %v61 = vld [vmem:[%s0 + $0x38] sm:$0xff]
  %v62 = vld [vmem:[%s0 + $0x40] sm:$0xff]
  %v63 = vld [vmem:[%s0 + $0x48] sm:$0xff]
  %v64 = vld [vmem:[%s0 + $0x50] sm:$0xff]
  %v65 = vld [vmem:[%s0 + $0x58] sm:$0xff]
  %v66 = vld [vmem:[%s0 + $0x60] sm:$0xff]
  %v67 = vld [vmem:[%s0 + $0x68] sm:$0xff]
  %v68 = vld [vmem:[%s0 + $0x70] sm:$0xff]
  %v69 = vld [vmem:[%s0 + $0x78] sm:$0xff]
  %v70 = vld [vmem:[%s1] sm:$0xf]
  %v71 = vld [vmem:[%s1 + $0x4] sm:$0xf]
  %v72 = vld [vmem:[%s1 + $0x8] sm:$0xf]
  %v73 = vld [vmem:[%s1 + $0xc] sm:$0xf]
  %v74 = vld [vmem:[%s1 + $0x10] sm:$0xf]
  %v75 = vld [vmem:[%s1 + $0x14] sm:$0xf]
  %v76 = vld [vmem:[%s1 + $0x18] sm:$0xf]
  %v77 = vld [vmem:[%s1 + $0x1c] sm:$0xf]
  %v78 = vld [vmem:[%s1 + $0x20] sm:$0xf]
  %v79 = vld [vmem:[%s1 + $0x24] sm:$0xf]
  %v80 = vld [vmem:[%s1 + $0x28] sm:$0xf]
  %v81 = vld [vmem:[%s1 + $0x2c] sm:$0xf]
  %v82 = vld [vmem:[%s1 + $0x30] sm:$0xf]
  %v83 = vld [vmem:[%s1 + $0x34] sm:$0xf]
  %v84 = vld [vmem:[%s1 + $0x38] sm:$0xf]
  %v85 = vld [vmem:[%s1 + $0x3c] sm:$0xf]
  %v86 = vld [vmem:[%s1 + $0x40] sm:$0xf]
  %v87 = vld [vmem:[%s1 + $0x44] sm:$0xf]
  %v88 = vld [vmem:[%s1 + $0x48] sm:$0xf]
  %v89 = vld [vmem:[%s1 + $0x4c] sm:$0xf]
  %v90 = vld [vmem:[%s1 + $0x50] sm:$0xf]
  %v91 = vld [vmem:[%s1 + $0x54] sm:$0xf]
  %v92 = vld [vmem:[%s1 + $0x58] sm:$0xf]
  %v93 = vld [vmem:[%s1 + $0x5c] sm:$0xf]
  %v94 = vld [vmem:[%s1 + $0x60] sm:$0xf]
  %v95 = vld [vmem:[%s1 + $0x64] sm:$0xf]
  %v96 = vld [vmem:[%s1 + $0x68] sm:$0xf]
  %v97 = vld [vmem:[%s1 + $0x6c] sm:$0xf]
  %v98 = vld [vmem:[%s1 + $0x70] sm:$0xf]
  %v99 = vld [vmem:[%s1 + $0x74] sm:$0xf]
  %v100 = vld [vmem:[%s1 + $0x78] sm:$0xf]
  %v101 = vld [vmem:[%s1 + $0x7c] sm:$0xf]
  %v118 = vunpack.c.l.b16 %v54
  %v119 = vunpack.c.h.b16 %v54
  %v120 = vunpack.c.l.b16 %v55
  %v121 = vunpack.c.h.b16 %v55
  %v122 = vunpack.c.l.b16 %v56
  %v123 = vunpack.c.h.b16 %v56
  %v124 = vunpack.c.l.b16 %v57
  %v125 = vunpack.c.h.b16 %v57
  %v126 = vunpack.c.l.b16 %v58
  %v127 = vunpack.c.h.b16 %v58
  %v128 = vunpack.c.l.b16 %v59
  %v129 = vunpack.c.h.b16 %v59
  %v130 = vunpack.c.l.b16 %v60
  %v131 = vunpack.c.h.b16 %v60
  %v132 = vunpack.c.l.b16 %v61
  %v133 = vunpack.c.h.b16 %v61
  %v134 = vunpack.c.l.b16 %v62
  %v135 = vunpack.c.h.b16 %v62
  %v136 = vunpack.c.l.b16 %v63
  %v137 = vunpack.c.h.b16 %v63
  %v138 = vunpack.c.l.b16 %v64
  %v139 = vunpack.c.h.b16 %v64
  %v140 = vunpack.c.l.b16 %v65
  %v141 = vunpack.c.h.b16 %v65
  %v142 = vunpack.c.l.b16 %v66
  %v143 = vunpack.c.h.b16 %v66
  %v144 = vunpack.c.l.b16 %v67
  %v145 = vunpack.c.h.b16 %v67
  %v146 = vunpack.c.l.b16 %v68
  %v147 = vunpack.c.h.b16 %v68
  %v148 = vunpack.c.l.b16 %v69
  %v149 = vunpack.c.h.b16 %v69
  %v150 = vpack.c.b16 %v120, %v118
  %v151 = vpack.c.b16 %v121, %v119
  %v152 = vpack.c.b16 %v124, %v122
  %v153 = vpack.c.b16 %v125, %v123
  %v154 = vpack.c.b16 %v128, %v126
  %v155 = vpack.c.b16 %v129, %v127
  %v156 = vpack.c.b16 %v132, %v130
  %v157 = vpack.c.b16 %v133, %v131
  %v158 = vpack.c.b16 %v136, %v134
  %v159 = vpack.c.b16 %v137, %v135
  %v160 = vpack.c.b16 %v140, %v138
  %v161 = vpack.c.b16 %v141, %v139
  %v162 = vpack.c.b16 %v144, %v142
  %v163 = vpack.c.b16 %v145, %v143
  %v164 = vpack.c.b16 %v148, %v146
  %v165 = vpack.c.b16 %v149, %v147
  %v214 = vunpack.c.l.b16 %v70
  %v215 = vunpack.c.l.b16 %v71
  %v216 = vunpack.c.l.b16 %v72
  %v217 = vunpack.c.l.b16 %v73
  %v218 = vunpack.c.l.b16 %v74
  %v219 = vunpack.c.l.b16 %v75
  %v220 = vunpack.c.l.b16 %v76
  %v221 = vunpack.c.l.b16 %v77
  %v222 = vunpack.c.l.b16 %v78
  %v223 = vunpack.c.l.b16 %v79
  %v224 = vunpack.c.l.b16 %v80
  %v225 = vunpack.c.l.b16 %v81
  %v226 = vunpack.c.l.b16 %v82
  %v227 = vunpack.c.l.b16 %v83
  %v228 = vunpack.c.l.b16 %v84
  %v229 = vunpack.c.l.b16 %v85
  %v230 = vunpack.c.l.b16 %v86
  %v231 = vunpack.c.l.b16 %v87
  %v232 = vunpack.c.l.b16 %v88
  %v233 = vunpack.c.l.b16 %v89
  %v234 = vunpack.c.l.b16 %v90
  %v235 = vunpack.c.l.b16 %v91
  %v236 = vunpack.c.l.b16 %v92
  %v237 = vunpack.c.l.b16 %v93
  %v238 = vunpack.c.l.b16 %v94
  %v239 = vunpack.c.l.b16 %v95
  %v240 = vunpack.c.l.b16 %v96
  %v241 = vunpack.c.l.b16 %v97
  %v242 = vunpack.c.l.b16 %v98
  %v243 = vunpack.c.l.b16 %v99
  %v244 = vunpack.c.l.b16 %v100
  %v245 = vunpack.c.l.b16 %v101
  %v246 = vpack.c.b16 %v215, %v214
  %v247 = vpack.c.b16 %v217, %v216
  %v248 = vpack.c.b16 %v219, %v218
  %v249 = vpack.c.b16 %v221, %v220
  %v250 = vpack.c.b16 %v223, %v222
  %v251 = vpack.c.b16 %v225, %v224
  %v252 = vpack.c.b16 %v227, %v226
  %v253 = vpack.c.b16 %v229, %v228
  %v254 = vpack.c.b16 %v231, %v230
  %v255 = vpack.c.b16 %v233, %v232
  %v256 = vpack.c.b16 %v235, %v234
  %v257 = vpack.c.b16 %v237, %v236
  %v258 = vpack.c.b16 %v239, %v238
  %v259 = vpack.c.b16 %v241, %v240
  %v260 = vpack.c.b16 %v243, %v242
  %v261 = vpack.c.b16 %v245, %v244
  %278 = vmatprep.subr.bf16.mxu0 0
  %279 = vmatpush1.bf16.msra.mxu0 %v253
  %280 = vmatprep.subr.bf16.mxu0 0
  %281 = vmatpush1.bf16.msra.mxu0 %v252
  %282 = vmatprep.subr.bf16.mxu0 0
  %283 = vmatpush1.bf16.msra.mxu0 %v251
  %284 = vmatprep.subr.bf16.mxu0 0
  %285 = vmatpush1.bf16.msra.mxu0 %v250
  %286 = vmatprep.subr.bf16.mxu0 0
  %287 = vmatpush1.bf16.msra.mxu0 %v249
  %288 = vmatprep.subr.bf16.mxu0 0
  %289 = vmatpush1.bf16.msra.mxu0 %v248
  %290 = vmatprep.subr.bf16.mxu0 0
  %291 = vmatpush1.bf16.msra.mxu0 %v247
  %292 = vmatprep.subr.bf16.mxu0 0
  %293 = vmatpush1.bf16.msra.mxu0 %v246
  %294 = vmatprep.subr.bf16.mxu0 0
  %295 = vmatpush2.bf16.msra.mxu0 %v261
  %296 = vmatprep.subr.bf16.mxu0 0
  %297 = vmatpush2.bf16.msra.mxu0 %v260
  %298 = vmatprep.subr.bf16.mxu0 0
  %299 = vmatpush2.bf16.msra.mxu0 %v259
  %300 = vmatprep.subr.bf16.mxu0 0
  %301 = vmatpush2.bf16.msra.mxu0 %v258
  %302 = vmatprep.subr.bf16.mxu0 0
  %303 = vmatpush2.bf16.msra.mxu0 %v257
  %304 = vmatprep.subr.bf16.mxu0 0
  %305 = vmatpush2.bf16.msra.mxu0 %v256
  %306 = vmatprep.subr.bf16.mxu0 0
  %307 = vmatpush2.bf16.msra.mxu0 %v255
  %308 = vmatprep.subr.bf16.mxu0 0
  %309 = vmatpush2.bf16.msra.mxu0 %v254
  %310 = vmatprep.mubr.bf16.mxu0 %v151
  %311 = vmatmul.mubr.bf16.gmra.mxu0 %v150
  %v312 = vpop.f32.mrf.mxu0
  %v313 = vadd.f32 0.0, %v312
  %v314 = vpop.f32.mrf.mxu0
  %v315 = vpop.f32.mrf.mxu0
  %v316 = vadd.f32 0.0, %v315
  %v317 = vpop.f32.mrf.mxu0
  %318 = vmatprep.mubr.bf16.mxu0 %v153
  %319 = vmatmul.mubr.bf16.gmra.mxu0 %v152
  %v320 = vpop.f32.mrf.mxu0
  %v321 = vadd.f32 0.0, %v320
  %v322 = vpop.f32.mrf.mxu0
  %v323 = vpop.f32.mrf.mxu0
  %v324 = vadd.f32 0.0, %v323
  %v325 = vpop.f32.mrf.mxu0
  %326 = vmatprep.mubr.bf16.mxu0 %v155
  %327 = vmatmul.mubr.bf16.gmra.mxu0 %v154
  %v328 = vpop.f32.mrf.mxu0
  %v329 = vadd.f32 0.0, %v328
  %v330 = vpop.f32.mrf.mxu0
  %v331 = vpop.f32.mrf.mxu0
  %v332 = vadd.f32 0.0, %v331
  %v333 = vpop.f32.mrf.mxu0
  %334 = vmatprep.mubr.bf16.mxu0 %v157
  %335 = vmatmul.mubr.bf16.gmra.mxu0 %v156
  %v336 = vpop.f32.mrf.mxu0
  %v337 = vadd.f32 0.0, %v336
  %v338 = vpop.f32.mrf.mxu0
  %v339 = vpop.f32.mrf.mxu0
  %v340 = vadd.f32 0.0, %v339
  %v341 = vpop.f32.mrf.mxu0
  %342 = vmatprep.mubr.bf16.mxu0 %v159
  %343 = vmatmul.mubr.bf16.gmra.mxu0 %v158
  %v344 = vpop.f32.mrf.mxu0
  %v345 = vadd.f32 0.0, %v344
  %v346 = vpop.f32.mrf.mxu0
  %v347 = vpop.f32.mrf.mxu0
  %v348 = vadd.f32 0.0, %v347
  %v349 = vpop.f32.mrf.mxu0
  %350 = vmatprep.mubr.bf16.mxu0 %v161
  %351 = vmatmul.mubr.bf16.gmra.mxu0 %v160
  %v352 = vpop.f32.mrf.mxu0
  %v353 = vadd.f32 0.0, %v352
  %v354 = vpop.f32.mrf.mxu0
  %v355 = vpop.f32.mrf.mxu0
  %v356 = vadd.f32 0.0, %v355
  %v357 = vpop.f32.mrf.mxu0
  %358 = vmatprep.mubr.bf16.mxu0 %v163
  %359 = vmatmul.mubr.bf16.gmra.mxu0 %v162
  %v360 = vpop.f32.mrf.mxu0
  %v361 = vadd.f32 0.0, %v360
  %v362 = vpop.f32.mrf.mxu0
  %v363 = vpop.f32.mrf.mxu0
  %v364 = vadd.f32 0.0, %v363
  %v365 = vpop.f32.mrf.mxu0
  %366 = vmatprep.mubr.bf16.mxu0 %v165
  %367 = vmatmul.mubr.bf16.gmra.mxu0 %v164
  %v368 = vpop.f32.mrf.mxu0
  %v369 = vadd.f32 0.0, %v368
  %v370 = vpop.f32.mrf.mxu0
  %v371 = vpop.f32.mrf.mxu0
  %v372 = vadd.f32 0.0, %v371
  %v373 = vpop.f32.mrf.mxu0
  %374 = vdwg.mxu0
  %v375 = vadd.f32 %v38, %v313
  %v376 = vadd.f32 %v39, %v316
  %v377 = vadd.f32 %v40, %v321
  %v378 = vadd.f32 %v41, %v324
  %v379 = vadd.f32 %v42, %v329
  %v380 = vadd.f32 %v43, %v332
  %v381 = vadd.f32 %v44, %v337
  %v382 = vadd.f32 %v45, %v340
  %v383 = vadd.f32 %v46, %v345
  %v384 = vadd.f32 %v47, %v348
  %v385 = vadd.f32 %v48, %v353
  %v386 = vadd.f32 %v49, %v356
  %v387 = vadd.f32 %v50, %v361
  %v388 = vadd.f32 %v51, %v364
  %v389 = vadd.f32 %v52, %v369
  %v390 = vadd.f32 %v53, %v372
  %391 = vst [vmem:[#allocation2] sm:$0xff] %v375
  %392 = vst [vmem:[#allocation2 + $0x8] sm:$0xff] %v376
  %393 = vst [vmem:[#allocation2 + $0x10] sm:$0xff] %v377
  %394 = vst [vmem:[#allocation2 + $0x18] sm:$0xff] %v378
  %395 = vst [vmem:[#allocation2 + $0x20] sm:$0xff] %v379
  %396 = vst [vmem:[#allocation2 + $0x28] sm:$0xff] %v380
  %397 = vst [vmem:[#allocation2 + $0x30] sm:$0xff] %v381
  %398 = vst [vmem:[#allocation2 + $0x38] sm:$0xff] %v382
  %399 = vst [vmem:[#allocation2 + $0x40] sm:$0xff] %v383
  %400 = vst [vmem:[#allocation2 + $0x48] sm:$0xff] %v384
  %401 = vst [vmem:[#allocation2 + $0x50] sm:$0xff] %v385
  %402 = vst [vmem:[#allocation2 + $0x58] sm:$0xff] %v386
  %403 = vst [vmem:[#allocation2 + $0x60] sm:$0xff] %v387
  %404 = vst [vmem:[#allocation2 + $0x68] sm:$0xff] %v388
  %405 = vst [vmem:[#allocation2 + $0x70] sm:$0xff] %v389
  %406 = vst [vmem:[#allocation2 + $0x78] sm:$0xff] %v390
  // Predicated region
  $region22: #{_lambda_.28} parent=0 // pred_check
    %p407 = pneg %p18
  $region23: #{_lambda_.28} parent=0 // pred_check_branch
    %409 = sbr.rel (%p407) target = $region25
  $region24: #{_lambda_.28} parent=0 // pred_region
    %v410 = vld [vmem:[#allocation2] sm:$0xff]
    %v411 = vld [vmem:[#allocation2 + $0x8] sm:$0xff]
    %v412 = vld [vmem:[#allocation2 + $0x10] sm:$0xff]
    %v413 = vld [vmem:[#allocation2 + $0x18] sm:$0xff]
    %v414 = vld [vmem:[#allocation2 + $0x20] sm:$0xff]
    %v415 = vld [vmem:[#allocation2 + $0x28] sm:$0xff]
    %v416 = vld [vmem:[#allocation2 + $0x30] sm:$0xff]
    %v417 = vld [vmem:[#allocation2 + $0x38] sm:$0xff]
    %v418 = vld [vmem:[#allocation2 + $0x40] sm:$0xff]
    %v419 = vld [vmem:[#allocation2 + $0x48] sm:$0xff]
    %v420 = vld [vmem:[#allocation2 + $0x50] sm:$0xff]
    %v421 = vld [vmem:[#allocation2 + $0x58] sm:$0xff]
    %v422 = vld [vmem:[#allocation2 + $0x60] sm:$0xff]
    %v423 = vld [vmem:[#allocation2 + $0x68] sm:$0xff]
    %v424 = vld [vmem:[#allocation2 + $0x70] sm:$0xff]
    %v425 = vld [vmem:[#allocation2 + $0x78] sm:$0xff]
    %v426 = vld [vmem:[%s2] sm:$0x1]
    %v428 = vlaneseq
    %v429 = vshrl.u32 %v428, 7
    %v430 = vsub.s32 0, %v429
    %v431 = vrot.slane %v426, %v430
    %v433 = vadd.f32 %v410, %v431
    %v434 = vadd.f32 %v411, %v431
    %v435 = vadd.f32 %v412, %v431
    %v436 = vadd.f32 %v413, %v431
    %v437 = vadd.f32 %v414, %v431
    %v438 = vadd.f32 %v415, %v431
    %v439 = vadd.f32 %v416, %v431
    %v440 = vadd.f32 %v417, %v431
    %v441 = vadd.f32 %v418, %v431
    %v442 = vadd.f32 %v419, %v431
    %v443 = vadd.f32 %v420, %v431
    %v444 = vadd.f32 %v421, %v431
    %v445 = vadd.f32 %v422, %v431
    %v446 = vadd.f32 %v423, %v431
    %v447 = vadd.f32 %v424, %v431
    %v448 = vadd.f32 %v425, %v431
    %v449 = vld [vmem:[%s3] sm:$0xff]
    %v450 = vld [vmem:[%s3 + $0x8] sm:$0xff]
    %v451 = vld [vmem:[%s3 + $0x10] sm:$0xff]
    %v452 = vld [vmem:[%s3 + $0x18] sm:$0xff]
    %v453 = vld [vmem:[%s3 + $0x20] sm:$0xff]
    %v454 = vld [vmem:[%s3 + $0x28] sm:$0xff]
    %v455 = vld [vmem:[%s3 + $0x30] sm:$0xff]
    %v456 = vld [vmem:[%s3 + $0x38] sm:$0xff]
    %v457 = vld [vmem:[%s3 + $0x40] sm:$0xff]
    %v458 = vld [vmem:[%s3 + $0x48] sm:$0xff]
    %v459 = vld [vmem:[%s3 + $0x50] sm:$0xff]
    %v460 = vld [vmem:[%s3 + $0x58] sm:$0xff]
    %v461 = vld [vmem:[%s3 + $0x60] sm:$0xff]
    %v462 = vld [vmem:[%s3 + $0x68] sm:$0xff]
    %v463 = vld [vmem:[%s3 + $0x70] sm:$0xff]
    %v464 = vld [vmem:[%s3 + $0x78] sm:$0xff]
    %v465 = vadd.f32 %v433, %v449
    %v466 = vadd.f32 %v434, %v450
    %v467 = vadd.f32 %v435, %v451
    %v468 = vadd.f32 %v436, %v452
    %v469 = vadd.f32 %v437, %v453
    %v470 = vadd.f32 %v438, %v454
    %v471 = vadd.f32 %v439, %v455
    %v472 = vadd.f32 %v440, %v456
    %v473 = vadd.f32 %v441, %v457
    %v474 = vadd.f32 %v442, %v458
    %v475 = vadd.f32 %v443, %v459
    %v476 = vadd.f32 %v444, %v460
    %v477 = vadd.f32 %v445, %v461
    %v478 = vadd.f32 %v446, %v462
    %v479 = vadd.f32 %v447, %v463
    %v480 = vadd.f32 %v448, %v464
    %v481 = vmax.f32 %v465, 0.0
    %v482 = vmax.f32 %v466, 0.0
    %v483 = vmax.f32 %v467, 0.0
    %v484 = vmax.f32 %v468, 0.0
    %v485 = vmax.f32 %v469, 0.0
    %v486 = vmax.f32 %v470, 0.0
    %v487 = vmax.f32 %v471, 0.0
    %v488 = vmax.f32 %v472, 0.0
    %v489 = vmax.f32 %v473, 0.0
    %v490 = vmax.f32 %v474, 0.0
    %v491 = vmax.f32 %v475, 0.0
    %v492 = vmax.f32 %v476, 0.0
    %v493 = vmax.f32 %v477, 0.0
    %v494 = vmax.f32 %v478, 0.0
    %v495 = vmax.f32 %v479, 0.0
    %v496 = vmax.f32 %v480, 0.0
    %497 = vst [vmem:[%s4] sm:$0xff] %v481
    %498 = vst [vmem:[%s4 + $0x8] sm:$0xff] %v482
    %499 = vst [vmem:[%s4 + $0x10] sm:$0xff] %v483
    %500 = vst [vmem:[%s4 + $0x18] sm:$0xff] %v484
    %501 = vst [vmem:[%s4 + $0x20] sm:$0xff] %v485
    %502 = vst [vmem:[%s4 + $0x28] sm:$0xff] %v486
    %503 = vst [vmem:[%s4 + $0x30] sm:$0xff] %v487
    %504 = vst [vmem:[%s4 + $0x38] sm:$0xff] %v488
    %505 = vst [vmem:[%s4 + $0x40] sm:$0xff] %v489
    %506 = vst [vmem:[%s4 + $0x48] sm:$0xff] %v490
    %507 = vst [vmem:[%s4 + $0x50] sm:$0xff] %v491
    %508 = vst [vmem:[%s4 + $0x58] sm:$0xff] %v492
    %509 = vst [vmem:[%s4 + $0x60] sm:$0xff] %v493
    %510 = vst [vmem:[%s4 + $0x68] sm:$0xff] %v494
    %511 = vst [vmem:[%s4 + $0x70] sm:$0xff] %v495
    %512 = vst [vmem:[%s4 + $0x78] sm:$0xff] %v496
  $region25: #{_lambda_.28} parent=0 // pred_fallthru
    _
  // Predicated region
  $region26: #{_lambda_.28} parent=0 // pred_check
    _
  $region27: #{_lambda_.28} parent=0 // pred_check_branch
    %514 = sbr.rel (0) target = $region29
  $region28: #{_lambda_.28} parent=0 // pred_region
    _
  $region29: #{_lambda_.28} parent=0 // pred_fallthru
    _
  // Predicated region
  $region30: #{_lambda_.28} parent=0 // pred_check
    _
  $region31: #{_lambda_.28} parent=0 // pred_check_branch
    %516 = sbr.rel (0) target = $region33
  $region32: #{_lambda_.28} parent=0 // pred_region
    _
  $region33: #{_lambda_.28} parent=0 // pred_fallthru
    _

// kernel: _lambda_.29
$region0: #{_lambda_.29}
  #allocation0 [shape = 'u32[]', space=smem, size = 0x4, offset = 0x4, fixed_abs, tag = 'smem constant byte address 0x4 - core index']
  #allocation1 [shape = 'u32[144,128]{1,0:T(1,128)}', space=vmem, size = 0x12000, scoped, tag = 'internal scratch']
  #allocation2 [shape = 'f32[128,128]{1,0:T(8,128)}', space=vmem, size = 0x10000, scoped, tag = 'scratch operand']
  %s0 = inlined_call_operand.vmem [shape: bf16[128,256], index: 0, kind: input, shape index: {}]
  %s1 = inlined_call_operand.vmem [shape: bf16[256,128], index: 1, kind: input, shape index: {}]
  %s2 = inlined_call_operand.vmem [shape: f32[1,128], index: 2, kind: input, shape index: {}]
  %s3 = inlined_call_operand.vmem [shape: f32[128,128], index: 3, kind: output, shape index: {}]
  %s4 = sld [smem:[#allocation0]]
  $region30: #{_lambda_.29} parent=0
    _
  %s6 = ssub.s32 1, %s4
  %s7 = scalar_select 0, %s6, %s4
  // Predicated region
  $region2: #{_lambda_.29} parent=0 // pred_check
    _
  $region3: #{_lambda_.29} parent=0 // pred_check_branch
    %9 = sbr.rel (0) target = $region5
  $region4: #{_lambda_.29} parent=0 // pred_region
    _
  $region5: #{_lambda_.29} parent=0 // pred_fallthru
    _
  // Predicated region
  $region6: #{_lambda_.29} parent=0 // pred_check
    _
  $region7: #{_lambda_.29} parent=0 // pred_check_branch
    %11 = sbr.rel (0) target = $region9
  $region8: #{_lambda_.29} parent=0 // pred_region
    _
  $region9: #{_lambda_.29} parent=0 // pred_fallthru
    _
  // Predicated region
  $region10: #{_lambda_.29} parent=0 // pred_check
    _
  $region11: #{_lambda_.29} parent=0 // pred_check_branch
    %13 = sbr.rel (0) target = $region13
  $region12: #{_lambda_.29} parent=0 // pred_region
    _
  $region13: #{_lambda_.29} parent=0 // pred_fallthru
    _
  %p15 = scmp.eq.s32.totalorder 0, 0
  // Predicated region
  $region14: #{_lambda_.29} parent=0 // pred_check
    %p16 = pneg %p15
  $region15: #{_lambda_.29} parent=0 // pred_check_branch
    %18 = sbr.rel (%p16) target = $region17
  $region16: #{_lambda_.29} parent=0 // pred_region
    %19 = vst [vmem:[#allocation2] sm:$0xff] 0.0
    %20 = vst [vmem:[#allocation2 + $0x8] sm:$0xff] 0.0
    %21 = vst [vmem:[#allocation2 + $0x10] sm:$0xff] 0.0
    %22 = vst [vmem:[#allocation2 + $0x18] sm:$0xff] 0.0
    %23 = vst [vmem:[#allocation2 + $0x20] sm:$0xff] 0.0
    %24 = vst [vmem:[#allocation2 + $0x28] sm:$0xff] 0.0
    %25 = vst [vmem:[#allocation2 + $0x30] sm:$0xff] 0.0
    %26 = vst [vmem:[#allocation2 + $0x38] sm:$0xff] 0.0
    %27 = vst [vmem:[#allocation2 + $0x40] sm:$0xff] 0.0
    %28 = vst [vmem:[#allocation2 + $0x48] sm:$0xff] 0.0
    %29 = vst [vmem:[#allocation2 + $0x50] sm:$0xff] 0.0
    %30 = vst [vmem:[#allocation2 + $0x58] sm:$0xff] 0.0
    %31 = vst [vmem:[#allocation2 + $0x60] sm:$0xff] 0.0
    %32 = vst [vmem:[#allocation2 + $0x68] sm:$0xff] 0.0
    %33 = vst [vmem:[#allocation2 + $0x70] sm:$0xff] 0.0
    %34 = vst [vmem:[#allocation2 + $0x78] sm:$0xff] 0.0
  $region17: #{_lambda_.29} parent=0 // pred_fallthru
    _
  %v35 = vld [vmem:[#allocation2] sm:$0xff]
  %v36 = vld [vmem:[#allocation2 + $0x8] sm:$0xff]
  %v37 = vld [vmem:[#allocation2 + $0x10] sm:$0xff]
  %v38 = vld [vmem:[#allocation2 + $0x18] sm:$0xff]
  %v39 = vld [vmem:[#allocation2 + $0x20] sm:$0xff]
  %v40 = vld [vmem:[#allocation2 + $0x28] sm:$0xff]
  %v41 = vld [vmem:[#allocation2 + $0x30] sm:$0xff]
  %v42 = vld [vmem:[#allocation2 + $0x38] sm:$0xff]
  %v43 = vld [vmem:[#allocation2 + $0x40] sm:$0xff]
  %v44 = vld [vmem:[#allocation2 + $0x48] sm:$0xff]
  %v45 = vld [vmem:[#allocation2 + $0x50] sm:$0xff]
  %v46 = vld [vmem:[#allocation2 + $0x58] sm:$0xff]
  %v47 = vld [vmem:[#allocation2 + $0x60] sm:$0xff]
  %v48 = vld [vmem:[#allocation2 + $0x68] sm:$0xff]
  %v49 = vld [vmem:[#allocation2 + $0x70] sm:$0xff]
  %v50 = vld [vmem:[#allocation2 + $0x78] sm:$0xff]
  %v51 = vld [vmem:[%s0] sm:$0xff]
  %v52 = vld [vmem:[%s0 + $0x8] sm:$0xff]
  %v53 = vld [vmem:[%s0 + $0x10] sm:$0xff]
  %v54 = vld [vmem:[%s0 + $0x18] sm:$0xff]
  %v55 = vld [vmem:[%s0 + $0x20] sm:$0xff]
  %v56 = vld [vmem:[%s0 + $0x28] sm:$0xff]
  %v57 = vld [vmem:[%s0 + $0x30] sm:$0xff]
  %v58 = vld [vmem:[%s0 + $0x38] sm:$0xff]
  %v59 = vld [vmem:[%s0 + $0x40] sm:$0xff]
  %v60 = vld [vmem:[%s0 + $0x48] sm:$0xff]
  %v61 = vld [vmem:[%s0 + $0x50] sm:$0xff]
  %v62 = vld [vmem:[%s0 + $0x58] sm:$0xff]
  %v63 = vld [vmem:[%s0 + $0x60] sm:$0xff]
  %v64 = vld [vmem:[%s0 + $0x68] sm:$0xff]
  %v65 = vld [vmem:[%s0 + $0x70] sm:$0xff]
  %v66 = vld [vmem:[%s0 + $0x78] sm:$0xff]
  %v67 = vld [vmem:[%s1] sm:$0xf]
  %v68 = vld [vmem:[%s1 + $0x4] sm:$0xf]
  %v69 = vld [vmem:[%s1 + $0x8] sm:$0xf]
  %v70 = vld [vmem:[%s1 + $0xc] sm:$0xf]
  %v71 = vld [vmem:[%s1 + $0x10] sm:$0xf]
  %v72 = vld [vmem:[%s1 + $0x14] sm:$0xf]
  %v73 = vld [vmem:[%s1 + $0x18] sm:$0xf]
  %v74 = vld [vmem:[%s1 + $0x1c] sm:$0xf]
  %v75 = vld [vmem:[%s1 + $0x20] sm:$0xf]
  %v76 = vld [vmem:[%s1 + $0x24] sm:$0xf]
  %v77 = vld [vmem:[%s1 + $0x28] sm:$0xf]
  %v78 = vld [vmem:[%s1 + $0x2c] sm:$0xf]
  %v79 = vld [vmem:[%s1 + $0x30] sm:$0xf]
  %v80 = vld [vmem:[%s1 + $0x34] sm:$0xf]
  %v81 = vld [vmem:[%s1 + $0x38] sm:$0xf]
  %v82 = vld [vmem:[%s1 + $0x3c] sm:$0xf]
  %v83 = vld [vmem:[%s1 + $0x40] sm:$0xf]
  %v84 = vld [vmem:[%s1 + $0x44] sm:$0xf]
  %v85 = vld [vmem:[%s1 + $0x48] sm:$0xf]
  %v86 = vld [vmem:[%s1 + $0x4c] sm:$0xf]
  %v87 = vld [vmem:[%s1 + $0x50] sm:$0xf]
  %v88 = vld [vmem:[%s1 + $0x54] sm:$0xf]
  %v89 = vld [vmem:[%s1 + $0x58] sm:$0xf]
  %v90 = vld [vmem:[%s1 + $0x5c] sm:$0xf]
  %v91 = vld [vmem:[%s1 + $0x60] sm:$0xf]
  %v92 = vld [vmem:[%s1 + $0x64] sm:$0xf]
  %v93 = vld [vmem:[%s1 + $0x68] sm:$0xf]
  %v94 = vld [vmem:[%s1 + $0x6c] sm:$0xf]
  %v95 = vld [vmem:[%s1 + $0x70] sm:$0xf]
  %v96 = vld [vmem:[%s1 + $0x74] sm:$0xf]
  %v97 = vld [vmem:[%s1 + $0x78] sm:$0xf]
  %v98 = vld [vmem:[%s1 + $0x7c] sm:$0xf]
  %v115 = vunpack.c.l.b16 %v51
  %v116 = vunpack.c.h.b16 %v51
  %v117 = vunpack.c.l.b16 %v52
  %v118 = vunpack.c.h.b16 %v52
  %v119 = vunpack.c.l.b16 %v53
  %v120 = vunpack.c.h.b16 %v53
  %v121 = vunpack.c.l.b16 %v54
  %v122 = vunpack.c.h.b16 %v54
  %v123 = vunpack.c.l.b16 %v55
  %v124 = vunpack.c.h.b16 %v55
  %v125 = vunpack.c.l.b16 %v56
  %v126 = vunpack.c.h.b16 %v56
  %v127 = vunpack.c.l.b16 %v57
  %v128 = vunpack.c.h.b16 %v57
  %v129 = vunpack.c.l.b16 %v58
  %v130 = vunpack.c.h.b16 %v58
  %v131 = vunpack.c.l.b16 %v59
  %v132 = vunpack.c.h.b16 %v59
  %v133 = vunpack.c.l.b16 %v60
  %v134 = vunpack.c.h.b16 %v60
  %v135 = vunpack.c.l.b16 %v61
  %v136 = vunpack.c.h.b16 %v61
  %v137 = vunpack.c.l.b16 %v62
  %v138 = vunpack.c.h.b16 %v62
  %v139 = vunpack.c.l.b16 %v63
  %v140 = vunpack.c.h.b16 %v63
  %v141 = vunpack.c.l.b16 %v64
  %v142 = vunpack.c.h.b16 %v64
  %v143 = vunpack.c.l.b16 %v65
  %v144 = vunpack.c.h.b16 %v65
  %v145 = vunpack.c.l.b16 %v66
  %v146 = vunpack.c.h.b16 %v66
  %v147 = vpack.c.b16 %v117, %v115
  %v148 = vpack.c.b16 %v118, %v116
  %v149 = vpack.c.b16 %v121, %v119
  %v150 = vpack.c.b16 %v122, %v120
  %v151 = vpack.c.b16 %v125, %v123
  %v152 = vpack.c.b16 %v126, %v124
  %v153 = vpack.c.b16 %v129, %v127
  %v154 = vpack.c.b16 %v130, %v128
  %v155 = vpack.c.b16 %v133, %v131
  %v156 = vpack.c.b16 %v134, %v132
  %v157 = vpack.c.b16 %v137, %v135
  %v158 = vpack.c.b16 %v138, %v136
  %v159 = vpack.c.b16 %v141, %v139
  %v160 = vpack.c.b16 %v142, %v140
  %v161 = vpack.c.b16 %v145, %v143
  %v162 = vpack.c.b16 %v146, %v144
  %v211 = vunpack.c.l.b16 %v67
  %v212 = vunpack.c.l.b16 %v68
  %v213 = vunpack.c.l.b16 %v69
  %v214 = vunpack.c.l.b16 %v70
  %v215 = vunpack.c.l.b16 %v71
  %v216 = vunpack.c.l.b16 %v72
  %v217 = vunpack.c.l.b16 %v73
  %v218 = vunpack.c.l.b16 %v74
  %v219 = vunpack.c.l.b16 %v75
  %v220 = vunpack.c.l.b16 %v76
  %v221 = vunpack.c.l.b16 %v77
  %v222 = vunpack.c.l.b16 %v78
  %v223 = vunpack.c.l.b16 %v79
  %v224 = vunpack.c.l.b16 %v80
  %v225 = vunpack.c.l.b16 %v81
  %v226 = vunpack.c.l.b16 %v82
  %v227 = vunpack.c.l.b16 %v83
  %v228 = vunpack.c.l.b16 %v84
  %v229 = vunpack.c.l.b16 %v85
  %v230 = vunpack.c.l.b16 %v86
  %v231 = vunpack.c.l.b16 %v87
  %v232 = vunpack.c.l.b16 %v88
  %v233 = vunpack.c.l.b16 %v89
  %v234 = vunpack.c.l.b16 %v90
  %v235 = vunpack.c.l.b16 %v91
  %v236 = vunpack.c.l.b16 %v92
  %v237 = vunpack.c.l.b16 %v93
  %v238 = vunpack.c.l.b16 %v94
  %v239 = vunpack.c.l.b16 %v95
  %v240 = vunpack.c.l.b16 %v96
  %v241 = vunpack.c.l.b16 %v97
  %v242 = vunpack.c.l.b16 %v98
  %v243 = vpack.c.b16 %v212, %v211
  %v244 = vpack.c.b16 %v214, %v213
  %v245 = vpack.c.b16 %v216, %v215
  %v246 = vpack.c.b16 %v218, %v217
  %v247 = vpack.c.b16 %v220, %v219
  %v248 = vpack.c.b16 %v222, %v221
  %v249 = vpack.c.b16 %v224, %v223
  %v250 = vpack.c.b16 %v226, %v225
  %v251 = vpack.c.b16 %v228, %v227
  %v252 = vpack.c.b16 %v230, %v229
  %v253 = vpack.c.b16 %v232, %v231
  %v254 = vpack.c.b16 %v234, %v233
  %v255 = vpack.c.b16 %v236, %v235
  %v256 = vpack.c.b16 %v238, %v237
  %v257 = vpack.c.b16 %v240, %v239
  %v258 = vpack.c.b16 %v242, %v241
  %275 = vmatprep.subr.bf16.mxu0 0
  %276 = vmatpush1.bf16.msra.mxu0 %v250
  %277 = vmatprep.subr.bf16.mxu0 0
  %278 = vmatpush1.bf16.msra.mxu0 %v249
  %279 = vmatprep.subr.bf16.mxu0 0
  %280 = vmatpush1.bf16.msra.mxu0 %v248
  %281 = vmatprep.subr.bf16.mxu0 0
  %282 = vmatpush1.bf16.msra.mxu0 %v247
  %283 = vmatprep.subr.bf16.mxu0 0
  %284 = vmatpush1.bf16.msra.mxu0 %v246
  %285 = vmatprep.subr.bf16.mxu0 0
  %286 = vmatpush1.bf16.msra.mxu0 %v245
  %287 = vmatprep.subr.bf16.mxu0 0
  %288 = vmatpush1.bf16.msra.mxu0 %v244
  %289 = vmatprep.subr.bf16.mxu0 0
  %290 = vmatpush1.bf16.msra.mxu0 %v243
  %291 = vmatprep.subr.bf16.mxu0 0
  %292 = vmatpush2.bf16.msra.mxu0 %v258
  %293 = vmatprep.subr.bf16.mxu0 0
  %294 = vmatpush2.bf16.msra.mxu0 %v257
  %295 = vmatprep.subr.bf16.mxu0 0
  %296 = vmatpush2.bf16.msra.mxu0 %v256
  %297 = vmatprep.subr.bf16.mxu0 0
  %298 = vmatpush2.bf16.msra.mxu0 %v255
  %299 = vmatprep.subr.bf16.mxu0 0
  %300 = vmatpush2.bf16.msra.mxu0 %v254
  %301 = vmatprep.subr.bf16.mxu0 0
  %302 = vmatpush2.bf16.msra.mxu0 %v253
  %303 = vmatprep.subr.bf16.mxu0 0
  %304 = vmatpush2.bf16.msra.mxu0 %v252
  %305 = vmatprep.subr.bf16.mxu0 0
  %306 = vmatpush2.bf16.msra.mxu0 %v251
  %307 = vmatprep.mubr.bf16.mxu0 %v148
  %308 = vmatmul.mubr.bf16.gmra.mxu0 %v147
  %v309 = vpop.f32.mrf.mxu0
  %v310 = vadd.f32 0.0, %v309
  %v311 = vpop.f32.mrf.mxu0
  %v312 = vpop.f32.mrf.mxu0
  %v313 = vadd.f32 0.0, %v312
  %v314 = vpop.f32.mrf.mxu0
  %315 = vmatprep.mubr.bf16.mxu0 %v150
  %316 = vmatmul.mubr.bf16.gmra.mxu0 %v149
  %v317 = vpop.f32.mrf.mxu0
  %v318 = vadd.f32 0.0, %v317
  %v319 = vpop.f32.mrf.mxu0
  %v320 = vpop.f32.mrf.mxu0
  %v321 = vadd.f32 0.0, %v320
  %v322 = vpop.f32.mrf.mxu0
  %323 = vmatprep.mubr.bf16.mxu0 %v152
  %324 = vmatmul.mubr.bf16.gmra.mxu0 %v151
  %v325 = vpop.f32.mrf.mxu0
  %v326 = vadd.f32 0.0, %v325
  %v327 = vpop.f32.mrf.mxu0
  %v328 = vpop.f32.mrf.mxu0
  %v329 = vadd.f32 0.0, %v328
  %v330 = vpop.f32.mrf.mxu0
  %331 = vmatprep.mubr.bf16.mxu0 %v154
  %332 = vmatmul.mubr.bf16.gmra.mxu0 %v153
  %v333 = vpop.f32.mrf.mxu0
  %v334 = vadd.f32 0.0, %v333
  %v335 = vpop.f32.mrf.mxu0
  %v336 = vpop.f32.mrf.mxu0
  %v337 = vadd.f32 0.0, %v336
  %v338 = vpop.f32.mrf.mxu0
  %339 = vmatprep.mubr.bf16.mxu0 %v156
  %340 = vmatmul.mubr.bf16.gmra.mxu0 %v155
  %v341 = vpop.f32.mrf.mxu0
  %v342 = vadd.f32 0.0, %v341
  %v343 = vpop.f32.mrf.mxu0
  %v344 = vpop.f32.mrf.mxu0
  %v345 = vadd.f32 0.0, %v344
  %v346 = vpop.f32.mrf.mxu0
  %347 = vmatprep.mubr.bf16.mxu0 %v158
  %348 = vmatmul.mubr.bf16.gmra.mxu0 %v157
  %v349 = vpop.f32.mrf.mxu0
  %v350 = vadd.f32 0.0, %v349
  %v351 = vpop.f32.mrf.mxu0
  %v352 = vpop.f32.mrf.mxu0
  %v353 = vadd.f32 0.0, %v352
  %v354 = vpop.f32.mrf.mxu0
  %355 = vmatprep.mubr.bf16.mxu0 %v160
  %356 = vmatmul.mubr.bf16.gmra.mxu0 %v159
  %v357 = vpop.f32.mrf.mxu0
  %v358 = vadd.f32 0.0, %v357
  %v359 = vpop.f32.mrf.mxu0
  %v360 = vpop.f32.mrf.mxu0
  %v361 = vadd.f32 0.0, %v360
  %v362 = vpop.f32.mrf.mxu0
  %363 = vmatprep.mubr.bf16.mxu0 %v162
  %364 = vmatmul.mubr.bf16.gmra.mxu0 %v161
  %v365 = vpop.f32.mrf.mxu0
  %v366 = vadd.f32 0.0, %v365
  %v367 = vpop.f32.mrf.mxu0
  %v368 = vpop.f32.mrf.mxu0
  %v369 = vadd.f32 0.0, %v368
  %v370 = vpop.f32.mrf.mxu0
  %371 = vdwg.mxu0
  %v372 = vadd.f32 %v35, %v310
  %v373 = vadd.f32 %v36, %v313
  %v374 = vadd.f32 %v37, %v318
  %v375 = vadd.f32 %v38, %v321
  %v376 = vadd.f32 %v39, %v326
  %v377 = vadd.f32 %v40, %v329
  %v378 = vadd.f32 %v41, %v334
  %v379 = vadd.f32 %v42, %v337
  %v380 = vadd.f32 %v43, %v342
  %v381 = vadd.f32 %v44, %v345
  %v382 = vadd.f32 %v45, %v350
  %v383 = vadd.f32 %v46, %v353
  %v384 = vadd.f32 %v47, %v358
  %v385 = vadd.f32 %v48, %v361
  %v386 = vadd.f32 %v49, %v366
  %v387 = vadd.f32 %v50, %v369
  %388 = vst [vmem:[#allocation2] sm:$0xff] %v372
  %389 = vst [vmem:[#allocation2 + $0x8] sm:$0xff] %v373
  %390 = vst [vmem:[#allocation2 + $0x10] sm:$0xff] %v374
  %391 = vst [vmem:[#allocation2 + $0x18] sm:$0xff] %v375
  %392 = vst [vmem:[#allocation2 + $0x20] sm:$0xff] %v376
  %393 = vst [vmem:[#allocation2 + $0x28] sm:$0xff] %v377
  %394 = vst [vmem:[#allocation2 + $0x30] sm:$0xff] %v378
  %395 = vst [vmem:[#allocation2 + $0x38] sm:$0xff] %v379
  %396 = vst [vmem:[#allocation2 + $0x40] sm:$0xff] %v380
  %397 = vst [vmem:[#allocation2 + $0x48] sm:$0xff] %v381
  %398 = vst [vmem:[#allocation2 + $0x50] sm:$0xff] %v382
  %399 = vst [vmem:[#allocation2 + $0x58] sm:$0xff] %v383
  %400 = vst [vmem:[#allocation2 + $0x60] sm:$0xff] %v384
  %401 = vst [vmem:[#allocation2 + $0x68] sm:$0xff] %v385
  %402 = vst [vmem:[#allocation2 + $0x70] sm:$0xff] %v386
  %403 = vst [vmem:[#allocation2 + $0x78] sm:$0xff] %v387
  // Predicated region
  $region18: #{_lambda_.29} parent=0 // pred_check
    %p404 = pneg %p15
  $region19: #{_lambda_.29} parent=0 // pred_check_branch
    %406 = sbr.rel (%p404) target = $region21
  $region20: #{_lambda_.29} parent=0 // pred_region
    %v407 = vld [vmem:[#allocation2] sm:$0xff]
    %v408 = vld [vmem:[#allocation2 + $0x8] sm:$0xff]
    %v409 = vld [vmem:[#allocation2 + $0x10] sm:$0xff]
    %v410 = vld [vmem:[#allocation2 + $0x18] sm:$0xff]
    %v411 = vld [vmem:[#allocation2 + $0x20] sm:$0xff]
    %v412 = vld [vmem:[#allocation2 + $0x28] sm:$0xff]
    %v413 = vld [vmem:[#allocation2 + $0x30] sm:$0xff]
    %v414 = vld [vmem:[#allocation2 + $0x38] sm:$0xff]
    %v415 = vld [vmem:[#allocation2 + $0x40] sm:$0xff]
    %v416 = vld [vmem:[#allocation2 + $0x48] sm:$0xff]
    %v417 = vld [vmem:[#allocation2 + $0x50] sm:$0xff]
    %v418 = vld [vmem:[#allocation2 + $0x58] sm:$0xff]
    %v419 = vld [vmem:[#allocation2 + $0x60] sm:$0xff]
    %v420 = vld [vmem:[#allocation2 + $0x68] sm:$0xff]
    %v421 = vld [vmem:[#allocation2 + $0x70] sm:$0xff]
    %v422 = vld [vmem:[#allocation2 + $0x78] sm:$0xff]
    %v423 = vld [vmem:[%s2] sm:$0x1]
    %v425 = vlaneseq
    %v426 = vshrl.u32 %v425, 7
    %v427 = vsub.s32 0, %v426
    %v428 = vrot.slane %v423, %v427
    %v430 = vadd.f32 %v407, %v428
    %v431 = vadd.f32 %v408, %v428
    %v432 = vadd.f32 %v409, %v428
    %v433 = vadd.f32 %v410, %v428
    %v434 = vadd.f32 %v411, %v428
    %v435 = vadd.f32 %v412, %v428
    %v436 = vadd.f32 %v413, %v428
    %v437 = vadd.f32 %v414, %v428
    %v438 = vadd.f32 %v415, %v428
    %v439 = vadd.f32 %v416, %v428
    %v440 = vadd.f32 %v417, %v428
    %v441 = vadd.f32 %v418, %v428
    %v442 = vadd.f32 %v419, %v428
    %v443 = vadd.f32 %v420, %v428
    %v444 = vadd.f32 %v421, %v428
    %v445 = vadd.f32 %v422, %v428
    %v446 = vmax.f32 %v430, 0.0
    %v447 = vmax.f32 %v431, 0.0
    %v448 = vmax.f32 %v432, 0.0
    %v449 = vmax.f32 %v433, 0.0
    %v450 = vmax.f32 %v434, 0.0
    %v451 = vmax.f32 %v435, 0.0
    %v452 = vmax.f32 %v436, 0.0
    %v453 = vmax.f32 %v437, 0.0
    %v454 = vmax.f32 %v438, 0.0
    %v455 = vmax.f32 %v439, 0.0
    %v456 = vmax.f32 %v440, 0.0
    %v457 = vmax.f32 %v441, 0.0
    %v458 = vmax.f32 %v442, 0.0
    %v459 = vmax.f32 %v443, 0.0
    %v460 = vmax.f32 %v444, 0.0
    %v461 = vmax.f32 %v445, 0.0
    %462 = vst [vmem:[%s3] sm:$0xff] %v446
    %463 = vst [vmem:[%s3 + $0x8] sm:$0xff] %v447
    %464 = vst [vmem:[%s3 + $0x10] sm:$0xff] %v448
    %465 = vst [vmem:[%s3 + $0x18] sm:$0xff] %v449
    %466 = vst [vmem:[%s3 + $0x20] sm:$0xff] %v450
    %467 = vst [vmem:[%s3 + $0x28] sm:$0xff] %v451
    %468 = vst [vmem:[%s3 + $0x30] sm:$0xff] %v452
    %469 = vst [vmem:[%s3 + $0x38] sm:$0xff] %v453
    %470 = vst [vmem:[%s3 + $0x40] sm:$0xff] %v454
    %471 = vst [vmem:[%s3 + $0x48] sm:$0xff] %v455
    %472 = vst [vmem:[%s3 + $0x50] sm:$0xff] %v456
    %473 = vst [vmem:[%s3 + $0x58] sm:$0xff] %v457
    %474 = vst [vmem:[%s3 + $0x60] sm:$0xff] %v458
    %475 = vst [vmem:[%s3 + $0x68] sm:$0xff] %v459
    %476 = vst [vmem:[%s3 + $0x70] sm:$0xff] %v460
    %477 = vst [vmem:[%s3 + $0x78] sm:$0xff] %v461
  $region21: #{_lambda_.29} parent=0 // pred_fallthru
    _
  // Predicated region
  $region22: #{_lambda_.29} parent=0 // pred_check
    _
  $region23: #{_lambda_.29} parent=0 // pred_check_branch
    %479 = sbr.rel (0) target = $region25
  $region24: #{_lambda_.29} parent=0 // pred_region
    _
  $region25: #{_lambda_.29} parent=0 // pred_fallthru
    _
  // Predicated region
  $region26: #{_lambda_.29} parent=0 // pred_check
    _
  $region27: #{_lambda_.29} parent=0 // pred_check_branch
    %481 = sbr.rel (0) target = $region29
  $region28: #{_lambda_.29} parent=0 // pred_region
    _
  $region29: #{_lambda_.29} parent=0 // pred_fallthru
    _

// kernel: _lambda_.34
$region0: #{_lambda_.34}
  #allocation0 [shape = 'u32[]', space=smem, size = 0x4, offset = 0x4, fixed_abs, tag = 'smem constant byte address 0x4 - core index']
  #allocation1 [shape = 'u32[144,128]{1,0:T(1,128)}', space=vmem, size = 0x12000, scoped, tag = 'internal scratch']
  #allocation2 [shape = 'f32[128,128]{1,0:T(8,128)}', space=vmem, size = 0x10000, scoped, tag = 'scratch operand']
  %s0 = inlined_call_operand.vmem [shape: bf16[128,384], index: 0, kind: input, shape index: {}]
  %s1 = inlined_call_operand.vmem [shape: bf16[384,128], index: 1, kind: input, shape index: {}]
  %s2 = inlined_call_operand.vmem [shape: f32[1,128], index: 2, kind: input, shape index: {}]
  %s3 = inlined_call_operand.vmem [shape: f32[128,128], index: 3, kind: output, shape index: {}]
  %s4 = sld [smem:[#allocation0]]
  $region30: #{_lambda_.34} parent=0
    _
  %s6 = ssub.s32 1, %s4
  %s7 = scalar_select 0, %s6, %s4
  // Predicated region
  $region2: #{_lambda_.34} parent=0 // pred_check
    _
  $region3: #{_lambda_.34} parent=0 // pred_check_branch
    %9 = sbr.rel (0) target = $region5
  $region4: #{_lambda_.34} parent=0 // pred_region
    _
  $region5: #{_lambda_.34} parent=0 // pred_fallthru
    _
  // Predicated region
  $region6: #{_lambda_.34} parent=0 // pred_check
    _
  $region7: #{_lambda_.34} parent=0 // pred_check_branch
    %11 = sbr.rel (0) target = $region9
  $region8: #{_lambda_.34} parent=0 // pred_region
    _
  $region9: #{_lambda_.34} parent=0 // pred_fallthru
    _
  // Predicated region
  $region10: #{_lambda_.34} parent=0 // pred_check
    _
  $region11: #{_lambda_.34} parent=0 // pred_check_branch
    %13 = sbr.rel (0) target = $region13
  $region12: #{_lambda_.34} parent=0 // pred_region
    _
  $region13: #{_lambda_.34} parent=0 // pred_fallthru
    _
  %p15 = scmp.eq.s32.totalorder 0, 0
  // Predicated region
  $region14: #{_lambda_.34} parent=0 // pred_check
    %p16 = pneg %p15
  $region15: #{_lambda_.34} parent=0 // pred_check_branch
    %18 = sbr.rel (%p16) target = $region17
  $region16: #{_lambda_.34} parent=0 // pred_region
    %19 = vst [vmem:[#allocation2] sm:$0xff] 0.0
    %20 = vst [vmem:[#allocation2 + $0x8] sm:$0xff] 0.0
    %21 = vst [vmem:[#allocation2 + $0x10] sm:$0xff] 0.0
    %22 = vst [vmem:[#allocation2 + $0x18] sm:$0xff] 0.0
    %23 = vst [vmem:[#allocation2 + $0x20] sm:$0xff] 0.0
    %24 = vst [vmem:[#allocation2 + $0x28] sm:$0xff] 0.0
    %25 = vst [vmem:[#allocation2 + $0x30] sm:$0xff] 0.0
    %26 = vst [vmem:[#allocation2 + $0x38] sm:$0xff] 0.0
    %27 = vst [vmem:[#allocation2 + $0x40] sm:$0xff] 0.0
    %28 = vst [vmem:[#allocation2 + $0x48] sm:$0xff] 0.0
    %29 = vst [vmem:[#allocation2 + $0x50] sm:$0xff] 0.0
    %30 = vst [vmem:[#allocation2 + $0x58] sm:$0xff] 0.0
    %31 = vst [vmem:[#allocation2 + $0x60] sm:$0xff] 0.0
    %32 = vst [vmem:[#allocation2 + $0x68] sm:$0xff] 0.0
    %33 = vst [vmem:[#allocation2 + $0x70] sm:$0xff] 0.0
    %34 = vst [vmem:[#allocation2 + $0x78] sm:$0xff] 0.0
  $region17: #{_lambda_.34} parent=0 // pred_fallthru
    _
  %v35 = vld [vmem:[#allocation2] sm:$0xff]
  %v36 = vld [vmem:[#allocation2 + $0x8] sm:$0xff]
  %v37 = vld [vmem:[#allocation2 + $0x10] sm:$0xff]
  %v38 = vld [vmem:[#allocation2 + $0x18] sm:$0xff]
  %v39 = vld [vmem:[#allocation2 + $0x20] sm:$0xff]
  %v40 = vld [vmem:[#allocation2 + $0x28] sm:$0xff]
  %v41 = vld [vmem:[#allocation2 + $0x30] sm:$0xff]
  %v42 = vld [vmem:[#allocation2 + $0x38] sm:$0xff]
  %v43 = vld [vmem:[#allocation2 + $0x40] sm:$0xff]
  %v44 = vld [vmem:[#allocation2 + $0x48] sm:$0xff]
  %v45 = vld [vmem:[#allocation2 + $0x50] sm:$0xff]
  %v46 = vld [vmem:[#allocation2 + $0x58] sm:$0xff]
  %v47 = vld [vmem:[#allocation2 + $0x60] sm:$0xff]
  %v48 = vld [vmem:[#allocation2 + $0x68] sm:$0xff]
  %v49 = vld [vmem:[#allocation2 + $0x70] sm:$0xff]
  %v50 = vld [vmem:[#allocation2 + $0x78] sm:$0xff]
  %v51 = vld [vmem:[%s0] sm:$0xff]
  %v52 = vld [vmem:[%s0 + $0x8] sm:$0xf]
  %v53 = vld [vmem:[%s0 + $0xc] sm:$0xff]
  %v54 = vld [vmem:[%s0 + $0x14] sm:$0xf]
  %v55 = vld [vmem:[%s0 + $0x18] sm:$0xff]
  %v56 = vld [vmem:[%s0 + $0x20] sm:$0xf]
  %v57 = vld [vmem:[%s0 + $0x24] sm:$0xff]
  %v58 = vld [vmem:[%s0 + $0x2c] sm:$0xf]
  %v59 = vld [vmem:[%s0 + $0x30] sm:$0xff]
  %v60 = vld [vmem:[%s0 + $0x38] sm:$0xf]
  %v61 = vld [vmem:[%s0 + $0x3c] sm:$0xff]
  %v62 = vld [vmem:[%s0 + $0x44] sm:$0xf]
  %v63 = vld [vmem:[%s0 + $0x48] sm:$0xff]
  %v64 = vld [vmem:[%s0 + $0x50] sm:$0xf]
  %v65 = vld [vmem:[%s0 + $0x54] sm:$0xff]
  %v66 = vld [vmem:[%s0 + $0x5c] sm:$0xf]
  %v67 = vld [vmem:[%s0 + $0x60] sm:$0xff]
  %v68 = vld [vmem:[%s0 + $0x68] sm:$0xf]
  %v69 = vld [vmem:[%s0 + $0x6c] sm:$0xff]
  %v70 = vld [vmem:[%s0 + $0x74] sm:$0xf]
  %v71 = vld [vmem:[%s0 + $0x78] sm:$0xff]
  %v72 = vld [vmem:[%s0 + $0x80] sm:$0xf]
  %v73 = vld [vmem:[%s0 + $0x84] sm:$0xff]
  %v74 = vld [vmem:[%s0 + $0x8c] sm:$0xf]
  %v75 = vld [vmem:[%s0 + $0x90] sm:$0xff]
  %v76 = vld [vmem:[%s0 + $0x98] sm:$0xf]
  %v77 = vld [vmem:[%s0 + $0x9c] sm:$0xff]
  %v78 = vld [vmem:[%s0 + $0xa4] sm:$0xf]
  %v79 = vld [vmem:[%s0 + $0xa8] sm:$0xff]
  %v80 = vld [vmem:[%s0 + $0xb0] sm:$0xf]
  %v81 = vld [vmem:[%s0 + $0xb4] sm:$0xff]
  %v82 = vld [vmem:[%s0 + $0xbc] sm:$0xf]
  %v83 = vld [vmem:[%s1] sm:$0xf]
  %v84 = vld [vmem:[%s1 + $0x4] sm:$0xf]
  %v85 = vld [vmem:[%s1 + $0x8] sm:$0xf]
  %v86 = vld [vmem:[%s1 + $0xc] sm:$0xf]
  %v87 = vld [vmem:[%s1 + $0x10] sm:$0xf]
  %v88 = vld [vmem:[%s1 + $0x14] sm:$0xf]
  %v89 = vld [vmem:[%s1 + $0x18] sm:$0xf]
  %v90 = vld [vmem:[%s1 + $0x1c] sm:$0xf]
  %v91 = vld [vmem:[%s1 + $0x20] sm:$0xf]
  %v92 = vld [vmem:[%s1 + $0x24] sm:$0xf]
  %v93 = vld [vmem:[%s1 + $0x28] sm:$0xf]
  %v94 = vld [vmem:[%s1 + $0x2c] sm:$0xf]
  %v95 = vld [vmem:[%s1 + $0x30] sm:$0xf]
  %v96 = vld [vmem:[%s1 + $0x34] sm:$0xf]
  %v97 = vld [vmem:[%s1 + $0x38] sm:$0xf]
  %v98 = vld [vmem:[%s1 + $0x3c] sm:$0xf]
  %v99 = vld [vmem:[%s1 + $0x40] sm:$0xf]
  %v100 = vld [vmem:[%s1 + $0x44] sm:$0xf]
  %v101 = vld [vmem:[%s1 + $0x48] sm:$0xf]
  %v102 = vld [vmem:[%s1 + $0x4c] sm:$0xf]
  %v103 = vld [vmem:[%s1 + $0x50] sm:$0xf]
  %v104 = vld [vmem:[%s1 + $0x54] sm:$0xf]
  %v105 = vld [vmem:[%s1 + $0x58] sm:$0xf]
  %v106 = vld [vmem:[%s1 + $0x5c] sm:$0xf]
  %v107 = vld [vmem:[%s1 + $0x60] sm:$0xf]
  %v108 = vld [vmem:[%s1 + $0x64] sm:$0xf]
  %v109 = vld [vmem:[%s1 + $0x68] sm:$0xf]
  %v110 = vld [vmem:[%s1 + $0x6c] sm:$0xf]
  %v111 = vld [vmem:[%s1 + $0x70] sm:$0xf]
  %v112 = vld [vmem:[%s1 + $0x74] sm:$0xf]
  %v113 = vld [vmem:[%s1 + $0x78] sm:$0xf]
  %v114 = vld [vmem:[%s1 + $0x7c] sm:$0xf]
  %v115 = vld [vmem:[%s1 + $0x80] sm:$0xf]
  %v116 = vld [vmem:[%s1 + $0x84] sm:$0xf]
  %v117 = vld [vmem:[%s1 + $0x88] sm:$0xf]
  %v118 = vld [vmem:[%s1 + $0x8c] sm:$0xf]
  %v119 = vld [vmem:[%s1 + $0x90] sm:$0xf]
  %v120 = vld [vmem:[%s1 + $0x94] sm:$0xf]
  %v121 = vld [vmem:[%s1 + $0x98] sm:$0xf]
  %v122 = vld [vmem:[%s1 + $0x9c] sm:$0xf]
  %v123 = vld [vmem:[%s1 + $0xa0] sm:$0xf]
  %v124 = vld [vmem:[%s1 + $0xa4] sm:$0xf]
  %v125 = vld [vmem:[%s1 + $0xa8] sm:$0xf]
  %v126 = vld [vmem:[%s1 + $0xac] sm:$0xf]
  %v127 = vld [vmem:[%s1 + $0xb0] sm:$0xf]
  %v128 = vld [vmem:[%s1 + $0xb4] sm:$0xf]
  %v129 = vld [vmem:[%s1 + $0xb8] sm:$0xf]
  %v130 = vld [vmem:[%s1 + $0xbc] sm:$0xf]
  %v163 = vunpack.c.l.b16 %v51
  %v164 = vunpack.c.h.b16 %v51
  %v165 = vunpack.c.l.b16 %v52
  %v166 = vunpack.c.l.b16 %v53
  %v167 = vunpack.c.h.b16 %v53
  %v168 = vunpack.c.l.b16 %v54
  %v169 = vunpack.c.l.b16 %v55
  %v170 = vunpack.c.h.b16 %v55
  %v171 = vunpack.c.l.b16 %v56
  %v172 = vunpack.c.l.b16 %v57
  %v173 = vunpack.c.h.b16 %v57
  %v174 = vunpack.c.l.b16 %v58
  %v175 = vunpack.c.l.b16 %v59
  %v176 = vunpack.c.h.b16 %v59
  %v177 = vunpack.c.l.b16 %v60
  %v178 = vunpack.c.l.b16 %v61
  %v179 = vunpack.c.h.b16 %v61
  %v180 = vunpack.c.l.b16 %v62
  %v181 = vunpack.c.l.b16 %v63
  %v182 = vunpack.c.h.b16 %v63
  %v183 = vunpack.c.l.b16 %v64
  %v184 = vunpack.c.l.b16 %v65
  %v185 = vunpack.c.h.b16 %v65
  %v186 = vunpack.c.l.b16 %v66
  %v187 = vunpack.c.l.b16 %v67
  %v188 = vunpack.c.h.b16 %v67
  %v189 = vunpack.c.l.b16 %v68
  %v190 = vunpack.c.l.b16 %v69
  %v191 = vunpack.c.h.b16 %v69
  %v192 = vunpack.c.l.b16 %v70
  %v193 = vunpack.c.l.b16 %v71
  %v194 = vunpack.c.h.b16 %v71
  %v195 = vunpack.c.l.b16 %v72
  %v196 = vunpack.c.l.b16 %v73
  %v197 = vunpack.c.h.b16 %v73
  %v198 = vunpack.c.l.b16 %v74
  %v199 = vunpack.c.l.b16 %v75
  %v200 = vunpack.c.h.b16 %v75
  %v201 = vunpack.c.l.b16 %v76
  %v202 = vunpack.c.l.b16 %v77
  %v203 = vunpack.c.h.b16 %v77
  %v204 = vunpack.c.l.b16 %v78
  %v205 = vunpack.c.l.b16 %v79
  %v206 = vunpack.c.h.b16 %v79
  %v207 = vunpack.c.l.b16 %v80
  %v208 = vunpack.c.l.b16 %v81
  %v209 = vunpack.c.h.b16 %v81
  %v210 = vunpack.c.l.b16 %v82
  %v211 = vpack.c.b16 %v166, %v163
  %v212 = vpack.c.b16 %v167, %v164
  %v213 = vpack.c.b16 %v168, %v165
  %v214 = vpack.c.b16 %v172, %v169
  %v215 = vpack.c.b16 %v173, %v170
  %v216 = vpack.c.b16 %v174, %v171
  %v217 = vpack.c.b16 %v178, %v175
  %v218 = vpack.c.b16 %v179, %v176
  %v219 = vpack.c.b16 %v180, %v177
  %v220 = vpack.c.b16 %v184, %v181
  %v221 = vpack.c.b16 %v185, %v182
  %v222 = vpack.c.b16 %v186, %v183
  %v223 = vpack.c.b16 %v190, %v187
  %v224 = vpack.c.b16 %v191, %v188
  %v225 = vpack.c.b16 %v192, %v189
  %v226 = vpack.c.b16 %v196, %v193
  %v227 = vpack.c.b16 %v197, %v194
  %v228 = vpack.c.b16 %v198, %v195
  %v229 = vpack.c.b16 %v202, %v199
  %v230 = vpack.c.b16 %v203, %v200
  %v231 = vpack.c.b16 %v204, %v201
  %v232 = vpack.c.b16 %v208, %v205
  %v233 = vpack.c.b16 %v209, %v206
  %v234 = vpack.c.b16 %v210, %v207
  %v307 = vunpack.c.l.b16 %v83
  %v308 = vunpack.c.l.b16 %v84
  %v309 = vunpack.c.l.b16 %v85
  %v310 = vunpack.c.l.b16 %v86
  %v311 = vunpack.c.l.b16 %v87
  %v312 = vunpack.c.l.b16 %v88
  %v313 = vunpack.c.l.b16 %v89
  %v314 = vunpack.c.l.b16 %v90
  %v315 = vunpack.c.l.b16 %v91
  %v316 = vunpack.c.l.b16 %v92
  %v317 = vunpack.c.l.b16 %v93
  %v318 = vunpack.c.l.b16 %v94
  %v319 = vunpack.c.l.b16 %v95
  %v320 = vunpack.c.l.b16 %v96
  %v321 = vunpack.c.l.b16 %v97
  %v322 = vunpack.c.l.b16 %v98
  %v323 = vunpack.c.l.b16 %v99
  %v324 = vunpack.c.l.b16 %v100
  %v325 = vunpack.c.l.b16 %v101
  %v326 = vunpack.c.l.b16 %v102
  %v327 = vunpack.c.l.b16 %v103
  %v328 = vunpack.c.l.b16 %v104
  %v329 = vunpack.c.l.b16 %v105
  %v330 = vunpack.c.l.b16 %v106
  %v331 = vunpack.c.l.b16 %v107
  %v332 = vunpack.c.l.b16 %v108
  %v333 = vunpack.c.l.b16 %v109
  %v334 = vunpack.c.l.b16 %v110
  %v335 = vunpack.c.l.b16 %v111
  %v336 = vunpack.c.l.b16 %v112
  %v337 = vunpack.c.l.b16 %v113
  %v338 = vunpack.c.l.b16 %v114
  %v339 = vunpack.c.l.b16 %v115
  %v340 = vunpack.c.l.b16 %v116
  %v341 = vunpack.c.l.b16 %v117
  %v342 = vunpack.c.l.b16 %v118
  %v343 = vunpack.c.l.b16 %v119
  %v344 = vunpack.c.l.b16 %v120
  %v345 = vunpack.c.l.b16 %v121
  %v346 = vunpack.c.l.b16 %v122
  %v347 = vunpack.c.l.b16 %v123
  %v348 = vunpack.c.l.b16 %v124
  %v349 = vunpack.c.l.b16 %v125
  %v350 = vunpack.c.l.b16 %v126
  %v351 = vunpack.c.l.b16 %v127
  %v352 = vunpack.c.l.b16 %v128
  %v353 = vunpack.c.l.b16 %v129
  %v354 = vunpack.c.l.b16 %v130
  %v355 = vpack.c.b16 %v308, %v307
  %v356 = vpack.c.b16 %v310, %v309
  %v357 = vpack.c.b16 %v312, %v311
  %v358 = vpack.c.b16 %v314, %v313
  %v359 = vpack.c.b16 %v316, %v315
  %v360 = vpack.c.b16 %v318, %v317
  %v361 = vpack.c.b16 %v320, %v319
  %v362 = vpack.c.b16 %v322, %v321
  %v363 = vpack.c.b16 %v324, %v323
  %v364 = vpack.c.b16 %v326, %v325
  %v365 = vpack.c.b16 %v328, %v327
  %v366 = vpack.c.b16 %v330, %v329
  %v367 = vpack.c.b16 %v332, %v331
  %v368 = vpack.c.b16 %v334, %v333
  %v369 = vpack.c.b16 %v336, %v335
  %v370 = vpack.c.b16 %v338, %v337
  %v371 = vpack.c.b16 %v340, %v339
  %v372 = vpack.c.b16 %v342, %v341
  %v373 = vpack.c.b16 %v344, %v343
  %v374 = vpack.c.b16 %v346, %v345
  %v375 = vpack.c.b16 %v348, %v347
  %v376 = vpack.c.b16 %v350, %v349
  %v377 = vpack.c.b16 %v352, %v351
  %v378 = vpack.c.b16 %v354, %v353
  %403 = vmatprep.subr.bf16.mxu0 0
  %404 = vmatpush1.bf16.msra.mxu0 %v362
  %405 = vmatprep.subr.bf16.mxu0 0
  %406 = vmatpush1.bf16.msra.mxu0 %v361
  %407 = vmatprep.subr.bf16.mxu0 0
  %408 = vmatpush1.bf16.msra.mxu0 %v360
  %409 = vmatprep.subr.bf16.mxu0 0
  %410 = vmatpush1.bf16.msra.mxu0 %v359
  %411 = vmatprep.subr.bf16.mxu0 0
  %412 = vmatpush1.bf16.msra.mxu0 %v358
  %413 = vmatprep.subr.bf16.mxu0 0
  %414 = vmatpush1.bf16.msra.mxu0 %v357
  %415 = vmatprep.subr.bf16.mxu0 0
  %416 = vmatpush1.bf16.msra.mxu0 %v356
  %417 = vmatprep.subr.bf16.mxu0 0
  %418 = vmatpush1.bf16.msra.mxu0 %v355
  %419 = vmatprep.subr.bf16.mxu0 0
  %420 = vmatpush2.bf16.msra.mxu0 %v370
  %421 = vmatprep.subr.bf16.mxu0 0
  %422 = vmatpush2.bf16.msra.mxu0 %v369
  %423 = vmatprep.subr.bf16.mxu0 0
  %424 = vmatpush2.bf16.msra.mxu0 %v368
  %425 = vmatprep.subr.bf16.mxu0 0
  %426 = vmatpush2.bf16.msra.mxu0 %v367
  %427 = vmatprep.subr.bf16.mxu0 0
  %428 = vmatpush2.bf16.msra.mxu0 %v366
  %429 = vmatprep.subr.bf16.mxu0 0
  %430 = vmatpush2.bf16.msra.mxu0 %v365
  %431 = vmatprep.subr.bf16.mxu0 0
  %432 = vmatpush2.bf16.msra.mxu0 %v364
  %433 = vmatprep.subr.bf16.mxu0 0
  %434 = vmatpush2.bf16.msra.mxu0 %v363
  %435 = vmatprep.mubr.bf16.mxu0 %v212
  %436 = vmatmul.mubr.bf16.gmra.mxu0 %v211
  %v437 = vpop.f32.mrf.mxu0
  %v438 = vadd.f32 0.0, %v437
  %v439 = vpop.f32.mrf.mxu0
  %v440 = vpop.f32.mrf.mxu0
  %v441 = vadd.f32 0.0, %v440
  %v442 = vpop.f32.mrf.mxu0
  %443 = vmatprep.mubr.bf16.mxu0 %v215
  %444 = vmatmul.mubr.bf16.gmra.mxu0 %v214
  %v445 = vpop.f32.mrf.mxu0
  %v446 = vadd.f32 0.0, %v445
  %v447 = vpop.f32.mrf.mxu0
  %v448 = vpop.f32.mrf.mxu0
  %v449 = vadd.f32 0.0, %v448
  %v450 = vpop.f32.mrf.mxu0
  %451 = vmatprep.mubr.bf16.mxu0 %v218
  %452 = vmatmul.mubr.bf16.gmra.mxu0 %v217
  %v453 = vpop.f32.mrf.mxu0
  %v454 = vadd.f32 0.0, %v453
  %v455 = vpop.f32.mrf.mxu0
  %v456 = vpop.f32.mrf.mxu0
  %v457 = vadd.f32 0.0, %v456
  %v458 = vpop.f32.mrf.mxu0
  %459 = vmatprep.mubr.bf16.mxu0 %v221
  %460 = vmatmul.mubr.bf16.gmra.mxu0 %v220
  %v461 = vpop.f32.mrf.mxu0
  %v462 = vadd.f32 0.0, %v461
  %v463 = vpop.f32.mrf.mxu0
  %v464 = vpop.f32.mrf.mxu0
  %v465 = vadd.f32 0.0, %v464
  %v466 = vpop.f32.mrf.mxu0
  %467 = vmatprep.mubr.bf16.mxu0 %v224
  %468 = vmatmul.mubr.bf16.gmra.mxu0 %v223
  %v469 = vpop.f32.mrf.mxu0
  %v470 = vadd.f32 0.0, %v469
  %v471 = vpop.f32.mrf.mxu0
  %v472 = vpop.f32.mrf.mxu0
  %v473 = vadd.f32 0.0, %v472
  %v474 = vpop.f32.mrf.mxu0
  %475 = vmatprep.mubr.bf16.mxu0 %v227
  %476 = vmatmul.mubr.bf16.gmra.mxu0 %v226
  %v477 = vpop.f32.mrf.mxu0
  %v478 = vadd.f32 0.0, %v477
  %v479 = vpop.f32.mrf.mxu0
  %v480 = vpop.f32.mrf.mxu0
  %v481 = vadd.f32 0.0, %v480
  %v482 = vpop.f32.mrf.mxu0
  %483 = vmatprep.mubr.bf16.mxu0 %v230
  %484 = vmatmul.mubr.bf16.gmra.mxu0 %v229
  %v485 = vpop.f32.mrf.mxu0
  %v486 = vadd.f32 0.0, %v485
  %v487 = vpop.f32.mrf.mxu0
  %v488 = vpop.f32.mrf.mxu0
  %v489 = vadd.f32 0.0, %v488
  %v490 = vpop.f32.mrf.mxu0
  %491 = vmatprep.mubr.bf16.mxu0 %v233
  %492 = vmatmul.mubr.bf16.gmra.mxu0 %v232
  %v493 = vpop.f32.mrf.mxu0
  %v494 = vadd.f32 0.0, %v493
  %v495 = vpop.f32.mrf.mxu0
  %v496 = vpop.f32.mrf.mxu0
  %v497 = vadd.f32 0.0, %v496
  %v498 = vpop.f32.mrf.mxu0
  %499 = vdwg.mxu0
  %500 = vmatprep.subr.bf16.mxu0 0
  %501 = vmatpush1.bf16.msra.mxu0 %v378
  %502 = vmatprep.subr.bf16.mxu0 0
  %503 = vmatpush1.bf16.msra.mxu0 %v377
  %504 = vmatprep.subr.bf16.mxu0 0
  %505 = vmatpush1.bf16.msra.mxu0 %v376
  %506 = vmatprep.subr.bf16.mxu0 0
  %507 = vmatpush1.bf16.msra.mxu0 %v375
  %508 = vmatprep.subr.bf16.mxu0 0
  %509 = vmatpush1.bf16.msra.mxu0 %v374
  %510 = vmatprep.subr.bf16.mxu0 0
  %511 = vmatpush1.bf16.msra.mxu0 %v373
  %512 = vmatprep.subr.bf16.mxu0 0
  %513 = vmatpush1.bf16.msra.mxu0 %v372
  %514 = vmatprep.subr.bf16.mxu0 0
  %515 = vmatpush1.bf16.msra.mxu0 %v371
  %516 = vmatprep.subr.bf16.mxu0 0
  %517 = vmatpush2.bf16.msra.mxu0 0
  %518 = vmatprep.subr.bf16.mxu0 0
  %519 = vmatpush2.bf16.msra.mxu0 0
  %520 = vmatprep.subr.bf16.mxu0 0
  %521 = vmatpush2.bf16.msra.mxu0 0
  %522 = vmatprep.subr.bf16.mxu0 0
  %523 = vmatpush2.bf16.msra.mxu0 0
  %524 = vmatprep.subr.bf16.mxu0 0
  %525 = vmatpush2.bf16.msra.mxu0 0
  %526 = vmatprep.subr.bf16.mxu0 0
  %527 = vmatpush2.bf16.msra.mxu0 0
  %528 = vmatprep.subr.bf16.mxu0 0
  %529 = vmatpush2.bf16.msra.mxu0 0
  %530 = vmatprep.subr.bf16.mxu0 0
  %531 = vmatpush2.bf16.msra.mxu0 0
  %532 = vmatprep.mubr.bf16.mxu0 0
  %533 = vmatmul.mubr.bf16.gmra.mxu0 %v213
  %v534 = vpop.f32.mrf.mxu0
  %v535 = vadd.f32 %v438, %v534
  %v536 = vpop.f32.mrf.mxu0
  %v537 = vpop.f32.mrf.mxu0
  %v538 = vadd.f32 %v441, %v537
  %v539 = vpop.f32.mrf.mxu0
  %540 = vmatprep.mubr.bf16.mxu0 0
  %541 = vmatmul.mubr.bf16.gmra.mxu0 %v216
  %v542 = vpop.f32.mrf.mxu0
  %v543 = vadd.f32 %v446, %v542
  %v544 = vpop.f32.mrf.mxu0
  %v545 = vpop.f32.mrf.mxu0
  %v546 = vadd.f32 %v449, %v545
  %v547 = vpop.f32.mrf.mxu0
  %548 = vmatprep.mubr.bf16.mxu0 0
  %549 = vmatmul.mubr.bf16.gmra.mxu0 %v219
  %v550 = vpop.f32.mrf.mxu0
  %v551 = vadd.f32 %v454, %v550
  %v552 = vpop.f32.mrf.mxu0
  %v553 = vpop.f32.mrf.mxu0
  %v554 = vadd.f32 %v457, %v553
  %v555 = vpop.f32.mrf.mxu0
  %556 = vmatprep.mubr.bf16.mxu0 0
  %557 = vmatmul.mubr.bf16.gmra.mxu0 %v222
  %v558 = vpop.f32.mrf.mxu0
  %v559 = vadd.f32 %v462, %v558
  %v560 = vpop.f32.mrf.mxu0
  %v561 = vpop.f32.mrf.mxu0
  %v562 = vadd.f32 %v465, %v561
  %v563 = vpop.f32.mrf.mxu0
  %564 = vmatprep.mubr.bf16.mxu0 0
  %565 = vmatmul.mubr.bf16.gmra.mxu0 %v225
  %v566 = vpop.f32.mrf.mxu0
  %v567 = vadd.f32 %v470, %v566
  %v568 = vpop.f32.mrf.mxu0
  %v569 = vpop.f32.mrf.mxu0
  %v570 = vadd.f32 %v473, %v569
  %v571 = vpop.f32.mrf.mxu0
  %572 = vmatprep.mubr.bf16.mxu0 0
  %573 = vmatmul.mubr.bf16.gmra.mxu0 %v228
  %v574 = vpop.f32.mrf.mxu0
  %v575 = vadd.f32 %v478, %v574
  %v576 = vpop.f32.mrf.mxu0
  %v577 = vpop.f32.mrf.mxu0
  %v578 = vadd.f32 %v481, %v577
  %v579 = vpop.f32.mrf.mxu0
  %580 = vmatprep.mubr.bf16.mxu0 0
  %581 = vmatmul.mubr.bf16.gmra.mxu0 %v231
  %v582 = vpop.f32.mrf.mxu0
  %v583 = vadd.f32 %v486, %v582
  %v584 = vpop.f32.mrf.mxu0
  %v585 = vpop.f32.mrf.mxu0
  %v586 = vadd.f32 %v489, %v585
  %v587 = vpop.f32.mrf.mxu0
  %588 = vmatprep.mubr.bf16.mxu0 0
  %589 = vmatmul.mubr.bf16.gmra.mxu0 %v234
  %v590 = vpop.f32.mrf.mxu0
  %v591 = vadd.f32 %v494, %v590
  %v592 = vpop.f32.mrf.mxu0
  %v593 = vpop.f32.mrf.mxu0
  %v594 = vadd.f32 %v497, %v593
  %v595 = vpop.f32.mrf.mxu0
  %596 = vdwg.mxu0
  %v597 = vadd.f32 %v35, %v535
  %v598 = vadd.f32 %v36, %v538
  %v599 = vadd.f32 %v37, %v543
  %v600 = vadd.f32 %v38, %v546
  %v601 = vadd.f32 %v39, %v551
  %v602 = vadd.f32 %v40, %v554
  %v603 = vadd.f32 %v41, %v559
  %v604 = vadd.f32 %v42, %v562
  %v605 = vadd.f32 %v43, %v567
  %v606 = vadd.f32 %v44, %v570
  %v607 = vadd.f32 %v45, %v575
  %v608 = vadd.f32 %v46, %v578
  %v609 = vadd.f32 %v47, %v583
  %v610 = vadd.f32 %v48, %v586
  %v611 = vadd.f32 %v49, %v591
  %v612 = vadd.f32 %v50, %v594
  %613 = vst [vmem:[#allocation2] sm:$0xff] %v597
  %614 = vst [vmem:[#allocation2 + $0x8] sm:$0xff] %v598
  %615 = vst [vmem:[#allocation2 + $0x10] sm:$0xff] %v599
  %616 = vst [vmem:[#allocation2 + $0x18] sm:$0xff] %v600
  %617 = vst [vmem:[#allocation2 + $0x20] sm:$0xff] %v601
  %618 = vst [vmem:[#allocation2 + $0x28] sm:$0xff] %v602
  %619 = vst [vmem:[#allocation2 + $0x30] sm:$0xff] %v603
  %620 = vst [vmem:[#allocation2 + $0x38] sm:$0xff] %v604
  %621 = vst [vmem:[#allocation2 + $0x40] sm:$0xff] %v605
  %622 = vst [vmem:[#allocation2 + $0x48] sm:$0xff] %v606
  %623 = vst [vmem:[#allocation2 + $0x50] sm:$0xff] %v607
  %624 = vst [vmem:[#allocation2 + $0x58] sm:$0xff] %v608
  %625 = vst [vmem:[#allocation2 + $0x60] sm:$0xff] %v609
  %626 = vst [vmem:[#allocation2 + $0x68] sm:$0xff] %v610
  %627 = vst [vmem:[#allocation2 + $0x70] sm:$0xff] %v611
  %628 = vst [vmem:[#allocation2 + $0x78] sm:$0xff] %v612
  // Predicated region
  $region18: #{_lambda_.34} parent=0 // pred_check
    %p629 = pneg %p15
  $region19: #{_lambda_.34} parent=0 // pred_check_branch
    %631 = sbr.rel (%p629) target = $region21
  $region20: #{_lambda_.34} parent=0 // pred_region
    %v632 = vld [vmem:[#allocation2] sm:$0xff]
    %v633 = vld [vmem:[#allocation2 + $0x8] sm:$0xff]
    %v634 = vld [vmem:[#allocation2 + $0x10] sm:$0xff]
    %v635 = vld [vmem:[#allocation2 + $0x18] sm:$0xff]
    %v636 = vld [vmem:[#allocation2 + $0x20] sm:$0xff]
    %v637 = vld [vmem:[#allocation2 + $0x28] sm:$0xff]
    %v638 = vld [vmem:[#allocation2 + $0x30] sm:$0xff]
    %v639 = vld [vmem:[#allocation2 + $0x38] sm:$0xff]
    %v640 = vld [vmem:[#allocation2 + $0x40] sm:$0xff]
    %v641 = vld [vmem:[#allocation2 + $0x48] sm:$0xff]
    %v642 = vld [vmem:[#allocation2 + $0x50] sm:$0xff]
    %v643 = vld [vmem:[#allocation2 + $0x58] sm:$0xff]
    %v644 = vld [vmem:[#allocation2 + $0x60] sm:$0xff]
    %v645 = vld [vmem:[#allocation2 + $0x68] sm:$0xff]
    %v646 = vld [vmem:[#allocation2 + $0x70] sm:$0xff]
    %v647 = vld [vmem:[#allocation2 + $0x78] sm:$0xff]
    %v648 = vld [vmem:[%s2] sm:$0x1]
    %v650 = vlaneseq
    %v651 = vshrl.u32 %v650, 7
    %v652 = vsub.s32 0, %v651
    %v653 = vrot.slane %v648, %v652
    %v655 = vadd.f32 %v632, %v653
    %v656 = vadd.f32 %v633, %v653
    %v657 = vadd.f32 %v634, %v653
    %v658 = vadd.f32 %v635, %v653
    %v659 = vadd.f32 %v636, %v653
    %v660 = vadd.f32 %v637, %v653
    %v661 = vadd.f32 %v638, %v653
    %v662 = vadd.f32 %v639, %v653
    %v663 = vadd.f32 %v640, %v653
    %v664 = vadd.f32 %v641, %v653
    %v665 = vadd.f32 %v642, %v653
    %v666 = vadd.f32 %v643, %v653
    %v667 = vadd.f32 %v644, %v653
    %v668 = vadd.f32 %v645, %v653
    %v669 = vadd.f32 %v646, %v653
    %v670 = vadd.f32 %v647, %v653
    %v671 = vmax.f32 %v655, 0.0
    %v672 = vmax.f32 %v656, 0.0
    %v673 = vmax.f32 %v657, 0.0
    %v674 = vmax.f32 %v658, 0.0
    %v675 = vmax.f32 %v659, 0.0
    %v676 = vmax.f32 %v660, 0.0
    %v677 = vmax.f32 %v661, 0.0
    %v678 = vmax.f32 %v662, 0.0
    %v679 = vmax.f32 %v663, 0.0
    %v680 = vmax.f32 %v664, 0.0
    %v681 = vmax.f32 %v665, 0.0
    %v682 = vmax.f32 %v666, 0.0
    %v683 = vmax.f32 %v667, 0.0
    %v684 = vmax.f32 %v668, 0.0
    %v685 = vmax.f32 %v669, 0.0
    %v686 = vmax.f32 %v670, 0.0
    %687 = vst [vmem:[%s3] sm:$0xff] %v671
    %688 = vst [vmem:[%s3 + $0x8] sm:$0xff] %v672
    %689 = vst [vmem:[%s3 + $0x10] sm:$0xff] %v673
    %690 = vst [vmem:[%s3 + $0x18] sm:$0xff] %v674
    %691 = vst [vmem:[%s3 + $0x20] sm:$0xff] %v675
    %692 = vst [vmem:[%s3 + $0x28] sm:$0xff] %v676
    %693 = vst [vmem:[%s3 + $0x30] sm:$0xff] %v677
    %694 = vst [vmem:[%s3 + $0x38] sm:$0xff] %v678
    %695 = vst [vmem:[%s3 + $0x40] sm:$0xff] %v679
    %696 = vst [vmem:[%s3 + $0x48] sm:$0xff] %v680
    %697 = vst [vmem:[%s3 + $0x50] sm:$0xff] %v681
    %698 = vst [vmem:[%s3 + $0x58] sm:$0xff] %v682
    %699 = vst [vmem:[%s3 + $0x60] sm:$0xff] %v683
    %700 = vst [vmem:[%s3 + $0x68] sm:$0xff] %v684
    %701 = vst [vmem:[%s3 + $0x70] sm:$0xff] %v685
    %702 = vst [vmem:[%s3 + $0x78] sm:$0xff] %v686
  $region21: #{_lambda_.34} parent=0 // pred_fallthru
    _
  // Predicated region
  $region22: #{_lambda_.34} parent=0 // pred_check
    _
  $region23: #{_lambda_.34} parent=0 // pred_check_branch
    %704 = sbr.rel (0) target = $region25
  $region24: #{_lambda_.34} parent=0 // pred_region
    _
  $region25: #{_lambda_.34} parent=0 // pred_fallthru
    _
  // Predicated region
  $region26: #{_lambda_.34} parent=0 // pred_check
    _
  $region27: #{_lambda_.34} parent=0 // pred_check_branch
    %706 = sbr.rel (0) target = $region29
  $region28: #{_lambda_.34} parent=0 // pred_region
    _
  $region29: #{_lambda_.34} parent=0 // pred_fallthru
    _

// kernel: _lambda_.33
$region0: #{_lambda_.33}
  #allocation0 [shape = 'u32[]', space=smem, size = 0x4, offset = 0x4, fixed_abs, tag = 'smem constant byte address 0x4 - core index']
  #allocation1 [shape = 'u32[144,128]{1,0:T(1,128)}', space=vmem, size = 0x12000, scoped, tag = 'internal scratch']
  #allocation2 [shape = 'f32[128,128]{1,0:T(8,128)}', space=vmem, size = 0x10000, scoped, tag = 'scratch operand']
  %s0 = inlined_call_operand.vmem [shape: bf16[128,384], index: 0, kind: input, shape index: {}]
  %s1 = inlined_call_operand.vmem [shape: bf16[384,128], index: 1, kind: input, shape index: {}]
  %s2 = inlined_call_operand.vmem [shape: f32[1,128], index: 2, kind: input, shape index: {}]
  %s3 = inlined_call_operand.vmem [shape: f32[128,128], index: 3, kind: input, shape index: {}]
  %s4 = inlined_call_operand.vmem [shape: f32[128,128], index: 4, kind: output, shape index: {}]
  %s5 = sld [smem:[#allocation0]]
  $region34: #{_lambda_.33} parent=0
    _
  %s7 = ssub.s32 1, %s5
  %s8 = scalar_select 0, %s7, %s5
  // Predicated region
  $region2: #{_lambda_.33} parent=0 // pred_check
    _
  $region3: #{_lambda_.33} parent=0 // pred_check_branch
    %10 = sbr.rel (0) target = $region5
  $region4: #{_lambda_.33} parent=0 // pred_region
    _
  $region5: #{_lambda_.33} parent=0 // pred_fallthru
    _
  // Predicated region
  $region6: #{_lambda_.33} parent=0 // pred_check
    _
  $region7: #{_lambda_.33} parent=0 // pred_check_branch
    %12 = sbr.rel (0) target = $region9
  $region8: #{_lambda_.33} parent=0 // pred_region
    _
  $region9: #{_lambda_.33} parent=0 // pred_fallthru
    _
  // Predicated region
  $region10: #{_lambda_.33} parent=0 // pred_check
    _
  $region11: #{_lambda_.33} parent=0 // pred_check_branch
    %14 = sbr.rel (0) target = $region13
  $region12: #{_lambda_.33} parent=0 // pred_region
    _
  $region13: #{_lambda_.33} parent=0 // pred_fallthru
    _
  // Predicated region
  $region14: #{_lambda_.33} parent=0 // pred_check
    _
  $region15: #{_lambda_.33} parent=0 // pred_check_branch
    %16 = sbr.rel (0) target = $region17
  $region16: #{_lambda_.33} parent=0 // pred_region
    _
  $region17: #{_lambda_.33} parent=0 // pred_fallthru
    _
  %p18 = scmp.eq.s32.totalorder 0, 0
  // Predicated region
  $region18: #{_lambda_.33} parent=0 // pred_check
    %p19 = pneg %p18
  $region19: #{_lambda_.33} parent=0 // pred_check_branch
    %21 = sbr.rel (%p19) target = $region21
  $region20: #{_lambda_.33} parent=0 // pred_region
    %22 = vst [vmem:[#allocation2] sm:$0xff] 0.0
    %23 = vst [vmem:[#allocation2 + $0x8] sm:$0xff] 0.0
    %24 = vst [vmem:[#allocation2 + $0x10] sm:$0xff] 0.0
    %25 = vst [vmem:[#allocation2 + $0x18] sm:$0xff] 0.0
    %26 = vst [vmem:[#allocation2 + $0x20] sm:$0xff] 0.0
    %27 = vst [vmem:[#allocation2 + $0x28] sm:$0xff] 0.0
    %28 = vst [vmem:[#allocation2 + $0x30] sm:$0xff] 0.0
    %29 = vst [vmem:[#allocation2 + $0x38] sm:$0xff] 0.0
    %30 = vst [vmem:[#allocation2 + $0x40] sm:$0xff] 0.0
    %31 = vst [vmem:[#allocation2 + $0x48] sm:$0xff] 0.0
    %32 = vst [vmem:[#allocation2 + $0x50] sm:$0xff] 0.0
    %33 = vst [vmem:[#allocation2 + $0x58] sm:$0xff] 0.0
    %34 = vst [vmem:[#allocation2 + $0x60] sm:$0xff] 0.0
    %35 = vst [vmem:[#allocation2 + $0x68] sm:$0xff] 0.0
    %36 = vst [vmem:[#allocation2 + $0x70] sm:$0xff] 0.0
    %37 = vst [vmem:[#allocation2 + $0x78] sm:$0xff] 0.0
  $region21: #{_lambda_.33} parent=0 // pred_fallthru
    _
  %v38 = vld [vmem:[#allocation2] sm:$0xff]
  %v39 = vld [vmem:[#allocation2 + $0x8] sm:$0xff]
  %v40 = vld [vmem:[#allocation2 + $0x10] sm:$0xff]
  %v41 = vld [vmem:[#allocation2 + $0x18] sm:$0xff]
  %v42 = vld [vmem:[#allocation2 + $0x20] sm:$0xff]
  %v43 = vld [vmem:[#allocation2 + $0x28] sm:$0xff]
  %v44 = vld [vmem:[#allocation2 + $0x30] sm:$0xff]
  %v45 = vld [vmem:[#allocation2 + $0x38] sm:$0xff]
  %v46 = vld [vmem:[#allocation2 + $0x40] sm:$0xff]
  %v47 = vld [vmem:[#allocation2 + $0x48] sm:$0xff]
  %v48 = vld [vmem:[#allocation2 + $0x50] sm:$0xff]
  %v49 = vld [vmem:[#allocation2 + $0x58] sm:$0xff]
  %v50 = vld [vmem:[#allocation2 + $0x60] sm:$0xff]
  %v51 = vld [vmem:[#allocation2 + $0x68] sm:$0xff]
  %v52 = vld [vmem:[#allocation2 + $0x70] sm:$0xff]
  %v53 = vld [vmem:[#allocation2 + $0x78] sm:$0xff]
  %v54 = vld [vmem:[%s0] sm:$0xff]
  %v55 = vld [vmem:[%s0 + $0x8] sm:$0xf]
  %v56 = vld [vmem:[%s0 + $0xc] sm:$0xff]
  %v57 = vld [vmem:[%s0 + $0x14] sm:$0xf]
  %v58 = vld [vmem:[%s0 + $0x18] sm:$0xff]
  %v59 = vld [vmem:[%s0 + $0x20] sm:$0xf]
  %v60 = vld [vmem:[%s0 + $0x24] sm:$0xff]
  %v61 = vld [vmem:[%s0 + $0x2c] sm:$0xf]
  %v62 = vld [vmem:[%s0 + $0x30] sm:$0xff]
  %v63 = vld [vmem:[%s0 + $0x38] sm:$0xf]
  %v64 = vld [vmem:[%s0 + $0x3c] sm:$0xff]
  %v65 = vld [vmem:[%s0 + $0x44] sm:$0xf]
  %v66 = vld [vmem:[%s0 + $0x48] sm:$0xff]
  %v67 = vld [vmem:[%s0 + $0x50] sm:$0xf]
  %v68 = vld [vmem:[%s0 + $0x54] sm:$0xff]
  %v69 = vld [vmem:[%s0 + $0x5c] sm:$0xf]
  %v70 = vld [vmem:[%s0 + $0x60] sm:$0xff]
  %v71 = vld [vmem:[%s0 + $0x68] sm:$0xf]
  %v72 = vld [vmem:[%s0 + $0x6c] sm:$0xff]
  %v73 = vld [vmem:[%s0 + $0x74] sm:$0xf]
  %v74 = vld [vmem:[%s0 + $0x78] sm:$0xff]
  %v75 = vld [vmem:[%s0 + $0x80] sm:$0xf]
  %v76 = vld [vmem:[%s0 + $0x84] sm:$0xff]
  %v77 = vld [vmem:[%s0 + $0x8c] sm:$0xf]
  %v78 = vld [vmem:[%s0 + $0x90] sm:$0xff]
  %v79 = vld [vmem:[%s0 + $0x98] sm:$0xf]
  %v80 = vld [vmem:[%s0 + $0x9c] sm:$0xff]
  %v81 = vld [vmem:[%s0 + $0xa4] sm:$0xf]
  %v82 = vld [vmem:[%s0 + $0xa8] sm:$0xff]
  %v83 = vld [vmem:[%s0 + $0xb0] sm:$0xf]
  %v84 = vld [vmem:[%s0 + $0xb4] sm:$0xff]
  %v85 = vld [vmem:[%s0 + $0xbc] sm:$0xf]
  %v86 = vld [vmem:[%s1] sm:$0xf]
  %v87 = vld [vmem:[%s1 + $0x4] sm:$0xf]
  %v88 = vld [vmem:[%s1 + $0x8] sm:$0xf]
  %v89 = vld [vmem:[%s1 + $0xc] sm:$0xf]
  %v90 = vld [vmem:[%s1 + $0x10] sm:$0xf]
  %v91 = vld [vmem:[%s1 + $0x14] sm:$0xf]
  %v92 = vld [vmem:[%s1 + $0x18] sm:$0xf]
  %v93 = vld [vmem:[%s1 + $0x1c] sm:$0xf]
  %v94 = vld [vmem:[%s1 + $0x20] sm:$0xf]
  %v95 = vld [vmem:[%s1 + $0x24] sm:$0xf]
  %v96 = vld [vmem:[%s1 + $0x28] sm:$0xf]
  %v97 = vld [vmem:[%s1 + $0x2c] sm:$0xf]
  %v98 = vld [vmem:[%s1 + $0x30] sm:$0xf]
  %v99 = vld [vmem:[%s1 + $0x34] sm:$0xf]
  %v100 = vld [vmem:[%s1 + $0x38] sm:$0xf]
  %v101 = vld [vmem:[%s1 + $0x3c] sm:$0xf]
  %v102 = vld [vmem:[%s1 + $0x40] sm:$0xf]
  %v103 = vld [vmem:[%s1 + $0x44] sm:$0xf]
  %v104 = vld [vmem:[%s1 + $0x48] sm:$0xf]
  %v105 = vld [vmem:[%s1 + $0x4c] sm:$0xf]
  %v106 = vld [vmem:[%s1 + $0x50] sm:$0xf]
  %v107 = vld [vmem:[%s1 + $0x54] sm:$0xf]
  %v108 = vld [vmem:[%s1 + $0x58] sm:$0xf]
  %v109 = vld [vmem:[%s1 + $0x5c] sm:$0xf]
  %v110 = vld [vmem:[%s1 + $0x60] sm:$0xf]
  %v111 = vld [vmem:[%s1 + $0x64] sm:$0xf]
  %v112 = vld [vmem:[%s1 + $0x68] sm:$0xf]
  %v113 = vld [vmem:[%s1 + $0x6c] sm:$0xf]
  %v114 = vld [vmem:[%s1 + $0x70] sm:$0xf]
  %v115 = vld [vmem:[%s1 + $0x74] sm:$0xf]
  %v116 = vld [vmem:[%s1 + $0x78] sm:$0xf]
  %v117 = vld [vmem:[%s1 + $0x7c] sm:$0xf]
  %v118 = vld [vmem:[%s1 + $0x80] sm:$0xf]
  %v119 = vld [vmem:[%s1 + $0x84] sm:$0xf]
  %v120 = vld [vmem:[%s1 + $0x88] sm:$0xf]
  %v121 = vld [vmem:[%s1 + $0x8c] sm:$0xf]
  %v122 = vld [vmem:[%s1 + $0x90] sm:$0xf]
  %v123 = vld [vmem:[%s1 + $0x94] sm:$0xf]
  %v124 = vld [vmem:[%s1 + $0x98] sm:$0xf]
  %v125 = vld [vmem:[%s1 + $0x9c] sm:$0xf]
  %v126 = vld [vmem:[%s1 + $0xa0] sm:$0xf]
  %v127 = vld [vmem:[%s1 + $0xa4] sm:$0xf]
  %v128 = vld [vmem:[%s1 + $0xa8] sm:$0xf]
  %v129 = vld [vmem:[%s1 + $0xac] sm:$0xf]
  %v130 = vld [vmem:[%s1 + $0xb0] sm:$0xf]
  %v131 = vld [vmem:[%s1 + $0xb4] sm:$0xf]
  %v132 = vld [vmem:[%s1 + $0xb8] sm:$0xf]
  %v133 = vld [vmem:[%s1 + $0xbc] sm:$0xf]
  %v166 = vunpack.c.l.b16 %v54
  %v167 = vunpack.c.h.b16 %v54
  %v168 = vunpack.c.l.b16 %v55
  %v169 = vunpack.c.l.b16 %v56
  %v170 = vunpack.c.h.b16 %v56
  %v171 = vunpack.c.l.b16 %v57
  %v172 = vunpack.c.l.b16 %v58
  %v173 = vunpack.c.h.b16 %v58
  %v174 = vunpack.c.l.b16 %v59
  %v175 = vunpack.c.l.b16 %v60
  %v176 = vunpack.c.h.b16 %v60
  %v177 = vunpack.c.l.b16 %v61
  %v178 = vunpack.c.l.b16 %v62
  %v179 = vunpack.c.h.b16 %v62
  %v180 = vunpack.c.l.b16 %v63
  %v181 = vunpack.c.l.b16 %v64
  %v182 = vunpack.c.h.b16 %v64
  %v183 = vunpack.c.l.b16 %v65
  %v184 = vunpack.c.l.b16 %v66
  %v185 = vunpack.c.h.b16 %v66
  %v186 = vunpack.c.l.b16 %v67
  %v187 = vunpack.c.l.b16 %v68
  %v188 = vunpack.c.h.b16 %v68
  %v189 = vunpack.c.l.b16 %v69
  %v190 = vunpack.c.l.b16 %v70
  %v191 = vunpack.c.h.b16 %v70
  %v192 = vunpack.c.l.b16 %v71
  %v193 = vunpack.c.l.b16 %v72
  %v194 = vunpack.c.h.b16 %v72
  %v195 = vunpack.c.l.b16 %v73
  %v196 = vunpack.c.l.b16 %v74
  %v197 = vunpack.c.h.b16 %v74
  %v198 = vunpack.c.l.b16 %v75
  %v199 = vunpack.c.l.b16 %v76
  %v200 = vunpack.c.h.b16 %v76
  %v201 = vunpack.c.l.b16 %v77
  %v202 = vunpack.c.l.b16 %v78
  %v203 = vunpack.c.h.b16 %v78
  %v204 = vunpack.c.l.b16 %v79
  %v205 = vunpack.c.l.b16 %v80
  %v206 = vunpack.c.h.b16 %v80
  %v207 = vunpack.c.l.b16 %v81
  %v208 = vunpack.c.l.b16 %v82
  %v209 = vunpack.c.h.b16 %v82
  %v210 = vunpack.c.l.b16 %v83
  %v211 = vunpack.c.l.b16 %v84
  %v212 = vunpack.c.h.b16 %v84
  %v213 = vunpack.c.l.b16 %v85
  %v214 = vpack.c.b16 %v169, %v166
  %v215 = vpack.c.b16 %v170, %v167
  %v216 = vpack.c.b16 %v171, %v168
  %v217 = vpack.c.b16 %v175, %v172
  %v218 = vpack.c.b16 %v176, %v173
  %v219 = vpack.c.b16 %v177, %v174
  %v220 = vpack.c.b16 %v181, %v178
  %v221 = vpack.c.b16 %v182, %v179
  %v222 = vpack.c.b16 %v183, %v180
  %v223 = vpack.c.b16 %v187, %v184
  %v224 = vpack.c.b16 %v188, %v185
  %v225 = vpack.c.b16 %v189, %v186
  %v226 = vpack.c.b16 %v193, %v190
  %v227 = vpack.c.b16 %v194, %v191
  %v228 = vpack.c.b16 %v195, %v192
  %v229 = vpack.c.b16 %v199, %v196
  %v230 = vpack.c.b16 %v200, %v197
  %v231 = vpack.c.b16 %v201, %v198
  %v232 = vpack.c.b16 %v205, %v202
  %v233 = vpack.c.b16 %v206, %v203
  %v234 = vpack.c.b16 %v207, %v204
  %v235 = vpack.c.b16 %v211, %v208
  %v236 = vpack.c.b16 %v212, %v209
  %v237 = vpack.c.b16 %v213, %v210
  %v310 = vunpack.c.l.b16 %v86
  %v311 = vunpack.c.l.b16 %v87
  %v312 = vunpack.c.l.b16 %v88
  %v313 = vunpack.c.l.b16 %v89
  %v314 = vunpack.c.l.b16 %v90
  %v315 = vunpack.c.l.b16 %v91
  %v316 = vunpack.c.l.b16 %v92
  %v317 = vunpack.c.l.b16 %v93
  %v318 = vunpack.c.l.b16 %v94
  %v319 = vunpack.c.l.b16 %v95
  %v320 = vunpack.c.l.b16 %v96
  %v321 = vunpack.c.l.b16 %v97
  %v322 = vunpack.c.l.b16 %v98
  %v323 = vunpack.c.l.b16 %v99
  %v324 = vunpack.c.l.b16 %v100
  %v325 = vunpack.c.l.b16 %v101
  %v326 = vunpack.c.l.b16 %v102
  %v327 = vunpack.c.l.b16 %v103
  %v328 = vunpack.c.l.b16 %v104
  %v329 = vunpack.c.l.b16 %v105
  %v330 = vunpack.c.l.b16 %v106
  %v331 = vunpack.c.l.b16 %v107
  %v332 = vunpack.c.l.b16 %v108
  %v333 = vunpack.c.l.b16 %v109
  %v334 = vunpack.c.l.b16 %v110
  %v335 = vunpack.c.l.b16 %v111
  %v336 = vunpack.c.l.b16 %v112
  %v337 = vunpack.c.l.b16 %v113
  %v338 = vunpack.c.l.b16 %v114
  %v339 = vunpack.c.l.b16 %v115
  %v340 = vunpack.c.l.b16 %v116
  %v341 = vunpack.c.l.b16 %v117
  %v342 = vunpack.c.l.b16 %v118
  %v343 = vunpack.c.l.b16 %v119
  %v344 = vunpack.c.l.b16 %v120
  %v345 = vunpack.c.l.b16 %v121
  %v346 = vunpack.c.l.b16 %v122
  %v347 = vunpack.c.l.b16 %v123
  %v348 = vunpack.c.l.b16 %v124
  %v349 = vunpack.c.l.b16 %v125
  %v350 = vunpack.c.l.b16 %v126
  %v351 = vunpack.c.l.b16 %v127
  %v352 = vunpack.c.l.b16 %v128
  %v353 = vunpack.c.l.b16 %v129
  %v354 = vunpack.c.l.b16 %v130
  %v355 = vunpack.c.l.b16 %v131
  %v356 = vunpack.c.l.b16 %v132
  %v357 = vunpack.c.l.b16 %v133
  %v358 = vpack.c.b16 %v311, %v310
  %v359 = vpack.c.b16 %v313, %v312
  %v360 = vpack.c.b16 %v315, %v314
  %v361 = vpack.c.b16 %v317, %v316
  %v362 = vpack.c.b16 %v319, %v318
  %v363 = vpack.c.b16 %v321, %v320
  %v364 = vpack.c.b16 %v323, %v322
  %v365 = vpack.c.b16 %v325, %v324
  %v366 = vpack.c.b16 %v327, %v326
  %v367 = vpack.c.b16 %v329, %v328
  %v368 = vpack.c.b16 %v331, %v330
  %v369 = vpack.c.b16 %v333, %v332
  %v370 = vpack.c.b16 %v335, %v334
  %v371 = vpack.c.b16 %v337, %v336
  %v372 = vpack.c.b16 %v339, %v338
  %v373 = vpack.c.b16 %v341, %v340
  %v374 = vpack.c.b16 %v343, %v342
  %v375 = vpack.c.b16 %v345, %v344
  %v376 = vpack.c.b16 %v347, %v346
  %v377 = vpack.c.b16 %v349, %v348
  %v378 = vpack.c.b16 %v351, %v350
  %v379 = vpack.c.b16 %v353, %v352
  %v380 = vpack.c.b16 %v355, %v354
  %v381 = vpack.c.b16 %v357, %v356
  %406 = vmatprep.subr.bf16.mxu0 0
  %407 = vmatpush1.bf16.msra.mxu0 %v365
  %408 = vmatprep.subr.bf16.mxu0 0
  %409 = vmatpush1.bf16.msra.mxu0 %v364
  %410 = vmatprep.subr.bf16.mxu0 0
  %411 = vmatpush1.bf16.msra.mxu0 %v363
  %412 = vmatprep.subr.bf16.mxu0 0
  %413 = vmatpush1.bf16.msra.mxu0 %v362
  %414 = vmatprep.subr.bf16.mxu0 0
  %415 = vmatpush1.bf16.msra.mxu0 %v361
  %416 = vmatprep.subr.bf16.mxu0 0
  %417 = vmatpush1.bf16.msra.mxu0 %v360
  %418 = vmatprep.subr.bf16.mxu0 0
  %419 = vmatpush1.bf16.msra.mxu0 %v359
  %420 = vmatprep.subr.bf16.mxu0 0
  %421 = vmatpush1.bf16.msra.mxu0 %v358
  %422 = vmatprep.subr.bf16.mxu0 0
  %423 = vmatpush2.bf16.msra.mxu0 %v373
  %424 = vmatprep.subr.bf16.mxu0 0
  %425 = vmatpush2.bf16.msra.mxu0 %v372
  %426 = vmatprep.subr.bf16.mxu0 0
  %427 = vmatpush2.bf16.msra.mxu0 %v371
  %428 = vmatprep.subr.bf16.mxu0 0
  %429 = vmatpush2.bf16.msra.mxu0 %v370
  %430 = vmatprep.subr.bf16.mxu0 0
  %431 = vmatpush2.bf16.msra.mxu0 %v369
  %432 = vmatprep.subr.bf16.mxu0 0
  %433 = vmatpush2.bf16.msra.mxu0 %v368
  %434 = vmatprep.subr.bf16.mxu0 0
  %435 = vmatpush2.bf16.msra.mxu0 %v367
  %436 = vmatprep.subr.bf16.mxu0 0
  %437 = vmatpush2.bf16.msra.mxu0 %v366
  %438 = vmatprep.mubr.bf16.mxu0 %v215
  %439 = vmatmul.mubr.bf16.gmra.mxu0 %v214
  %v440 = vpop.f32.mrf.mxu0
  %v441 = vadd.f32 0.0, %v440
  %v442 = vpop.f32.mrf.mxu0
  %v443 = vpop.f32.mrf.mxu0
  %v444 = vadd.f32 0.0, %v443
  %v445 = vpop.f32.mrf.mxu0
  %446 = vmatprep.mubr.bf16.mxu0 %v218
  %447 = vmatmul.mubr.bf16.gmra.mxu0 %v217
  %v448 = vpop.f32.mrf.mxu0
  %v449 = vadd.f32 0.0, %v448
  %v450 = vpop.f32.mrf.mxu0
  %v451 = vpop.f32.mrf.mxu0
  %v452 = vadd.f32 0.0, %v451
  %v453 = vpop.f32.mrf.mxu0
  %454 = vmatprep.mubr.bf16.mxu0 %v221
  %455 = vmatmul.mubr.bf16.gmra.mxu0 %v220
  %v456 = vpop.f32.mrf.mxu0
  %v457 = vadd.f32 0.0, %v456
  %v458 = vpop.f32.mrf.mxu0
  %v459 = vpop.f32.mrf.mxu0
  %v460 = vadd.f32 0.0, %v459
  %v461 = vpop.f32.mrf.mxu0
  %462 = vmatprep.mubr.bf16.mxu0 %v224
  %463 = vmatmul.mubr.bf16.gmra.mxu0 %v223
  %v464 = vpop.f32.mrf.mxu0
  %v465 = vadd.f32 0.0, %v464
  %v466 = vpop.f32.mrf.mxu0
  %v467 = vpop.f32.mrf.mxu0
  %v468 = vadd.f32 0.0, %v467
  %v469 = vpop.f32.mrf.mxu0
  %470 = vmatprep.mubr.bf16.mxu0 %v227
  %471 = vmatmul.mubr.bf16.gmra.mxu0 %v226
  %v472 = vpop.f32.mrf.mxu0
  %v473 = vadd.f32 0.0, %v472
  %v474 = vpop.f32.mrf.mxu0
  %v475 = vpop.f32.mrf.mxu0
  %v476 = vadd.f32 0.0, %v475
  %v477 = vpop.f32.mrf.mxu0
  %478 = vmatprep.mubr.bf16.mxu0 %v230
  %479 = vmatmul.mubr.bf16.gmra.mxu0 %v229
  %v480 = vpop.f32.mrf.mxu0
  %v481 = vadd.f32 0.0, %v480
  %v482 = vpop.f32.mrf.mxu0
  %v483 = vpop.f32.mrf.mxu0
  %v484 = vadd.f32 0.0, %v483
  %v485 = vpop.f32.mrf.mxu0
  %486 = vmatprep.mubr.bf16.mxu0 %v233
  %487 = vmatmul.mubr.bf16.gmra.mxu0 %v232
  %v488 = vpop.f32.mrf.mxu0
  %v489 = vadd.f32 0.0, %v488
  %v490 = vpop.f32.mrf.mxu0
  %v491 = vpop.f32.mrf.mxu0
  %v492 = vadd.f32 0.0, %v491
  %v493 = vpop.f32.mrf.mxu0
  %494 = vmatprep.mubr.bf16.mxu0 %v236
  %495 = vmatmul.mubr.bf16.gmra.mxu0 %v235
  %v496 = vpop.f32.mrf.mxu0
  %v497 = vadd.f32 0.0, %v496
  %v498 = vpop.f32.mrf.mxu0
  %v499 = vpop.f32.mrf.mxu0
  %v500 = vadd.f32 0.0, %v499
  %v501 = vpop.f32.mrf.mxu0
  %502 = vdwg.mxu0
  %503 = vmatprep.subr.bf16.mxu0 0
  %504 = vmatpush1.bf16.msra.mxu0 %v381
  %505 = vmatprep.subr.bf16.mxu0 0
  %506 = vmatpush1.bf16.msra.mxu0 %v380
  %507 = vmatprep.subr.bf16.mxu0 0
  %508 = vmatpush1.bf16.msra.mxu0 %v379
  %509 = vmatprep.subr.bf16.mxu0 0
  %510 = vmatpush1.bf16.msra.mxu0 %v378
  %511 = vmatprep.subr.bf16.mxu0 0
  %512 = vmatpush1.bf16.msra.mxu0 %v377
  %513 = vmatprep.subr.bf16.mxu0 0
  %514 = vmatpush1.bf16.msra.mxu0 %v376
  %515 = vmatprep.subr.bf16.mxu0 0
  %516 = vmatpush1.bf16.msra.mxu0 %v375
  %517 = vmatprep.subr.bf16.mxu0 0
  %518 = vmatpush1.bf16.msra.mxu0 %v374
  %519 = vmatprep.subr.bf16.mxu0 0
  %520 = vmatpush2.bf16.msra.mxu0 0
  %521 = vmatprep.subr.bf16.mxu0 0
  %522 = vmatpush2.bf16.msra.mxu0 0
  %523 = vmatprep.subr.bf16.mxu0 0
  %524 = vmatpush2.bf16.msra.mxu0 0
  %525 = vmatprep.subr.bf16.mxu0 0
  %526 = vmatpush2.bf16.msra.mxu0 0
  %527 = vmatprep.subr.bf16.mxu0 0
  %528 = vmatpush2.bf16.msra.mxu0 0
  %529 = vmatprep.subr.bf16.mxu0 0
  %530 = vmatpush2.bf16.msra.mxu0 0
  %531 = vmatprep.subr.bf16.mxu0 0
  %532 = vmatpush2.bf16.msra.mxu0 0
  %533 = vmatprep.subr.bf16.mxu0 0
  %534 = vmatpush2.bf16.msra.mxu0 0
  %535 = vmatprep.mubr.bf16.mxu0 0
  %536 = vmatmul.mubr.bf16.gmra.mxu0 %v216
  %v537 = vpop.f32.mrf.mxu0
  %v538 = vadd.f32 %v441, %v537
  %v539 = vpop.f32.mrf.mxu0
  %v540 = vpop.f32.mrf.mxu0
  %v541 = vadd.f32 %v444, %v540
  %v542 = vpop.f32.mrf.mxu0
  %543 = vmatprep.mubr.bf16.mxu0 0
  %544 = vmatmul.mubr.bf16.gmra.mxu0 %v219
  %v545 = vpop.f32.mrf.mxu0
  %v546 = vadd.f32 %v449, %v545
  %v547 = vpop.f32.mrf.mxu0
  %v548 = vpop.f32.mrf.mxu0
  %v549 = vadd.f32 %v452, %v548
  %v550 = vpop.f32.mrf.mxu0
  %551 = vmatprep.mubr.bf16.mxu0 0
  %552 = vmatmul.mubr.bf16.gmra.mxu0 %v222
  %v553 = vpop.f32.mrf.mxu0
  %v554 = vadd.f32 %v457, %v553
  %v555 = vpop.f32.mrf.mxu0
  %v556 = vpop.f32.mrf.mxu0
  %v557 = vadd.f32 %v460, %v556
  %v558 = vpop.f32.mrf.mxu0
  %559 = vmatprep.mubr.bf16.mxu0 0
  %560 = vmatmul.mubr.bf16.gmra.mxu0 %v225
  %v561 = vpop.f32.mrf.mxu0
  %v562 = vadd.f32 %v465, %v561
  %v563 = vpop.f32.mrf.mxu0
  %v564 = vpop.f32.mrf.mxu0
  %v565 = vadd.f32 %v468, %v564
  %v566 = vpop.f32.mrf.mxu0
  %567 = vmatprep.mubr.bf16.mxu0 0
  %568 = vmatmul.mubr.bf16.gmra.mxu0 %v228
  %v569 = vpop.f32.mrf.mxu0
  %v570 = vadd.f32 %v473, %v569
  %v571 = vpop.f32.mrf.mxu0
  %v572 = vpop.f32.mrf.mxu0
  %v573 = vadd.f32 %v476, %v572
  %v574 = vpop.f32.mrf.mxu0
  %575 = vmatprep.mubr.bf16.mxu0 0
  %576 = vmatmul.mubr.bf16.gmra.mxu0 %v231
  %v577 = vpop.f32.mrf.mxu0
  %v578 = vadd.f32 %v481, %v577
  %v579 = vpop.f32.mrf.mxu0
  %v580 = vpop.f32.mrf.mxu0
  %v581 = vadd.f32 %v484, %v580
  %v582 = vpop.f32.mrf.mxu0
  %583 = vmatprep.mubr.bf16.mxu0 0
  %584 = vmatmul.mubr.bf16.gmra.mxu0 %v234
  %v585 = vpop.f32.mrf.mxu0
  %v586 = vadd.f32 %v489, %v585
  %v587 = vpop.f32.mrf.mxu0
  %v588 = vpop.f32.mrf.mxu0
  %v589 = vadd.f32 %v492, %v588
  %v590 = vpop.f32.mrf.mxu0
  %591 = vmatprep.mubr.bf16.mxu0 0
  %592 = vmatmul.mubr.bf16.gmra.mxu0 %v237
  %v593 = vpop.f32.mrf.mxu0
  %v594 = vadd.f32 %v497, %v593
  %v595 = vpop.f32.mrf.mxu0
  %v596 = vpop.f32.mrf.mxu0
  %v597 = vadd.f32 %v500, %v596
  %v598 = vpop.f32.mrf.mxu0
  %599 = vdwg.mxu0
  %v600 = vadd.f32 %v38, %v538
  %v601 = vadd.f32 %v39, %v541
  %v602 = vadd.f32 %v40, %v546
  %v603 = vadd.f32 %v41, %v549
  %v604 = vadd.f32 %v42, %v554
  %v605 = vadd.f32 %v43, %v557
  %v606 = vadd.f32 %v44, %v562
  %v607 = vadd.f32 %v45, %v565
  %v608 = vadd.f32 %v46, %v570
  %v609 = vadd.f32 %v47, %v573
  %v610 = vadd.f32 %v48, %v578
  %v611 = vadd.f32 %v49, %v581
  %v612 = vadd.f32 %v50, %v586
  %v613 = vadd.f32 %v51, %v589
  %v614 = vadd.f32 %v52, %v594
  %v615 = vadd.f32 %v53, %v597
  %616 = vst [vmem:[#allocation2] sm:$0xff] %v600
  %617 = vst [vmem:[#allocation2 + $0x8] sm:$0xff] %v601
  %618 = vst [vmem:[#allocation2 + $0x10] sm:$0xff] %v602
  %619 = vst [vmem:[#allocation2 + $0x18] sm:$0xff] %v603
  %620 = vst [vmem:[#allocation2 + $0x20] sm:$0xff] %v604
  %621 = vst [vmem:[#allocation2 + $0x28] sm:$0xff] %v605
  %622 = vst [vmem:[#allocation2 + $0x30] sm:$0xff] %v606
  %623 = vst [vmem:[#allocation2 + $0x38] sm:$0xff] %v607
  %624 = vst [vmem:[#allocation2 + $0x40] sm:$0xff] %v608
  %625 = vst [vmem:[#allocation2 + $0x48] sm:$0xff] %v609
  %626 = vst [vmem:[#allocation2 + $0x50] sm:$0xff] %v610
  %627 = vst [vmem:[#allocation2 + $0x58] sm:$0xff] %v611
  %628 = vst [vmem:[#allocation2 + $0x60] sm:$0xff] %v612
  %629 = vst [vmem:[#allocation2 + $0x68] sm:$0xff] %v613
  %630 = vst [vmem:[#allocation2 + $0x70] sm:$0xff] %v614
  %631 = vst [vmem:[#allocation2 + $0x78] sm:$0xff] %v615
  // Predicated region
  $region22: #{_lambda_.33} parent=0 // pred_check
    %p632 = pneg %p18
  $region23: #{_lambda_.33} parent=0 // pred_check_branch
    %634 = sbr.rel (%p632) target = $region25
  $region24: #{_lambda_.33} parent=0 // pred_region
    %v635 = vld [vmem:[#allocation2] sm:$0xff]
    %v636 = vld [vmem:[#allocation2 + $0x8] sm:$0xff]
    %v637 = vld [vmem:[#allocation2 + $0x10] sm:$0xff]
    %v638 = vld [vmem:[#allocation2 + $0x18] sm:$0xff]
    %v639 = vld [vmem:[#allocation2 + $0x20] sm:$0xff]
    %v640 = vld [vmem:[#allocation2 + $0x28] sm:$0xff]
    %v641 = vld [vmem:[#allocation2 + $0x30] sm:$0xff]
    %v642 = vld [vmem:[#allocation2 + $0x38] sm:$0xff]
    %v643 = vld [vmem:[#allocation2 + $0x40] sm:$0xff]
    %v644 = vld [vmem:[#allocation2 + $0x48] sm:$0xff]
    %v645 = vld [vmem:[#allocation2 + $0x50] sm:$0xff]
    %v646 = vld [vmem:[#allocation2 + $0x58] sm:$0xff]
    %v647 = vld [vmem:[#allocation2 + $0x60] sm:$0xff]
    %v648 = vld [vmem:[#allocation2 + $0x68] sm:$0xff]
    %v649 = vld [vmem:[#allocation2 + $0x70] sm:$0xff]
    %v650 = vld [vmem:[#allocation2 + $0x78] sm:$0xff]
    %v651 = vld [vmem:[%s2] sm:$0x1]
    %v653 = vlaneseq
    %v654 = vshrl.u32 %v653, 7
    %v655 = vsub.s32 0, %v654
    %v656 = vrot.slane %v651, %v655
    %v658 = vadd.f32 %v635, %v656
    %v659 = vadd.f32 %v636, %v656
    %v660 = vadd.f32 %v637, %v656
    %v661 = vadd.f32 %v638, %v656
    %v662 = vadd.f32 %v639, %v656
    %v663 = vadd.f32 %v640, %v656
    %v664 = vadd.f32 %v641, %v656
    %v665 = vadd.f32 %v642, %v656
    %v666 = vadd.f32 %v643, %v656
    %v667 = vadd.f32 %v644, %v656
    %v668 = vadd.f32 %v645, %v656
    %v669 = vadd.f32 %v646, %v656
    %v670 = vadd.f32 %v647, %v656
    %v671 = vadd.f32 %v648, %v656
    %v672 = vadd.f32 %v649, %v656
    %v673 = vadd.f32 %v650, %v656
    %v674 = vld [vmem:[%s3] sm:$0xff]
    %v675 = vld [vmem:[%s3 + $0x8] sm:$0xff]
    %v676 = vld [vmem:[%s3 + $0x10] sm:$0xff]
    %v677 = vld [vmem:[%s3 + $0x18] sm:$0xff]
    %v678 = vld [vmem:[%s3 + $0x20] sm:$0xff]
    %v679 = vld [vmem:[%s3 + $0x28] sm:$0xff]
    %v680 = vld [vmem:[%s3 + $0x30] sm:$0xff]
    %v681 = vld [vmem:[%s3 + $0x38] sm:$0xff]
    %v682 = vld [vmem:[%s3 + $0x40] sm:$0xff]
    %v683 = vld [vmem:[%s3 + $0x48] sm:$0xff]
    %v684 = vld [vmem:[%s3 + $0x50] sm:$0xff]
    %v685 = vld [vmem:[%s3 + $0x58] sm:$0xff]
    %v686 = vld [vmem:[%s3 + $0x60] sm:$0xff]
    %v687 = vld [vmem:[%s3 + $0x68] sm:$0xff]
    %v688 = vld [vmem:[%s3 + $0x70] sm:$0xff]
    %v689 = vld [vmem:[%s3 + $0x78] sm:$0xff]
    %v690 = vadd.f32 %v658, %v674
    %v691 = vadd.f32 %v659, %v675
    %v692 = vadd.f32 %v660, %v676
    %v693 = vadd.f32 %v661, %v677
    %v694 = vadd.f32 %v662, %v678
    %v695 = vadd.f32 %v663, %v679
    %v696 = vadd.f32 %v664, %v680
    %v697 = vadd.f32 %v665, %v681
    %v698 = vadd.f32 %v666, %v682
    %v699 = vadd.f32 %v667, %v683
    %v700 = vadd.f32 %v668, %v684
    %v701 = vadd.f32 %v669, %v685
    %v702 = vadd.f32 %v670, %v686
    %v703 = vadd.f32 %v671, %v687
    %v704 = vadd.f32 %v672, %v688
    %v705 = vadd.f32 %v673, %v689
    %v706 = vmax.f32 %v690, 0.0
    %v707 = vmax.f32 %v691, 0.0
    %v708 = vmax.f32 %v692, 0.0
    %v709 = vmax.f32 %v693, 0.0
    %v710 = vmax.f32 %v694, 0.0
    %v711 = vmax.f32 %v695, 0.0
    %v712 = vmax.f32 %v696, 0.0
    %v713 = vmax.f32 %v697, 0.0
    %v714 = vmax.f32 %v698, 0.0
    %v715 = vmax.f32 %v699, 0.0
    %v716 = vmax.f32 %v700, 0.0
    %v717 = vmax.f32 %v701, 0.0
    %v718 = vmax.f32 %v702, 0.0
    %v719 = vmax.f32 %v703, 0.0
    %v720 = vmax.f32 %v704, 0.0
    %v721 = vmax.f32 %v705, 0.0
    %722 = vst [vmem:[%s4] sm:$0xff] %v706
    %723 = vst [vmem:[%s4 + $0x8] sm:$0xff] %v707
    %724 = vst [vmem:[%s4 + $0x10] sm:$0xff] %v708
    %725 = vst [vmem:[%s4 + $0x18] sm:$0xff] %v709
    %726 = vst [vmem:[%s4 + $0x20] sm:$0xff] %v710
    %727 = vst [vmem:[%s4 + $0x28] sm:$0xff] %v711
    %728 = vst [vmem:[%s4 + $0x30] sm:$0xff] %v712
    %729 = vst [vmem:[%s4 + $0x38] sm:$0xff] %v713
    %730 = vst [vmem:[%s4 + $0x40] sm:$0xff] %v714
    %731 = vst [vmem:[%s4 + $0x48] sm:$0xff] %v715
    %732 = vst [vmem:[%s4 + $0x50] sm:$0xff] %v716
    %733 = vst [vmem:[%s4 + $0x58] sm:$0xff] %v717
    %734 = vst [vmem:[%s4 + $0x60] sm:$0xff] %v718
    %735 = vst [vmem:[%s4 + $0x68] sm:$0xff] %v719
    %736 = vst [vmem:[%s4 + $0x70] sm:$0xff] %v720
    %737 = vst [vmem:[%s4 + $0x78] sm:$0xff] %v721
  $region25: #{_lambda_.33} parent=0 // pred_fallthru
    _
  // Predicated region
  $region26: #{_lambda_.33} parent=0 // pred_check
    _
  $region27: #{_lambda_.33} parent=0 // pred_check_branch
    %739 = sbr.rel (0) target = $region29
  $region28: #{_lambda_.33} parent=0 // pred_region
    _
  $region29: #{_lambda_.33} parent=0 // pred_fallthru
    _
  // Predicated region
  $region30: #{_lambda_.33} parent=0 // pred_check
    _
  $region31: #{_lambda_.33} parent=0 // pred_check_branch
    %741 = sbr.rel (0) target = $region33
  $region32: #{_lambda_.33} parent=0 // pred_region
    _
  $region33: #{_lambda_.33} parent=0 // pred_fallthru
    _

// kernel: _lambda_.38
$region0: #{_lambda_.38}
  #allocation0 [shape = 'u32[]', space=smem, size = 0x4, offset = 0x4, fixed_abs, tag = 'smem constant byte address 0x4 - core index']
  #allocation1 [shape = 'u32[144,128]{1,0:T(1,128)}', space=vmem, size = 0x12000, scoped, tag = 'internal scratch']
  #allocation2 [shape = 'f32[128,128]{1,0:T(8,128)}', space=vmem, size = 0x10000, scoped, tag = 'scratch operand']
  %s0 = inlined_call_operand.vmem [shape: bf16[128,640], index: 0, kind: input, shape index: {}]
  %s1 = inlined_call_operand.vmem [shape: bf16[640,128], index: 1, kind: input, shape index: {}]
  %s2 = inlined_call_operand.vmem [shape: f32[1,128], index: 2, kind: input, shape index: {}]
  %s3 = inlined_call_operand.vmem [shape: f32[128,128], index: 3, kind: input, shape index: {}]
  %s4 = inlined_call_operand.vmem [shape: f32[128,128], index: 4, kind: output, shape index: {}]
  %s5 = sld [smem:[#allocation0]]
  $region98: #{_lambda_.38} parent=0
    _
  %s7 = ssub.s32 1, %s5
  %s8 = scalar_select 0, %s7, %s5
  $region1: #{_lambda_.38} parent=0
    #allocation3 [shape = 'u8[65536]{0}', space=vmem, size = 0x10000, scoped, tag = 'input window, operand 0']
    loop: start=0, step=1, limit=7
    $region2: #{_lambda_.38} parent=1 // loop_pre_header
      _
    $region3: #{_lambda_.38} parent=1 // loop_header
      %s10 = sphi 0, %s14
      %p11 = scmp.ge.s32.totalorder %s10, 7
      %s17 = sphi 0, %s36
      %s18 = sphi 0, %s32
      %s19 = sphi 0, %s28
      %s20 = sphi 0, %s17
      %s21 = sphi 0, %s18
      %s22 = sphi 0, %s19
      %s23 = sphi 0, %s20
      %s24 = sphi 0, %s21
      %s25 = sphi 0, %s22
      %s41 = sphi 0, %s43
      %s44 = sphi 0, %s41
      %s45 = sphi 0, %s44
      %s61 = sphi 0, %s45
      %s69 = sphi 0, %s71
      %s72 = sphi 0, %s69
      %s73 = sphi 0, %s72
      %s89 = sphi 0, %s73
      %s95 = sphi 0, %s97
      %s98 = sphi 0, %s95
      %s99 = sphi 0, %s98
      %s115 = sphi 0, %s99
      %s123 = sphi 0, %s125
      %s126 = sphi 0, %s123
      %s127 = sphi 0, %s126
      %s143 = sphi 0, %s127
      %s151 = sphi 0, %s153
      %s154 = sphi 0, %s151
      %s155 = sphi 0, %s154
      %s171 = sphi 0, %s155
    $region4: #{_lambda_.38} parent=1 // loop_header_branch
      %13 = sbr.rel (%p11) target = $region8
    $region5: #{_lambda_.38} parent=1 // loop_body
      %s15 = ssub.s32 %s10, 1
      %s16 = ssub.s32 %s10, 2
      %s26 = sadd.s32 1, %s19
      %p27 = scmp.ge.s32.totalorder %s26, 5
      %s28 = scalar_select %p27, 0, %s26
      %s29 = sadd.s32 1, %s18
      %s30 = scalar_select %p27, %s29, %s18
      %p31 = scmp.ge.s32.totalorder %s30, 1
      %s32 = scalar_select %p31, 0, %s30
      %s33 = sadd.s32 1, %s17
      %s34 = scalar_select %p31, %s33, %s17
      %p35 = scmp.ge.s32.totalorder %s34, 1
      %s36 = scalar_select %p35, 0, %s34
      %s37 = ssub.s32 %s17, %s36
      %s38 = ssub.s32 %s19, %s28
      %s39 = sor.u32 %s37, %s38
      %p40 = scmp.eq.s32.totalorder %s39, 0
      %s42 = sadd.s32 %s41, 1
      %s43 = scalar_select %p40, %s41, %s42
      %p46 = pneg %p40
      %p47 = scmp.eq.s32.totalorder %s10, 4
      %p48 = por %p46, %p47
      %p49 = scmp.ne.s32.totalorder %s41, %s44
      %p50 = scmp.eq.s32.totalorder %s10, 0
      %p51 = por %p49, %p50
      %p52 = scmp.ne.s32.totalorder %s41, %s44
      %p53 = scmp.eq.s32.totalorder %s15, 4
      %p54 = por %p52, %p53
      %p55 = scmp.ne.s32.totalorder %s44, %s45
      %p56 = scmp.eq.s32.totalorder %s15, 0
      %p57 = por %p55, %p56
      %p58 = scmp.ne.s32.totalorder %s44, %s45
      %p59 = scmp.eq.s32.totalorder %s16, 4
      %p60 = por %p58, %p59
      %p62 = scmp.ne.s32.totalorder %s45, %s61
      %p63 = scmp.eq.s32.totalorder %s16, 0
      %p64 = por %p62, %p63
      %s65 = ssub.s32 %s19, %s28
      %s66 = ssub.s32 %s18, %s32
      %s67 = sor.u32 %s65, %s66
      %p68 = scmp.eq.s32.totalorder %s67, 0
      %s70 = sadd.s32 %s69, 1
      %s71 = scalar_select %p68, %s69, %s70
      %p74 = pneg %p68
      %p75 = scmp.eq.s32.totalorder %s10, 4
      %p76 = por %p74, %p75
      %p77 = scmp.ne.s32.totalorder %s69, %s72
      %p78 = scmp.eq.s32.totalorder %s10, 0
      %p79 = por %p77, %p78
      %p80 = scmp.ne.s32.totalorder %s69, %s72
      %p81 = scmp.eq.s32.totalorder %s15, 4
      %p82 = por %p80, %p81
      %p83 = scmp.ne.s32.totalorder %s72, %s73
      %p84 = scmp.eq.s32.totalorder %s15, 0
      %p85 = por %p83, %p84
      %p86 = scmp.ne.s32.totalorder %s72, %s73
      %p87 = scmp.eq.s32.totalorder %s16, 4
      %p88 = por %p86, %p87
      %p90 = scmp.ne.s32.totalorder %s73, %s89
      %p91 = scmp.eq.s32.totalorder %s16, 0
      %p92 = por %p90, %p91
      %s93 = ssub.s32 %s18, %s32
      %p94 = scmp.eq.s32.totalorder %s93, 0
      %s96 = sadd.s32 %s95, 1
      %s97 = scalar_select %p94, %s95, %s96
      %p100 = pneg %p94
      %p101 = scmp.eq.s32.totalorder %s10, 4
      %p102 = por %p100, %p101
      %p103 = scmp.ne.s32.totalorder %s95, %s98
      %p104 = scmp.eq.s32.totalorder %s10, 0
      %p105 = por %p103, %p104
      %p106 = scmp.ne.s32.totalorder %s95, %s98
      %p107 = scmp.eq.s32.totalorder %s15, 4
      %p108 = por %p106, %p107
      %p109 = scmp.ne.s32.totalorder %s98, %s99
      %p110 = scmp.eq.s32.totalorder %s15, 0
      %p111 = por %p109, %p110
      %p112 = scmp.ne.s32.totalorder %s98, %s99
      %p113 = scmp.eq.s32.totalorder %s16, 4
      %p114 = por %p112, %p113
      %p116 = scmp.ne.s32.totalorder %s99, %s115
      %p117 = scmp.eq.s32.totalorder %s16, 0
      %p118 = por %p116, %p117
      %s119 = ssub.s32 %s17, %s36
      %s120 = ssub.s32 %s18, %s32
      %s121 = sor.u32 %s119, %s120
      %p122 = scmp.eq.s32.totalorder %s121, 0
      %s124 = sadd.s32 %s123, 1
      %s125 = scalar_select %p122, %s123, %s124
      %p128 = pneg %p122
      %p129 = scmp.eq.s32.totalorder %s10, 4
      %p130 = por %p128, %p129
      %p131 = scmp.ne.s32.totalorder %s123, %s126
      %p132 = scmp.eq.s32.totalorder %s10, 0
      %p133 = por %p131, %p132
      %p134 = scmp.ne.s32.totalorder %s123, %s126
      %p135 = scmp.eq.s32.totalorder %s15, 4
      %p136 = por %p134, %p135
      %p137 = scmp.ne.s32.totalorder %s126, %s127
      %p138 = scmp.eq.s32.totalorder %s15, 0
      %p139 = por %p137, %p138
      %p140 = scmp.ne.s32.totalorder %s126, %s127
      %p141 = scmp.eq.s32.totalorder %s16, 4
      %p142 = por %p140, %p141
      %p144 = scmp.ne.s32.totalorder %s127, %s143
      %p145 = scmp.eq.s32.totalorder %s16, 0
      %p146 = por %p144, %p145
      %s147 = ssub.s32 %s17, %s36
      %s148 = ssub.s32 %s18, %s32
      %s149 = sor.u32 %s147, %s148
      %p150 = scmp.eq.s32.totalorder %s149, 0
      %s152 = sadd.s32 %s151, 1
      %s153 = scalar_select %p150, %s151, %s152
      %p156 = pneg %p150
      %p157 = scmp.eq.s32.totalorder %s10, 4
      %p158 = por %p156, %p157
      %p159 = scmp.ne.s32.totalorder %s151, %s154
      %p160 = scmp.eq.s32.totalorder %s10, 0
      %p161 = por %p159, %p160
      %p162 = scmp.ne.s32.totalorder %s151, %s154
      %p163 = scmp.eq.s32.totalorder %s15, 4
      %p164 = por %p162, %p163
      %p165 = scmp.ne.s32.totalorder %s154, %s155
      %p166 = scmp.eq.s32.totalorder %s15, 0
      %p167 = por %p165, %p166
      %p168 = scmp.ne.s32.totalorder %s154, %s155
      %p169 = scmp.eq.s32.totalorder %s16, 4
      %p170 = por %p168, %p169
      %p172 = scmp.ne.s32.totalorder %s155, %s171
      %p173 = scmp.eq.s32.totalorder %s16, 0
      %p174 = por %p172, %p173
      %p175 = scmp.le.s32.totalorder 1, %s10
      %p176 = scmp.lt.s32.totalorder %s10, 6
      %p177 = pnand %p175, %p176
      %p178 = pneg %p177
      // Predicated region
      $region9: #{_lambda_.38} parent=5 // pred_check
        _
      $region10: #{_lambda_.38} parent=5 // pred_check_branch
        %180 = sbr.rel (%p177) target = $region12
      $region11: #{_lambda_.38} parent=5 // pred_region
        %s181 = ssub.s32 %s10, 1
        // Predicated region
        $region13: #{_lambda_.38} parent=11 // pred_check
          %p182 = pneg %p111
        $region14: #{_lambda_.38} parent=11 // pred_check_branch
          %184 = sbr.rel (%p182) target = $region16
        $region15: #{_lambda_.38} parent=11 // pred_region
          %p185 = scmp.lt.s32.totalorder %s21, 0
          %s186 = scalar_select %p185, %s21, 0
          %s187 = scalar_lea.vmem %s2, %s186
        $region16: #{_lambda_.38} parent=11 // pred_fallthru
          _
        // Predicated region
        $region17: #{_lambda_.38} parent=11 // pred_check
          %p188 = pneg %p139
        $region18: #{_lambda_.38} parent=11 // pred_check_branch
          %190 = sbr.rel (%p188) target = $region20
        $region19: #{_lambda_.38} parent=11 // pred_region
          %s191 = smul.u32 16, %s20
          %p192 = scmp.lt.s32.totalorder %s191, 15
          %s193 = scalar_select %p192, %s191, 15
          %p194 = scmp.lt.s32.totalorder %s21, 0
          %s195 = scalar_select %p194, %s21, 0
          %s196 = sadd.s32 %s195, %s193
          %s197 = smul.addr %s196, 8
          %s198 = scalar_lea.vmem %s3, %s197
          %s199 = smul.u32 16, %s20
        $region20: #{_lambda_.38} parent=11 // pred_fallthru
          _
      $region12: #{_lambda_.38} parent=5 // pred_fallthru
        _
      %p200 = scmp.lt.s32.totalorder %s10, 5
      // Predicated region
      $region21: #{_lambda_.38} parent=5 // pred_check
        %p201 = pneg %p200
      $region22: #{_lambda_.38} parent=5 // pred_check_branch
        %203 = sbr.rel (%p201) target = $region24
      $region23: #{_lambda_.38} parent=5 // pred_region
        // Predicated region
        $region25: #{_lambda_.38} parent=23 // pred_check
          %p204 = pneg %p51
        $region26: #{_lambda_.38} parent=23 // pred_check_branch
          %206 = sbr.rel (%p204) target = $region28
        $region27: #{_lambda_.38} parent=23 // pred_region
          %s207 = sand.u32 %s41, 1
          %s208 = sand.u32 %s41, 1
          %s209 = smul.addr %s208, 64
          %s210 = scalar_lea.vmem [#allocation3], %s209
          %s211 = smul.u32 16, %s17
          %s212 = smul.addr %s211, 5
          %s213 = sadd.s32 %s19, %s212
          %s214 = smul.addr %s213, 4
          %s215 = scalar_lea.vmem %s0, %s214
          // Predicated region
          $region29: #{_lambda_.38} parent=27 // pred_check
            _
          $region30: #{_lambda_.38} parent=27 // pred_check_branch
            %217 = sbr.rel (0) target = $region32
          $region31: #{_lambda_.38} parent=27 // pred_region
            // Predicated region
            $region33: #{_lambda_.38} parent=31 // pred_check
              _
            $region34: #{_lambda_.38} parent=31 // pred_check_branch
              %219 = sbr.rel target = $region36
            $region35: #{_lambda_.38} parent=31 // pred_region
              // Predicated region
              $region48: #{_lambda_.38} parent=35 // pred_check
                _
              $region49: #{_lambda_.38} parent=35 // pred_check_branch
                %265 = sbr.rel (0) target = $region51
              $region50: #{_lambda_.38} parent=35 // pred_region
                loop: start=0, step=1, limit=1
                $region52: #{_lambda_.38} parent=50 // loop_pre_header
                  _
                $region53: #{_lambda_.38} parent=50 // loop_header
                  %s267 = sphi 0, %s271
                  %p268 = scmp.ge.s32.totalorder %s267, 1
                  %s272 = sphi %s215, %s215
                  %s273 = sphi %s210, %s210
                $region54: #{_lambda_.38} parent=50 // loop_header_branch
                  %270 = sbr.rel (%p268) target = $region58
                $region55: #{_lambda_.38} parent=50 // loop_body
                  _
                $region56: #{_lambda_.38} parent=50 // loop_footer
                  %s271 = sadd.s32 1, %s267
                $region57: #{_lambda_.38} parent=50 // loop_footer_branch
                  %266 = sbr.rel target = $region53
                $region58: #{_lambda_.38} parent=50 // loop_exit
                  _
                %s275 = ssub.s32 16, 1
                loop: start=0, step=1, limit=1
                $region59: #{_lambda_.38} parent=50 // loop_pre_header
                  _
                $region60: #{_lambda_.38} parent=50 // loop_header
                  %s277 = sphi 0, %s281
                  %p278 = scmp.ge.s32.totalorder %s277, 1
                  %s282 = sphi %s215, %s215
                  %s283 = sphi %s210, %s210
                $region61: #{_lambda_.38} parent=50 // loop_header_branch
                  %280 = sbr.rel (%p278) target = $region65
                $region62: #{_lambda_.38} parent=50 // loop_body
                  %v284 = vld [vmem:[%s282] sm:%s275]
                  %285 = vst [vmem:[%s283] sm:%s275] %v284
                  %v286 = vld [vmem:[%s282 + $0x14] sm:%s275]
                  %287 = vst [vmem:[%s283 + $0x4] sm:%s275] %v286
                  %v288 = vld [vmem:[%s282 + $0x28] sm:%s275]
                  %289 = vst [vmem:[%s283 + $0x8] sm:%s275] %v288
                  %v290 = vld [vmem:[%s282 + $0x3c] sm:%s275]
                  %291 = vst [vmem:[%s283 + $0xc] sm:%s275] %v290
                  %v292 = vld [vmem:[%s282 + $0x50] sm:%s275]
                  %293 = vst [vmem:[%s283 + $0x10] sm:%s275] %v292
                  %v294 = vld [vmem:[%s282 + $0x64] sm:%s275]
                  %295 = vst [vmem:[%s283 + $0x14] sm:%s275] %v294
                  %v296 = vld [vmem:[%s282 + $0x78] sm:%s275]
                  %297 = vst [vmem:[%s283 + $0x18] sm:%s275] %v296
                  %v298 = vld [vmem:[%s282 + $0x8c] sm:%s275]
                  %299 = vst [vmem:[%s283 + $0x1c] sm:%s275] %v298
                  %v300 = vld [vmem:[%s282 + $0xa0] sm:%s275]
                  %301 = vst [vmem:[%s283 + $0x20] sm:%s275] %v300
                  %v302 = vld [vmem:[%s282 + $0xb4] sm:%s275]
                  %303 = vst [vmem:[%s283 + $0x24] sm:%s275] %v302
                  %v304 = vld [vmem:[%s282 + $0xc8] sm:%s275]
                  %305 = vst [vmem:[%s283 + $0x28] sm:%s275] %v304
                  %v306 = vld [vmem:[%s282 + $0xdc] sm:%s275]
                  %307 = vst [vmem:[%s283 + $0x2c] sm:%s275] %v306
                  %v308 = vld [vmem:[%s282 + $0xf0] sm:%s275]
                  %309 = vst [vmem:[%s283 + $0x30] sm:%s275] %v308
                  %v310 = vld [vmem:[%s282 + $0x104] sm:%s275]
                  %311 = vst [vmem:[%s283 + $0x34] sm:%s275] %v310
                  %v312 = vld [vmem:[%s282 + $0x118] sm:%s275]
                  %313 = vst [vmem:[%s283 + $0x38] sm:%s275] %v312
                  %v314 = vld [vmem:[%s282 + $0x12c] sm:%s275]
                  %315 = vst [vmem:[%s283 + $0x3c] sm:%s275] %v314
                $region63: #{_lambda_.38} parent=50 // loop_footer
                  %s281 = sadd.s32 1, %s277
                $region64: #{_lambda_.38} parent=50 // loop_footer_branch
                  %276 = sbr.rel target = $region60
                $region65: #{_lambda_.38} parent=50 // loop_exit
                  _
              $region51: #{_lambda_.38} parent=35 // pred_fallthru
                _
            $region36: #{_lambda_.38} parent=31 // pred_fallthru
              _
            // Predicated region
            $region37: #{_lambda_.38} parent=31 // pred_check
              _
            $region38: #{_lambda_.38} parent=31 // pred_check_branch
              %221 = sbr.rel (0) target = $region40
            $region39: #{_lambda_.38} parent=31 // pred_region
              %s223 = ssub.s32 16, 1
              loop: start=0, step=1, limit=1
              $region41: #{_lambda_.38} parent=39 // loop_pre_header
                _
              $region42: #{_lambda_.38} parent=39 // loop_header
                %s225 = sphi 0, %s229
                %p226 = scmp.ge.s32.totalorder %s225, 1
                %s230 = sphi %s215, %s215
                %s231 = sphi %s210, %s210
              $region43: #{_lambda_.38} parent=39 // loop_header_branch
                %228 = sbr.rel (%p226) target = $region47
              $region44: #{_lambda_.38} parent=39 // loop_body
                %v232 = vld [vmem:[%s230] sm:%s223]
                %233 = vst [vmem:[%s231] sm:%s223] %v232
                %v234 = vld [vmem:[%s230 + $0x14] sm:%s223]
                %235 = vst [vmem:[%s231 + $0x4] sm:%s223] %v234
                %v236 = vld [vmem:[%s230 + $0x28] sm:%s223]
                %237 = vst [vmem:[%s231 + $0x8] sm:%s223] %v236
                %v238 = vld [vmem:[%s230 + $0x3c] sm:%s223]
                %239 = vst [vmem:[%s231 + $0xc] sm:%s223] %v238
                %v240 = vld [vmem:[%s230 + $0x50] sm:%s223]
                %241 = vst [vmem:[%s231 + $0x10] sm:%s223] %v240
                %v242 = vld [vmem:[%s230 + $0x64] sm:%s223]
                %243 = vst [vmem:[%s231 + $0x14] sm:%s223] %v242
                %v244 = vld [vmem:[%s230 + $0x78] sm:%s223]
                %245 = vst [vmem:[%s231 + $0x18] sm:%s223] %v244
                %v246 = vld [vmem:[%s230 + $0x8c] sm:%s223]
                %247 = vst [vmem:[%s231 + $0x1c] sm:%s223] %v246
                %v248 = vld [vmem:[%s230 + $0xa0] sm:%s223]
                %249 = vst [vmem:[%s231 + $0x20] sm:%s223] %v248
                %v250 = vld [vmem:[%s230 + $0xb4] sm:%s223]
                %251 = vst [vmem:[%s231 + $0x24] sm:%s223] %v250
                %v252 = vld [vmem:[%s230 + $0xc8] sm:%s223]
                %253 = vst [vmem:[%s231 + $0x28] sm:%s223] %v252
                %v254 = vld [vmem:[%s230 + $0xdc] sm:%s223]
                %255 = vst [vmem:[%s231 + $0x2c] sm:%s223] %v254
                %v256 = vld [vmem:[%s230 + $0xf0] sm:%s223]
                %257 = vst [vmem:[%s231 + $0x30] sm:%s223] %v256
                %v258 = vld [vmem:[%s230 + $0x104] sm:%s223]
                %259 = vst [vmem:[%s231 + $0x34] sm:%s223] %v258
                %v260 = vld [vmem:[%s230 + $0x118] sm:%s223]
                %261 = vst [vmem:[%s231 + $0x38] sm:%s223] %v260
                %v262 = vld [vmem:[%s230 + $0x12c] sm:%s223]
                %263 = vst [vmem:[%s231 + $0x3c] sm:%s223] %v262
              $region45: #{_lambda_.38} parent=39 // loop_footer
                %s229 = sadd.s32 1, %s225
              $region46: #{_lambda_.38} parent=39 // loop_footer_branch
                %224 = sbr.rel target = $region42
              $region47: #{_lambda_.38} parent=39 // loop_exit
                _
            $region40: #{_lambda_.38} parent=31 // pred_fallthru
              _
          $region32: #{_lambda_.38} parent=27 // pred_fallthru
            _
          %316 = vnop
        $region28: #{_lambda_.38} parent=23 // pred_fallthru
          _
        // Predicated region
        $region66: #{_lambda_.38} parent=23 // pred_check
          %p317 = pneg %p79
        $region67: #{_lambda_.38} parent=23 // pred_check_branch
          %319 = sbr.rel (%p317) target = $region69
        $region68: #{_lambda_.38} parent=23 // pred_region
          %s320 = smul.u32 16, %s19
          %p321 = scmp.lt.s32.totalorder %s320, 79
          %s322 = scalar_select %p321, %s320, 79
          %p323 = scmp.lt.s32.totalorder %s18, 0
          %s324 = scalar_select %p323, %s18, 0
          %s325 = sadd.s32 %s324, %s322
          %s326 = smul.addr %s325, 4
          %s327 = scalar_lea.vmem %s1, %s326
          %s328 = smul.u32 16, %s19
        $region69: #{_lambda_.38} parent=23 // pred_fallthru
          _
      $region24: #{_lambda_.38} parent=5 // pred_fallthru
        _
      %p329 = scmp.le.s32.totalorder 1, %s10
      %p330 = scmp.lt.s32.totalorder %s10, 6
      %p331 = pnand %p329, %p330
      %p332 = pneg %p331
      // Predicated region
      $region70: #{_lambda_.38} parent=5 // pred_check
        _
      $region71: #{_lambda_.38} parent=5 // pred_check_branch
        %334 = sbr.rel (%p331) target = $region73
      $region72: #{_lambda_.38} parent=5 // pred_region
        %s335 = ssub.s32 %s10, 1
        %s336 = sand.u32 %s44, 1
        %s337 = sand.u32 %s44, 1
        %s338 = smul.addr %s337, 64
        %s339 = scalar_lea.vmem [#allocation3], %s338
        // Predicated region
        $region74: #{_lambda_.38} parent=72 // pred_check
          %p340 = pneg %p57
        $region75: #{_lambda_.38} parent=72 // pred_check_branch
          %342 = sbr.rel (%p340) target = $region77
        $region76: #{_lambda_.38} parent=72 // pred_region
          _
        $region77: #{_lambda_.38} parent=72 // pred_fallthru
          _
        %s343 = sand.u32 %s44, 1
        %s344 = sand.u32 %s44, 1
        %s345 = smul.addr %s344, 64
        %s346 = scalar_lea.vmem [#allocation3], %s345
        %p347 = pneg %p57
        %p348 = pneg %p54
        %s349 = smul.u32 16, %s22
        %p350 = scmp.lt.s32.totalorder %s349, 79
        %s351 = scalar_select %p350, %s349, 79
        %p352 = scmp.lt.s32.totalorder %s21, 0
        %s353 = scalar_select %p352, %s21, 0
        %s354 = sadd.s32 %s353, %s351
        %s355 = smul.addr %s354, 4
        %s356 = scalar_lea.vmem %s1, %s355
        %p357 = pneg %p85
        %p358 = pneg %p82
        %p359 = scmp.lt.s32.totalorder %s21, 0
        %s360 = scalar_select %p359, %s21, 0
        %s361 = scalar_lea.vmem %s2, %s360
        %p362 = pneg %p111
        %p363 = pneg %p108
        %s364 = smul.u32 16, %s20
        %p365 = scmp.lt.s32.totalorder %s364, 15
        %s366 = scalar_select %p365, %s364, 15
        %p367 = scmp.lt.s32.totalorder %s21, 0
        %s368 = scalar_select %p367, %s21, 0
        %s369 = sadd.s32 %s368, %s366
        %s370 = smul.addr %s369, 8
        %s371 = scalar_lea.vmem %s3, %s370
        %p372 = pneg %p139
        %p373 = pneg %p136
        %p374 = pneg %p167
        %p375 = pneg %p164
        %s376 = smul.u32 16, %s20
        %p377 = scmp.lt.s32.totalorder %s376, 15
        %s378 = scalar_select %p377, %s376, 15
        %p379 = scmp.lt.s32.totalorder %s21, 0
        %s380 = scalar_select %p379, %s21, 0
        %s381 = sadd.s32 %s380, %s378
        %s382 = smul.addr %s381, 8
        %s383 = scalar_lea.vmem %s4, %s382
        %s384 = smul.u32 16, %s20
        %s385 = smul.u32 16, %s22
        %p386 = scmp.lt.s32.totalorder %s385, 79
        %s387 = scalar_select %p386, %s385, 79
        %p388 = scmp.lt.s32.totalorder %s21, 0
        %s389 = scalar_select %p388, %s21, 0
        %s390 = sadd.s32 %s389, %s387
        %s391 = smul.addr %s390, 4
        %s392 = scalar_lea.vmem %s1, %s391
        %s393 = smul.u32 16, %s22
        %p394 = scmp.lt.s32.totalorder %s21, 0
        %s395 = scalar_select %p394, %s21, 0
        %s396 = scalar_lea.vmem %s2, %s395
        %s397 = smul.u32 16, %s20
        %p398 = scmp.lt.s32.totalorder %s397, 15
        %s399 = scalar_select %p398, %s397, 15
        %p400 = scmp.lt.s32.totalorder %s21, 0
        %s401 = scalar_select %p400, %s21, 0
        %s402 = sadd.s32 %s401, %s399
        %s403 = smul.addr %s402, 8
        %s404 = scalar_lea.vmem %s3, %s403
        %s405 = smul.u32 16, %s20
        %s406 = smul.u32 16, %s20
        %p407 = scmp.lt.s32.totalorder %s406, 15
        %s408 = scalar_select %p407, %s406, 15
        %p409 = scmp.lt.s32.totalorder %s21, 0
        %s410 = scalar_select %p409, %s21, 0
        %s411 = sadd.s32 %s410, %s408
        %s412 = smul.addr %s411, 8
        %s413 = scalar_lea.vmem %s4, %s412
        %s414 = smul.u32 16, %s20
        %p416 = scmp.eq.s32.totalorder %s22, 0
        // Predicated region
        $region78: #{_lambda_.38} parent=72 // pred_check
          %p417 = pneg %p416
        $region79: #{_lambda_.38} parent=72 // pred_check_branch
          %419 = sbr.rel (%p417) target = $region81
        $region80: #{_lambda_.38} parent=72 // pred_region
          %420 = vst [vmem:[#allocation2] sm:$0xff] 0.0
          %421 = vst [vmem:[#allocation2 + $0x8] sm:$0xff] 0.0
          %422 = vst [vmem:[#allocation2 + $0x10] sm:$0xff] 0.0
          %423 = vst [vmem:[#allocation2 + $0x18] sm:$0xff] 0.0
          %424 = vst [vmem:[#allocation2 + $0x20] sm:$0xff] 0.0
          %425 = vst [vmem:[#allocation2 + $0x28] sm:$0xff] 0.0
          %426 = vst [vmem:[#allocation2 + $0x30] sm:$0xff] 0.0
          %427 = vst [vmem:[#allocation2 + $0x38] sm:$0xff] 0.0
          %428 = vst [vmem:[#allocation2 + $0x40] sm:$0xff] 0.0
          %429 = vst [vmem:[#allocation2 + $0x48] sm:$0xff] 0.0
          %430 = vst [vmem:[#allocation2 + $0x50] sm:$0xff] 0.0
          %431 = vst [vmem:[#allocation2 + $0x58] sm:$0xff] 0.0
          %432 = vst [vmem:[#allocation2 + $0x60] sm:$0xff] 0.0
          %433 = vst [vmem:[#allocation2 + $0x68] sm:$0xff] 0.0
          %434 = vst [vmem:[#allocation2 + $0x70] sm:$0xff] 0.0
          %435 = vst [vmem:[#allocation2 + $0x78] sm:$0xff] 0.0
        $region81: #{_lambda_.38} parent=72 // pred_fallthru
          _
        %v436 = vld [vmem:[#allocation2] sm:$0xff]
        %v437 = vld [vmem:[#allocation2 + $0x8] sm:$0xff]
        %v438 = vld [vmem:[#allocation2 + $0x10] sm:$0xff]
        %v439 = vld [vmem:[#allocation2 + $0x18] sm:$0xff]
        %v440 = vld [vmem:[#allocation2 + $0x20] sm:$0xff]
        %v441 = vld [vmem:[#allocation2 + $0x28] sm:$0xff]
        %v442 = vld [vmem:[#allocation2 + $0x30] sm:$0xff]
        %v443 = vld [vmem:[#allocation2 + $0x38] sm:$0xff]
        %v444 = vld [vmem:[#allocation2 + $0x40] sm:$0xff]
        %v445 = vld [vmem:[#allocation2 + $0x48] sm:$0xff]
        %v446 = vld [vmem:[#allocation2 + $0x50] sm:$0xff]
        %v447 = vld [vmem:[#allocation2 + $0x58] sm:$0xff]
        %v448 = vld [vmem:[#allocation2 + $0x60] sm:$0xff]
        %v449 = vld [vmem:[#allocation2 + $0x68] sm:$0xff]
        %v450 = vld [vmem:[#allocation2 + $0x70] sm:$0xff]
        %v451 = vld [vmem:[#allocation2 + $0x78] sm:$0xff]
        %v452 = vld [vmem:[%s339] sm:$0xf]
        %v453 = vld [vmem:[%s339 + $0x4] sm:$0xf]
        %v454 = vld [vmem:[%s339 + $0x8] sm:$0xf]
        %v455 = vld [vmem:[%s339 + $0xc] sm:$0xf]
        %v456 = vld [vmem:[%s339 + $0x10] sm:$0xf]
        %v457 = vld [vmem:[%s339 + $0x14] sm:$0xf]
        %v458 = vld [vmem:[%s339 + $0x18] sm:$0xf]
        %v459 = vld [vmem:[%s339 + $0x1c] sm:$0xf]
        %v460 = vld [vmem:[%s339 + $0x20] sm:$0xf]
        %v461 = vld [vmem:[%s339 + $0x24] sm:$0xf]
        %v462 = vld [vmem:[%s339 + $0x28] sm:$0xf]
        %v463 = vld [vmem:[%s339 + $0x2c] sm:$0xf]
        %v464 = vld [vmem:[%s339 + $0x30] sm:$0xf]
        %v465 = vld [vmem:[%s339 + $0x34] sm:$0xf]
        %v466 = vld [vmem:[%s339 + $0x38] sm:$0xf]
        %v467 = vld [vmem:[%s339 + $0x3c] sm:$0xf]
        %v468 = vld [vmem:[%s392] sm:$0xf]
        %v469 = vld [vmem:[%s392 + $0x4] sm:$0xf]
        %v470 = vld [vmem:[%s392 + $0x8] sm:$0xf]
        %v471 = vld [vmem:[%s392 + $0xc] sm:$0xf]
        %v472 = vld [vmem:[%s392 + $0x10] sm:$0xf]
        %v473 = vld [vmem:[%s392 + $0x14] sm:$0xf]
        %v474 = vld [vmem:[%s392 + $0x18] sm:$0xf]
        %v475 = vld [vmem:[%s392 + $0x1c] sm:$0xf]
        %v476 = vld [vmem:[%s392 + $0x20] sm:$0xf]
        %v477 = vld [vmem:[%s392 + $0x24] sm:$0xf]
        %v478 = vld [vmem:[%s392 + $0x28] sm:$0xf]
        %v479 = vld [vmem:[%s392 + $0x2c] sm:$0xf]
        %v480 = vld [vmem:[%s392 + $0x30] sm:$0xf]
        %v481 = vld [vmem:[%s392 + $0x34] sm:$0xf]
        %v482 = vld [vmem:[%s392 + $0x38] sm:$0xf]
        %v483 = vld [vmem:[%s392 + $0x3c] sm:$0xf]
        %v500 = vunpack.c.l.b16 %v452
        %v501 = vunpack.c.l.b16 %v453
        %v502 = vunpack.c.l.b16 %v454
        %v503 = vunpack.c.l.b16 %v455
        %v504 = vunpack.c.l.b16 %v456
        %v505 = vunpack.c.l.b16 %v457
        %v506 = vunpack.c.l.b16 %v458
        %v507 = vunpack.c.l.b16 %v459
        %v508 = vunpack.c.l.b16 %v460
        %v509 = vunpack.c.l.b16 %v461
        %v510 = vunpack.c.l.b16 %v462
        %v511 = vunpack.c.l.b16 %v463
        %v512 = vunpack.c.l.b16 %v464
        %v513 = vunpack.c.l.b16 %v465
        %v514 = vunpack.c.l.b16 %v466
        %v515 = vunpack.c.l.b16 %v467
        %v516 = vpack.c.b16 %v501, %v500
        %v517 = vpack.c.b16 %v503, %v502
        %v518 = vpack.c.b16 %v505, %v504
        %v519 = vpack.c.b16 %v507, %v506
        %v520 = vpack.c.b16 %v509, %v508
        %v521 = vpack.c.b16 %v511, %v510
        %v522 = vpack.c.b16 %v513, %v512
        %v523 = vpack.c.b16 %v515, %v514
        %v548 = vunpack.c.l.b16 %v468
        %v549 = vunpack.c.l.b16 %v469
        %v550 = vunpack.c.l.b16 %v470
        %v551 = vunpack.c.l.b16 %v471
        %v552 = vunpack.c.l.b16 %v472
        %v553 = vunpack.c.l.b16 %v473
        %v554 = vunpack.c.l.b16 %v474
        %v555 = vunpack.c.l.b16 %v475
        %v556 = vunpack.c.l.b16 %v476
        %v557 = vunpack.c.l.b16 %v477
        %v558 = vunpack.c.l.b16 %v478
        %v559 = vunpack.c.l.b16 %v479
        %v560 = vunpack.c.l.b16 %v480
        %v561 = vunpack.c.l.b16 %v481
        %v562 = vunpack.c.l.b16 %v482
        %v563 = vunpack.c.l.b16 %v483
        %v564 = vpack.c.b16 %v549, %v548
        %v565 = vpack.c.b16 %v551, %v550
        %v566 = vpack.c.b16 %v553, %v552
        %v567 = vpack.c.b16 %v555, %v554
        %v568 = vpack.c.b16 %v557, %v556
        %v569 = vpack.c.b16 %v559, %v558
        %v570 = vpack.c.b16 %v561, %v560
        %v571 = vpack.c.b16 %v563, %v562
        %580 = vmatprep.subr.bf16.mxu0 0
        %581 = vmatpush1.bf16.msra.mxu0 %v571
        %582 = vmatprep.subr.bf16.mxu0 0
        %583 = vmatpush1.bf16.msra.mxu0 %v570
        %584 = vmatprep.subr.bf16.mxu0 0
        %585 = vmatpush1.bf16.msra.mxu0 %v569
        %586 = vmatprep.subr.bf16.mxu0 0
        %587 = vmatpush1.bf16.msra.mxu0 %v568
        %588 = vmatprep.subr.bf16.mxu0 0
        %589 = vmatpush1.bf16.msra.mxu0 %v567
        %590 = vmatprep.subr.bf16.mxu0 0
        %591 = vmatpush1.bf16.msra.mxu0 %v566
        %592 = vmatprep.subr.bf16.mxu0 0
        %593 = vmatpush1.bf16.msra.mxu0 %v565
        %594 = vmatprep.subr.bf16.mxu0 0
        %595 = vmatpush1.bf16.msra.mxu0 %v564
        %596 = vmatprep.subr.bf16.mxu0 0
        %597 = vmatpush2.bf16.msra.mxu0 0
        %598 = vmatprep.subr.bf16.mxu0 0
        %599 = vmatpush2.bf16.msra.mxu0 0
        %600 = vmatprep.subr.bf16.mxu0 0
        %601 = vmatpush2.bf16.msra.mxu0 0
        %602 = vmatprep.subr.bf16.mxu0 0
        %603 = vmatpush2.bf16.msra.mxu0 0
        %604 = vmatprep.subr.bf16.mxu0 0
        %605 = vmatpush2.bf16.msra.mxu0 0
        %606 = vmatprep.subr.bf16.mxu0 0
        %607 = vmatpush2.bf16.msra.mxu0 0
        %608 = vmatprep.subr.bf16.mxu0 0
        %609 = vmatpush2.bf16.msra.mxu0 0
        %610 = vmatprep.subr.bf16.mxu0 0
        %611 = vmatpush2.bf16.msra.mxu0 0
        %612 = vmatprep.mubr.bf16.mxu0 0
        %613 = vmatmul.mubr.bf16.gmra.mxu0 %v516
        %v614 = vpop.f32.mrf.mxu0
        %v615 = vadd.f32 0.0, %v614
        %v616 = vpop.f32.mrf.mxu0
        %v617 = vpop.f32.mrf.mxu0
        %v618 = vadd.f32 0.0, %v617
        %v619 = vpop.f32.mrf.mxu0
        %620 = vmatprep.mubr.bf16.mxu0 0
        %621 = vmatmul.mubr.bf16.gmra.mxu0 %v517
        %v622 = vpop.f32.mrf.mxu0
        %v623 = vadd.f32 0.0, %v622
        %v624 = vpop.f32.mrf.mxu0
        %v625 = vpop.f32.mrf.mxu0
        %v626 = vadd.f32 0.0, %v625
        %v627 = vpop.f32.mrf.mxu0
        %628 = vmatprep.mubr.bf16.mxu0 0
        %629 = vmatmul.mubr.bf16.gmra.mxu0 %v518
        %v630 = vpop.f32.mrf.mxu0
        %v631 = vadd.f32 0.0, %v630
        %v632 = vpop.f32.mrf.mxu0
        %v633 = vpop.f32.mrf.mxu0
        %v634 = vadd.f32 0.0, %v633
        %v635 = vpop.f32.mrf.mxu0
        %636 = vmatprep.mubr.bf16.mxu0 0
        %637 = vmatmul.mubr.bf16.gmra.mxu0 %v519
        %v638 = vpop.f32.mrf.mxu0
        %v639 = vadd.f32 0.0, %v638
        %v640 = vpop.f32.mrf.mxu0
        %v641 = vpop.f32.mrf.mxu0
        %v642 = vadd.f32 0.0, %v641
        %v643 = vpop.f32.mrf.mxu0
        %644 = vmatprep.mubr.bf16.mxu0 0
        %645 = vmatmul.mubr.bf16.gmra.mxu0 %v520
        %v646 = vpop.f32.mrf.mxu0
        %v647 = vadd.f32 0.0, %v646
        %v648 = vpop.f32.mrf.mxu0
        %v649 = vpop.f32.mrf.mxu0
        %v650 = vadd.f32 0.0, %v649
        %v651 = vpop.f32.mrf.mxu0
        %652 = vmatprep.mubr.bf16.mxu0 0
        %653 = vmatmul.mubr.bf16.gmra.mxu0 %v521
        %v654 = vpop.f32.mrf.mxu0
        %v655 = vadd.f32 0.0, %v654
        %v656 = vpop.f32.mrf.mxu0
        %v657 = vpop.f32.mrf.mxu0
        %v658 = vadd.f32 0.0, %v657
        %v659 = vpop.f32.mrf.mxu0
        %660 = vmatprep.mubr.bf16.mxu0 0
        %661 = vmatmul.mubr.bf16.gmra.mxu0 %v522
        %v662 = vpop.f32.mrf.mxu0
        %v663 = vadd.f32 0.0, %v662
        %v664 = vpop.f32.mrf.mxu0
        %v665 = vpop.f32.mrf.mxu0
        %v666 = vadd.f32 0.0, %v665
        %v667 = vpop.f32.mrf.mxu0
        %668 = vmatprep.mubr.bf16.mxu0 0
        %669 = vmatmul.mubr.bf16.gmra.mxu0 %v523
        %v670 = vpop.f32.mrf.mxu0
        %v671 = vadd.f32 0.0, %v670
        %v672 = vpop.f32.mrf.mxu0
        %v673 = vpop.f32.mrf.mxu0
        %v674 = vadd.f32 0.0, %v673
        %v675 = vpop.f32.mrf.mxu0
        %676 = vdwg.mxu0
        %v677 = vadd.f32 %v436, %v615
        %v678 = vadd.f32 %v437, %v618
        %v679 = vadd.f32 %v438, %v623
        %v680 = vadd.f32 %v439, %v626
        %v681 = vadd.f32 %v440, %v631
        %v682 = vadd.f32 %v441, %v634
        %v683 = vadd.f32 %v442, %v639
        %v684 = vadd.f32 %v443, %v642
        %v685 = vadd.f32 %v444, %v647
        %v686 = vadd.f32 %v445, %v650
        %v687 = vadd.f32 %v446, %v655
        %v688 = vadd.f32 %v447, %v658
        %v689 = vadd.f32 %v448, %v663
        %v690 = vadd.f32 %v449, %v666
        %v691 = vadd.f32 %v450, %v671
        %v692 = vadd.f32 %v451, %v674
        %693 = vst [vmem:[#allocation2] sm:$0xff] %v677
        %694 = vst [vmem:[#allocation2 + $0x8] sm:$0xff] %v678
        %695 = vst [vmem:[#allocation2 + $0x10] sm:$0xff] %v679
        %696 = vst [vmem:[#allocation2 + $0x18] sm:$0xff] %v680
        %697 = vst [vmem:[#allocation2 + $0x20] sm:$0xff] %v681
        %698 = vst [vmem:[#allocation2 + $0x28] sm:$0xff] %v682
        %699 = vst [vmem:[#allocation2 + $0x30] sm:$0xff] %v683
        %700 = vst [vmem:[#allocation2 + $0x38] sm:$0xff] %v684
        %701 = vst [vmem:[#allocation2 + $0x40] sm:$0xff] %v685
        %702 = vst [vmem:[#allocation2 + $0x48] sm:$0xff] %v686
        %703 = vst [vmem:[#allocation2 + $0x50] sm:$0xff] %v687
        %704 = vst [vmem:[#allocation2 + $0x58] sm:$0xff] %v688
        %705 = vst [vmem:[#allocation2 + $0x60] sm:$0xff] %v689
        %706 = vst [vmem:[#allocation2 + $0x68] sm:$0xff] %v690
        %707 = vst [vmem:[#allocation2 + $0x70] sm:$0xff] %v691
        %708 = vst [vmem:[#allocation2 + $0x78] sm:$0xff] %v692
        %p709 = scmp.eq.s32.totalorder %s22, 4
        // Predicated region
        $region82: #{_lambda_.38} parent=72 // pred_check
          %p710 = pneg %p709
        $region83: #{_lambda_.38} parent=72 // pred_check_branch
          %712 = sbr.rel (%p710) target = $region85
        $region84: #{_lambda_.38} parent=72 // pred_region
          %v713 = vld [vmem:[#allocation2] sm:$0xff]
          %v714 = vld [vmem:[#allocation2 + $0x8] sm:$0xff]
          %v715 = vld [vmem:[#allocation2 + $0x10] sm:$0xff]
          %v716 = vld [vmem:[#allocation2 + $0x18] sm:$0xff]
          %v717 = vld [vmem:[#allocation2 + $0x20] sm:$0xff]
          %v718 = vld [vmem:[#allocation2 + $0x28] sm:$0xff]
          %v719 = vld [vmem:[#allocation2 + $0x30] sm:$0xff]
          %v720 = vld [vmem:[#allocation2 + $0x38] sm:$0xff]
          %v721 = vld [vmem:[#allocation2 + $0x40] sm:$0xff]
          %v722 = vld [vmem:[#allocation2 + $0x48] sm:$0xff]
          %v723 = vld [vmem:[#allocation2 + $0x50] sm:$0xff]
          %v724 = vld [vmem:[#allocation2 + $0x58] sm:$0xff]
          %v725 = vld [vmem:[#allocation2 + $0x60] sm:$0xff]
          %v726 = vld [vmem:[#allocation2 + $0x68] sm:$0xff]
          %v727 = vld [vmem:[#allocation2 + $0x70] sm:$0xff]
          %v728 = vld [vmem:[#allocation2 + $0x78] sm:$0xff]
          %v729 = vld [vmem:[%s396] sm:$0x1]
          %v731 = vlaneseq
          %v732 = vshrl.u32 %v731, 7
          %v733 = vsub.s32 0, %v732
          %v734 = vrot.slane %v729, %v733
          %v736 = vadd.f32 %v713, %v734
          %v737 = vadd.f32 %v714, %v734
          %v738 = vadd.f32 %v715, %v734
          %v739 = vadd.f32 %v716, %v734
          %v740 = vadd.f32 %v717, %v734
          %v741 = vadd.f32 %v718, %v734
          %v742 = vadd.f32 %v719, %v734
          %v743 = vadd.f32 %v720, %v734
          %v744 = vadd.f32 %v721, %v734
          %v745 = vadd.f32 %v722, %v734
          %v746 = vadd.f32 %v723, %v734
          %v747 = vadd.f32 %v724, %v734
          %v748 = vadd.f32 %v725, %v734
          %v749 = vadd.f32 %v726, %v734
          %v750 = vadd.f32 %v727, %v734
          %v751 = vadd.f32 %v728, %v734
          %v752 = vld [vmem:[%s404] sm:$0xff]
          %v753 = vld [vmem:[%s404 + $0x8] sm:$0xff]
          %v754 = vld [vmem:[%s404 + $0x10] sm:$0xff]
          %v755 = vld [vmem:[%s404 + $0x18] sm:$0xff]
          %v756 = vld [vmem:[%s404 + $0x20] sm:$0xff]
          %v757 = vld [vmem:[%s404 + $0x28] sm:$0xff]
          %v758 = vld [vmem:[%s404 + $0x30] sm:$0xff]
          %v759 = vld [vmem:[%s404 + $0x38] sm:$0xff]
          %v760 = vld [vmem:[%s404 + $0x40] sm:$0xff]
          %v761 = vld [vmem:[%s404 + $0x48] sm:$0xff]
          %v762 = vld [vmem:[%s404 + $0x50] sm:$0xff]
          %v763 = vld [vmem:[%s404 + $0x58] sm:$0xff]
          %v764 = vld [vmem:[%s404 + $0x60] sm:$0xff]
          %v765 = vld [vmem:[%s404 + $0x68] sm:$0xff]
          %v766 = vld [vmem:[%s404 + $0x70] sm:$0xff]
          %v767 = vld [vmem:[%s404 + $0x78] sm:$0xff]
          %v768 = vadd.f32 %v736, %v752
          %v769 = vadd.f32 %v737, %v753
          %v770 = vadd.f32 %v738, %v754
          %v771 = vadd.f32 %v739, %v755
          %v772 = vadd.f32 %v740, %v756
          %v773 = vadd.f32 %v741, %v757
          %v774 = vadd.f32 %v742, %v758
          %v775 = vadd.f32 %v743, %v759
          %v776 = vadd.f32 %v744, %v760
          %v777 = vadd.f32 %v745, %v761
          %v778 = vadd.f32 %v746, %v762
          %v779 = vadd.f32 %v747, %v763
          %v780 = vadd.f32 %v748, %v764
          %v781 = vadd.f32 %v749, %v765
          %v782 = vadd.f32 %v750, %v766
          %v783 = vadd.f32 %v751, %v767
          %v784 = vmax.f32 %v768, 0.0
          %v785 = vmax.f32 %v769, 0.0
          %v786 = vmax.f32 %v770, 0.0
          %v787 = vmax.f32 %v771, 0.0
          %v788 = vmax.f32 %v772, 0.0
          %v789 = vmax.f32 %v773, 0.0
          %v790 = vmax.f32 %v774, 0.0
          %v791 = vmax.f32 %v775, 0.0
          %v792 = vmax.f32 %v776, 0.0
          %v793 = vmax.f32 %v777, 0.0
          %v794 = vmax.f32 %v778, 0.0
          %v795 = vmax.f32 %v779, 0.0
          %v796 = vmax.f32 %v780, 0.0
          %v797 = vmax.f32 %v781, 0.0
          %v798 = vmax.f32 %v782, 0.0
          %v799 = vmax.f32 %v783, 0.0
          %800 = vst [vmem:[%s413] sm:$0xff] %v784
          %801 = vst [vmem:[%s413 + $0x8] sm:$0xff] %v785
          %802 = vst [vmem:[%s413 + $0x10] sm:$0xff] %v786
          %803 = vst [vmem:[%s413 + $0x18] sm:$0xff] %v787
          %804 = vst [vmem:[%s413 + $0x20] sm:$0xff] %v788
          %805 = vst [vmem:[%s413 + $0x28] sm:$0xff] %v789
          %806 = vst [vmem:[%s413 + $0x30] sm:$0xff] %v790
          %807 = vst [vmem:[%s413 + $0x38] sm:$0xff] %v791
          %808 = vst [vmem:[%s413 + $0x40] sm:$0xff] %v792
          %809 = vst [vmem:[%s413 + $0x48] sm:$0xff] %v793
          %810 = vst [vmem:[%s413 + $0x50] sm:$0xff] %v794
          %811 = vst [vmem:[%s413 + $0x58] sm:$0xff] %v795
          %812 = vst [vmem:[%s413 + $0x60] sm:$0xff] %v796
          %813 = vst [vmem:[%s413 + $0x68] sm:$0xff] %v797
          %814 = vst [vmem:[%s413 + $0x70] sm:$0xff] %v798
          %815 = vst [vmem:[%s413 + $0x78] sm:$0xff] %v799
        $region85: #{_lambda_.38} parent=72 // pred_fallthru
          _
        %s816 = smul.u32 16, %s20
        %p817 = scmp.lt.s32.totalorder %s816, 15
        %s818 = scalar_select %p817, %s816, 15
        %p819 = scmp.lt.s32.totalorder %s21, 0
        %s820 = scalar_select %p819, %s21, 0
        %s821 = sadd.s32 %s820, %s818
        %s822 = smul.addr %s821, 8
        %s823 = scalar_lea.vmem %s4, %s822
        // Predicated region
        $region86: #{_lambda_.38} parent=72 // pred_check
          %p824 = pneg %p164
        $region87: #{_lambda_.38} parent=72 // pred_check_branch
          %826 = sbr.rel (%p824) target = $region89
        $region88: #{_lambda_.38} parent=72 // pred_region
          %s827 = smul.u32 16, %s20
        $region89: #{_lambda_.38} parent=72 // pred_fallthru
          _
        // Predicated region
        $region90: #{_lambda_.38} parent=72 // pred_check
          %p828 = pneg %p164
        $region91: #{_lambda_.38} parent=72 // pred_check_branch
          %830 = sbr.rel (%p828) target = $region93
        $region92: #{_lambda_.38} parent=72 // pred_region
          %s831 = smul.u32 16, %s20
          %p832 = scmp.lt.s32.totalorder %s831, 15
          %s833 = scalar_select %p832, %s831, 15
          %p834 = scmp.lt.s32.totalorder %s21, 0
          %s835 = scalar_select %p834, %s21, 0
          %s836 = sadd.s32 %s835, %s833
          %s837 = smul.addr %s836, 8
          %s838 = scalar_lea.vmem %s4, %s837
        $region93: #{_lambda_.38} parent=72 // pred_fallthru
          _
      $region73: #{_lambda_.38} parent=5 // pred_fallthru
        _
      %p839 = scmp.le.s32.totalorder 2, %s10
      // Predicated region
      $region94: #{_lambda_.38} parent=5 // pred_check
        %p840 = pneg %p839
      $region95: #{_lambda_.38} parent=5 // pred_check_branch
        %842 = sbr.rel (%p840) target = $region97
      $region96: #{_lambda_.38} parent=5 // pred_region
        %s843 = ssub.s32 %s10, 2
      $region97: #{_lambda_.38} parent=5 // pred_fallthru
        _
    $region6: #{_lambda_.38} parent=1 // loop_footer
      %s14 = sadd.s32 1, %s10
    $region7: #{_lambda_.38} parent=1 // loop_footer_branch
      %9 = sbr.rel target = $region3
    $region8: #{_lambda_.38} parent=1 // loop_exit
      _

// kernel: _lambda_.39
$region0: #{_lambda_.39}
  #allocation0 [shape = 'u32[]', space=smem, size = 0x4, offset = 0x4, fixed_abs, tag = 'smem constant byte address 0x4 - core index']
  #allocation1 [shape = 'u32[144,128]{1,0:T(1,128)}', space=vmem, size = 0x12000, scoped, tag = 'internal scratch']
  #allocation2 [shape = 'f32[128,128]{1,0:T(8,128)}', space=vmem, size = 0x10000, scoped, tag = 'scratch operand']
  %s0 = inlined_call_operand.vmem [shape: bf16[128,640], index: 0, kind: input, shape index: {}]
  %s1 = inlined_call_operand.vmem [shape: bf16[640,128], index: 1, kind: input, shape index: {}]
  %s2 = inlined_call_operand.vmem [shape: f32[1,128], index: 2, kind: input, shape index: {}]
  %s3 = inlined_call_operand.vmem [shape: f32[128,128], index: 3, kind: output, shape index: {}]
  %s4 = sld [smem:[#allocation0]]
  $region94: #{_lambda_.39} parent=0
    _
  %s6 = ssub.s32 1, %s4
  %s7 = scalar_select 0, %s6, %s4
  $region1: #{_lambda_.39} parent=0
    #allocation3 [shape = 'u8[65536]{0}', space=vmem, size = 0x10000, scoped, tag = 'input window, operand 0']
    loop: start=0, step=1, limit=7
    $region2: #{_lambda_.39} parent=1 // loop_pre_header
      _
    $region3: #{_lambda_.39} parent=1 // loop_header
      %s9 = sphi 0, %s13
      %p10 = scmp.ge.s32.totalorder %s9, 7
      %s16 = sphi 0, %s35
      %s17 = sphi 0, %s31
      %s18 = sphi 0, %s27
      %s19 = sphi 0, %s16
      %s20 = sphi 0, %s17
      %s21 = sphi 0, %s18
      %s22 = sphi 0, %s19
      %s23 = sphi 0, %s20
      %s24 = sphi 0, %s21
      %s40 = sphi 0, %s42
      %s43 = sphi 0, %s40
      %s44 = sphi 0, %s43
      %s60 = sphi 0, %s44
      %s68 = sphi 0, %s70
      %s71 = sphi 0, %s68
      %s72 = sphi 0, %s71
      %s88 = sphi 0, %s72
      %s94 = sphi 0, %s96
      %s97 = sphi 0, %s94
      %s98 = sphi 0, %s97
      %s114 = sphi 0, %s98
      %s122 = sphi 0, %s124
      %s125 = sphi 0, %s122
      %s126 = sphi 0, %s125
      %s142 = sphi 0, %s126
    $region4: #{_lambda_.39} parent=1 // loop_header_branch
      %12 = sbr.rel (%p10) target = $region8
    $region5: #{_lambda_.39} parent=1 // loop_body
      %s14 = ssub.s32 %s9, 1
      %s15 = ssub.s32 %s9, 2
      %s25 = sadd.s32 1, %s18
      %p26 = scmp.ge.s32.totalorder %s25, 5
      %s27 = scalar_select %p26, 0, %s25
      %s28 = sadd.s32 1, %s17
      %s29 = scalar_select %p26, %s28, %s17
      %p30 = scmp.ge.s32.totalorder %s29, 1
      %s31 = scalar_select %p30, 0, %s29
      %s32 = sadd.s32 1, %s16
      %s33 = scalar_select %p30, %s32, %s16
      %p34 = scmp.ge.s32.totalorder %s33, 1
      %s35 = scalar_select %p34, 0, %s33
      %s36 = ssub.s32 %s16, %s35
      %s37 = ssub.s32 %s18, %s27
      %s38 = sor.u32 %s36, %s37
      %p39 = scmp.eq.s32.totalorder %s38, 0
      %s41 = sadd.s32 %s40, 1
      %s42 = scalar_select %p39, %s40, %s41
      %p45 = pneg %p39
      %p46 = scmp.eq.s32.totalorder %s9, 4
      %p47 = por %p45, %p46
      %p48 = scmp.ne.s32.totalorder %s40, %s43
      %p49 = scmp.eq.s32.totalorder %s9, 0
      %p50 = por %p48, %p49
      %p51 = scmp.ne.s32.totalorder %s40, %s43
      %p52 = scmp.eq.s32.totalorder %s14, 4
      %p53 = por %p51, %p52
      %p54 = scmp.ne.s32.totalorder %s43, %s44
      %p55 = scmp.eq.s32.totalorder %s14, 0
      %p56 = por %p54, %p55
      %p57 = scmp.ne.s32.totalorder %s43, %s44
      %p58 = scmp.eq.s32.totalorder %s15, 4
      %p59 = por %p57, %p58
      %p61 = scmp.ne.s32.totalorder %s44, %s60
      %p62 = scmp.eq.s32.totalorder %s15, 0
      %p63 = por %p61, %p62
      %s64 = ssub.s32 %s18, %s27
      %s65 = ssub.s32 %s17, %s31
      %s66 = sor.u32 %s64, %s65
      %p67 = scmp.eq.s32.totalorder %s66, 0
      %s69 = sadd.s32 %s68, 1
      %s70 = scalar_select %p67, %s68, %s69
      %p73 = pneg %p67
      %p74 = scmp.eq.s32.totalorder %s9, 4
      %p75 = por %p73, %p74
      %p76 = scmp.ne.s32.totalorder %s68, %s71
      %p77 = scmp.eq.s32.totalorder %s9, 0
      %p78 = por %p76, %p77
      %p79 = scmp.ne.s32.totalorder %s68, %s71
      %p80 = scmp.eq.s32.totalorder %s14, 4
      %p81 = por %p79, %p80
      %p82 = scmp.ne.s32.totalorder %s71, %s72
      %p83 = scmp.eq.s32.totalorder %s14, 0
      %p84 = por %p82, %p83
      %p85 = scmp.ne.s32.totalorder %s71, %s72
      %p86 = scmp.eq.s32.totalorder %s15, 4
      %p87 = por %p85, %p86
      %p89 = scmp.ne.s32.totalorder %s72, %s88
      %p90 = scmp.eq.s32.totalorder %s15, 0
      %p91 = por %p89, %p90
      %s92 = ssub.s32 %s17, %s31
      %p93 = scmp.eq.s32.totalorder %s92, 0
      %s95 = sadd.s32 %s94, 1
      %s96 = scalar_select %p93, %s94, %s95
      %p99 = pneg %p93
      %p100 = scmp.eq.s32.totalorder %s9, 4
      %p101 = por %p99, %p100
      %p102 = scmp.ne.s32.totalorder %s94, %s97
      %p103 = scmp.eq.s32.totalorder %s9, 0
      %p104 = por %p102, %p103
      %p105 = scmp.ne.s32.totalorder %s94, %s97
      %p106 = scmp.eq.s32.totalorder %s14, 4
      %p107 = por %p105, %p106
      %p108 = scmp.ne.s32.totalorder %s97, %s98
      %p109 = scmp.eq.s32.totalorder %s14, 0
      %p110 = por %p108, %p109
      %p111 = scmp.ne.s32.totalorder %s97, %s98
      %p112 = scmp.eq.s32.totalorder %s15, 4
      %p113 = por %p111, %p112
      %p115 = scmp.ne.s32.totalorder %s98, %s114
      %p116 = scmp.eq.s32.totalorder %s15, 0
      %p117 = por %p115, %p116
      %s118 = ssub.s32 %s16, %s35
      %s119 = ssub.s32 %s17, %s31
      %s120 = sor.u32 %s118, %s119
      %p121 = scmp.eq.s32.totalorder %s120, 0
      %s123 = sadd.s32 %s122, 1
      %s124 = scalar_select %p121, %s122, %s123
      %p127 = pneg %p121
      %p128 = scmp.eq.s32.totalorder %s9, 4
      %p129 = por %p127, %p128
      %p130 = scmp.ne.s32.totalorder %s122, %s125
      %p131 = scmp.eq.s32.totalorder %s9, 0
      %p132 = por %p130, %p131
      %p133 = scmp.ne.s32.totalorder %s122, %s125
      %p134 = scmp.eq.s32.totalorder %s14, 4
      %p135 = por %p133, %p134
      %p136 = scmp.ne.s32.totalorder %s125, %s126
      %p137 = scmp.eq.s32.totalorder %s14, 0
      %p138 = por %p136, %p137
      %p139 = scmp.ne.s32.totalorder %s125, %s126
      %p140 = scmp.eq.s32.totalorder %s15, 4
      %p141 = por %p139, %p140
      %p143 = scmp.ne.s32.totalorder %s126, %s142
      %p144 = scmp.eq.s32.totalorder %s15, 0
      %p145 = por %p143, %p144
      %p146 = scmp.le.s32.totalorder 1, %s9
      %p147 = scmp.lt.s32.totalorder %s9, 6
      %p148 = pnand %p146, %p147
      %p149 = pneg %p148
      // Predicated region
      $region9: #{_lambda_.39} parent=5 // pred_check
        _
      $region10: #{_lambda_.39} parent=5 // pred_check_branch
        %151 = sbr.rel (%p148) target = $region12
      $region11: #{_lambda_.39} parent=5 // pred_region
        %s152 = ssub.s32 %s9, 1
        // Predicated region
        $region13: #{_lambda_.39} parent=11 // pred_check
          %p153 = pneg %p110
        $region14: #{_lambda_.39} parent=11 // pred_check_branch
          %155 = sbr.rel (%p153) target = $region16
        $region15: #{_lambda_.39} parent=11 // pred_region
          %p156 = scmp.lt.s32.totalorder %s20, 0
          %s157 = scalar_select %p156, %s20, 0
          %s158 = scalar_lea.vmem %s2, %s157
        $region16: #{_lambda_.39} parent=11 // pred_fallthru
          _
      $region12: #{_lambda_.39} parent=5 // pred_fallthru
        _
      %p159 = scmp.lt.s32.totalorder %s9, 5
      // Predicated region
      $region17: #{_lambda_.39} parent=5 // pred_check
        %p160 = pneg %p159
      $region18: #{_lambda_.39} parent=5 // pred_check_branch
        %162 = sbr.rel (%p160) target = $region20
      $region19: #{_lambda_.39} parent=5 // pred_region
        // Predicated region
        $region21: #{_lambda_.39} parent=19 // pred_check
          %p163 = pneg %p50
        $region22: #{_lambda_.39} parent=19 // pred_check_branch
          %165 = sbr.rel (%p163) target = $region24
        $region23: #{_lambda_.39} parent=19 // pred_region
          %s166 = sand.u32 %s40, 1
          %s167 = sand.u32 %s40, 1
          %s168 = smul.addr %s167, 64
          %s169 = scalar_lea.vmem [#allocation3], %s168
          %s170 = smul.u32 16, %s16
          %s171 = smul.addr %s170, 5
          %s172 = sadd.s32 %s18, %s171
          %s173 = smul.addr %s172, 4
          %s174 = scalar_lea.vmem %s0, %s173
          // Predicated region
          $region25: #{_lambda_.39} parent=23 // pred_check
            _
          $region26: #{_lambda_.39} parent=23 // pred_check_branch
            %176 = sbr.rel (0) target = $region28
          $region27: #{_lambda_.39} parent=23 // pred_region
            // Predicated region
            $region29: #{_lambda_.39} parent=27 // pred_check
              _
            $region30: #{_lambda_.39} parent=27 // pred_check_branch
              %178 = sbr.rel target = $region32
            $region31: #{_lambda_.39} parent=27 // pred_region
              // Predicated region
              $region44: #{_lambda_.39} parent=31 // pred_check
                _
              $region45: #{_lambda_.39} parent=31 // pred_check_branch
                %224 = sbr.rel (0) target = $region47
              $region46: #{_lambda_.39} parent=31 // pred_region
                loop: start=0, step=1, limit=1
                $region48: #{_lambda_.39} parent=46 // loop_pre_header
                  _
                $region49: #{_lambda_.39} parent=46 // loop_header
                  %s226 = sphi 0, %s230
                  %p227 = scmp.ge.s32.totalorder %s226, 1
                  %s231 = sphi %s174, %s174
                  %s232 = sphi %s169, %s169
                $region50: #{_lambda_.39} parent=46 // loop_header_branch
                  %229 = sbr.rel (%p227) target = $region54
                $region51: #{_lambda_.39} parent=46 // loop_body
                  _
                $region52: #{_lambda_.39} parent=46 // loop_footer
                  %s230 = sadd.s32 1, %s226
                $region53: #{_lambda_.39} parent=46 // loop_footer_branch
                  %225 = sbr.rel target = $region49
                $region54: #{_lambda_.39} parent=46 // loop_exit
                  _
                %s234 = ssub.s32 16, 1
                loop: start=0, step=1, limit=1
                $region55: #{_lambda_.39} parent=46 // loop_pre_header
                  _
                $region56: #{_lambda_.39} parent=46 // loop_header
                  %s236 = sphi 0, %s240
                  %p237 = scmp.ge.s32.totalorder %s236, 1
                  %s241 = sphi %s174, %s174
                  %s242 = sphi %s169, %s169
                $region57: #{_lambda_.39} parent=46 // loop_header_branch
                  %239 = sbr.rel (%p237) target = $region61
                $region58: #{_lambda_.39} parent=46 // loop_body
                  %v243 = vld [vmem:[%s241] sm:%s234]
                  %244 = vst [vmem:[%s242] sm:%s234] %v243
                  %v245 = vld [vmem:[%s241 + $0x14] sm:%s234]
                  %246 = vst [vmem:[%s242 + $0x4] sm:%s234] %v245
                  %v247 = vld [vmem:[%s241 + $0x28] sm:%s234]
                  %248 = vst [vmem:[%s242 + $0x8] sm:%s234] %v247
                  %v249 = vld [vmem:[%s241 + $0x3c] sm:%s234]
                  %250 = vst [vmem:[%s242 + $0xc] sm:%s234] %v249
                  %v251 = vld [vmem:[%s241 + $0x50] sm:%s234]
                  %252 = vst [vmem:[%s242 + $0x10] sm:%s234] %v251
                  %v253 = vld [vmem:[%s241 + $0x64] sm:%s234]
                  %254 = vst [vmem:[%s242 + $0x14] sm:%s234] %v253
                  %v255 = vld [vmem:[%s241 + $0x78] sm:%s234]
                  %256 = vst [vmem:[%s242 + $0x18] sm:%s234] %v255
                  %v257 = vld [vmem:[%s241 + $0x8c] sm:%s234]
                  %258 = vst [vmem:[%s242 + $0x1c] sm:%s234] %v257
                  %v259 = vld [vmem:[%s241 + $0xa0] sm:%s234]
                  %260 = vst [vmem:[%s242 + $0x20] sm:%s234] %v259
                  %v261 = vld [vmem:[%s241 + $0xb4] sm:%s234]
                  %262 = vst [vmem:[%s242 + $0x24] sm:%s234] %v261
                  %v263 = vld [vmem:[%s241 + $0xc8] sm:%s234]
                  %264 = vst [vmem:[%s242 + $0x28] sm:%s234] %v263
                  %v265 = vld [vmem:[%s241 + $0xdc] sm:%s234]
                  %266 = vst [vmem:[%s242 + $0x2c] sm:%s234] %v265
                  %v267 = vld [vmem:[%s241 + $0xf0] sm:%s234]
                  %268 = vst [vmem:[%s242 + $0x30] sm:%s234] %v267
                  %v269 = vld [vmem:[%s241 + $0x104] sm:%s234]
                  %270 = vst [vmem:[%s242 + $0x34] sm:%s234] %v269
                  %v271 = vld [vmem:[%s241 + $0x118] sm:%s234]
                  %272 = vst [vmem:[%s242 + $0x38] sm:%s234] %v271
                  %v273 = vld [vmem:[%s241 + $0x12c] sm:%s234]
                  %274 = vst [vmem:[%s242 + $0x3c] sm:%s234] %v273
                $region59: #{_lambda_.39} parent=46 // loop_footer
                  %s240 = sadd.s32 1, %s236
                $region60: #{_lambda_.39} parent=46 // loop_footer_branch
                  %235 = sbr.rel target = $region56
                $region61: #{_lambda_.39} parent=46 // loop_exit
                  _
              $region47: #{_lambda_.39} parent=31 // pred_fallthru
                _
            $region32: #{_lambda_.39} parent=27 // pred_fallthru
              _
            // Predicated region
            $region33: #{_lambda_.39} parent=27 // pred_check
              _
            $region34: #{_lambda_.39} parent=27 // pred_check_branch
              %180 = sbr.rel (0) target = $region36
            $region35: #{_lambda_.39} parent=27 // pred_region
              %s182 = ssub.s32 16, 1
              loop: start=0, step=1, limit=1
              $region37: #{_lambda_.39} parent=35 // loop_pre_header
                _
              $region38: #{_lambda_.39} parent=35 // loop_header
                %s184 = sphi 0, %s188
                %p185 = scmp.ge.s32.totalorder %s184, 1
                %s189 = sphi %s174, %s174
                %s190 = sphi %s169, %s169
              $region39: #{_lambda_.39} parent=35 // loop_header_branch
                %187 = sbr.rel (%p185) target = $region43
              $region40: #{_lambda_.39} parent=35 // loop_body
                %v191 = vld [vmem:[%s189] sm:%s182]
                %192 = vst [vmem:[%s190] sm:%s182] %v191
                %v193 = vld [vmem:[%s189 + $0x14] sm:%s182]
                %194 = vst [vmem:[%s190 + $0x4] sm:%s182] %v193
                %v195 = vld [vmem:[%s189 + $0x28] sm:%s182]
                %196 = vst [vmem:[%s190 + $0x8] sm:%s182] %v195
                %v197 = vld [vmem:[%s189 + $0x3c] sm:%s182]
                %198 = vst [vmem:[%s190 + $0xc] sm:%s182] %v197
                %v199 = vld [vmem:[%s189 + $0x50] sm:%s182]
                %200 = vst [vmem:[%s190 + $0x10] sm:%s182] %v199
                %v201 = vld [vmem:[%s189 + $0x64] sm:%s182]
                %202 = vst [vmem:[%s190 + $0x14] sm:%s182] %v201
                %v203 = vld [vmem:[%s189 + $0x78] sm:%s182]
                %204 = vst [vmem:[%s190 + $0x18] sm:%s182] %v203
                %v205 = vld [vmem:[%s189 + $0x8c] sm:%s182]
                %206 = vst [vmem:[%s190 + $0x1c] sm:%s182] %v205
                %v207 = vld [vmem:[%s189 + $0xa0] sm:%s182]
                %208 = vst [vmem:[%s190 + $0x20] sm:%s182] %v207
                %v209 = vld [vmem:[%s189 + $0xb4] sm:%s182]
                %210 = vst [vmem:[%s190 + $0x24] sm:%s182] %v209
                %v211 = vld [vmem:[%s189 + $0xc8] sm:%s182]
                %212 = vst [vmem:[%s190 + $0x28] sm:%s182] %v211
                %v213 = vld [vmem:[%s189 + $0xdc] sm:%s182]
                %214 = vst [vmem:[%s190 + $0x2c] sm:%s182] %v213
                %v215 = vld [vmem:[%s189 + $0xf0] sm:%s182]
                %216 = vst [vmem:[%s190 + $0x30] sm:%s182] %v215
                %v217 = vld [vmem:[%s189 + $0x104] sm:%s182]
                %218 = vst [vmem:[%s190 + $0x34] sm:%s182] %v217
                %v219 = vld [vmem:[%s189 + $0x118] sm:%s182]
                %220 = vst [vmem:[%s190 + $0x38] sm:%s182] %v219
                %v221 = vld [vmem:[%s189 + $0x12c] sm:%s182]
                %222 = vst [vmem:[%s190 + $0x3c] sm:%s182] %v221
              $region41: #{_lambda_.39} parent=35 // loop_footer
                %s188 = sadd.s32 1, %s184
              $region42: #{_lambda_.39} parent=35 // loop_footer_branch
                %183 = sbr.rel target = $region38
              $region43: #{_lambda_.39} parent=35 // loop_exit
                _
            $region36: #{_lambda_.39} parent=27 // pred_fallthru
              _
          $region28: #{_lambda_.39} parent=23 // pred_fallthru
            _
          %275 = vnop
        $region24: #{_lambda_.39} parent=19 // pred_fallthru
          _
        // Predicated region
        $region62: #{_lambda_.39} parent=19 // pred_check
          %p276 = pneg %p78
        $region63: #{_lambda_.39} parent=19 // pred_check_branch
          %278 = sbr.rel (%p276) target = $region65
        $region64: #{_lambda_.39} parent=19 // pred_region
          %s279 = smul.u32 16, %s18
          %p280 = scmp.lt.s32.totalorder %s279, 79
          %s281 = scalar_select %p280, %s279, 79
          %p282 = scmp.lt.s32.totalorder %s17, 0
          %s283 = scalar_select %p282, %s17, 0
          %s284 = sadd.s32 %s283, %s281
          %s285 = smul.addr %s284, 4
          %s286 = scalar_lea.vmem %s1, %s285
          %s287 = smul.u32 16, %s18
        $region65: #{_lambda_.39} parent=19 // pred_fallthru
          _
      $region20: #{_lambda_.39} parent=5 // pred_fallthru
        _
      %p288 = scmp.le.s32.totalorder 1, %s9
      %p289 = scmp.lt.s32.totalorder %s9, 6
      %p290 = pnand %p288, %p289
      %p291 = pneg %p290
      // Predicated region
      $region66: #{_lambda_.39} parent=5 // pred_check
        _
      $region67: #{_lambda_.39} parent=5 // pred_check_branch
        %293 = sbr.rel (%p290) target = $region69
      $region68: #{_lambda_.39} parent=5 // pred_region
        %s294 = ssub.s32 %s9, 1
        %s295 = sand.u32 %s43, 1
        %s296 = sand.u32 %s43, 1
        %s297 = smul.addr %s296, 64
        %s298 = scalar_lea.vmem [#allocation3], %s297
        // Predicated region
        $region70: #{_lambda_.39} parent=68 // pred_check
          %p299 = pneg %p56
        $region71: #{_lambda_.39} parent=68 // pred_check_branch
          %301 = sbr.rel (%p299) target = $region73
        $region72: #{_lambda_.39} parent=68 // pred_region
          _
        $region73: #{_lambda_.39} parent=68 // pred_fallthru
          _
        %s302 = sand.u32 %s43, 1
        %s303 = sand.u32 %s43, 1
        %s304 = smul.addr %s303, 64
        %s305 = scalar_lea.vmem [#allocation3], %s304
        %p306 = pneg %p56
        %p307 = pneg %p53
        %s308 = smul.u32 16, %s21
        %p309 = scmp.lt.s32.totalorder %s308, 79
        %s310 = scalar_select %p309, %s308, 79
        %p311 = scmp.lt.s32.totalorder %s20, 0
        %s312 = scalar_select %p311, %s20, 0
        %s313 = sadd.s32 %s312, %s310
        %s314 = smul.addr %s313, 4
        %s315 = scalar_lea.vmem %s1, %s314
        %p316 = pneg %p84
        %p317 = pneg %p81
        %p318 = scmp.lt.s32.totalorder %s20, 0
        %s319 = scalar_select %p318, %s20, 0
        %s320 = scalar_lea.vmem %s2, %s319
        %p321 = pneg %p110
        %p322 = pneg %p107
        %p323 = pneg %p138
        %p324 = pneg %p135
        %s325 = smul.u32 16, %s19
        %p326 = scmp.lt.s32.totalorder %s325, 15
        %s327 = scalar_select %p326, %s325, 15
        %p328 = scmp.lt.s32.totalorder %s20, 0
        %s329 = scalar_select %p328, %s20, 0
        %s330 = sadd.s32 %s329, %s327
        %s331 = smul.addr %s330, 8
        %s332 = scalar_lea.vmem %s3, %s331
        %s333 = smul.u32 16, %s19
        %s334 = smul.u32 16, %s21
        %p335 = scmp.lt.s32.totalorder %s334, 79
        %s336 = scalar_select %p335, %s334, 79
        %p337 = scmp.lt.s32.totalorder %s20, 0
        %s338 = scalar_select %p337, %s20, 0
        %s339 = sadd.s32 %s338, %s336
        %s340 = smul.addr %s339, 4
        %s341 = scalar_lea.vmem %s1, %s340
        %s342 = smul.u32 16, %s21
        %p343 = scmp.lt.s32.totalorder %s20, 0
        %s344 = scalar_select %p343, %s20, 0
        %s345 = scalar_lea.vmem %s2, %s344
        %s346 = smul.u32 16, %s19
        %p347 = scmp.lt.s32.totalorder %s346, 15
        %s348 = scalar_select %p347, %s346, 15
        %p349 = scmp.lt.s32.totalorder %s20, 0
        %s350 = scalar_select %p349, %s20, 0
        %s351 = sadd.s32 %s350, %s348
        %s352 = smul.addr %s351, 8
        %s353 = scalar_lea.vmem %s3, %s352
        %s354 = smul.u32 16, %s19
        %p356 = scmp.eq.s32.totalorder %s21, 0
        // Predicated region
        $region74: #{_lambda_.39} parent=68 // pred_check
          %p357 = pneg %p356
        $region75: #{_lambda_.39} parent=68 // pred_check_branch
          %359 = sbr.rel (%p357) target = $region77
        $region76: #{_lambda_.39} parent=68 // pred_region
          %360 = vst [vmem:[#allocation2] sm:$0xff] 0.0
          %361 = vst [vmem:[#allocation2 + $0x8] sm:$0xff] 0.0
          %362 = vst [vmem:[#allocation2 + $0x10] sm:$0xff] 0.0
          %363 = vst [vmem:[#allocation2 + $0x18] sm:$0xff] 0.0
          %364 = vst [vmem:[#allocation2 + $0x20] sm:$0xff] 0.0
          %365 = vst [vmem:[#allocation2 + $0x28] sm:$0xff] 0.0
          %366 = vst [vmem:[#allocation2 + $0x30] sm:$0xff] 0.0
          %367 = vst [vmem:[#allocation2 + $0x38] sm:$0xff] 0.0
          %368 = vst [vmem:[#allocation2 + $0x40] sm:$0xff] 0.0
          %369 = vst [vmem:[#allocation2 + $0x48] sm:$0xff] 0.0
          %370 = vst [vmem:[#allocation2 + $0x50] sm:$0xff] 0.0
          %371 = vst [vmem:[#allocation2 + $0x58] sm:$0xff] 0.0
          %372 = vst [vmem:[#allocation2 + $0x60] sm:$0xff] 0.0
          %373 = vst [vmem:[#allocation2 + $0x68] sm:$0xff] 0.0
          %374 = vst [vmem:[#allocation2 + $0x70] sm:$0xff] 0.0
          %375 = vst [vmem:[#allocation2 + $0x78] sm:$0xff] 0.0
        $region77: #{_lambda_.39} parent=68 // pred_fallthru
          _
        %v376 = vld [vmem:[#allocation2] sm:$0xff]
        %v377 = vld [vmem:[#allocation2 + $0x8] sm:$0xff]
        %v378 = vld [vmem:[#allocation2 + $0x10] sm:$0xff]
        %v379 = vld [vmem:[#allocation2 + $0x18] sm:$0xff]
        %v380 = vld [vmem:[#allocation2 + $0x20] sm:$0xff]
        %v381 = vld [vmem:[#allocation2 + $0x28] sm:$0xff]
        %v382 = vld [vmem:[#allocation2 + $0x30] sm:$0xff]
        %v383 = vld [vmem:[#allocation2 + $0x38] sm:$0xff]
        %v384 = vld [vmem:[#allocation2 + $0x40] sm:$0xff]
        %v385 = vld [vmem:[#allocation2 + $0x48] sm:$0xff]
        %v386 = vld [vmem:[#allocation2 + $0x50] sm:$0xff]
        %v387 = vld [vmem:[#allocation2 + $0x58] sm:$0xff]
        %v388 = vld [vmem:[#allocation2 + $0x60] sm:$0xff]
        %v389 = vld [vmem:[#allocation2 + $0x68] sm:$0xff]
        %v390 = vld [vmem:[#allocation2 + $0x70] sm:$0xff]
        %v391 = vld [vmem:[#allocation2 + $0x78] sm:$0xff]
        %v392 = vld [vmem:[%s298] sm:$0xf]
        %v393 = vld [vmem:[%s298 + $0x4] sm:$0xf]
        %v394 = vld [vmem:[%s298 + $0x8] sm:$0xf]
        %v395 = vld [vmem:[%s298 + $0xc] sm:$0xf]
        %v396 = vld [vmem:[%s298 + $0x10] sm:$0xf]
        %v397 = vld [vmem:[%s298 + $0x14] sm:$0xf]
        %v398 = vld [vmem:[%s298 + $0x18] sm:$0xf]
        %v399 = vld [vmem:[%s298 + $0x1c] sm:$0xf]
        %v400 = vld [vmem:[%s298 + $0x20] sm:$0xf]
        %v401 = vld [vmem:[%s298 + $0x24] sm:$0xf]
        %v402 = vld [vmem:[%s298 + $0x28] sm:$0xf]
        %v403 = vld [vmem:[%s298 + $0x2c] sm:$0xf]
        %v404 = vld [vmem:[%s298 + $0x30] sm:$0xf]
        %v405 = vld [vmem:[%s298 + $0x34] sm:$0xf]
        %v406 = vld [vmem:[%s298 + $0x38] sm:$0xf]
        %v407 = vld [vmem:[%s298 + $0x3c] sm:$0xf]
        %v408 = vld [vmem:[%s341] sm:$0xf]
        %v409 = vld [vmem:[%s341 + $0x4] sm:$0xf]
        %v410 = vld [vmem:[%s341 + $0x8] sm:$0xf]
        %v411 = vld [vmem:[%s341 + $0xc] sm:$0xf]
        %v412 = vld [vmem:[%s341 + $0x10] sm:$0xf]
        %v413 = vld [vmem:[%s341 + $0x14] sm:$0xf]
        %v414 = vld [vmem:[%s341 + $0x18] sm:$0xf]
        %v415 = vld [vmem:[%s341 + $0x1c] sm:$0xf]
        %v416 = vld [vmem:[%s341 + $0x20] sm:$0xf]
        %v417 = vld [vmem:[%s341 + $0x24] sm:$0xf]
        %v418 = vld [vmem:[%s341 + $0x28] sm:$0xf]
        %v419 = vld [vmem:[%s341 + $0x2c] sm:$0xf]
        %v420 = vld [vmem:[%s341 + $0x30] sm:$0xf]
        %v421 = vld [vmem:[%s341 + $0x34] sm:$0xf]
        %v422 = vld [vmem:[%s341 + $0x38] sm:$0xf]
        %v423 = vld [vmem:[%s341 + $0x3c] sm:$0xf]
        %v440 = vunpack.c.l.b16 %v392
        %v441 = vunpack.c.l.b16 %v393
        %v442 = vunpack.c.l.b16 %v394
        %v443 = vunpack.c.l.b16 %v395
        %v444 = vunpack.c.l.b16 %v396
        %v445 = vunpack.c.l.b16 %v397
        %v446 = vunpack.c.l.b16 %v398
        %v447 = vunpack.c.l.b16 %v399
        %v448 = vunpack.c.l.b16 %v400
        %v449 = vunpack.c.l.b16 %v401
        %v450 = vunpack.c.l.b16 %v402
        %v451 = vunpack.c.l.b16 %v403
        %v452 = vunpack.c.l.b16 %v404
        %v453 = vunpack.c.l.b16 %v405
        %v454 = vunpack.c.l.b16 %v406
        %v455 = vunpack.c.l.b16 %v407
        %v456 = vpack.c.b16 %v441, %v440
        %v457 = vpack.c.b16 %v443, %v442
        %v458 = vpack.c.b16 %v445, %v444
        %v459 = vpack.c.b16 %v447, %v446
        %v460 = vpack.c.b16 %v449, %v448
        %v461 = vpack.c.b16 %v451, %v450
        %v462 = vpack.c.b16 %v453, %v452
        %v463 = vpack.c.b16 %v455, %v454
        %v488 = vunpack.c.l.b16 %v408
        %v489 = vunpack.c.l.b16 %v409
        %v490 = vunpack.c.l.b16 %v410
        %v491 = vunpack.c.l.b16 %v411
        %v492 = vunpack.c.l.b16 %v412
        %v493 = vunpack.c.l.b16 %v413
        %v494 = vunpack.c.l.b16 %v414
        %v495 = vunpack.c.l.b16 %v415
        %v496 = vunpack.c.l.b16 %v416
        %v497 = vunpack.c.l.b16 %v417
        %v498 = vunpack.c.l.b16 %v418
        %v499 = vunpack.c.l.b16 %v419
        %v500 = vunpack.c.l.b16 %v420
        %v501 = vunpack.c.l.b16 %v421
        %v502 = vunpack.c.l.b16 %v422
        %v503 = vunpack.c.l.b16 %v423
        %v504 = vpack.c.b16 %v489, %v488
        %v505 = vpack.c.b16 %v491, %v490
        %v506 = vpack.c.b16 %v493, %v492
        %v507 = vpack.c.b16 %v495, %v494
        %v508 = vpack.c.b16 %v497, %v496
        %v509 = vpack.c.b16 %v499, %v498
        %v510 = vpack.c.b16 %v501, %v500
        %v511 = vpack.c.b16 %v503, %v502
        %520 = vmatprep.subr.bf16.mxu0 0
        %521 = vmatpush1.bf16.msra.mxu0 %v511
        %522 = vmatprep.subr.bf16.mxu0 0
        %523 = vmatpush1.bf16.msra.mxu0 %v510
        %524 = vmatprep.subr.bf16.mxu0 0
        %525 = vmatpush1.bf16.msra.mxu0 %v509
        %526 = vmatprep.subr.bf16.mxu0 0
        %527 = vmatpush1.bf16.msra.mxu0 %v508
        %528 = vmatprep.subr.bf16.mxu0 0
        %529 = vmatpush1.bf16.msra.mxu0 %v507
        %530 = vmatprep.subr.bf16.mxu0 0
        %531 = vmatpush1.bf16.msra.mxu0 %v506
        %532 = vmatprep.subr.bf16.mxu0 0
        %533 = vmatpush1.bf16.msra.mxu0 %v505
        %534 = vmatprep.subr.bf16.mxu0 0
        %535 = vmatpush1.bf16.msra.mxu0 %v504
        %536 = vmatprep.subr.bf16.mxu0 0
        %537 = vmatpush2.bf16.msra.mxu0 0
        %538 = vmatprep.subr.bf16.mxu0 0
        %539 = vmatpush2.bf16.msra.mxu0 0
        %540 = vmatprep.subr.bf16.mxu0 0
        %541 = vmatpush2.bf16.msra.mxu0 0
        %542 = vmatprep.subr.bf16.mxu0 0
        %543 = vmatpush2.bf16.msra.mxu0 0
        %544 = vmatprep.subr.bf16.mxu0 0
        %545 = vmatpush2.bf16.msra.mxu0 0
        %546 = vmatprep.subr.bf16.mxu0 0
        %547 = vmatpush2.bf16.msra.mxu0 0
        %548 = vmatprep.subr.bf16.mxu0 0
        %549 = vmatpush2.bf16.msra.mxu0 0
        %550 = vmatprep.subr.bf16.mxu0 0
        %551 = vmatpush2.bf16.msra.mxu0 0
        %552 = vmatprep.mubr.bf16.mxu0 0
        %553 = vmatmul.mubr.bf16.gmra.mxu0 %v456
        %v554 = vpop.f32.mrf.mxu0
        %v555 = vadd.f32 0.0, %v554
        %v556 = vpop.f32.mrf.mxu0
        %v557 = vpop.f32.mrf.mxu0
        %v558 = vadd.f32 0.0, %v557
        %v559 = vpop.f32.mrf.mxu0
        %560 = vmatprep.mubr.bf16.mxu0 0
        %561 = vmatmul.mubr.bf16.gmra.mxu0 %v457
        %v562 = vpop.f32.mrf.mxu0
        %v563 = vadd.f32 0.0, %v562
        %v564 = vpop.f32.mrf.mxu0
        %v565 = vpop.f32.mrf.mxu0
        %v566 = vadd.f32 0.0, %v565
        %v567 = vpop.f32.mrf.mxu0
        %568 = vmatprep.mubr.bf16.mxu0 0
        %569 = vmatmul.mubr.bf16.gmra.mxu0 %v458
        %v570 = vpop.f32.mrf.mxu0
        %v571 = vadd.f32 0.0, %v570
        %v572 = vpop.f32.mrf.mxu0
        %v573 = vpop.f32.mrf.mxu0
        %v574 = vadd.f32 0.0, %v573
        %v575 = vpop.f32.mrf.mxu0
        %576 = vmatprep.mubr.bf16.mxu0 0
        %577 = vmatmul.mubr.bf16.gmra.mxu0 %v459
        %v578 = vpop.f32.mrf.mxu0
        %v579 = vadd.f32 0.0, %v578
        %v580 = vpop.f32.mrf.mxu0
        %v581 = vpop.f32.mrf.mxu0
        %v582 = vadd.f32 0.0, %v581
        %v583 = vpop.f32.mrf.mxu0
        %584 = vmatprep.mubr.bf16.mxu0 0
        %585 = vmatmul.mubr.bf16.gmra.mxu0 %v460
        %v586 = vpop.f32.mrf.mxu0
        %v587 = vadd.f32 0.0, %v586
        %v588 = vpop.f32.mrf.mxu0
        %v589 = vpop.f32.mrf.mxu0
        %v590 = vadd.f32 0.0, %v589
        %v591 = vpop.f32.mrf.mxu0
        %592 = vmatprep.mubr.bf16.mxu0 0
        %593 = vmatmul.mubr.bf16.gmra.mxu0 %v461
        %v594 = vpop.f32.mrf.mxu0
        %v595 = vadd.f32 0.0, %v594
        %v596 = vpop.f32.mrf.mxu0
        %v597 = vpop.f32.mrf.mxu0
        %v598 = vadd.f32 0.0, %v597
        %v599 = vpop.f32.mrf.mxu0
        %600 = vmatprep.mubr.bf16.mxu0 0
        %601 = vmatmul.mubr.bf16.gmra.mxu0 %v462
        %v602 = vpop.f32.mrf.mxu0
        %v603 = vadd.f32 0.0, %v602
        %v604 = vpop.f32.mrf.mxu0
        %v605 = vpop.f32.mrf.mxu0
        %v606 = vadd.f32 0.0, %v605
        %v607 = vpop.f32.mrf.mxu0
        %608 = vmatprep.mubr.bf16.mxu0 0
        %609 = vmatmul.mubr.bf16.gmra.mxu0 %v463
        %v610 = vpop.f32.mrf.mxu0
        %v611 = vadd.f32 0.0, %v610
        %v612 = vpop.f32.mrf.mxu0
        %v613 = vpop.f32.mrf.mxu0
        %v614 = vadd.f32 0.0, %v613
        %v615 = vpop.f32.mrf.mxu0
        %616 = vdwg.mxu0
        %v617 = vadd.f32 %v376, %v555
        %v618 = vadd.f32 %v377, %v558
        %v619 = vadd.f32 %v378, %v563
        %v620 = vadd.f32 %v379, %v566
        %v621 = vadd.f32 %v380, %v571
        %v622 = vadd.f32 %v381, %v574
        %v623 = vadd.f32 %v382, %v579
        %v624 = vadd.f32 %v383, %v582
        %v625 = vadd.f32 %v384, %v587
        %v626 = vadd.f32 %v385, %v590
        %v627 = vadd.f32 %v386, %v595
        %v628 = vadd.f32 %v387, %v598
        %v629 = vadd.f32 %v388, %v603
        %v630 = vadd.f32 %v389, %v606
        %v631 = vadd.f32 %v390, %v611
        %v632 = vadd.f32 %v391, %v614
        %633 = vst [vmem:[#allocation2] sm:$0xff] %v617
        %634 = vst [vmem:[#allocation2 + $0x8] sm:$0xff] %v618
        %635 = vst [vmem:[#allocation2 + $0x10] sm:$0xff] %v619
        %636 = vst [vmem:[#allocation2 + $0x18] sm:$0xff] %v620
        %637 = vst [vmem:[#allocation2 + $0x20] sm:$0xff] %v621
        %638 = vst [vmem:[#allocation2 + $0x28] sm:$0xff] %v622
        %639 = vst [vmem:[#allocation2 + $0x30] sm:$0xff] %v623
        %640 = vst [vmem:[#allocation2 + $0x38] sm:$0xff] %v624
        %641 = vst [vmem:[#allocation2 + $0x40] sm:$0xff] %v625
        %642 = vst [vmem:[#allocation2 + $0x48] sm:$0xff] %v626
        %643 = vst [vmem:[#allocation2 + $0x50] sm:$0xff] %v627
        %644 = vst [vmem:[#allocation2 + $0x58] sm:$0xff] %v628
        %645 = vst [vmem:[#allocation2 + $0x60] sm:$0xff] %v629
        %646 = vst [vmem:[#allocation2 + $0x68] sm:$0xff] %v630
        %647 = vst [vmem:[#allocation2 + $0x70] sm:$0xff] %v631
        %648 = vst [vmem:[#allocation2 + $0x78] sm:$0xff] %v632
        %p649 = scmp.eq.s32.totalorder %s21, 4
        // Predicated region
        $region78: #{_lambda_.39} parent=68 // pred_check
          %p650 = pneg %p649
        $region79: #{_lambda_.39} parent=68 // pred_check_branch
          %652 = sbr.rel (%p650) target = $region81
        $region80: #{_lambda_.39} parent=68 // pred_region
          %v653 = vld [vmem:[#allocation2] sm:$0xff]
          %v654 = vld [vmem:[#allocation2 + $0x8] sm:$0xff]
          %v655 = vld [vmem:[#allocation2 + $0x10] sm:$0xff]
          %v656 = vld [vmem:[#allocation2 + $0x18] sm:$0xff]
          %v657 = vld [vmem:[#allocation2 + $0x20] sm:$0xff]
          %v658 = vld [vmem:[#allocation2 + $0x28] sm:$0xff]
          %v659 = vld [vmem:[#allocation2 + $0x30] sm:$0xff]
          %v660 = vld [vmem:[#allocation2 + $0x38] sm:$0xff]
          %v661 = vld [vmem:[#allocation2 + $0x40] sm:$0xff]
          %v662 = vld [vmem:[#allocation2 + $0x48] sm:$0xff]
          %v663 = vld [vmem:[#allocation2 + $0x50] sm:$0xff]
          %v664 = vld [vmem:[#allocation2 + $0x58] sm:$0xff]
          %v665 = vld [vmem:[#allocation2 + $0x60] sm:$0xff]
          %v666 = vld [vmem:[#allocation2 + $0x68] sm:$0xff]
          %v667 = vld [vmem:[#allocation2 + $0x70] sm:$0xff]
          %v668 = vld [vmem:[#allocation2 + $0x78] sm:$0xff]
          %v669 = vld [vmem:[%s345] sm:$0x1]
          %v671 = vlaneseq
          %v672 = vshrl.u32 %v671, 7
          %v673 = vsub.s32 0, %v672
          %v674 = vrot.slane %v669, %v673
          %v676 = vadd.f32 %v653, %v674
          %v677 = vadd.f32 %v654, %v674
          %v678 = vadd.f32 %v655, %v674
          %v679 = vadd.f32 %v656, %v674
          %v680 = vadd.f32 %v657, %v674
          %v681 = vadd.f32 %v658, %v674
          %v682 = vadd.f32 %v659, %v674
          %v683 = vadd.f32 %v660, %v674
          %v684 = vadd.f32 %v661, %v674
          %v685 = vadd.f32 %v662, %v674
          %v686 = vadd.f32 %v663, %v674
          %v687 = vadd.f32 %v664, %v674
          %v688 = vadd.f32 %v665, %v674
          %v689 = vadd.f32 %v666, %v674
          %v690 = vadd.f32 %v667, %v674
          %v691 = vadd.f32 %v668, %v674
          %v692 = vmax.f32 %v676, 0.0
          %v693 = vmax.f32 %v677, 0.0
          %v694 = vmax.f32 %v678, 0.0
          %v695 = vmax.f32 %v679, 0.0
          %v696 = vmax.f32 %v680, 0.0
          %v697 = vmax.f32 %v681, 0.0
          %v698 = vmax.f32 %v682, 0.0
          %v699 = vmax.f32 %v683, 0.0
          %v700 = vmax.f32 %v684, 0.0
          %v701 = vmax.f32 %v685, 0.0
          %v702 = vmax.f32 %v686, 0.0
          %v703 = vmax.f32 %v687, 0.0
          %v704 = vmax.f32 %v688, 0.0
          %v705 = vmax.f32 %v689, 0.0
          %v706 = vmax.f32 %v690, 0.0
          %v707 = vmax.f32 %v691, 0.0
          %708 = vst [vmem:[%s353] sm:$0xff] %v692
          %709 = vst [vmem:[%s353 + $0x8] sm:$0xff] %v693
          %710 = vst [vmem:[%s353 + $0x10] sm:$0xff] %v694
          %711 = vst [vmem:[%s353 + $0x18] sm:$0xff] %v695
          %712 = vst [vmem:[%s353 + $0x20] sm:$0xff] %v696
          %713 = vst [vmem:[%s353 + $0x28] sm:$0xff] %v697
          %714 = vst [vmem:[%s353 + $0x30] sm:$0xff] %v698
          %715 = vst [vmem:[%s353 + $0x38] sm:$0xff] %v699
          %716 = vst [vmem:[%s353 + $0x40] sm:$0xff] %v700
          %717 = vst [vmem:[%s353 + $0x48] sm:$0xff] %v701
          %718 = vst [vmem:[%s353 + $0x50] sm:$0xff] %v702
          %719 = vst [vmem:[%s353 + $0x58] sm:$0xff] %v703
          %720 = vst [vmem:[%s353 + $0x60] sm:$0xff] %v704
          %721 = vst [vmem:[%s353 + $0x68] sm:$0xff] %v705
          %722 = vst [vmem:[%s353 + $0x70] sm:$0xff] %v706
          %723 = vst [vmem:[%s353 + $0x78] sm:$0xff] %v707
        $region81: #{_lambda_.39} parent=68 // pred_fallthru
          _
        %s724 = smul.u32 16, %s19
        %p725 = scmp.lt.s32.totalorder %s724, 15
        %s726 = scalar_select %p725, %s724, 15
        %p727 = scmp.lt.s32.totalorder %s20, 0
        %s728 = scalar_select %p727, %s20, 0
        %s729 = sadd.s32 %s728, %s726
        %s730 = smul.addr %s729, 8
        %s731 = scalar_lea.vmem %s3, %s730
        // Predicated region
        $region82: #{_lambda_.39} parent=68 // pred_check
          %p732 = pneg %p135
        $region83: #{_lambda_.39} parent=68 // pred_check_branch
          %734 = sbr.rel (%p732) target = $region85
        $region84: #{_lambda_.39} parent=68 // pred_region
          %s735 = smul.u32 16, %s19
        $region85: #{_lambda_.39} parent=68 // pred_fallthru
          _
        // Predicated region
        $region86: #{_lambda_.39} parent=68 // pred_check
          %p736 = pneg %p135
        $region87: #{_lambda_.39} parent=68 // pred_check_branch
          %738 = sbr.rel (%p736) target = $region89
        $region88: #{_lambda_.39} parent=68 // pred_region
          %s739 = smul.u32 16, %s19
          %p740 = scmp.lt.s32.totalorder %s739, 15
          %s741 = scalar_select %p740, %s739, 15
          %p742 = scmp.lt.s32.totalorder %s20, 0
          %s743 = scalar_select %p742, %s20, 0
          %s744 = sadd.s32 %s743, %s741
          %s745 = smul.addr %s744, 8
          %s746 = scalar_lea.vmem %s3, %s745
        $region89: #{_lambda_.39} parent=68 // pred_fallthru
          _
      $region69: #{_lambda_.39} parent=5 // pred_fallthru
        _
      %p747 = scmp.le.s32.totalorder 2, %s9
      // Predicated region
      $region90: #{_lambda_.39} parent=5 // pred_check
        %p748 = pneg %p747
      $region91: #{_lambda_.39} parent=5 // pred_check_branch
        %750 = sbr.rel (%p748) target = $region93
      $region92: #{_lambda_.39} parent=5 // pred_region
        %s751 = ssub.s32 %s9, 2
      $region93: #{_lambda_.39} parent=5 // pred_fallthru
        _
    $region6: #{_lambda_.39} parent=1 // loop_footer
      %s13 = sadd.s32 1, %s9
    $region7: #{_lambda_.39} parent=1 // loop_footer_branch
      %8 = sbr.rel target = $region3
    $region8: #{_lambda_.39} parent=1 // loop_exit
      _

// kernel: _lambda_.41
$region0: #{_lambda_.41}
  #allocation0 [shape = 'u32[]', space=smem, size = 0x4, offset = 0x4, fixed_abs, tag = 'smem constant byte address 0x4 - core index']
  #allocation1 [shape = 'u32[144,128]{1,0:T(1,128)}', space=vmem, size = 0x12000, scoped, tag = 'internal scratch']
  %s0 = inlined_call_operand.vmem [shape: f32[2,4,64], index: 0, kind: input, shape index: {}]
  %s1 = inlined_call_operand.vmem [shape: f32[64,128], index: 1, kind: input, shape index: {}]
  %s2 = inlined_call_operand.vmem [shape: f32[1,128], index: 2, kind: input, shape index: {}]
  %s3 = inlined_call_operand.vmem [shape: f32[128,128], index: 3, kind: input, shape index: {}]
  %s4 = inlined_call_operand.vmem [shape: f32[1,128], index: 4, kind: input, shape index: {}]
  %s5 = inlined_call_operand.hbm [shape: f32[2,128], index: 5, kind: output, shape index: {}]
  %s6 = sld [smem:[#allocation0]]
  $region30: #{_lambda_.41} parent=0
    _
  %s8 = ssub.s32 1, %s6
  %s9 = scalar_select 0, %s8, %s6
  $region1: #{_lambda_.41} parent=0
    #allocation2 [shape = 'u8[1024]{0}', space=vmem, size = 0x400, scoped, tag = 'output window, operand 0, single buffered']
    #allocation3 [shape = 's32[1]{0}', space=sflag, size = 0x4, scoped, tag = 'scoped memory for _lambda_.41']
    %10 = vsyncpa [#allocation3], 0
    // Predicated region
    $region2: #{_lambda_.41} parent=1 // pred_check
      _
    $region3: #{_lambda_.41} parent=1 // pred_check_branch
      %12 = sbr.rel (0) target = $region5
    $region4: #{_lambda_.41} parent=1 // pred_region
      _
    $region5: #{_lambda_.41} parent=1 // pred_fallthru
      _
    // Predicated region
    $region6: #{_lambda_.41} parent=1 // pred_check
      _
    $region7: #{_lambda_.41} parent=1 // pred_check_branch
      %14 = sbr.rel (0) target = $region9
    $region8: #{_lambda_.41} parent=1 // pred_region
      _
    $region9: #{_lambda_.41} parent=1 // pred_fallthru
      _
    // Predicated region
    $region10: #{_lambda_.41} parent=1 // pred_check
      _
    $region11: #{_lambda_.41} parent=1 // pred_check_branch
      %16 = sbr.rel (0) target = $region13
    $region12: #{_lambda_.41} parent=1 // pred_region
      _
    $region13: #{_lambda_.41} parent=1 // pred_fallthru
      _
    // Predicated region
    $region14: #{_lambda_.41} parent=1 // pred_check
      _
    $region15: #{_lambda_.41} parent=1 // pred_check_branch
      %18 = sbr.rel (0) target = $region17
    $region16: #{_lambda_.41} parent=1 // pred_region
      _
    $region17: #{_lambda_.41} parent=1 // pred_fallthru
      _
    // Predicated region
    $region18: #{_lambda_.41} parent=1 // pred_check
      _
    $region19: #{_lambda_.41} parent=1 // pred_check_branch
      %20 = sbr.rel (0) target = $region21
    $region20: #{_lambda_.41} parent=1 // pred_region
      _
    $region21: #{_lambda_.41} parent=1 // pred_fallthru
      _
    %v21 = vld [vmem:[%s0] sm:$0xf]
    %v22 = vld [vmem:[%s0 + $0x4] sm:$0xf]
    %vm23 = vcmask 519168
    %v24 = vsel %vm23, %v21, 0.0
    %v25 = vrot.slane %v24, 4
    %v26 = vadd.f32 %v24, %v25
    %v27 = vrot.slane %v26, 2
    %v28 = vadd.f32 %v26, %v27
    %v29 = vrot.slane %v28, 1
    %v30 = vadd.f32 %v28, %v29
    %v31 = vsel %vm23, %v22, 0.0
    %v32 = vrot.slane %v31, 4
    %v33 = vadd.f32 %v31, %v32
    %v34 = vrot.slane %v33, 2
    %v35 = vadd.f32 %v33, %v34
    %v36 = vrot.slane %v35, 1
    %v37 = vadd.f32 %v35, %v36
    %v38 = vrcp.pop 4.0
    %v39 = vmul.f32 %v30, %v38
    %v40 = vmul.f32 %v37, %v38
    %v41 = vld [vmem:[%s1] sm:$0xff]
    %v42 = vld [vmem:[%s1 + $0x8] sm:$0xff]
    %v43 = vld [vmem:[%s1 + $0x10] sm:$0xff]
    %v44 = vld [vmem:[%s1 + $0x18] sm:$0xff]
    %v45 = vld [vmem:[%s1 + $0x20] sm:$0xff]
    %v46 = vld [vmem:[%s1 + $0x28] sm:$0xff]
    %v47 = vld [vmem:[%s1 + $0x30] sm:$0xff]
    %v48 = vld [vmem:[%s1 + $0x38] sm:$0xff]
    %v49 = vld [vmem:[%s2] sm:$0x1]
    %v51 = vlaneseq
    %v52 = vshrl.u32 %v51, 7
    %v53 = vsub.s32 0, %v52
    %v54 = vrot.slane %v49, %v53
    %vm58 = vcmask 1041409
    %v59 = vsel %vm58, %v40, %v39
    %vm60 = vcmask 523264
    %v61 = vsel %vm60, %v59, 0
    %63 = vmatprep.subr.mxu0 0.0
    %64 = vmatpush1.msra.mxu0 0.0
    %65 = vmatprep.subr.mxu0 0.0
    %66 = vmatpush1.msra.mxu0 0.0
    %67 = vmatprep.subr.mxu0 0.0
    %68 = vmatpush1.msra.mxu0 0.0
    %69 = vmatprep.subr.mxu0 0.0
    %70 = vmatpush1.msra.mxu0 0.0
    %71 = vmatprep.subr.mxu0 0.0
    %72 = vmatpush1.msra.mxu0 0.0
    %73 = vmatprep.subr.mxu0 0.0
    %74 = vmatpush1.msra.mxu0 0.0
    %75 = vmatprep.subr.mxu0 0.0
    %76 = vmatpush1.msra.mxu0 0.0
    %77 = vmatprep.subr.mxu0 0.0
    %78 = vmatpush1.msra.mxu0 0.0
    %79 = vmatprep.subr.mxu0 0.0
    %80 = vmatpush1.msra.mxu0 %v48
    %81 = vmatprep.subr.mxu0 0.0
    %82 = vmatpush1.msra.mxu0 %v47
    %83 = vmatprep.subr.mxu0 0.0
    %84 = vmatpush1.msra.mxu0 %v46
    %85 = vmatprep.subr.mxu0 0.0
    %86 = vmatpush1.msra.mxu0 %v45
    %87 = vmatprep.subr.mxu0 0.0
    %88 = vmatpush1.msra.mxu0 %v44
    %89 = vmatprep.subr.mxu0 0.0
    %90 = vmatpush1.msra.mxu0 %v43
    %91 = vmatprep.subr.mxu0 0.0
    %92 = vmatpush1.msra.mxu0 %v42
    %93 = vmatprep.subr.mxu0 0.0
    %94 = vmatpush1.msra.mxu0 %v41
    %95 = vmatprep.subr.mxu0 0.0
    %96 = vmatpush2.msra.mxu0 0.0
    %97 = vmatprep.subr.mxu0 0.0
    %98 = vmatpush2.msra.mxu0 0.0
    %99 = vmatprep.subr.mxu0 0.0
    %100 = vmatpush2.msra.mxu0 0.0
    %101 = vmatprep.subr.mxu0 0.0
    %102 = vmatpush2.msra.mxu0 0.0
    %103 = vmatprep.subr.mxu0 0.0
    %104 = vmatpush2.msra.mxu0 0.0
    %105 = vmatprep.subr.mxu0 0.0
    %106 = vmatpush2.msra.mxu0 0.0
    %107 = vmatprep.subr.mxu0 0.0
    %108 = vmatpush2.msra.mxu0 0.0
    %109 = vmatprep.subr.mxu0 0.0
    %110 = vmatpush2.msra.mxu0 0.0
    %111 = vmatprep.subr.mxu0 0.0
    %112 = vmatpush2.msra.mxu0 0.0
    %113 = vmatprep.subr.mxu0 0.0
    %114 = vmatpush2.msra.mxu0 0.0
    %115 = vmatprep.subr.mxu0 0.0
    %116 = vmatpush2.msra.mxu0 0.0
    %117 = vmatprep.subr.mxu0 0.0
    %118 = vmatpush2.msra.mxu0 0.0
    %119 = vmatprep.subr.mxu0 0.0
    %120 = vmatpush2.msra.mxu0 0.0
    %121 = vmatprep.subr.mxu0 0.0
    %122 = vmatpush2.msra.mxu0 0.0
    %123 = vmatprep.subr.mxu0 0.0
    %124 = vmatpush2.msra.mxu0 0.0
    %125 = vmatprep.subr.mxu0 0.0
    %126 = vmatpush2.msra.mxu0 0.0
    %127 = vmatprep.mubr.f32.mxu0 0.0
    %128 = vmatmul.mubr.f32.gmra.mxu0 %v61
    %v129 = vpop.f32.mrf.mxu0
    %v130 = vadd.f32 %v54, %v129
    %v131 = vpop.f32.mrf.mxu0
    %132 = vdwg.mxu0
    %v133 = vld [vmem:[%s3] sm:$0xff]
    %v134 = vld [vmem:[%s3 + $0x8] sm:$0xff]
    %v135 = vld [vmem:[%s3 + $0x10] sm:$0xff]
    %v136 = vld [vmem:[%s3 + $0x18] sm:$0xff]
    %v137 = vld [vmem:[%s3 + $0x20] sm:$0xff]
    %v138 = vld [vmem:[%s3 + $0x28] sm:$0xff]
    %v139 = vld [vmem:[%s3 + $0x30] sm:$0xff]
    %v140 = vld [vmem:[%s3 + $0x38] sm:$0xff]
    %v141 = vld [vmem:[%s3 + $0x40] sm:$0xff]
    %v142 = vld [vmem:[%s3 + $0x48] sm:$0xff]
    %v143 = vld [vmem:[%s3 + $0x50] sm:$0xff]
    %v144 = vld [vmem:[%s3 + $0x58] sm:$0xff]
    %v145 = vld [vmem:[%s3 + $0x60] sm:$0xff]
    %v146 = vld [vmem:[%s3 + $0x68] sm:$0xff]
    %v147 = vld [vmem:[%s3 + $0x70] sm:$0xff]
    %v148 = vld [vmem:[%s3 + $0x78] sm:$0xff]
    %v149 = vld [vmem:[%s4] sm:$0x1]
    %v151 = vlaneseq
    %v152 = vshrl.u32 %v151, 7
    %v153 = vsub.s32 0, %v152
    %v154 = vrot.slane %v149, %v153
    %156 = vmatprep.subr.mxu0 0.0
    %157 = vmatpush1.msra.mxu0 %v148
    %158 = vmatprep.subr.mxu0 0.0
    %159 = vmatpush1.msra.mxu0 %v147
    %160 = vmatprep.subr.mxu0 0.0
    %161 = vmatpush1.msra.mxu0 %v146
    %162 = vmatprep.subr.mxu0 0.0
    %163 = vmatpush1.msra.mxu0 %v145
    %164 = vmatprep.subr.mxu0 0.0
    %165 = vmatpush1.msra.mxu0 %v144
    %166 = vmatprep.subr.mxu0 0.0
    %167 = vmatpush1.msra.mxu0 %v143
    %168 = vmatprep.subr.mxu0 0.0
    %169 = vmatpush1.msra.mxu0 %v142
    %170 = vmatprep.subr.mxu0 0.0
    %171 = vmatpush1.msra.mxu0 %v141
    %172 = vmatprep.subr.mxu0 0.0
    %173 = vmatpush1.msra.mxu0 %v140
    %174 = vmatprep.subr.mxu0 0.0
    %175 = vmatpush1.msra.mxu0 %v139
    %176 = vmatprep.subr.mxu0 0.0
    %177 = vmatpush1.msra.mxu0 %v138
    %178 = vmatprep.subr.mxu0 0.0
    %179 = vmatpush1.msra.mxu0 %v137
    %180 = vmatprep.subr.mxu0 0.0
    %181 = vmatpush1.msra.mxu0 %v136
    %182 = vmatprep.subr.mxu0 0.0
    %183 = vmatpush1.msra.mxu0 %v135
    %184 = vmatprep.subr.mxu0 0.0
    %185 = vmatpush1.msra.mxu0 %v134
    %186 = vmatprep.subr.mxu0 0.0
    %187 = vmatpush1.msra.mxu0 %v133
    %188 = vmatprep.subr.mxu0 0.0
    %189 = vmatpush2.msra.mxu0 0.0
    %190 = vmatprep.subr.mxu0 0.0
    %191 = vmatpush2.msra.mxu0 0.0
    %192 = vmatprep.subr.mxu0 0.0
    %193 = vmatpush2.msra.mxu0 0.0
    %194 = vmatprep.subr.mxu0 0.0
    %195 = vmatpush2.msra.mxu0 0.0
    %196 = vmatprep.subr.mxu0 0.0
    %197 = vmatpush2.msra.mxu0 0.0
    %198 = vmatprep.subr.mxu0 0.0
    %199 = vmatpush2.msra.mxu0 0.0
    %200 = vmatprep.subr.mxu0 0.0
    %201 = vmatpush2.msra.mxu0 0.0
    %202 = vmatprep.subr.mxu0 0.0
    %203 = vmatpush2.msra.mxu0 0.0
    %204 = vmatprep.subr.mxu0 0.0
    %205 = vmatpush2.msra.mxu0 0.0
    %206 = vmatprep.subr.mxu0 0.0
    %207 = vmatpush2.msra.mxu0 0.0
    %208 = vmatprep.subr.mxu0 0.0
    %209 = vmatpush2.msra.mxu0 0.0
    %210 = vmatprep.subr.mxu0 0.0
    %211 = vmatpush2.msra.mxu0 0.0
    %212 = vmatprep.subr.mxu0 0.0
    %213 = vmatpush2.msra.mxu0 0.0
    %214 = vmatprep.subr.mxu0 0.0
    %215 = vmatpush2.msra.mxu0 0.0
    %216 = vmatprep.subr.mxu0 0.0
    %217 = vmatpush2.msra.mxu0 0.0
    %218 = vmatprep.subr.mxu0 0.0
    %219 = vmatpush2.msra.mxu0 0.0
    %220 = vmatprep.mubr.f32.mxu0 0.0
    %221 = vmatmul.mubr.f32.gmra.mxu0 %v130
    %v222 = vpop.f32.mrf.mxu0
    %v223 = vadd.f32 %v154, %v222
    %v224 = vpop.f32.mrf.mxu0
    %225 = vdwg.mxu0
    %226 = vst [vmem:[#allocation2] sm:$0x3] %v223
    // Predicated region
    $region22: #{_lambda_.41} parent=1 // pred_check
      _
    $region23: #{_lambda_.41} parent=1 // pred_check_branch
      %228 = sbr.rel (0) target = $region25
    $region24: #{_lambda_.41} parent=1 // pred_region
      %s230 = ssub.s32 32, 32
      %231 = vsyncadd [#allocation3], %s230
      %s233 = sshll.u32 [#allocation2], 4
      %s234 = int_to_ptr.vmem [resolvable:$true] %s233
      %236 = dma.vmem_to_hbm [thread:$0]  %s234, 32, %s5, [#allocation3]
    $region25: #{_lambda_.41} parent=1 // pred_fallthru
      _
    // Predicated region
    $region26: #{_lambda_.41} parent=1 // pred_check
      _
    $region27: #{_lambda_.41} parent=1 // pred_check_branch
      %238 = sbr.rel (0) target = $region29
    $region28: #{_lambda_.41} parent=1 // pred_region
      %239 = dma.done [#allocation3], 32
    $region29: #{_lambda_.41} parent=1 // pred_fallthru
      _
    %240 = vsyncpa [#allocation3], 1

</llo_original>
